<compile_context>
chip_gen: v6e
topology: v6e:2x2x1
jax: 0.10.0
libtpu: 0.0.40
codegen_flags: <defaults>
</compile_context>

<pallas_src>
import functools

import jax
import jax.numpy as jnp
from jax import lax
from jax.experimental import pallas as pl
from jax.experimental.pallas import tpu as pltpu


# ----------------------------------------------------------------------------
# Pallas matmul kernel with fused bias + optional ReLU
# ----------------------------------------------------------------------------
def _matmul_bias_act_kernel(x_ref, w_ref, b_ref, o_ref, acc_ref, *, apply_relu):
    k = pl.program_id(2)

    @pl.when(k == 0)
    def _():
        acc_ref[...] = jnp.zeros_like(acc_ref)

    acc_ref[...] += jnp.dot(
        x_ref[...], w_ref[...], preferred_element_type=jnp.float32
    )

    @pl.when(k == pl.num_programs(2) - 1)
    def _():
        out = acc_ref[...] + b_ref[...]
        if apply_relu:
            out = jnp.maximum(out, 0.0)
        o_ref[...] = out.astype(o_ref.dtype)


def _round_up(x, m):
    return ((x + m - 1) // m) * m


def _select_k_tiling(K):
    """K padded to a multiple of 128; tk = Kp if small, else a 128-mult divisor."""
    Kp = _round_up(K, 128)
    if Kp <= 512:
        return Kp, Kp
    for tk in (512, 384, 256, 128):
        if Kp % tk == 0:
            return Kp, tk
    return Kp, 128


def _select_n_tiling(N):
    """Widest 128-multiple tile dividing round_up(N,128); avoids padding waste."""
    Np = _round_up(N, 128)
    if Np <= 512:
        return Np, Np
    for tn in (512, 384, 256, 128):
        if Np % tn == 0:
            return Np, tn
    return Np, 128


def _select_m_tiling(M):
    """Bounded M tile: multiple of 16 (bf16 sublane), single tile up to 512 rows."""
    Mp = _round_up(M, 16)
    if Mp <= 512:
        return Mp, Mp
    tm = 512 if (_round_up(M, 512) - M) <= 128 else 256
    return _round_up(M, tm), tm


def matmul_bias_act(x, packed, *, relu, out_dtype=jnp.float32):
    """y = x @ W + b (optionally ReLU) with a Pallas TPU kernel.

    x: (M, K) float.  `packed` holds the pre-padded bf16 weight (Kp, Np), the
    padded f32 bias (1, Np), the tile sizes and the logical (K, N).
    Returns (M, N) in `out_dtype` (f32 accumulation inside the kernel).
    """
    M, K = x.shape
    assert K == packed["K"], (K, packed["K"])
    w = packed["w"]
    b = packed["b"]
    Kp, Np = w.shape
    tk, tn = packed["tk"], packed["tn"]
    N = packed["N"]

    Mp, tm = _select_m_tiling(M)

    xp = x.astype(jnp.bfloat16)
    if (Mp, Kp) != (M, K):
        xp = jnp.pad(xp, ((0, Mp - M), (0, Kp - K)))

    grid = (Mp // tm, Np // tn, Kp // tk)

    out_bytes = jnp.dtype(out_dtype).itemsize
    flops = 2 * Mp * Np * Kp
    bytes_accessed = (
        Mp * Kp * 2 * (Np // tn)  # bf16 x tile re-streamed per j
        + Kp * Np * 2             # bf16 weights
        + Mp * Np * out_bytes     # output
        + Np * 4                  # f32 bias
    )

    out = pl.pallas_call(
        functools.partial(_matmul_bias_act_kernel, apply_relu=relu),
        out_shape=jax.ShapeDtypeStruct((Mp, Np), out_dtype),
        grid_spec=pltpu.PrefetchScalarGridSpec(
            num_scalar_prefetch=0,
            grid=grid,
            in_specs=[
                pl.BlockSpec((tm, tk), lambda i, j, k: (i, k)),
                pl.BlockSpec((tk, tn), lambda i, j, k: (k, j)),
                pl.BlockSpec((1, tn), lambda i, j, k: (0, j)),
            ],
            out_specs=pl.BlockSpec((tm, tn), lambda i, j, k: (i, j)),
            scratch_shapes=[pltpu.VMEM((tm, tn), jnp.float32)],
        ),
        compiler_params=pltpu.CompilerParams(
            dimension_semantics=("parallel", "parallel", "arbitrary"),
            vmem_limit_bytes=32 * 1024 * 1024,
        ),
        cost_estimate=pl.CostEstimate(
            flops=flops, transcendentals=0, bytes_accessed=bytes_accessed
        ),
    )(xp, w, b)
    return out[:M, :N]


# ----------------------------------------------------------------------------
# Glue: im2col, maxpool, adaptive avgpool (cheap, plain JAX)
# ----------------------------------------------------------------------------
def im2col(x_nhwc, kh, kw, stride, pad):
    x = jnp.pad(x_nhwc, ((0, 0), (pad, pad), (pad, pad), (0, 0)))
    n, h, w, c = x.shape
    ho = (h - kh) // stride + 1
    wo = (w - kw) // stride + 1
    cols = []
    for ki in range(kh):
        for kj in range(kw):
            sl = lax.slice(
                x,
                (0, ki, kj, 0),
                (n, ki + stride * (ho - 1) + 1, kj + stride * (wo - 1) + 1, c),
                (1, stride, stride, 1),
            )
            cols.append(sl)  # (n, ho, wo, c)
    patches = jnp.stack(cols, axis=3)                  # (n, ho, wo, kh*kw, c)
    patches = jnp.transpose(patches, (0, 1, 2, 4, 3))  # (n, ho, wo, c, kh*kw)
    return patches.reshape(n * ho * wo, c * kh * kw), (n, ho, wo)


def conv2d_relu(x_nhwc, layer):
    """Conv with pre-packed weights; K ordering (cin, kh, kw) matches im2col."""
    patches, (n, ho, wo) = im2col(
        x_nhwc, layer["kh"], layer["kw"], layer["stride"], layer["pad"]
    )
    y = matmul_bias_act(patches, layer, relu=True, out_dtype=jnp.bfloat16)
    return y.reshape(n, ho, wo, layer["N"])


def maxpool_3x3_s2(x_nhwc):
    neg_inf = jnp.asarray(-jnp.inf, dtype=x_nhwc.dtype)
    return lax.reduce_window(
        x_nhwc,
        neg_inf,
        lax.max,
        window_dimensions=(1, 3, 3, 1),
        window_strides=(1, 2, 2, 1),
        padding="VALID",
    )


def adaptive_avg_pool(x_nhwc, out_h=6, out_w=6):
    n, h, w, c = x_nhwc.shape
    if h == out_h and w == out_w:
        return x_nhwc
    if h % out_h == 0 and w % out_w == 0:
        x = x_nhwc.astype(jnp.float32).reshape(
            n, out_h, h // out_h, out_w, w // out_w, c
        )
        return x.mean(axis=(2, 4)).astype(x_nhwc.dtype)
    if out_h % h == 0 and out_w % w == 0:
        # Each input cell replicates (PyTorch adaptive pool, output multiple of input).
        x = jnp.repeat(x_nhwc, out_h // h, axis=1)
        return jnp.repeat(x, out_w // w, axis=2)
    # General (rarely hit) fallback.
    rows = []
    for i in range(out_h):
        hs, he = (i * h) // out_h, -(-((i + 1) * h) // out_h)
        cols = []
        for j in range(out_w):
            ws, we = (j * w) // out_w, -(-((j + 1) * w) // out_w)
            cols.append(
                jnp.mean(
                    x_nhwc[:, hs:he, ws:we, :].astype(jnp.float32), axis=(1, 2)
                ).astype(x_nhwc.dtype)
            )
        rows.append(jnp.stack(cols, axis=1))
    return jnp.stack(rows, axis=1)


# ----------------------------------------------------------------------------
# Parameter init (deterministic, synthetic) + one-time weight packing
# ----------------------------------------------------------------------------
def init_params(key, num_classes=2):
    conv_cfg = [  # (cout, cin, kh, kw, stride, pad)
        (64, 3, 11, 11, 4, 2),
        (192, 64, 5, 5, 1, 2),
        (384, 192, 3, 3, 1, 1),
        (256, 384, 3, 3, 1, 1),
        (256, 256, 3, 3, 1, 1),
    ]
    fc_cfg = [(4096, 256 * 6 * 6), (4096, 4096), (num_classes, 4096)]

    params = {"conv": [], "fc": []}
    keys = jax.random.split(key, len(conv_cfg) + len(fc_cfg))
    for idx, (co, ci, kh, kw, s, p) in enumerate(conv_cfg):
        fan_in = ci * kh * kw
        w = jax.random.normal(keys[idx], (co, ci, kh, kw), jnp.float32) / jnp.sqrt(fan_in)
        b = jnp.zeros((co,), jnp.float32)
        params["conv"].append({"w": w, "b": b, "stride": s, "pad": p})
    for idx, (out_f, in_f) in enumerate(fc_cfg):
        k = keys[len(conv_cfg) + idx]
        w = jax.random.normal(k, (out_f, in_f), jnp.float32) / jnp.sqrt(in_f)
        b = jnp.zeros((out_f,), jnp.float32)
        params["fc"].append({"w": w, "b": b})
    return params


def prepare_params(params):
    """Hoist weight reshape/transpose/pad/bf16-cast out of the forward pass."""
    prepped = {"conv": [], "fc": []}
    for layer in params["conv"]:
        w = layer["w"]  # (cout, cin, kh, kw)  -- PyTorch layout
        cout, cin, kh, kw = w.shape
        K, N = cin * kh * kw, cout
        Kp, tk = _select_k_tiling(K)
        Np, tn = _select_n_tiling(N)
        w_mat = w.reshape(cout, K).T  # (K, N), K ordered (cin, kh, kw)
        w_mat = jnp.pad(w_mat, ((0, Kp - K), (0, Np - N))).astype(jnp.bfloat16)
        b = jnp.pad(layer["b"], (0, Np - N)).astype(jnp.float32).reshape(1, Np)
        prepped["conv"].append(
            {"w": w_mat, "b": b, "tk": tk, "tn": tn, "K": K, "N": N,
             "kh": kh, "kw": kw, "stride": layer["stride"], "pad": layer["pad"]}
        )
    for layer in params["fc"]:
        w = layer["w"]  # (out_f, in_f)
        out_f, in_f = w.shape
        K, N = in_f, out_f
        Kp, tk = _select_k_tiling(K)
        Np, tn = _select_n_tiling(N)
        w_mat = jnp.pad(w.T, ((0, Kp - K), (0, Np - N))).astype(jnp.bfloat16)
        b = jnp.pad(layer["b"], (0, Np - N)).astype(jnp.float32).reshape(1, Np)
        prepped["fc"].append(
            {"w": w_mat, "b": b, "tk": tk, "tn": tn, "K": K, "N": N}
        )
    return prepped


# ----------------------------------------------------------------------------
# Forward pass (matches AlexNet.forward semantics, eval mode)
# ----------------------------------------------------------------------------
def alexnet_forward(prepped, x_nchw):
    x = jnp.transpose(x_nchw, (0, 2, 3, 1)).astype(jnp.bfloat16)  # NCHW -> NHWC, bf16

    c = prepped["conv"]
    x = conv2d_relu(x, c[0])
    x = maxpool_3x3_s2(x)
    x = conv2d_relu(x, c[1])
    x = maxpool_3x3_s2(x)
    x = conv2d_relu(x, c[2])
    x = conv2d_relu(x, c[3])
    x = conv2d_relu(x, c[4])
    x = maxpool_3x3_s2(x)

    x = adaptive_avg_pool(x, 6, 6)             # (N, 6, 6, 256)
    x = jnp.transpose(x, (0, 3, 1, 2))         # NCHW for torch.flatten order
    x = x.reshape(x.shape[0], -1)              # (N, 256*6*6)

    # TODO(synk): nn.Dropout treated as eval-mode identity (no stochastic drop).
    f = prepped["fc"]
    x = matmul_bias_act(x, f[0], relu=True, out_dtype=jnp.bfloat16)
    x = matmul_bias_act(x, f[1], relu=True, out_dtype=jnp.bfloat16)
    x = matmul_bias_act(x, f[2], relu=False, out_dtype=jnp.float32)
    return x


# ----------------------------------------------------------------------------
if __name__ == "__main__":
    key = jax.random.PRNGKey(0)
    pkey, xkey = jax.random.split(key)

    params = init_params(pkey, num_classes=2)
    prepped = prepare_params(params)

    # Smallest spatial size that survives AlexNet's conv/pool stack: 64x64.
    x = jax.random.normal(xkey, (2, 3, 64, 64), jnp.float32)

    fwd = jax.jit(functools.partial(alexnet_forward, prepped))
    out = fwd(x)
    jax.block_until_ready(out)

    assert out.shape == (2, 2), out.shape
    assert out.dtype == jnp.float32
    print("KERNEL_OK")
</pallas_src>

<mosaic_0001>
module attributes {stable_mosaic.version = 11 : i64} {
  func.func @_matmul_bias_act_kernel(%arg0: i32, %arg1: i32, %arg2: i32, %arg3: memref<464x384xbf16, #tpu.memory_space<vmem>>, %arg4: memref<384x128xbf16, #tpu.memory_space<vmem>>, %arg5: memref<1x128xf32, #tpu.memory_space<vmem>>, %arg6: memref<464x128xbf16, #tpu.memory_space<vmem>>, %arg7: memref<464x128xf32, #tpu.memory_space<vmem>>) attributes {dimension_semantics = [#tpu.dimension_semantics<parallel>, #tpu.dimension_semantics<parallel>, #tpu.dimension_semantics<arbitrary>], iteration_bounds = array<i64: 1, 1, 1>, scalar_prefetch = 0 : i64, scratch_operands = 1 : i64, tpu.core_type = #tpu.core_type<tc>, window_params = [{transform_indices = @transform_0, window_bounds = array<i64: 464, 384>}, {transform_indices = @transform_1, window_bounds = array<i64: 384, 128>}, {transform_indices = @transform_2, window_bounds = array<i64: 1, 128>}, {transform_indices = @transform_3, window_bounds = array<i64: 464, 128>}]} {
    %c0_i32 = arith.constant 0 : i32
    %0 = arith.cmpi eq, %arg2, %c0_i32 : i32
    %1 = arith.extui %0 : i1 to i32
    %c0_i32_0 = arith.constant 0 : i32
    %2 = arith.cmpi ne, %1, %c0_i32_0 : i32
    scf.if %2 {
      %cst_10 = arith.constant 0.000000e+00 : f32
      %12 = vector.broadcast %cst_10 : f32 to vector<464x128xf32>
      %c0_11 = arith.constant 0 : index
      %c0_12 = arith.constant 0 : index
      %13 = vector.load %arg7[%c0_11, %c0_12] : memref<464x128xf32, #tpu.memory_space<vmem>>, vector<464x128xf32>
      tpu.vector_store %arg7[%c0_11, %c0_12], %12 {strides = array<i32>} : memref<464x128xf32, #tpu.memory_space<vmem>>, vector<464x128xf32>,
    } else {
    }
    %c0 = arith.constant 0 : index
    %c0_1 = arith.constant 0 : index
    %3 = vector.load %arg7[%c0, %c0_1] : memref<464x128xf32, #tpu.memory_space<vmem>>, vector<464x128xf32>
    %c0_2 = arith.constant 0 : index
    %c0_3 = arith.constant 0 : index
    %4 = vector.load %arg3[%c0_2, %c0_3] : memref<464x384xbf16, #tpu.memory_space<vmem>>, vector<464x384xbf16>
    %c0_4 = arith.constant 0 : index
    %c0_5 = arith.constant 0 : index
    %5 = vector.load %arg4[%c0_4, %c0_5] : memref<384x128xbf16, #tpu.memory_space<vmem>>, vector<384x128xbf16>
    %cst = arith.constant dense<0.000000e+00> : vector<464x128xf32>
    %6 = tpu.matmul %4, %5, %cst {dimension_numbers = #tpu.dot_dimension_numbers<[1], [0], [0], [1], [0, 0, 1, 1], [], []>} : vector<464x384xbf16>, vector<384x128xbf16>, vector<464x128xf32> -> vector<464x128xf32>
    %7 = arith.addf %3, %6 : vector<464x128xf32>
    %c0_6 = arith.constant 0 : index
    %c0_7 = arith.constant 0 : index
    %8 = vector.load %arg7[%c0_6, %c0_7] : memref<464x128xf32, #tpu.memory_space<vmem>>, vector<464x128xf32>
    tpu.vector_store %arg7[%c0_6, %c0_7], %7 {strides = array<i32>} : memref<464x128xf32, #tpu.memory_space<vmem>>, vector<464x128xf32>,
    %c0_i32_8 = arith.constant 0 : i32
    %9 = arith.cmpi eq, %arg2, %c0_i32_8 : i32
    %10 = arith.extui %9 : i1 to i32
    %c0_i32_9 = arith.constant 0 : i32
    %11 = arith.cmpi ne, %10, %c0_i32_9 : i32
    scf.if %11 {
      %c0_10 = arith.constant 0 : index
      %c0_11 = arith.constant 0 : index
      %12 = vector.load %arg7[%c0_10, %c0_11] : memref<464x128xf32, #tpu.memory_space<vmem>>, vector<464x128xf32>
      %c0_12 = arith.constant 0 : index
      %c0_13 = arith.constant 0 : index
      %13 = vector.load %arg5[%c0_12, %c0_13] : memref<1x128xf32, #tpu.memory_space<vmem>>, vector<1x128xf32>
      %14 = vector.broadcast %13 : vector<1x128xf32> to vector<464x128xf32>
      %15 = arith.addf %12, %14 : vector<464x128xf32>
      %cst_14 = arith.constant 0.000000e+00 : f32
      %16 = vector.broadcast %cst_14 : f32 to vector<464x128xf32>
      %17 = arith.maximumf %15, %16 : vector<464x128xf32>
      %18 = arith.truncf %17 : vector<464x128xf32> to vector<464x128xbf16>
      %c0_15 = arith.constant 0 : index
      %c0_16 = arith.constant 0 : index
      %19 = vector.load %arg6[%c0_15, %c0_16] : memref<464x128xbf16, #tpu.memory_space<vmem>>, vector<464x128xbf16>
      tpu.vector_store %arg6[%c0_15, %c0_16], %18 {strides = array<i32>} : memref<464x128xbf16, #tpu.memory_space<vmem>>, vector<464x128xbf16>,
    } else {
    }
    return
  }
  func.func @transform_0(%arg0: i32, %arg1: i32, %arg2: i32) -> (i32, i32) {
    %c0_i32 = arith.constant 0 : i32
    return %arg0, %arg2 : i32, i32
  }
  func.func @transform_1(%arg0: i32, %arg1: i32, %arg2: i32) -> (i32, i32) {
    %c0_i32 = arith.constant 0 : i32
    return %arg2, %arg1 : i32, i32
  }
  func.func @transform_2(%arg0: i32, %arg1: i32, %arg2: i32) -> (i32, i32) {
    %c0_i32 = arith.constant 0 : i32
    %c0_i32_0 = arith.constant 0 : i32
    return %c0_i32, %arg1 : i32, i32
  }
  func.func @transform_3(%arg0: i32, %arg1: i32, %arg2: i32) -> (i32, i32) {
    %c0_i32 = arith.constant 0 : i32
    return %arg0, %arg1 : i32, i32
  }
}

module attributes {stable_mosaic.version = 11 : i64} {
  func.func @_matmul_bias_act_kernel(%arg0: i32, %arg1: i32, %arg2: i32, %arg3: memref<112x128xbf16, #tpu.memory_space<vmem>>, %arg4: memref<128x256xbf16, #tpu.memory_space<vmem>>, %arg5: memref<1x256xf32, #tpu.memory_space<vmem>>, %arg6: memref<112x256xbf16, #tpu.memory_space<vmem>>, %arg7: memref<112x256xf32, #tpu.memory_space<vmem>>) attributes {dimension_semantics = [#tpu.dimension_semantics<parallel>, #tpu.dimension_semantics<parallel>, #tpu.dimension_semantics<arbitrary>], iteration_bounds = array<i64: 1, 1, 13>, scalar_prefetch = 0 : i64, scratch_operands = 1 : i64, tpu.core_type = #tpu.core_type<tc>, window_params = [{transform_indices = @transform_0, window_bounds = array<i64: 112, 128>}, {transform_indices = @transform_1, window_bounds = array<i64: 128, 256>}, {transform_indices = @transform_2, window_bounds = array<i64: 1, 256>}, {transform_indices = @transform_3, window_bounds = array<i64: 112, 256>}]} {
    %c0_i32 = arith.constant 0 : i32
    %0 = arith.cmpi eq, %arg2, %c0_i32 : i32
    %1 = arith.extui %0 : i1 to i32
    %c0_i32_0 = arith.constant 0 : i32
    %2 = arith.cmpi ne, %1, %c0_i32_0 : i32
    scf.if %2 {
      %cst_9 = arith.constant 0.000000e+00 : f32
      %12 = vector.broadcast %cst_9 : f32 to vector<112x256xf32>
      %c0_10 = arith.constant 0 : index
      %c0_11 = arith.constant 0 : index
      %13 = vector.load %arg7[%c0_10, %c0_11] : memref<112x256xf32, #tpu.memory_space<vmem>>, vector<112x256xf32>
      tpu.vector_store %arg7[%c0_10, %c0_11], %12 {strides = array<i32>} : memref<112x256xf32, #tpu.memory_space<vmem>>, vector<112x256xf32>,
    } else {
    }
    %c0 = arith.constant 0 : index
    %c0_1 = arith.constant 0 : index
    %3 = vector.load %arg7[%c0, %c0_1] : memref<112x256xf32, #tpu.memory_space<vmem>>, vector<112x256xf32>
    %c0_2 = arith.constant 0 : index
    %c0_3 = arith.constant 0 : index
    %4 = vector.load %arg3[%c0_2, %c0_3] : memref<112x128xbf16, #tpu.memory_space<vmem>>, vector<112x128xbf16>
    %c0_4 = arith.constant 0 : index
    %c0_5 = arith.constant 0 : index
    %5 = vector.load %arg4[%c0_4, %c0_5] : memref<128x256xbf16, #tpu.memory_space<vmem>>, vector<128x256xbf16>
    %cst = arith.constant dense<0.000000e+00> : vector<112x256xf32>
    %6 = tpu.matmul %4, %5, %cst {dimension_numbers = #tpu.dot_dimension_numbers<[1], [0], [0], [1], [0, 0, 1, 1], [], []>} : vector<112x128xbf16>, vector<128x256xbf16>, vector<112x256xf32> -> vector<112x256xf32>
    %7 = arith.addf %3, %6 : vector<112x256xf32>
    %c0_6 = arith.constant 0 : index
    %c0_7 = arith.constant 0 : index
    %8 = vector.load %arg7[%c0_6, %c0_7] : memref<112x256xf32, #tpu.memory_space<vmem>>, vector<112x256xf32>
    tpu.vector_store %arg7[%c0_6, %c0_7], %7 {strides = array<i32>} : memref<112x256xf32, #tpu.memory_space<vmem>>, vector<112x256xf32>,
    %c12_i32 = arith.constant 12 : i32
    %9 = arith.cmpi eq, %arg2, %c12_i32 : i32
    %10 = arith.extui %9 : i1 to i32
    %c0_i32_8 = arith.constant 0 : i32
    %11 = arith.cmpi ne, %10, %c0_i32_8 : i32
    scf.if %11 {
      %c0_9 = arith.constant 0 : index
      %c0_10 = arith.constant 0 : index
      %12 = vector.load %arg7[%c0_9, %c0_10] : memref<112x256xf32, #tpu.memory_space<vmem>>, vector<112x256xf32>
      %c0_11 = arith.constant 0 : index
      %c0_12 = arith.constant 0 : index
      %13 = vector.load %arg5[%c0_11, %c0_12] : memref<1x256xf32, #tpu.memory_space<vmem>>, vector<1x256xf32>
      %14 = vector.broadcast %13 : vector<1x256xf32> to vector<112x256xf32>
      %15 = arith.addf %12, %14 : vector<112x256xf32>
      %cst_13 = arith.constant 0.000000e+00 : f32
      %16 = vector.broadcast %cst_13 : f32 to vector<112x256xf32>
      %17 = arith.maximumf %15, %16 : vector<112x256xf32>
      %18 = arith.truncf %17 : vector<112x256xf32> to vector<112x256xbf16>
      %c0_14 = arith.constant 0 : index
      %c0_15 = arith.constant 0 : index
      %19 = vector.load %arg6[%c0_14, %c0_15] : memref<112x256xbf16, #tpu.memory_space<vmem>>, vector<112x256xbf16>
      tpu.vector_store %arg6[%c0_14, %c0_15], %18 {strides = array<i32>} : memref<112x256xbf16, #tpu.memory_space<vmem>>, vector<112x256xbf16>,
    } else {
    }
    return
  }
  func.func @transform_0(%arg0: i32, %arg1: i32, %arg2: i32) -> (i32, i32) {
    %c0_i32 = arith.constant 0 : i32
    return %arg0, %arg2 : i32, i32
  }
  func.func @transform_1(%arg0: i32, %arg1: i32, %arg2: i32) -> (i32, i32) {
    %c0_i32 = arith.constant 0 : i32
    return %arg2, %arg1 : i32, i32
  }
  func.func @transform_2(%arg0: i32, %arg1: i32, %arg2: i32) -> (i32, i32) {
    %c0_i32 = arith.constant 0 : i32
    %c0_i32_0 = arith.constant 0 : i32
    return %c0_i32, %arg1 : i32, i32
  }
  func.func @transform_3(%arg0: i32, %arg1: i32, %arg2: i32) -> (i32, i32) {
    %c0_i32 = arith.constant 0 : i32
    return %arg0, %arg1 : i32, i32
  }
}

module attributes {stable_mosaic.version = 11 : i64} {
  func.func @_matmul_bias_act_kernel(%arg0: i32, %arg1: i32, %arg2: i32, %arg3: memref<32x256xbf16, #tpu.memory_space<vmem>>, %arg4: memref<256x384xbf16, #tpu.memory_space<vmem>>, %arg5: memref<1x384xf32, #tpu.memory_space<vmem>>, %arg6: memref<32x384xbf16, #tpu.memory_space<vmem>>, %arg7: memref<32x384xf32, #tpu.memory_space<vmem>>) attributes {dimension_semantics = [#tpu.dimension_semantics<parallel>, #tpu.dimension_semantics<parallel>, #tpu.dimension_semantics<arbitrary>], iteration_bounds = array<i64: 1, 1, 7>, scalar_prefetch = 0 : i64, scratch_operands = 1 : i64, tpu.core_type = #tpu.core_type<tc>, window_params = [{transform_indices = @transform_0, window_bounds = array<i64: 32, 256>}, {transform_indices = @transform_1, window_bounds = array<i64: 256, 384>}, {transform_indices = @transform_2, window_bounds = array<i64: 1, 384>}, {transform_indices = @transform_3, window_bounds = array<i64: 32, 384>}]} {
    %c0_i32 = arith.constant 0 : i32
    %0 = arith.cmpi eq, %arg2, %c0_i32 : i32
    %1 = arith.extui %0 : i1 to i32
    %c0_i32_0 = arith.constant 0 : i32
    %2 = arith.cmpi ne, %1, %c0_i32_0 : i32
    scf.if %2 {
      %cst_9 = arith.constant 0.000000e+00 : f32
      %12 = vector.broadcast %cst_9 : f32 to vector<32x384xf32>
      %c0_10 = arith.constant 0 : index
      %c0_11 = arith.constant 0 : index
      %13 = vector.load %arg7[%c0_10, %c0_11] : memref<32x384xf32, #tpu.memory_space<vmem>>, vector<32x384xf32>
      tpu.vector_store %arg7[%c0_10, %c0_11], %12 {strides = array<i32>} : memref<32x384xf32, #tpu.memory_space<vmem>>, vector<32x384xf32>,
    } else {
    }
    %c0 = arith.constant 0 : index
    %c0_1 = arith.constant 0 : index
    %3 = vector.load %arg7[%c0, %c0_1] : memref<32x384xf32, #tpu.memory_space<vmem>>, vector<32x384xf32>
    %c0_2 = arith.constant 0 : index
    %c0_3 = arith.constant 0 : index
    %4 = vector.load %arg3[%c0_2, %c0_3] : memref<32x256xbf16, #tpu.memory_space<vmem>>, vector<32x256xbf16>
    %c0_4 = arith.constant 0 : index
    %c0_5 = arith.constant 0 : index
    %5 = vector.load %arg4[%c0_4, %c0_5] : memref<256x384xbf16, #tpu.memory_space<vmem>>, vector<256x384xbf16>
    %cst = arith.constant dense<0.000000e+00> : vector<32x384xf32>
    %6 = tpu.matmul %4, %5, %cst {dimension_numbers = #tpu.dot_dimension_numbers<[1], [0], [0], [1], [0, 0, 1, 1], [], []>} : vector<32x256xbf16>, vector<256x384xbf16>, vector<32x384xf32> -> vector<32x384xf32>
    %7 = arith.addf %3, %6 : vector<32x384xf32>
    %c0_6 = arith.constant 0 : index
    %c0_7 = arith.constant 0 : index
    %8 = vector.load %arg7[%c0_6, %c0_7] : memref<32x384xf32, #tpu.memory_space<vmem>>, vector<32x384xf32>
    tpu.vector_store %arg7[%c0_6, %c0_7], %7 {strides = array<i32>} : memref<32x384xf32, #tpu.memory_space<vmem>>, vector<32x384xf32>,
    %c6_i32 = arith.constant 6 : i32
    %9 = arith.cmpi eq, %arg2, %c6_i32 : i32
    %10 = arith.extui %9 : i1 to i32
    %c0_i32_8 = arith.constant 0 : i32
    %11 = arith.cmpi ne, %10, %c0_i32_8 : i32
    scf.if %11 {
      %c0_9 = arith.constant 0 : index
      %c0_10 = arith.constant 0 : index
      %12 = vector.load %arg7[%c0_9, %c0_10] : memref<32x384xf32, #tpu.memory_space<vmem>>, vector<32x384xf32>
      %c0_11 = arith.constant 0 : index
      %c0_12 = arith.constant 0 : index
      %13 = vector.load %arg5[%c0_11, %c0_12] : memref<1x384xf32, #tpu.memory_space<vmem>>, vector<1x384xf32>
      %14 = vector.broadcast %13 : vector<1x384xf32> to vector<32x384xf32>
      %15 = arith.addf %12, %14 : vector<32x384xf32>
      %cst_13 = arith.constant 0.000000e+00 : f32
      %16 = vector.broadcast %cst_13 : f32 to vector<32x384xf32>
      %17 = arith.maximumf %15, %16 : vector<32x384xf32>
      %18 = arith.truncf %17 : vector<32x384xf32> to vector<32x384xbf16>
      %c0_14 = arith.constant 0 : index
      %c0_15 = arith.constant 0 : index
      %19 = vector.load %arg6[%c0_14, %c0_15] : memref<32x384xbf16, #tpu.memory_space<vmem>>, vector<32x384xbf16>
      tpu.vector_store %arg6[%c0_14, %c0_15], %18 {strides = array<i32>} : memref<32x384xbf16, #tpu.memory_space<vmem>>, vector<32x384xbf16>,
    } else {
    }
    return
  }
  func.func @transform_0(%arg0: i32, %arg1: i32, %arg2: i32) -> (i32, i32) {
    %c0_i32 = arith.constant 0 : i32
    return %arg0, %arg2 : i32, i32
  }
  func.func @transform_1(%arg0: i32, %arg1: i32, %arg2: i32) -> (i32, i32) {
    %c0_i32 = arith.constant 0 : i32
    return %arg2, %arg1 : i32, i32
  }
  func.func @transform_2(%arg0: i32, %arg1: i32, %arg2: i32) -> (i32, i32) {
    %c0_i32 = arith.constant 0 : i32
    %c0_i32_0 = arith.constant 0 : i32
    return %c0_i32, %arg1 : i32, i32
  }
  func.func @transform_3(%arg0: i32, %arg1: i32, %arg2: i32) -> (i32, i32) {
    %c0_i32 = arith.constant 0 : i32
    return %arg0, %arg1 : i32, i32
  }
}

module attributes {stable_mosaic.version = 11 : i64} {
  func.func @_matmul_bias_act_kernel(%arg0: i32, %arg1: i32, %arg2: i32, %arg3: memref<32x384xbf16, #tpu.memory_space<vmem>>, %arg4: memref<384x256xbf16, #tpu.memory_space<vmem>>, %arg5: memref<1x256xf32, #tpu.memory_space<vmem>>, %arg6: memref<32x256xbf16, #tpu.memory_space<vmem>>, %arg7: memref<32x256xf32, #tpu.memory_space<vmem>>) attributes {dimension_semantics = [#tpu.dimension_semantics<parallel>, #tpu.dimension_semantics<parallel>, #tpu.dimension_semantics<arbitrary>], iteration_bounds = array<i64: 1, 1, 9>, scalar_prefetch = 0 : i64, scratch_operands = 1 : i64, tpu.core_type = #tpu.core_type<tc>, window_params = [{transform_indices = @transform_0, window_bounds = array<i64: 32, 384>}, {transform_indices = @transform_1, window_bounds = array<i64: 384, 256>}, {transform_indices = @transform_2, window_bounds = array<i64: 1, 256>}, {transform_indices = @transform_3, window_bounds = array<i64: 32, 256>}]} {
    %c0_i32 = arith.constant 0 : i32
    %0 = arith.cmpi eq, %arg2, %c0_i32 : i32
    %1 = arith.extui %0 : i1 to i32
    %c0_i32_0 = arith.constant 0 : i32
    %2 = arith.cmpi ne, %1, %c0_i32_0 : i32
    scf.if %2 {
      %cst_9 = arith.constant 0.000000e+00 : f32
      %12 = vector.broadcast %cst_9 : f32 to vector<32x256xf32>
      %c0_10 = arith.constant 0 : index
      %c0_11 = arith.constant 0 : index
      %13 = vector.load %arg7[%c0_10, %c0_11] : memref<32x256xf32, #tpu.memory_space<vmem>>, vector<32x256xf32>
      tpu.vector_store %arg7[%c0_10, %c0_11], %12 {strides = array<i32>} : memref<32x256xf32, #tpu.memory_space<vmem>>, vector<32x256xf32>,
    } else {
    }
    %c0 = arith.constant 0 : index
    %c0_1 = arith.constant 0 : index
    %3 = vector.load %arg7[%c0, %c0_1] : memref<32x256xf32, #tpu.memory_space<vmem>>, vector<32x256xf32>
    %c0_2 = arith.constant 0 : index
    %c0_3 = arith.constant 0 : index
    %4 = vector.load %arg3[%c0_2, %c0_3] : memref<32x384xbf16, #tpu.memory_space<vmem>>, vector<32x384xbf16>
    %c0_4 = arith.constant 0 : index
    %c0_5 = arith.constant 0 : index
    %5 = vector.load %arg4[%c0_4, %c0_5] : memref<384x256xbf16, #tpu.memory_space<vmem>>, vector<384x256xbf16>
    %cst = arith.constant dense<0.000000e+00> : vector<32x256xf32>
    %6 = tpu.matmul %4, %5, %cst {dimension_numbers = #tpu.dot_dimension_numbers<[1], [0], [0], [1], [0, 0, 1, 1], [], []>} : vector<32x384xbf16>, vector<384x256xbf16>, vector<32x256xf32> -> vector<32x256xf32>
    %7 = arith.addf %3, %6 : vector<32x256xf32>
    %c0_6 = arith.constant 0 : index
    %c0_7 = arith.constant 0 : index
    %8 = vector.load %arg7[%c0_6, %c0_7] : memref<32x256xf32, #tpu.memory_space<vmem>>, vector<32x256xf32>
    tpu.vector_store %arg7[%c0_6, %c0_7], %7 {strides = array<i32>} : memref<32x256xf32, #tpu.memory_space<vmem>>, vector<32x256xf32>,
    %c8_i32 = arith.constant 8 : i32
    %9 = arith.cmpi eq, %arg2, %c8_i32 : i32
    %10 = arith.extui %9 : i1 to i32
    %c0_i32_8 = arith.constant 0 : i32
    %11 = arith.cmpi ne, %10, %c0_i32_8 : i32
    scf.if %11 {
      %c0_9 = arith.constant 0 : index
      %c0_10 = arith.constant 0 : index
      %12 = vector.load %arg7[%c0_9, %c0_10] : memref<32x256xf32, #tpu.memory_space<vmem>>, vector<32x256xf32>
      %c0_11 = arith.constant 0 : index
      %c0_12 = arith.constant 0 : index
      %13 = vector.load %arg5[%c0_11, %c0_12] : memref<1x256xf32, #tpu.memory_space<vmem>>, vector<1x256xf32>
      %14 = vector.broadcast %13 : vector<1x256xf32> to vector<32x256xf32>
      %15 = arith.addf %12, %14 : vector<32x256xf32>
      %cst_13 = arith.constant 0.000000e+00 : f32
      %16 = vector.broadcast %cst_13 : f32 to vector<32x256xf32>
      %17 = arith.maximumf %15, %16 : vector<32x256xf32>
      %18 = arith.truncf %17 : vector<32x256xf32> to vector<32x256xbf16>
      %c0_14 = arith.constant 0 : index
      %c0_15 = arith.constant 0 : index
      %19 = vector.load %arg6[%c0_14, %c0_15] : memref<32x256xbf16, #tpu.memory_space<vmem>>, vector<32x256xbf16>
      tpu.vector_store %arg6[%c0_14, %c0_15], %18 {strides = array<i32>} : memref<32x256xbf16, #tpu.memory_space<vmem>>, vector<32x256xbf16>,
    } else {
    }
    return
  }
  func.func @transform_0(%arg0: i32, %arg1: i32, %arg2: i32) -> (i32, i32) {
    %c0_i32 = arith.constant 0 : i32
    return %arg0, %arg2 : i32, i32
  }
  func.func @transform_1(%arg0: i32, %arg1: i32, %arg2: i32) -> (i32, i32) {
    %c0_i32 = arith.constant 0 : i32
    return %arg2, %arg1 : i32, i32
  }
  func.func @transform_2(%arg0: i32, %arg1: i32, %arg2: i32) -> (i32, i32) {
    %c0_i32 = arith.constant 0 : i32
    %c0_i32_0 = arith.constant 0 : i32
    return %c0_i32, %arg1 : i32, i32
  }
  func.func @transform_3(%arg0: i32, %arg1: i32, %arg2: i32) -> (i32, i32) {
    %c0_i32 = arith.constant 0 : i32
    return %arg0, %arg1 : i32, i32
  }
}

module attributes {stable_mosaic.version = 11 : i64} {
  func.func @_matmul_bias_act_kernel(%arg0: i32, %arg1: i32, %arg2: i32, %arg3: memref<32x384xbf16, #tpu.memory_space<vmem>>, %arg4: memref<384x256xbf16, #tpu.memory_space<vmem>>, %arg5: memref<1x256xf32, #tpu.memory_space<vmem>>, %arg6: memref<32x256xbf16, #tpu.memory_space<vmem>>, %arg7: memref<32x256xf32, #tpu.memory_space<vmem>>) attributes {dimension_semantics = [#tpu.dimension_semantics<parallel>, #tpu.dimension_semantics<parallel>, #tpu.dimension_semantics<arbitrary>], iteration_bounds = array<i64: 1, 1, 6>, scalar_prefetch = 0 : i64, scratch_operands = 1 : i64, tpu.core_type = #tpu.core_type<tc>, window_params = [{transform_indices = @transform_0, window_bounds = array<i64: 32, 384>}, {transform_indices = @transform_1, window_bounds = array<i64: 384, 256>}, {transform_indices = @transform_2, window_bounds = array<i64: 1, 256>}, {transform_indices = @transform_3, window_bounds = array<i64: 32, 256>}]} {
    %c0_i32 = arith.constant 0 : i32
    %0 = arith.cmpi eq, %arg2, %c0_i32 : i32
    %1 = arith.extui %0 : i1 to i32
    %c0_i32_0 = arith.constant 0 : i32
    %2 = arith.cmpi ne, %1, %c0_i32_0 : i32
    scf.if %2 {
      %cst_9 = arith.constant 0.000000e+00 : f32
      %12 = vector.broadcast %cst_9 : f32 to vector<32x256xf32>
      %c0_10 = arith.constant 0 : index
      %c0_11 = arith.constant 0 : index
      %13 = vector.load %arg7[%c0_10, %c0_11] : memref<32x256xf32, #tpu.memory_space<vmem>>, vector<32x256xf32>
      tpu.vector_store %arg7[%c0_10, %c0_11], %12 {strides = array<i32>} : memref<32x256xf32, #tpu.memory_space<vmem>>, vector<32x256xf32>,
    } else {
    }
    %c0 = arith.constant 0 : index
    %c0_1 = arith.constant 0 : index
    %3 = vector.load %arg7[%c0, %c0_1] : memref<32x256xf32, #tpu.memory_space<vmem>>, vector<32x256xf32>
    %c0_2 = arith.constant 0 : index
    %c0_3 = arith.constant 0 : index
    %4 = vector.load %arg3[%c0_2, %c0_3] : memref<32x384xbf16, #tpu.memory_space<vmem>>, vector<32x384xbf16>
    %c0_4 = arith.constant 0 : index
    %c0_5 = arith.constant 0 : index
    %5 = vector.load %arg4[%c0_4, %c0_5] : memref<384x256xbf16, #tpu.memory_space<vmem>>, vector<384x256xbf16>
    %cst = arith.constant dense<0.000000e+00> : vector<32x256xf32>
    %6 = tpu.matmul %4, %5, %cst {dimension_numbers = #tpu.dot_dimension_numbers<[1], [0], [0], [1], [0, 0, 1, 1], [], []>} : vector<32x384xbf16>, vector<384x256xbf16>, vector<32x256xf32> -> vector<32x256xf32>
    %7 = arith.addf %3, %6 : vector<32x256xf32>
    %c0_6 = arith.constant 0 : index
    %c0_7 = arith.constant 0 : index
    %8 = vector.load %arg7[%c0_6, %c0_7] : memref<32x256xf32, #tpu.memory_space<vmem>>, vector<32x256xf32>
    tpu.vector_store %arg7[%c0_6, %c0_7], %7 {strides = array<i32>} : memref<32x256xf32, #tpu.memory_space<vmem>>, vector<32x256xf32>,
    %c5_i32 = arith.constant 5 : i32
    %9 = arith.cmpi eq, %arg2, %c5_i32 : i32
    %10 = arith.extui %9 : i1 to i32
    %c0_i32_8 = arith.constant 0 : i32
    %11 = arith.cmpi ne, %10, %c0_i32_8 : i32
    scf.if %11 {
      %c0_9 = arith.constant 0 : index
      %c0_10 = arith.constant 0 : index
      %12 = vector.load %arg7[%c0_9, %c0_10] : memref<32x256xf32, #tpu.memory_space<vmem>>, vector<32x256xf32>
      %c0_11 = arith.constant 0 : index
      %c0_12 = arith.constant 0 : index
      %13 = vector.load %arg5[%c0_11, %c0_12] : memref<1x256xf32, #tpu.memory_space<vmem>>, vector<1x256xf32>
      %14 = vector.broadcast %13 : vector<1x256xf32> to vector<32x256xf32>
      %15 = arith.addf %12, %14 : vector<32x256xf32>
      %cst_13 = arith.constant 0.000000e+00 : f32
      %16 = vector.broadcast %cst_13 : f32 to vector<32x256xf32>
      %17 = arith.maximumf %15, %16 : vector<32x256xf32>
      %18 = arith.truncf %17 : vector<32x256xf32> to vector<32x256xbf16>
      %c0_14 = arith.constant 0 : index
      %c0_15 = arith.constant 0 : index
      %19 = vector.load %arg6[%c0_14, %c0_15] : memref<32x256xbf16, #tpu.memory_space<vmem>>, vector<32x256xbf16>
      tpu.vector_store %arg6[%c0_14, %c0_15], %18 {strides = array<i32>} : memref<32x256xbf16, #tpu.memory_space<vmem>>, vector<32x256xbf16>,
    } else {
    }
    return
  }
  func.func @transform_0(%arg0: i32, %arg1: i32, %arg2: i32) -> (i32, i32) {
    %c0_i32 = arith.constant 0 : i32
    return %arg0, %arg2 : i32, i32
  }
  func.func @transform_1(%arg0: i32, %arg1: i32, %arg2: i32) -> (i32, i32) {
    %c0_i32 = arith.constant 0 : i32
    return %arg2, %arg1 : i32, i32
  }
  func.func @transform_2(%arg0: i32, %arg1: i32, %arg2: i32) -> (i32, i32) {
    %c0_i32 = arith.constant 0 : i32
    %c0_i32_0 = arith.constant 0 : i32
    return %c0_i32, %arg1 : i32, i32
  }
  func.func @transform_3(%arg0: i32, %arg1: i32, %arg2: i32) -> (i32, i32) {
    %c0_i32 = arith.constant 0 : i32
    return %arg0, %arg1 : i32, i32
  }
}

module attributes {stable_mosaic.version = 11 : i64} {
  func.func @_matmul_bias_act_kernel(%arg0: i32, %arg1: i32, %arg2: i32, %arg3: memref<16x512xbf16, #tpu.memory_space<vmem>>, %arg4: memref<512x512xbf16, #tpu.memory_space<vmem>>, %arg5: memref<1x512xf32, #tpu.memory_space<vmem>>, %arg6: memref<16x512xbf16, #tpu.memory_space<vmem>>, %arg7: memref<16x512xf32, #tpu.memory_space<vmem>>) attributes {dimension_semantics = [#tpu.dimension_semantics<parallel>, #tpu.dimension_semantics<parallel>, #tpu.dimension_semantics<arbitrary>], iteration_bounds = array<i64: 1, 8, 18>, scalar_prefetch = 0 : i64, scratch_operands = 1 : i64, tpu.core_type = #tpu.core_type<tc>, window_params = [{transform_indices = @transform_0, window_bounds = array<i64: 16, 512>}, {transform_indices = @transform_1, window_bounds = array<i64: 512, 512>}, {transform_indices = @transform_2, window_bounds = array<i64: 1, 512>}, {transform_indices = @transform_3, window_bounds = array<i64: 16, 512>}]} {
    %c0_i32 = arith.constant 0 : i32
    %0 = arith.cmpi eq, %arg2, %c0_i32 : i32
    %1 = arith.extui %0 : i1 to i32
    %c0_i32_0 = arith.constant 0 : i32
    %2 = arith.cmpi ne, %1, %c0_i32_0 : i32
    scf.if %2 {
      %cst_9 = arith.constant 0.000000e+00 : f32
      %12 = vector.broadcast %cst_9 : f32 to vector<16x512xf32>
      %c0_10 = arith.constant 0 : index
      %c0_11 = arith.constant 0 : index
      %13 = vector.load %arg7[%c0_10, %c0_11] : memref<16x512xf32, #tpu.memory_space<vmem>>, vector<16x512xf32>
      tpu.vector_store %arg7[%c0_10, %c0_11], %12 {strides = array<i32>} : memref<16x512xf32, #tpu.memory_space<vmem>>, vector<16x512xf32>,
    } else {
    }
    %c0 = arith.constant 0 : index
    %c0_1 = arith.constant 0 : index
    %3 = vector.load %arg7[%c0, %c0_1] : memref<16x512xf32, #tpu.memory_space<vmem>>, vector<16x512xf32>
    %c0_2 = arith.constant 0 : index
    %c0_3 = arith.constant 0 : index
    %4 = vector.load %arg3[%c0_2, %c0_3] : memref<16x512xbf16, #tpu.memory_space<vmem>>, vector<16x512xbf16>
    %c0_4 = arith.constant 0 : index
    %c0_5 = arith.constant 0 : index
    %5 = vector.load %arg4[%c0_4, %c0_5] : memref<512x512xbf16, #tpu.memory_space<vmem>>, vector<512x512xbf16>
    %cst = arith.constant dense<0.000000e+00> : vector<16x512xf32>
    %6 = tpu.matmul %4, %5, %cst {dimension_numbers = #tpu.dot_dimension_numbers<[1], [0], [0], [1], [0, 0, 1, 1], [], []>} : vector<16x512xbf16>, vector<512x512xbf16>, vector<16x512xf32> -> vector<16x512xf32>
    %7 = arith.addf %3, %6 : vector<16x512xf32>
    %c0_6 = arith.constant 0 : index
    %c0_7 = arith.constant 0 : index
    %8 = vector.load %arg7[%c0_6, %c0_7] : memref<16x512xf32, #tpu.memory_space<vmem>>, vector<16x512xf32>
    tpu.vector_store %arg7[%c0_6, %c0_7], %7 {strides = array<i32>} : memref<16x512xf32, #tpu.memory_space<vmem>>, vector<16x512xf32>,
    %c17_i32 = arith.constant 17 : i32
    %9 = arith.cmpi eq, %arg2, %c17_i32 : i32
    %10 = arith.extui %9 : i1 to i32
    %c0_i32_8 = arith.constant 0 : i32
    %11 = arith.cmpi ne, %10, %c0_i32_8 : i32
    scf.if %11 {
      %c0_9 = arith.constant 0 : index
      %c0_10 = arith.constant 0 : index
      %12 = vector.load %arg7[%c0_9, %c0_10] : memref<16x512xf32, #tpu.memory_space<vmem>>, vector<16x512xf32>
      %c0_11 = arith.constant 0 : index
      %c0_12 = arith.constant 0 : index
      %13 = vector.load %arg5[%c0_11, %c0_12] : memref<1x512xf32, #tpu.memory_space<vmem>>, vector<1x512xf32>
      %14 = vector.broadcast %13 : vector<1x512xf32> to vector<16x512xf32>
      %15 = arith.addf %12, %14 : vector<16x512xf32>
      %cst_13 = arith.constant 0.000000e+00 : f32
      %16 = vector.broadcast %cst_13 : f32 to vector<16x512xf32>
      %17 = arith.maximumf %15, %16 : vector<16x512xf32>
      %18 = arith.truncf %17 : vector<16x512xf32> to vector<16x512xbf16>
      %c0_14 = arith.constant 0 : index
      %c0_15 = arith.constant 0 : index
      %19 = vector.load %arg6[%c0_14, %c0_15] : memref<16x512xbf16, #tpu.memory_space<vmem>>, vector<16x512xbf16>
      tpu.vector_store %arg6[%c0_14, %c0_15], %18 {strides = array<i32>} : memref<16x512xbf16, #tpu.memory_space<vmem>>, vector<16x512xbf16>,
    } else {
    }
    return
  }
  func.func @transform_0(%arg0: i32, %arg1: i32, %arg2: i32) -> (i32, i32) {
    %c0_i32 = arith.constant 0 : i32
    return %arg0, %arg2 : i32, i32
  }
  func.func @transform_1(%arg0: i32, %arg1: i32, %arg2: i32) -> (i32, i32) {
    %c0_i32 = arith.constant 0 : i32
    return %arg2, %arg1 : i32, i32
  }
  func.func @transform_2(%arg0: i32, %arg1: i32, %arg2: i32) -> (i32, i32) {
    %c0_i32 = arith.constant 0 : i32
    %c0_i32_0 = arith.constant 0 : i32
    return %c0_i32, %arg1 : i32, i32
  }
  func.func @transform_3(%arg0: i32, %arg1: i32, %arg2: i32) -> (i32, i32) {
    %c0_i32 = arith.constant 0 : i32
    return %arg0, %arg1 : i32, i32
  }
}

module attributes {stable_mosaic.version = 11 : i64} {
  func.func @_matmul_bias_act_kernel(%arg0: i32, %arg1: i32, %arg2: i32, %arg3: memref<16x512xbf16, #tpu.memory_space<vmem>>, %arg4: memref<512x512xbf16, #tpu.memory_space<vmem>>, %arg5: memref<1x512xf32, #tpu.memory_space<vmem>>, %arg6: memref<16x512xbf16, #tpu.memory_space<vmem>>, %arg7: memref<16x512xf32, #tpu.memory_space<vmem>>) attributes {dimension_semantics = [#tpu.dimension_semantics<parallel>, #tpu.dimension_semantics<parallel>, #tpu.dimension_semantics<arbitrary>], iteration_bounds = array<i64: 1, 8, 8>, scalar_prefetch = 0 : i64, scratch_operands = 1 : i64, tpu.core_type = #tpu.core_type<tc>, window_params = [{transform_indices = @transform_0, window_bounds = array<i64: 16, 512>}, {transform_indices = @transform_1, window_bounds = array<i64: 512, 512>}, {transform_indices = @transform_2, window_bounds = array<i64: 1, 512>}, {transform_indices = @transform_3, window_bounds = array<i64: 16, 512>}]} {
    %c0_i32 = arith.constant 0 : i32
    %0 = arith.cmpi eq, %arg2, %c0_i32 : i32
    %1 = arith.extui %0 : i1 to i32
    %c0_i32_0 = arith.constant 0 : i32
    %2 = arith.cmpi ne, %1, %c0_i32_0 : i32
    scf.if %2 {
      %cst_9 = arith.constant 0.000000e+00 : f32
      %12 = vector.broadcast %cst_9 : f32 to vector<16x512xf32>
      %c0_10 = arith.constant 0 : index
      %c0_11 = arith.constant 0 : index
      %13 = vector.load %arg7[%c0_10, %c0_11] : memref<16x512xf32, #tpu.memory_space<vmem>>, vector<16x512xf32>
      tpu.vector_store %arg7[%c0_10, %c0_11], %12 {strides = array<i32>} : memref<16x512xf32, #tpu.memory_space<vmem>>, vector<16x512xf32>,
    } else {
    }
    %c0 = arith.constant 0 : index
    %c0_1 = arith.constant 0 : index
    %3 = vector.load %arg7[%c0, %c0_1] : memref<16x512xf32, #tpu.memory_space<vmem>>, vector<16x512xf32>
    %c0_2 = arith.constant 0 : index
    %c0_3 = arith.constant 0 : index
    %4 = vector.load %arg3[%c0_2, %c0_3] : memref<16x512xbf16, #tpu.memory_space<vmem>>, vector<16x512xbf16>
    %c0_4 = arith.constant 0 : index
    %c0_5 = arith.constant 0 : index
    %5 = vector.load %arg4[%c0_4, %c0_5] : memref<512x512xbf16, #tpu.memory_space<vmem>>, vector<512x512xbf16>
    %cst = arith.constant dense<0.000000e+00> : vector<16x512xf32>
    %6 = tpu.matmul %4, %5, %cst {dimension_numbers = #tpu.dot_dimension_numbers<[1], [0], [0], [1], [0, 0, 1, 1], [], []>} : vector<16x512xbf16>, vector<512x512xbf16>, vector<16x512xf32> -> vector<16x512xf32>
    %7 = arith.addf %3, %6 : vector<16x512xf32>
    %c0_6 = arith.constant 0 : index
    %c0_7 = arith.constant 0 : index
    %8 = vector.load %arg7[%c0_6, %c0_7] : memref<16x512xf32, #tpu.memory_space<vmem>>, vector<16x512xf32>
    tpu.vector_store %arg7[%c0_6, %c0_7], %7 {strides = array<i32>} : memref<16x512xf32, #tpu.memory_space<vmem>>, vector<16x512xf32>,
    %c7_i32 = arith.constant 7 : i32
    %9 = arith.cmpi eq, %arg2, %c7_i32 : i32
    %10 = arith.extui %9 : i1 to i32
    %c0_i32_8 = arith.constant 0 : i32
    %11 = arith.cmpi ne, %10, %c0_i32_8 : i32
    scf.if %11 {
      %c0_9 = arith.constant 0 : index
      %c0_10 = arith.constant 0 : index
      %12 = vector.load %arg7[%c0_9, %c0_10] : memref<16x512xf32, #tpu.memory_space<vmem>>, vector<16x512xf32>
      %c0_11 = arith.constant 0 : index
      %c0_12 = arith.constant 0 : index
      %13 = vector.load %arg5[%c0_11, %c0_12] : memref<1x512xf32, #tpu.memory_space<vmem>>, vector<1x512xf32>
      %14 = vector.broadcast %13 : vector<1x512xf32> to vector<16x512xf32>
      %15 = arith.addf %12, %14 : vector<16x512xf32>
      %cst_13 = arith.constant 0.000000e+00 : f32
      %16 = vector.broadcast %cst_13 : f32 to vector<16x512xf32>
      %17 = arith.maximumf %15, %16 : vector<16x512xf32>
      %18 = arith.truncf %17 : vector<16x512xf32> to vector<16x512xbf16>
      %c0_14 = arith.constant 0 : index
      %c0_15 = arith.constant 0 : index
      %19 = vector.load %arg6[%c0_14, %c0_15] : memref<16x512xbf16, #tpu.memory_space<vmem>>, vector<16x512xbf16>
      tpu.vector_store %arg6[%c0_14, %c0_15], %18 {strides = array<i32>} : memref<16x512xbf16, #tpu.memory_space<vmem>>, vector<16x512xbf16>,
    } else {
    }
    return
  }
  func.func @transform_0(%arg0: i32, %arg1: i32, %arg2: i32) -> (i32, i32) {
    %c0_i32 = arith.constant 0 : i32
    return %arg0, %arg2 : i32, i32
  }
  func.func @transform_1(%arg0: i32, %arg1: i32, %arg2: i32) -> (i32, i32) {
    %c0_i32 = arith.constant 0 : i32
    return %arg2, %arg1 : i32, i32
  }
  func.func @transform_2(%arg0: i32, %arg1: i32, %arg2: i32) -> (i32, i32) {
    %c0_i32 = arith.constant 0 : i32
    %c0_i32_0 = arith.constant 0 : i32
    return %c0_i32, %arg1 : i32, i32
  }
  func.func @transform_3(%arg0: i32, %arg1: i32, %arg2: i32) -> (i32, i32) {
    %c0_i32 = arith.constant 0 : i32
    return %arg0, %arg1 : i32, i32
  }
}

module attributes {stable_mosaic.version = 11 : i64} {
  func.func @_matmul_bias_act_kernel(%arg0: i32, %arg1: i32, %arg2: i32, %arg3: memref<16x512xbf16, #tpu.memory_space<vmem>>, %arg4: memref<512x128xbf16, #tpu.memory_space<vmem>>, %arg5: memref<1x128xf32, #tpu.memory_space<vmem>>, %arg6: memref<16x128xf32, #tpu.memory_space<vmem>>, %arg7: memref<16x128xf32, #tpu.memory_space<vmem>>) attributes {dimension_semantics = [#tpu.dimension_semantics<parallel>, #tpu.dimension_semantics<parallel>, #tpu.dimension_semantics<arbitrary>], iteration_bounds = array<i64: 1, 1, 8>, scalar_prefetch = 0 : i64, scratch_operands = 1 : i64, tpu.core_type = #tpu.core_type<tc>, window_params = [{transform_indices = @transform_0, window_bounds = array<i64: 16, 512>}, {transform_indices = @transform_1, window_bounds = array<i64: 512, 128>}, {transform_indices = @transform_2, window_bounds = array<i64: 1, 128>}, {transform_indices = @transform_3, window_bounds = array<i64: 16, 128>}]} {
    %c0_i32 = arith.constant 0 : i32
    %0 = arith.cmpi eq, %arg2, %c0_i32 : i32
    %1 = arith.extui %0 : i1 to i32
    %c0_i32_0 = arith.constant 0 : i32
    %2 = arith.cmpi ne, %1, %c0_i32_0 : i32
    scf.if %2 {
      %cst_9 = arith.constant 0.000000e+00 : f32
      %12 = vector.broadcast %cst_9 : f32 to vector<16x128xf32>
      %c0_10 = arith.constant 0 : index
      %c0_11 = arith.constant 0 : index
      %13 = vector.load %arg7[%c0_10, %c0_11] : memref<16x128xf32, #tpu.memory_space<vmem>>, vector<16x128xf32>
      tpu.vector_store %arg7[%c0_10, %c0_11], %12 {strides = array<i32>} : memref<16x128xf32, #tpu.memory_space<vmem>>, vector<16x128xf32>,
    } else {
    }
    %c0 = arith.constant 0 : index
    %c0_1 = arith.constant 0 : index
    %3 = vector.load %arg7[%c0, %c0_1] : memref<16x128xf32, #tpu.memory_space<vmem>>, vector<16x128xf32>
    %c0_2 = arith.constant 0 : index
    %c0_3 = arith.constant 0 : index
    %4 = vector.load %arg3[%c0_2, %c0_3] : memref<16x512xbf16, #tpu.memory_space<vmem>>, vector<16x512xbf16>
    %c0_4 = arith.constant 0 : index
    %c0_5 = arith.constant 0 : index
    %5 = vector.load %arg4[%c0_4, %c0_5] : memref<512x128xbf16, #tpu.memory_space<vmem>>, vector<512x128xbf16>
    %cst = arith.constant dense<0.000000e+00> : vector<16x128xf32>
    %6 = tpu.matmul %4, %5, %cst {dimension_numbers = #tpu.dot_dimension_numbers<[1], [0], [0], [1], [0, 0, 1, 1], [], []>} : vector<16x512xbf16>, vector<512x128xbf16>, vector<16x128xf32> -> vector<16x128xf32>
    %7 = arith.addf %3, %6 : vector<16x128xf32>
    %c0_6 = arith.constant 0 : index
    %c0_7 = arith.constant 0 : index
    %8 = vector.load %arg7[%c0_6, %c0_7] : memref<16x128xf32, #tpu.memory_space<vmem>>, vector<16x128xf32>
    tpu.vector_store %arg7[%c0_6, %c0_7], %7 {strides = array<i32>} : memref<16x128xf32, #tpu.memory_space<vmem>>, vector<16x128xf32>,
    %c7_i32 = arith.constant 7 : i32
    %9 = arith.cmpi eq, %arg2, %c7_i32 : i32
    %10 = arith.extui %9 : i1 to i32
    %c0_i32_8 = arith.constant 0 : i32
    %11 = arith.cmpi ne, %10, %c0_i32_8 : i32
    scf.if %11 {
      %c0_9 = arith.constant 0 : index
      %c0_10 = arith.constant 0 : index
      %12 = vector.load %arg7[%c0_9, %c0_10] : memref<16x128xf32, #tpu.memory_space<vmem>>, vector<16x128xf32>
      %c0_11 = arith.constant 0 : index
      %c0_12 = arith.constant 0 : index
      %13 = vector.load %arg5[%c0_11, %c0_12] : memref<1x128xf32, #tpu.memory_space<vmem>>, vector<1x128xf32>
      %14 = vector.broadcast %13 : vector<1x128xf32> to vector<16x128xf32>
      %15 = arith.addf %12, %14 : vector<16x128xf32>
      %c0_13 = arith.constant 0 : index
      %c0_14 = arith.constant 0 : index
      %16 = vector.load %arg6[%c0_13, %c0_14] : memref<16x128xf32, #tpu.memory_space<vmem>>, vector<16x128xf32>
      tpu.vector_store %arg6[%c0_13, %c0_14], %15 {strides = array<i32>} : memref<16x128xf32, #tpu.memory_space<vmem>>, vector<16x128xf32>,
    } else {
    }
    return
  }
  func.func @transform_0(%arg0: i32, %arg1: i32, %arg2: i32) -> (i32, i32) {
    %c0_i32 = arith.constant 0 : i32
    return %arg0, %arg2 : i32, i32
  }
  func.func @transform_1(%arg0: i32, %arg1: i32, %arg2: i32) -> (i32, i32) {
    %c0_i32 = arith.constant 0 : i32
    return %arg2, %arg1 : i32, i32
  }
  func.func @transform_2(%arg0: i32, %arg1: i32, %arg2: i32) -> (i32, i32) {
    %c0_i32 = arith.constant 0 : i32
    %c0_i32_0 = arith.constant 0 : i32
    return %c0_i32, %arg1 : i32, i32
  }
  func.func @transform_3(%arg0: i32, %arg1: i32, %arg2: i32) -> (i32, i32) {
    %c0_i32 = arith.constant 0 : i32
    return %arg0, %arg1 : i32, i32
  }
}

</mosaic_0001>

<llo_original>
// kernel: alexnet_forward.8
$region0: #{alexnet_forward.8}
  #allocation0 [shape = 'u32[]', space=smem, size = 0x4, offset = 0x4, fixed_abs, tag = 'smem constant byte address 0x4 - core index']
  #allocation1 [shape = 'u32[144,128]{1,0:T(1,128)}', space=vmem, size = 0x12000, scoped, tag = 'internal scratch']
  #allocation2 [shape = 'f32[464,128]{1,0:T(8,128)}', space=vmem, size = 0x3a000, scoped, tag = 'scratch operand']
  %s0 = inlined_call_operand.vmem [shape: bf16[464,384], index: 0, kind: input, shape index: {}]
  %s1 = inlined_call_operand.vmem [shape: bf16[384,128], index: 1, kind: input, shape index: {}]
  %s2 = inlined_call_operand.vmem [shape: f32[1,128], index: 2, kind: input, shape index: {}]
  %s3 = inlined_call_operand.vmem [shape: bf16[464,128], index: 3, kind: output, shape index: {}]
  %s4 = sld [smem:[#allocation0]]
  $region30: #{alexnet_forward.8} parent=0
    _
  %s6 = ssub.s32 1, %s4
  %s7 = scalar_select 0, %s6, %s4
  // Predicated region
  $region2: #{alexnet_forward.8} parent=0 // pred_check
    _
  $region3: #{alexnet_forward.8} parent=0 // pred_check_branch
    %9 = sbr.rel (0) target = $region5
  $region4: #{alexnet_forward.8} parent=0 // pred_region
    _
  $region5: #{alexnet_forward.8} parent=0 // pred_fallthru
    _
  // Predicated region
  $region6: #{alexnet_forward.8} parent=0 // pred_check
    _
  $region7: #{alexnet_forward.8} parent=0 // pred_check_branch
    %11 = sbr.rel (0) target = $region9
  $region8: #{alexnet_forward.8} parent=0 // pred_region
    _
  $region9: #{alexnet_forward.8} parent=0 // pred_fallthru
    _
  // Predicated region
  $region10: #{alexnet_forward.8} parent=0 // pred_check
    _
  $region11: #{alexnet_forward.8} parent=0 // pred_check_branch
    %13 = sbr.rel (0) target = $region13
  $region12: #{alexnet_forward.8} parent=0 // pred_region
    _
  $region13: #{alexnet_forward.8} parent=0 // pred_fallthru
    _
  %p15 = scmp.eq.s32.totalorder 0, 0
  // Predicated region
  $region14: #{alexnet_forward.8} parent=0 // pred_check
    %p16 = pneg %p15
  $region15: #{alexnet_forward.8} parent=0 // pred_check_branch
    %18 = sbr.rel (%p16) target = $region17
  $region16: #{alexnet_forward.8} parent=0 // pred_region
    %19 = vst [vmem:[#allocation2] sm:$0xff] 0.0
    %20 = vst [vmem:[#allocation2 + $0x8] sm:$0xff] 0.0
    %21 = vst [vmem:[#allocation2 + $0x10] sm:$0xff] 0.0
    %22 = vst [vmem:[#allocation2 + $0x18] sm:$0xff] 0.0
    %23 = vst [vmem:[#allocation2 + $0x20] sm:$0xff] 0.0
    %24 = vst [vmem:[#allocation2 + $0x28] sm:$0xff] 0.0
    %25 = vst [vmem:[#allocation2 + $0x30] sm:$0xff] 0.0
    %26 = vst [vmem:[#allocation2 + $0x38] sm:$0xff] 0.0
    %27 = vst [vmem:[#allocation2 + $0x40] sm:$0xff] 0.0
    %28 = vst [vmem:[#allocation2 + $0x48] sm:$0xff] 0.0
    %29 = vst [vmem:[#allocation2 + $0x50] sm:$0xff] 0.0
    %30 = vst [vmem:[#allocation2 + $0x58] sm:$0xff] 0.0
    %31 = vst [vmem:[#allocation2 + $0x60] sm:$0xff] 0.0
    %32 = vst [vmem:[#allocation2 + $0x68] sm:$0xff] 0.0
    %33 = vst [vmem:[#allocation2 + $0x70] sm:$0xff] 0.0
    %34 = vst [vmem:[#allocation2 + $0x78] sm:$0xff] 0.0
    %35 = vst [vmem:[#allocation2 + $0x80] sm:$0xff] 0.0
    %36 = vst [vmem:[#allocation2 + $0x88] sm:$0xff] 0.0
    %37 = vst [vmem:[#allocation2 + $0x90] sm:$0xff] 0.0
    %38 = vst [vmem:[#allocation2 + $0x98] sm:$0xff] 0.0
    %39 = vst [vmem:[#allocation2 + $0xa0] sm:$0xff] 0.0
    %40 = vst [vmem:[#allocation2 + $0xa8] sm:$0xff] 0.0
    %41 = vst [vmem:[#allocation2 + $0xb0] sm:$0xff] 0.0
    %42 = vst [vmem:[#allocation2 + $0xb8] sm:$0xff] 0.0
    %43 = vst [vmem:[#allocation2 + $0xc0] sm:$0xff] 0.0
    %44 = vst [vmem:[#allocation2 + $0xc8] sm:$0xff] 0.0
    %45 = vst [vmem:[#allocation2 + $0xd0] sm:$0xff] 0.0
    %46 = vst [vmem:[#allocation2 + $0xd8] sm:$0xff] 0.0
    %47 = vst [vmem:[#allocation2 + $0xe0] sm:$0xff] 0.0
    %48 = vst [vmem:[#allocation2 + $0xe8] sm:$0xff] 0.0
    %49 = vst [vmem:[#allocation2 + $0xf0] sm:$0xff] 0.0
    %50 = vst [vmem:[#allocation2 + $0xf8] sm:$0xff] 0.0
    %51 = vst [vmem:[#allocation2 + $0x100] sm:$0xff] 0.0
    %52 = vst [vmem:[#allocation2 + $0x108] sm:$0xff] 0.0
    %53 = vst [vmem:[#allocation2 + $0x110] sm:$0xff] 0.0
    %54 = vst [vmem:[#allocation2 + $0x118] sm:$0xff] 0.0
    %55 = vst [vmem:[#allocation2 + $0x120] sm:$0xff] 0.0
    %56 = vst [vmem:[#allocation2 + $0x128] sm:$0xff] 0.0
    %57 = vst [vmem:[#allocation2 + $0x130] sm:$0xff] 0.0
    %58 = vst [vmem:[#allocation2 + $0x138] sm:$0xff] 0.0
    %59 = vst [vmem:[#allocation2 + $0x140] sm:$0xff] 0.0
    %60 = vst [vmem:[#allocation2 + $0x148] sm:$0xff] 0.0
    %61 = vst [vmem:[#allocation2 + $0x150] sm:$0xff] 0.0
    %62 = vst [vmem:[#allocation2 + $0x158] sm:$0xff] 0.0
    %63 = vst [vmem:[#allocation2 + $0x160] sm:$0xff] 0.0
    %64 = vst [vmem:[#allocation2 + $0x168] sm:$0xff] 0.0
    %65 = vst [vmem:[#allocation2 + $0x170] sm:$0xff] 0.0
    %66 = vst [vmem:[#allocation2 + $0x178] sm:$0xff] 0.0
    %67 = vst [vmem:[#allocation2 + $0x180] sm:$0xff] 0.0
    %68 = vst [vmem:[#allocation2 + $0x188] sm:$0xff] 0.0
    %69 = vst [vmem:[#allocation2 + $0x190] sm:$0xff] 0.0
    %70 = vst [vmem:[#allocation2 + $0x198] sm:$0xff] 0.0
    %71 = vst [vmem:[#allocation2 + $0x1a0] sm:$0xff] 0.0
    %72 = vst [vmem:[#allocation2 + $0x1a8] sm:$0xff] 0.0
    %73 = vst [vmem:[#allocation2 + $0x1b0] sm:$0xff] 0.0
    %74 = vst [vmem:[#allocation2 + $0x1b8] sm:$0xff] 0.0
    %75 = vst [vmem:[#allocation2 + $0x1c0] sm:$0xff] 0.0
    %76 = vst [vmem:[#allocation2 + $0x1c8] sm:$0xff] 0.0
  $region17: #{alexnet_forward.8} parent=0 // pred_fallthru
    _
  %v77 = vld [vmem:[#allocation2] sm:$0xff]
  %v78 = vld [vmem:[#allocation2 + $0x8] sm:$0xff]
  %v79 = vld [vmem:[#allocation2 + $0x10] sm:$0xff]
  %v80 = vld [vmem:[#allocation2 + $0x18] sm:$0xff]
  %v81 = vld [vmem:[#allocation2 + $0x20] sm:$0xff]
  %v82 = vld [vmem:[#allocation2 + $0x28] sm:$0xff]
  %v83 = vld [vmem:[#allocation2 + $0x30] sm:$0xff]
  %v84 = vld [vmem:[#allocation2 + $0x38] sm:$0xff]
  %v85 = vld [vmem:[#allocation2 + $0x40] sm:$0xff]
  %v86 = vld [vmem:[#allocation2 + $0x48] sm:$0xff]
  %v87 = vld [vmem:[#allocation2 + $0x50] sm:$0xff]
  %v88 = vld [vmem:[#allocation2 + $0x58] sm:$0xff]
  %v89 = vld [vmem:[#allocation2 + $0x60] sm:$0xff]
  %v90 = vld [vmem:[#allocation2 + $0x68] sm:$0xff]
  %v91 = vld [vmem:[#allocation2 + $0x70] sm:$0xff]
  %v92 = vld [vmem:[#allocation2 + $0x78] sm:$0xff]
  %v93 = vld [vmem:[#allocation2 + $0x80] sm:$0xff]
  %v94 = vld [vmem:[#allocation2 + $0x88] sm:$0xff]
  %v95 = vld [vmem:[#allocation2 + $0x90] sm:$0xff]
  %v96 = vld [vmem:[#allocation2 + $0x98] sm:$0xff]
  %v97 = vld [vmem:[#allocation2 + $0xa0] sm:$0xff]
  %v98 = vld [vmem:[#allocation2 + $0xa8] sm:$0xff]
  %v99 = vld [vmem:[#allocation2 + $0xb0] sm:$0xff]
  %v100 = vld [vmem:[#allocation2 + $0xb8] sm:$0xff]
  %v101 = vld [vmem:[#allocation2 + $0xc0] sm:$0xff]
  %v102 = vld [vmem:[#allocation2 + $0xc8] sm:$0xff]
  %v103 = vld [vmem:[#allocation2 + $0xd0] sm:$0xff]
  %v104 = vld [vmem:[#allocation2 + $0xd8] sm:$0xff]
  %v105 = vld [vmem:[#allocation2 + $0xe0] sm:$0xff]
  %v106 = vld [vmem:[#allocation2 + $0xe8] sm:$0xff]
  %v107 = vld [vmem:[#allocation2 + $0xf0] sm:$0xff]
  %v108 = vld [vmem:[#allocation2 + $0xf8] sm:$0xff]
  %v109 = vld [vmem:[#allocation2 + $0x100] sm:$0xff]
  %v110 = vld [vmem:[#allocation2 + $0x108] sm:$0xff]
  %v111 = vld [vmem:[#allocation2 + $0x110] sm:$0xff]
  %v112 = vld [vmem:[#allocation2 + $0x118] sm:$0xff]
  %v113 = vld [vmem:[#allocation2 + $0x120] sm:$0xff]
  %v114 = vld [vmem:[#allocation2 + $0x128] sm:$0xff]
  %v115 = vld [vmem:[#allocation2 + $0x130] sm:$0xff]
  %v116 = vld [vmem:[#allocation2 + $0x138] sm:$0xff]
  %v117 = vld [vmem:[#allocation2 + $0x140] sm:$0xff]
  %v118 = vld [vmem:[#allocation2 + $0x148] sm:$0xff]
  %v119 = vld [vmem:[#allocation2 + $0x150] sm:$0xff]
  %v120 = vld [vmem:[#allocation2 + $0x158] sm:$0xff]
  %v121 = vld [vmem:[#allocation2 + $0x160] sm:$0xff]
  %v122 = vld [vmem:[#allocation2 + $0x168] sm:$0xff]
  %v123 = vld [vmem:[#allocation2 + $0x170] sm:$0xff]
  %v124 = vld [vmem:[#allocation2 + $0x178] sm:$0xff]
  %v125 = vld [vmem:[#allocation2 + $0x180] sm:$0xff]
  %v126 = vld [vmem:[#allocation2 + $0x188] sm:$0xff]
  %v127 = vld [vmem:[#allocation2 + $0x190] sm:$0xff]
  %v128 = vld [vmem:[#allocation2 + $0x198] sm:$0xff]
  %v129 = vld [vmem:[#allocation2 + $0x1a0] sm:$0xff]
  %v130 = vld [vmem:[#allocation2 + $0x1a8] sm:$0xff]
  %v131 = vld [vmem:[#allocation2 + $0x1b0] sm:$0xff]
  %v132 = vld [vmem:[#allocation2 + $0x1b8] sm:$0xff]
  %v133 = vld [vmem:[#allocation2 + $0x1c0] sm:$0xff]
  %v134 = vld [vmem:[#allocation2 + $0x1c8] sm:$0xff]
  %v135 = vld [vmem:[%s0] sm:$0xff]
  %v136 = vld [vmem:[%s0 + $0x8] sm:$0xf]
  %v137 = vld [vmem:[%s0 + $0xc] sm:$0xff]
  %v138 = vld [vmem:[%s0 + $0x14] sm:$0xf]
  %v139 = vld [vmem:[%s0 + $0x18] sm:$0xff]
  %v140 = vld [vmem:[%s0 + $0x20] sm:$0xf]
  %v141 = vld [vmem:[%s0 + $0x24] sm:$0xff]
  %v142 = vld [vmem:[%s0 + $0x2c] sm:$0xf]
  %v143 = vld [vmem:[%s0 + $0x30] sm:$0xff]
  %v144 = vld [vmem:[%s0 + $0x38] sm:$0xf]
  %v145 = vld [vmem:[%s0 + $0x3c] sm:$0xff]
  %v146 = vld [vmem:[%s0 + $0x44] sm:$0xf]
  %v147 = vld [vmem:[%s0 + $0x48] sm:$0xff]
  %v148 = vld [vmem:[%s0 + $0x50] sm:$0xf]
  %v149 = vld [vmem:[%s0 + $0x54] sm:$0xff]
  %v150 = vld [vmem:[%s0 + $0x5c] sm:$0xf]
  %v151 = vld [vmem:[%s0 + $0x60] sm:$0xff]
  %v152 = vld [vmem:[%s0 + $0x68] sm:$0xf]
  %v153 = vld [vmem:[%s0 + $0x6c] sm:$0xff]
  %v154 = vld [vmem:[%s0 + $0x74] sm:$0xf]
  %v155 = vld [vmem:[%s0 + $0x78] sm:$0xff]
  %v156 = vld [vmem:[%s0 + $0x80] sm:$0xf]
  %v157 = vld [vmem:[%s0 + $0x84] sm:$0xff]
  %v158 = vld [vmem:[%s0 + $0x8c] sm:$0xf]
  %v159 = vld [vmem:[%s0 + $0x90] sm:$0xff]
  %v160 = vld [vmem:[%s0 + $0x98] sm:$0xf]
  %v161 = vld [vmem:[%s0 + $0x9c] sm:$0xff]
  %v162 = vld [vmem:[%s0 + $0xa4] sm:$0xf]
  %v163 = vld [vmem:[%s0 + $0xa8] sm:$0xff]
  %v164 = vld [vmem:[%s0 + $0xb0] sm:$0xf]
  %v165 = vld [vmem:[%s0 + $0xb4] sm:$0xff]
  %v166 = vld [vmem:[%s0 + $0xbc] sm:$0xf]
  %v167 = vld [vmem:[%s0 + $0xc0] sm:$0xff]
  %v168 = vld [vmem:[%s0 + $0xc8] sm:$0xf]
  %v169 = vld [vmem:[%s0 + $0xcc] sm:$0xff]
  %v170 = vld [vmem:[%s0 + $0xd4] sm:$0xf]
  %v171 = vld [vmem:[%s0 + $0xd8] sm:$0xff]
  %v172 = vld [vmem:[%s0 + $0xe0] sm:$0xf]
  %v173 = vld [vmem:[%s0 + $0xe4] sm:$0xff]
  %v174 = vld [vmem:[%s0 + $0xec] sm:$0xf]
  %v175 = vld [vmem:[%s0 + $0xf0] sm:$0xff]
  %v176 = vld [vmem:[%s0 + $0xf8] sm:$0xf]
  %v177 = vld [vmem:[%s0 + $0xfc] sm:$0xff]
  %v178 = vld [vmem:[%s0 + $0x104] sm:$0xf]
  %v179 = vld [vmem:[%s0 + $0x108] sm:$0xff]
  %v180 = vld [vmem:[%s0 + $0x110] sm:$0xf]
  %v181 = vld [vmem:[%s0 + $0x114] sm:$0xff]
  %v182 = vld [vmem:[%s0 + $0x11c] sm:$0xf]
  %v183 = vld [vmem:[%s0 + $0x120] sm:$0xff]
  %v184 = vld [vmem:[%s0 + $0x128] sm:$0xf]
  %v185 = vld [vmem:[%s0 + $0x12c] sm:$0xff]
  %v186 = vld [vmem:[%s0 + $0x134] sm:$0xf]
  %v187 = vld [vmem:[%s0 + $0x138] sm:$0xff]
  %v188 = vld [vmem:[%s0 + $0x140] sm:$0xf]
  %v189 = vld [vmem:[%s0 + $0x144] sm:$0xff]
  %v190 = vld [vmem:[%s0 + $0x14c] sm:$0xf]
  %v191 = vld [vmem:[%s0 + $0x150] sm:$0xff]
  %v192 = vld [vmem:[%s0 + $0x158] sm:$0xf]
  %v193 = vld [vmem:[%s0 + $0x15c] sm:$0xff]
  %v194 = vld [vmem:[%s0 + $0x164] sm:$0xf]
  %v195 = vld [vmem:[%s0 + $0x168] sm:$0xff]
  %v196 = vld [vmem:[%s0 + $0x170] sm:$0xf]
  %v197 = vld [vmem:[%s0 + $0x174] sm:$0xff]
  %v198 = vld [vmem:[%s0 + $0x17c] sm:$0xf]
  %v199 = vld [vmem:[%s0 + $0x180] sm:$0xff]
  %v200 = vld [vmem:[%s0 + $0x188] sm:$0xf]
  %v201 = vld [vmem:[%s0 + $0x18c] sm:$0xff]
  %v202 = vld [vmem:[%s0 + $0x194] sm:$0xf]
  %v203 = vld [vmem:[%s0 + $0x198] sm:$0xff]
  %v204 = vld [vmem:[%s0 + $0x1a0] sm:$0xf]
  %v205 = vld [vmem:[%s0 + $0x1a4] sm:$0xff]
  %v206 = vld [vmem:[%s0 + $0x1ac] sm:$0xf]
  %v207 = vld [vmem:[%s0 + $0x1b0] sm:$0xff]
  %v208 = vld [vmem:[%s0 + $0x1b8] sm:$0xf]
  %v209 = vld [vmem:[%s0 + $0x1bc] sm:$0xff]
  %v210 = vld [vmem:[%s0 + $0x1c4] sm:$0xf]
  %v211 = vld [vmem:[%s0 + $0x1c8] sm:$0xff]
  %v212 = vld [vmem:[%s0 + $0x1d0] sm:$0xf]
  %v213 = vld [vmem:[%s0 + $0x1d4] sm:$0xff]
  %v214 = vld [vmem:[%s0 + $0x1dc] sm:$0xf]
  %v215 = vld [vmem:[%s0 + $0x1e0] sm:$0xff]
  %v216 = vld [vmem:[%s0 + $0x1e8] sm:$0xf]
  %v217 = vld [vmem:[%s0 + $0x1ec] sm:$0xff]
  %v218 = vld [vmem:[%s0 + $0x1f4] sm:$0xf]
  %v219 = vld [vmem:[%s0 + $0x1f8] sm:$0xff]
  %v220 = vld [vmem:[%s0 + $0x200] sm:$0xf]
  %v221 = vld [vmem:[%s0 + $0x204] sm:$0xff]
  %v222 = vld [vmem:[%s0 + $0x20c] sm:$0xf]
  %v223 = vld [vmem:[%s0 + $0x210] sm:$0xff]
  %v224 = vld [vmem:[%s0 + $0x218] sm:$0xf]
  %v225 = vld [vmem:[%s0 + $0x21c] sm:$0xff]
  %v226 = vld [vmem:[%s0 + $0x224] sm:$0xf]
  %v227 = vld [vmem:[%s0 + $0x228] sm:$0xff]
  %v228 = vld [vmem:[%s0 + $0x230] sm:$0xf]
  %v229 = vld [vmem:[%s0 + $0x234] sm:$0xff]
  %v230 = vld [vmem:[%s0 + $0x23c] sm:$0xf]
  %v231 = vld [vmem:[%s0 + $0x240] sm:$0xff]
  %v232 = vld [vmem:[%s0 + $0x248] sm:$0xf]
  %v233 = vld [vmem:[%s0 + $0x24c] sm:$0xff]
  %v234 = vld [vmem:[%s0 + $0x254] sm:$0xf]
  %v235 = vld [vmem:[%s0 + $0x258] sm:$0xff]
  %v236 = vld [vmem:[%s0 + $0x260] sm:$0xf]
  %v237 = vld [vmem:[%s0 + $0x264] sm:$0xff]
  %v238 = vld [vmem:[%s0 + $0x26c] sm:$0xf]
  %v239 = vld [vmem:[%s0 + $0x270] sm:$0xff]
  %v240 = vld [vmem:[%s0 + $0x278] sm:$0xf]
  %v241 = vld [vmem:[%s0 + $0x27c] sm:$0xff]
  %v242 = vld [vmem:[%s0 + $0x284] sm:$0xf]
  %v243 = vld [vmem:[%s0 + $0x288] sm:$0xff]
  %v244 = vld [vmem:[%s0 + $0x290] sm:$0xf]
  %v245 = vld [vmem:[%s0 + $0x294] sm:$0xff]
  %v246 = vld [vmem:[%s0 + $0x29c] sm:$0xf]
  %v247 = vld [vmem:[%s0 + $0x2a0] sm:$0xff]
  %v248 = vld [vmem:[%s0 + $0x2a8] sm:$0xf]
  %v249 = vld [vmem:[%s0 + $0x2ac] sm:$0xff]
  %v250 = vld [vmem:[%s0 + $0x2b4] sm:$0xf]
  %v251 = vld [vmem:[%s1] sm:$0xf]
  %v252 = vld [vmem:[%s1 + $0x4] sm:$0xf]
  %v253 = vld [vmem:[%s1 + $0x8] sm:$0xf]
  %v254 = vld [vmem:[%s1 + $0xc] sm:$0xf]
  %v255 = vld [vmem:[%s1 + $0x10] sm:$0xf]
  %v256 = vld [vmem:[%s1 + $0x14] sm:$0xf]
  %v257 = vld [vmem:[%s1 + $0x18] sm:$0xf]
  %v258 = vld [vmem:[%s1 + $0x1c] sm:$0xf]
  %v259 = vld [vmem:[%s1 + $0x20] sm:$0xf]
  %v260 = vld [vmem:[%s1 + $0x24] sm:$0xf]
  %v261 = vld [vmem:[%s1 + $0x28] sm:$0xf]
  %v262 = vld [vmem:[%s1 + $0x2c] sm:$0xf]
  %v263 = vld [vmem:[%s1 + $0x30] sm:$0xf]
  %v264 = vld [vmem:[%s1 + $0x34] sm:$0xf]
  %v265 = vld [vmem:[%s1 + $0x38] sm:$0xf]
  %v266 = vld [vmem:[%s1 + $0x3c] sm:$0xf]
  %v267 = vld [vmem:[%s1 + $0x40] sm:$0xf]
  %v268 = vld [vmem:[%s1 + $0x44] sm:$0xf]
  %v269 = vld [vmem:[%s1 + $0x48] sm:$0xf]
  %v270 = vld [vmem:[%s1 + $0x4c] sm:$0xf]
  %v271 = vld [vmem:[%s1 + $0x50] sm:$0xf]
  %v272 = vld [vmem:[%s1 + $0x54] sm:$0xf]
  %v273 = vld [vmem:[%s1 + $0x58] sm:$0xf]
  %v274 = vld [vmem:[%s1 + $0x5c] sm:$0xf]
  %v275 = vld [vmem:[%s1 + $0x60] sm:$0xf]
  %v276 = vld [vmem:[%s1 + $0x64] sm:$0xf]
  %v277 = vld [vmem:[%s1 + $0x68] sm:$0xf]
  %v278 = vld [vmem:[%s1 + $0x6c] sm:$0xf]
  %v279 = vld [vmem:[%s1 + $0x70] sm:$0xf]
  %v280 = vld [vmem:[%s1 + $0x74] sm:$0xf]
  %v281 = vld [vmem:[%s1 + $0x78] sm:$0xf]
  %v282 = vld [vmem:[%s1 + $0x7c] sm:$0xf]
  %v283 = vld [vmem:[%s1 + $0x80] sm:$0xf]
  %v284 = vld [vmem:[%s1 + $0x84] sm:$0xf]
  %v285 = vld [vmem:[%s1 + $0x88] sm:$0xf]
  %v286 = vld [vmem:[%s1 + $0x8c] sm:$0xf]
  %v287 = vld [vmem:[%s1 + $0x90] sm:$0xf]
  %v288 = vld [vmem:[%s1 + $0x94] sm:$0xf]
  %v289 = vld [vmem:[%s1 + $0x98] sm:$0xf]
  %v290 = vld [vmem:[%s1 + $0x9c] sm:$0xf]
  %v291 = vld [vmem:[%s1 + $0xa0] sm:$0xf]
  %v292 = vld [vmem:[%s1 + $0xa4] sm:$0xf]
  %v293 = vld [vmem:[%s1 + $0xa8] sm:$0xf]
  %v294 = vld [vmem:[%s1 + $0xac] sm:$0xf]
  %v295 = vld [vmem:[%s1 + $0xb0] sm:$0xf]
  %v296 = vld [vmem:[%s1 + $0xb4] sm:$0xf]
  %v297 = vld [vmem:[%s1 + $0xb8] sm:$0xf]
  %v298 = vld [vmem:[%s1 + $0xbc] sm:$0xf]
  %v415 = vunpack.c.l.b16 %v135
  %v416 = vunpack.c.h.b16 %v135
  %v417 = vunpack.c.l.b16 %v136
  %v418 = vunpack.c.l.b16 %v137
  %v419 = vunpack.c.h.b16 %v137
  %v420 = vunpack.c.l.b16 %v138
  %v421 = vunpack.c.l.b16 %v139
  %v422 = vunpack.c.h.b16 %v139
  %v423 = vunpack.c.l.b16 %v140
  %v424 = vunpack.c.l.b16 %v141
  %v425 = vunpack.c.h.b16 %v141
  %v426 = vunpack.c.l.b16 %v142
  %v427 = vunpack.c.l.b16 %v143
  %v428 = vunpack.c.h.b16 %v143
  %v429 = vunpack.c.l.b16 %v144
  %v430 = vunpack.c.l.b16 %v145
  %v431 = vunpack.c.h.b16 %v145
  %v432 = vunpack.c.l.b16 %v146
  %v433 = vunpack.c.l.b16 %v147
  %v434 = vunpack.c.h.b16 %v147
  %v435 = vunpack.c.l.b16 %v148
  %v436 = vunpack.c.l.b16 %v149
  %v437 = vunpack.c.h.b16 %v149
  %v438 = vunpack.c.l.b16 %v150
  %v439 = vunpack.c.l.b16 %v151
  %v440 = vunpack.c.h.b16 %v151
  %v441 = vunpack.c.l.b16 %v152
  %v442 = vunpack.c.l.b16 %v153
  %v443 = vunpack.c.h.b16 %v153
  %v444 = vunpack.c.l.b16 %v154
  %v445 = vunpack.c.l.b16 %v155
  %v446 = vunpack.c.h.b16 %v155
  %v447 = vunpack.c.l.b16 %v156
  %v448 = vunpack.c.l.b16 %v157
  %v449 = vunpack.c.h.b16 %v157
  %v450 = vunpack.c.l.b16 %v158
  %v451 = vunpack.c.l.b16 %v159
  %v452 = vunpack.c.h.b16 %v159
  %v453 = vunpack.c.l.b16 %v160
  %v454 = vunpack.c.l.b16 %v161
  %v455 = vunpack.c.h.b16 %v161
  %v456 = vunpack.c.l.b16 %v162
  %v457 = vunpack.c.l.b16 %v163
  %v458 = vunpack.c.h.b16 %v163
  %v459 = vunpack.c.l.b16 %v164
  %v460 = vunpack.c.l.b16 %v165
  %v461 = vunpack.c.h.b16 %v165
  %v462 = vunpack.c.l.b16 %v166
  %v463 = vunpack.c.l.b16 %v167
  %v464 = vunpack.c.h.b16 %v167
  %v465 = vunpack.c.l.b16 %v168
  %v466 = vunpack.c.l.b16 %v169
  %v467 = vunpack.c.h.b16 %v169
  %v468 = vunpack.c.l.b16 %v170
  %v469 = vunpack.c.l.b16 %v171
  %v470 = vunpack.c.h.b16 %v171
  %v471 = vunpack.c.l.b16 %v172
  %v472 = vunpack.c.l.b16 %v173
  %v473 = vunpack.c.h.b16 %v173
  %v474 = vunpack.c.l.b16 %v174
  %v475 = vunpack.c.l.b16 %v175
  %v476 = vunpack.c.h.b16 %v175
  %v477 = vunpack.c.l.b16 %v176
  %v478 = vunpack.c.l.b16 %v177
  %v479 = vunpack.c.h.b16 %v177
  %v480 = vunpack.c.l.b16 %v178
  %v481 = vunpack.c.l.b16 %v179
  %v482 = vunpack.c.h.b16 %v179
  %v483 = vunpack.c.l.b16 %v180
  %v484 = vunpack.c.l.b16 %v181
  %v485 = vunpack.c.h.b16 %v181
  %v486 = vunpack.c.l.b16 %v182
  %v487 = vunpack.c.l.b16 %v183
  %v488 = vunpack.c.h.b16 %v183
  %v489 = vunpack.c.l.b16 %v184
  %v490 = vunpack.c.l.b16 %v185
  %v491 = vunpack.c.h.b16 %v185
  %v492 = vunpack.c.l.b16 %v186
  %v493 = vunpack.c.l.b16 %v187
  %v494 = vunpack.c.h.b16 %v187
  %v495 = vunpack.c.l.b16 %v188
  %v496 = vunpack.c.l.b16 %v189
  %v497 = vunpack.c.h.b16 %v189
  %v498 = vunpack.c.l.b16 %v190
  %v499 = vunpack.c.l.b16 %v191
  %v500 = vunpack.c.h.b16 %v191
  %v501 = vunpack.c.l.b16 %v192
  %v502 = vunpack.c.l.b16 %v193
  %v503 = vunpack.c.h.b16 %v193
  %v504 = vunpack.c.l.b16 %v194
  %v505 = vunpack.c.l.b16 %v195
  %v506 = vunpack.c.h.b16 %v195
  %v507 = vunpack.c.l.b16 %v196
  %v508 = vunpack.c.l.b16 %v197
  %v509 = vunpack.c.h.b16 %v197
  %v510 = vunpack.c.l.b16 %v198
  %v511 = vunpack.c.l.b16 %v199
  %v512 = vunpack.c.h.b16 %v199
  %v513 = vunpack.c.l.b16 %v200
  %v514 = vunpack.c.l.b16 %v201
  %v515 = vunpack.c.h.b16 %v201
  %v516 = vunpack.c.l.b16 %v202
  %v517 = vunpack.c.l.b16 %v203
  %v518 = vunpack.c.h.b16 %v203
  %v519 = vunpack.c.l.b16 %v204
  %v520 = vunpack.c.l.b16 %v205
  %v521 = vunpack.c.h.b16 %v205
  %v522 = vunpack.c.l.b16 %v206
  %v523 = vunpack.c.l.b16 %v207
  %v524 = vunpack.c.h.b16 %v207
  %v525 = vunpack.c.l.b16 %v208
  %v526 = vunpack.c.l.b16 %v209
  %v527 = vunpack.c.h.b16 %v209
  %v528 = vunpack.c.l.b16 %v210
  %v529 = vunpack.c.l.b16 %v211
  %v530 = vunpack.c.h.b16 %v211
  %v531 = vunpack.c.l.b16 %v212
  %v532 = vunpack.c.l.b16 %v213
  %v533 = vunpack.c.h.b16 %v213
  %v534 = vunpack.c.l.b16 %v214
  %v535 = vunpack.c.l.b16 %v215
  %v536 = vunpack.c.h.b16 %v215
  %v537 = vunpack.c.l.b16 %v216
  %v538 = vunpack.c.l.b16 %v217
  %v539 = vunpack.c.h.b16 %v217
  %v540 = vunpack.c.l.b16 %v218
  %v541 = vunpack.c.l.b16 %v219
  %v542 = vunpack.c.h.b16 %v219
  %v543 = vunpack.c.l.b16 %v220
  %v544 = vunpack.c.l.b16 %v221
  %v545 = vunpack.c.h.b16 %v221
  %v546 = vunpack.c.l.b16 %v222
  %v547 = vunpack.c.l.b16 %v223
  %v548 = vunpack.c.h.b16 %v223
  %v549 = vunpack.c.l.b16 %v224
  %v550 = vunpack.c.l.b16 %v225
  %v551 = vunpack.c.h.b16 %v225
  %v552 = vunpack.c.l.b16 %v226
  %v553 = vunpack.c.l.b16 %v227
  %v554 = vunpack.c.h.b16 %v227
  %v555 = vunpack.c.l.b16 %v228
  %v556 = vunpack.c.l.b16 %v229
  %v557 = vunpack.c.h.b16 %v229
  %v558 = vunpack.c.l.b16 %v230
  %v559 = vunpack.c.l.b16 %v231
  %v560 = vunpack.c.h.b16 %v231
  %v561 = vunpack.c.l.b16 %v232
  %v562 = vunpack.c.l.b16 %v233
  %v563 = vunpack.c.h.b16 %v233
  %v564 = vunpack.c.l.b16 %v234
  %v565 = vunpack.c.l.b16 %v235
  %v566 = vunpack.c.h.b16 %v235
  %v567 = vunpack.c.l.b16 %v236
  %v568 = vunpack.c.l.b16 %v237
  %v569 = vunpack.c.h.b16 %v237
  %v570 = vunpack.c.l.b16 %v238
  %v571 = vunpack.c.l.b16 %v239
  %v572 = vunpack.c.h.b16 %v239
  %v573 = vunpack.c.l.b16 %v240
  %v574 = vunpack.c.l.b16 %v241
  %v575 = vunpack.c.h.b16 %v241
  %v576 = vunpack.c.l.b16 %v242
  %v577 = vunpack.c.l.b16 %v243
  %v578 = vunpack.c.h.b16 %v243
  %v579 = vunpack.c.l.b16 %v244
  %v580 = vunpack.c.l.b16 %v245
  %v581 = vunpack.c.h.b16 %v245
  %v582 = vunpack.c.l.b16 %v246
  %v583 = vunpack.c.l.b16 %v247
  %v584 = vunpack.c.h.b16 %v247
  %v585 = vunpack.c.l.b16 %v248
  %v586 = vunpack.c.l.b16 %v249
  %v587 = vunpack.c.h.b16 %v249
  %v588 = vunpack.c.l.b16 %v250
  %v589 = vpack.c.b16 %v418, %v415
  %v590 = vpack.c.b16 %v419, %v416
  %v591 = vpack.c.b16 %v420, %v417
  %v592 = vpack.c.b16 %v424, %v421
  %v593 = vpack.c.b16 %v425, %v422
  %v594 = vpack.c.b16 %v426, %v423
  %v595 = vpack.c.b16 %v430, %v427
  %v596 = vpack.c.b16 %v431, %v428
  %v597 = vpack.c.b16 %v432, %v429
  %v598 = vpack.c.b16 %v436, %v433
  %v599 = vpack.c.b16 %v437, %v434
  %v600 = vpack.c.b16 %v438, %v435
  %v601 = vpack.c.b16 %v442, %v439
  %v602 = vpack.c.b16 %v443, %v440
  %v603 = vpack.c.b16 %v444, %v441
  %v604 = vpack.c.b16 %v448, %v445
  %v605 = vpack.c.b16 %v449, %v446
  %v606 = vpack.c.b16 %v450, %v447
  %v607 = vpack.c.b16 %v454, %v451
  %v608 = vpack.c.b16 %v455, %v452
  %v609 = vpack.c.b16 %v456, %v453
  %v610 = vpack.c.b16 %v460, %v457
  %v611 = vpack.c.b16 %v461, %v458
  %v612 = vpack.c.b16 %v462, %v459
  %v613 = vpack.c.b16 %v466, %v463
  %v614 = vpack.c.b16 %v467, %v464
  %v615 = vpack.c.b16 %v468, %v465
  %v616 = vpack.c.b16 %v472, %v469
  %v617 = vpack.c.b16 %v473, %v470
  %v618 = vpack.c.b16 %v474, %v471
  %v619 = vpack.c.b16 %v478, %v475
  %v620 = vpack.c.b16 %v479, %v476
  %v621 = vpack.c.b16 %v480, %v477
  %v622 = vpack.c.b16 %v484, %v481
  %v623 = vpack.c.b16 %v485, %v482
  %v624 = vpack.c.b16 %v486, %v483
  %v625 = vpack.c.b16 %v490, %v487
  %v626 = vpack.c.b16 %v491, %v488
  %v627 = vpack.c.b16 %v492, %v489
  %v628 = vpack.c.b16 %v496, %v493
  %v629 = vpack.c.b16 %v497, %v494
  %v630 = vpack.c.b16 %v498, %v495
  %v631 = vpack.c.b16 %v502, %v499
  %v632 = vpack.c.b16 %v503, %v500
  %v633 = vpack.c.b16 %v504, %v501
  %v634 = vpack.c.b16 %v508, %v505
  %v635 = vpack.c.b16 %v509, %v506
  %v636 = vpack.c.b16 %v510, %v507
  %v637 = vpack.c.b16 %v514, %v511
  %v638 = vpack.c.b16 %v515, %v512
  %v639 = vpack.c.b16 %v516, %v513
  %v640 = vpack.c.b16 %v520, %v517
  %v641 = vpack.c.b16 %v521, %v518
  %v642 = vpack.c.b16 %v522, %v519
  %v643 = vpack.c.b16 %v526, %v523
  %v644 = vpack.c.b16 %v527, %v524
  %v645 = vpack.c.b16 %v528, %v525
  %v646 = vpack.c.b16 %v532, %v529
  %v647 = vpack.c.b16 %v533, %v530
  %v648 = vpack.c.b16 %v534, %v531
  %v649 = vpack.c.b16 %v538, %v535
  %v650 = vpack.c.b16 %v539, %v536
  %v651 = vpack.c.b16 %v540, %v537
  %v652 = vpack.c.b16 %v544, %v541
  %v653 = vpack.c.b16 %v545, %v542
  %v654 = vpack.c.b16 %v546, %v543
  %v655 = vpack.c.b16 %v550, %v547
  %v656 = vpack.c.b16 %v551, %v548
  %v657 = vpack.c.b16 %v552, %v549
  %v658 = vpack.c.b16 %v556, %v553
  %v659 = vpack.c.b16 %v557, %v554
  %v660 = vpack.c.b16 %v558, %v555
  %v661 = vpack.c.b16 %v562, %v559
  %v662 = vpack.c.b16 %v563, %v560
  %v663 = vpack.c.b16 %v564, %v561
  %v664 = vpack.c.b16 %v568, %v565
  %v665 = vpack.c.b16 %v569, %v566
  %v666 = vpack.c.b16 %v570, %v567
  %v667 = vpack.c.b16 %v574, %v571
  %v668 = vpack.c.b16 %v575, %v572
  %v669 = vpack.c.b16 %v576, %v573
  %v670 = vpack.c.b16 %v580, %v577
  %v671 = vpack.c.b16 %v581, %v578
  %v672 = vpack.c.b16 %v582, %v579
  %v673 = vpack.c.b16 %v586, %v583
  %v674 = vpack.c.b16 %v587, %v584
  %v675 = vpack.c.b16 %v588, %v585
  %v811 = vunpack.c.l.b16 %v251
  %v812 = vunpack.c.l.b16 %v252
  %v813 = vunpack.c.l.b16 %v253
  %v814 = vunpack.c.l.b16 %v254
  %v815 = vunpack.c.l.b16 %v255
  %v816 = vunpack.c.l.b16 %v256
  %v817 = vunpack.c.l.b16 %v257
  %v818 = vunpack.c.l.b16 %v258
  %v819 = vunpack.c.l.b16 %v259
  %v820 = vunpack.c.l.b16 %v260
  %v821 = vunpack.c.l.b16 %v261
  %v822 = vunpack.c.l.b16 %v262
  %v823 = vunpack.c.l.b16 %v263
  %v824 = vunpack.c.l.b16 %v264
  %v825 = vunpack.c.l.b16 %v265
  %v826 = vunpack.c.l.b16 %v266
  %v827 = vunpack.c.l.b16 %v267
  %v828 = vunpack.c.l.b16 %v268
  %v829 = vunpack.c.l.b16 %v269
  %v830 = vunpack.c.l.b16 %v270
  %v831 = vunpack.c.l.b16 %v271
  %v832 = vunpack.c.l.b16 %v272
  %v833 = vunpack.c.l.b16 %v273
  %v834 = vunpack.c.l.b16 %v274
  %v835 = vunpack.c.l.b16 %v275
  %v836 = vunpack.c.l.b16 %v276
  %v837 = vunpack.c.l.b16 %v277
  %v838 = vunpack.c.l.b16 %v278
  %v839 = vunpack.c.l.b16 %v279
  %v840 = vunpack.c.l.b16 %v280
  %v841 = vunpack.c.l.b16 %v281
  %v842 = vunpack.c.l.b16 %v282
  %v843 = vunpack.c.l.b16 %v283
  %v844 = vunpack.c.l.b16 %v284
  %v845 = vunpack.c.l.b16 %v285
  %v846 = vunpack.c.l.b16 %v286
  %v847 = vunpack.c.l.b16 %v287
  %v848 = vunpack.c.l.b16 %v288
  %v849 = vunpack.c.l.b16 %v289
  %v850 = vunpack.c.l.b16 %v290
  %v851 = vunpack.c.l.b16 %v291
  %v852 = vunpack.c.l.b16 %v292
  %v853 = vunpack.c.l.b16 %v293
  %v854 = vunpack.c.l.b16 %v294
  %v855 = vunpack.c.l.b16 %v295
  %v856 = vunpack.c.l.b16 %v296
  %v857 = vunpack.c.l.b16 %v297
  %v858 = vunpack.c.l.b16 %v298
  %v859 = vpack.c.b16 %v812, %v811
  %v860 = vpack.c.b16 %v814, %v813
  %v861 = vpack.c.b16 %v816, %v815
  %v862 = vpack.c.b16 %v818, %v817
  %v863 = vpack.c.b16 %v820, %v819
  %v864 = vpack.c.b16 %v822, %v821
  %v865 = vpack.c.b16 %v824, %v823
  %v866 = vpack.c.b16 %v826, %v825
  %v867 = vpack.c.b16 %v828, %v827
  %v868 = vpack.c.b16 %v830, %v829
  %v869 = vpack.c.b16 %v832, %v831
  %v870 = vpack.c.b16 %v834, %v833
  %v871 = vpack.c.b16 %v836, %v835
  %v872 = vpack.c.b16 %v838, %v837
  %v873 = vpack.c.b16 %v840, %v839
  %v874 = vpack.c.b16 %v842, %v841
  %v875 = vpack.c.b16 %v844, %v843
  %v876 = vpack.c.b16 %v846, %v845
  %v877 = vpack.c.b16 %v848, %v847
  %v878 = vpack.c.b16 %v850, %v849
  %v879 = vpack.c.b16 %v852, %v851
  %v880 = vpack.c.b16 %v854, %v853
  %v881 = vpack.c.b16 %v856, %v855
  %v882 = vpack.c.b16 %v858, %v857
  %907 = vmatprep.subr.bf16.mxu0 0
  %908 = vmatpush1.bf16.msra.mxu0 %v866
  %909 = vmatprep.subr.bf16.mxu0 0
  %910 = vmatpush1.bf16.msra.mxu0 %v865
  %911 = vmatprep.subr.bf16.mxu0 0
  %912 = vmatpush1.bf16.msra.mxu0 %v864
  %913 = vmatprep.subr.bf16.mxu0 0
  %914 = vmatpush1.bf16.msra.mxu0 %v863
  %915 = vmatprep.subr.bf16.mxu0 0
  %916 = vmatpush1.bf16.msra.mxu0 %v862
  %917 = vmatprep.subr.bf16.mxu0 0
  %918 = vmatpush1.bf16.msra.mxu0 %v861
  %919 = vmatprep.subr.bf16.mxu0 0
  %920 = vmatpush1.bf16.msra.mxu0 %v860
  %921 = vmatprep.subr.bf16.mxu0 0
  %922 = vmatpush1.bf16.msra.mxu0 %v859
  %923 = vmatprep.subr.bf16.mxu0 0
  %924 = vmatpush2.bf16.msra.mxu0 %v874
  %925 = vmatprep.subr.bf16.mxu0 0
  %926 = vmatpush2.bf16.msra.mxu0 %v873
  %927 = vmatprep.subr.bf16.mxu0 0
  %928 = vmatpush2.bf16.msra.mxu0 %v872
  %929 = vmatprep.subr.bf16.mxu0 0
  %930 = vmatpush2.bf16.msra.mxu0 %v871
  %931 = vmatprep.subr.bf16.mxu0 0
  %932 = vmatpush2.bf16.msra.mxu0 %v870
  %933 = vmatprep.subr.bf16.mxu0 0
  %934 = vmatpush2.bf16.msra.mxu0 %v869
  %935 = vmatprep.subr.bf16.mxu0 0
  %936 = vmatpush2.bf16.msra.mxu0 %v868
  %937 = vmatprep.subr.bf16.mxu0 0
  %938 = vmatpush2.bf16.msra.mxu0 %v867
  %939 = vmatprep.mubr.bf16.mxu0 %v590
  %940 = vmatmul.mubr.bf16.gmra.mxu0 %v589
  %v941 = vpop.f32.mrf.mxu0
  %v942 = vadd.f32 0.0, %v941
  %v943 = vpop.f32.mrf.mxu0
  %v944 = vpop.f32.mrf.mxu0
  %v945 = vadd.f32 0.0, %v944
  %v946 = vpop.f32.mrf.mxu0
  %947 = vmatprep.mubr.bf16.mxu0 %v593
  %948 = vmatmul.mubr.bf16.gmra.mxu0 %v592
  %v949 = vpop.f32.mrf.mxu0
  %v950 = vadd.f32 0.0, %v949
  %v951 = vpop.f32.mrf.mxu0
  %v952 = vpop.f32.mrf.mxu0
  %v953 = vadd.f32 0.0, %v952
  %v954 = vpop.f32.mrf.mxu0
  %955 = vmatprep.mubr.bf16.mxu0 %v596
  %956 = vmatmul.mubr.bf16.gmra.mxu0 %v595
  %v957 = vpop.f32.mrf.mxu0
  %v958 = vadd.f32 0.0, %v957
  %v959 = vpop.f32.mrf.mxu0
  %v960 = vpop.f32.mrf.mxu0
  %v961 = vadd.f32 0.0, %v960
  %v962 = vpop.f32.mrf.mxu0
  %963 = vmatprep.mubr.bf16.mxu0 %v599
  %964 = vmatmul.mubr.bf16.gmra.mxu0 %v598
  %v965 = vpop.f32.mrf.mxu0
  %v966 = vadd.f32 0.0, %v965
  %v967 = vpop.f32.mrf.mxu0
  %v968 = vpop.f32.mrf.mxu0
  %v969 = vadd.f32 0.0, %v968
  %v970 = vpop.f32.mrf.mxu0
  %971 = vmatprep.mubr.bf16.mxu0 %v602
  %972 = vmatmul.mubr.bf16.gmra.mxu0 %v601
  %v973 = vpop.f32.mrf.mxu0
  %v974 = vadd.f32 0.0, %v973
  %v975 = vpop.f32.mrf.mxu0
  %v976 = vpop.f32.mrf.mxu0
  %v977 = vadd.f32 0.0, %v976
  %v978 = vpop.f32.mrf.mxu0
  %979 = vmatprep.mubr.bf16.mxu0 %v605
  %980 = vmatmul.mubr.bf16.gmra.mxu0 %v604
  %v981 = vpop.f32.mrf.mxu0
  %v982 = vadd.f32 0.0, %v981
  %v983 = vpop.f32.mrf.mxu0
  %v984 = vpop.f32.mrf.mxu0
  %v985 = vadd.f32 0.0, %v984
  %v986 = vpop.f32.mrf.mxu0
  %987 = vmatprep.mubr.bf16.mxu0 %v608
  %988 = vmatmul.mubr.bf16.gmra.mxu0 %v607
  %v989 = vpop.f32.mrf.mxu0
  %v990 = vadd.f32 0.0, %v989
  %v991 = vpop.f32.mrf.mxu0
  %v992 = vpop.f32.mrf.mxu0
  %v993 = vadd.f32 0.0, %v992
  %v994 = vpop.f32.mrf.mxu0
  %995 = vmatprep.mubr.bf16.mxu0 %v611
  %996 = vmatmul.mubr.bf16.gmra.mxu0 %v610
  %v997 = vpop.f32.mrf.mxu0
  %v998 = vadd.f32 0.0, %v997
  %v999 = vpop.f32.mrf.mxu0
  %v1000 = vpop.f32.mrf.mxu0
  %v1001 = vadd.f32 0.0, %v1000
  %v1002 = vpop.f32.mrf.mxu0
  %1003 = vmatprep.mubr.bf16.mxu0 %v614
  %1004 = vmatmul.mubr.bf16.gmra.mxu0 %v613
  %v1005 = vpop.f32.mrf.mxu0
  %v1006 = vadd.f32 0.0, %v1005
  %v1007 = vpop.f32.mrf.mxu0
  %v1008 = vpop.f32.mrf.mxu0
  %v1009 = vadd.f32 0.0, %v1008
  %v1010 = vpop.f32.mrf.mxu0
  %1011 = vmatprep.mubr.bf16.mxu0 %v617
  %1012 = vmatmul.mubr.bf16.gmra.mxu0 %v616
  %v1013 = vpop.f32.mrf.mxu0
  %v1014 = vadd.f32 0.0, %v1013
  %v1015 = vpop.f32.mrf.mxu0
  %v1016 = vpop.f32.mrf.mxu0
  %v1017 = vadd.f32 0.0, %v1016
  %v1018 = vpop.f32.mrf.mxu0
  %1019 = vmatprep.mubr.bf16.mxu0 %v620
  %1020 = vmatmul.mubr.bf16.gmra.mxu0 %v619
  %v1021 = vpop.f32.mrf.mxu0
  %v1022 = vadd.f32 0.0, %v1021
  %v1023 = vpop.f32.mrf.mxu0
  %v1024 = vpop.f32.mrf.mxu0
  %v1025 = vadd.f32 0.0, %v1024
  %v1026 = vpop.f32.mrf.mxu0
  %1027 = vmatprep.mubr.bf16.mxu0 %v623
  %1028 = vmatmul.mubr.bf16.gmra.mxu0 %v622
  %v1029 = vpop.f32.mrf.mxu0
  %v1030 = vadd.f32 0.0, %v1029
  %v1031 = vpop.f32.mrf.mxu0
  %v1032 = vpop.f32.mrf.mxu0
  %v1033 = vadd.f32 0.0, %v1032
  %v1034 = vpop.f32.mrf.mxu0
  %1035 = vmatprep.mubr.bf16.mxu0 %v626
  %1036 = vmatmul.mubr.bf16.gmra.mxu0 %v625
  %v1037 = vpop.f32.mrf.mxu0
  %v1038 = vadd.f32 0.0, %v1037
  %v1039 = vpop.f32.mrf.mxu0
  %v1040 = vpop.f32.mrf.mxu0
  %v1041 = vadd.f32 0.0, %v1040
  %v1042 = vpop.f32.mrf.mxu0
  %1043 = vmatprep.mubr.bf16.mxu0 %v629
  %1044 = vmatmul.mubr.bf16.gmra.mxu0 %v628
  %v1045 = vpop.f32.mrf.mxu0
  %v1046 = vadd.f32 0.0, %v1045
  %v1047 = vpop.f32.mrf.mxu0
  %v1048 = vpop.f32.mrf.mxu0
  %v1049 = vadd.f32 0.0, %v1048
  %v1050 = vpop.f32.mrf.mxu0
  %1051 = vmatprep.mubr.bf16.mxu0 %v632
  %1052 = vmatmul.mubr.bf16.gmra.mxu0 %v631
  %v1053 = vpop.f32.mrf.mxu0
  %v1054 = vadd.f32 0.0, %v1053
  %v1055 = vpop.f32.mrf.mxu0
  %v1056 = vpop.f32.mrf.mxu0
  %v1057 = vadd.f32 0.0, %v1056
  %v1058 = vpop.f32.mrf.mxu0
  %1059 = vmatprep.mubr.bf16.mxu0 %v635
  %1060 = vmatmul.mubr.bf16.gmra.mxu0 %v634
  %v1061 = vpop.f32.mrf.mxu0
  %v1062 = vadd.f32 0.0, %v1061
  %v1063 = vpop.f32.mrf.mxu0
  %v1064 = vpop.f32.mrf.mxu0
  %v1065 = vadd.f32 0.0, %v1064
  %v1066 = vpop.f32.mrf.mxu0
  %1067 = vmatprep.mubr.bf16.mxu0 %v638
  %1068 = vmatmul.mubr.bf16.gmra.mxu0 %v637
  %v1069 = vpop.f32.mrf.mxu0
  %v1070 = vadd.f32 0.0, %v1069
  %v1071 = vpop.f32.mrf.mxu0
  %v1072 = vpop.f32.mrf.mxu0
  %v1073 = vadd.f32 0.0, %v1072
  %v1074 = vpop.f32.mrf.mxu0
  %1075 = vmatprep.mubr.bf16.mxu0 %v641
  %1076 = vmatmul.mubr.bf16.gmra.mxu0 %v640
  %v1077 = vpop.f32.mrf.mxu0
  %v1078 = vadd.f32 0.0, %v1077
  %v1079 = vpop.f32.mrf.mxu0
  %v1080 = vpop.f32.mrf.mxu0
  %v1081 = vadd.f32 0.0, %v1080
  %v1082 = vpop.f32.mrf.mxu0
  %1083 = vmatprep.mubr.bf16.mxu0 %v644
  %1084 = vmatmul.mubr.bf16.gmra.mxu0 %v643
  %v1085 = vpop.f32.mrf.mxu0
  %v1086 = vadd.f32 0.0, %v1085
  %v1087 = vpop.f32.mrf.mxu0
  %v1088 = vpop.f32.mrf.mxu0
  %v1089 = vadd.f32 0.0, %v1088
  %v1090 = vpop.f32.mrf.mxu0
  %1091 = vmatprep.mubr.bf16.mxu0 %v647
  %1092 = vmatmul.mubr.bf16.gmra.mxu0 %v646
  %v1093 = vpop.f32.mrf.mxu0
  %v1094 = vadd.f32 0.0, %v1093
  %v1095 = vpop.f32.mrf.mxu0
  %v1096 = vpop.f32.mrf.mxu0
  %v1097 = vadd.f32 0.0, %v1096
  %v1098 = vpop.f32.mrf.mxu0
  %1099 = vmatprep.mubr.bf16.mxu0 %v650
  %1100 = vmatmul.mubr.bf16.gmra.mxu0 %v649
  %v1101 = vpop.f32.mrf.mxu0
  %v1102 = vadd.f32 0.0, %v1101
  %v1103 = vpop.f32.mrf.mxu0
  %v1104 = vpop.f32.mrf.mxu0
  %v1105 = vadd.f32 0.0, %v1104
  %v1106 = vpop.f32.mrf.mxu0
  %1107 = vmatprep.mubr.bf16.mxu0 %v653
  %1108 = vmatmul.mubr.bf16.gmra.mxu0 %v652
  %v1109 = vpop.f32.mrf.mxu0
  %v1110 = vadd.f32 0.0, %v1109
  %v1111 = vpop.f32.mrf.mxu0
  %v1112 = vpop.f32.mrf.mxu0
  %v1113 = vadd.f32 0.0, %v1112
  %v1114 = vpop.f32.mrf.mxu0
  %1115 = vmatprep.mubr.bf16.mxu0 %v656
  %1116 = vmatmul.mubr.bf16.gmra.mxu0 %v655
  %v1117 = vpop.f32.mrf.mxu0
  %v1118 = vadd.f32 0.0, %v1117
  %v1119 = vpop.f32.mrf.mxu0
  %v1120 = vpop.f32.mrf.mxu0
  %v1121 = vadd.f32 0.0, %v1120
  %v1122 = vpop.f32.mrf.mxu0
  %1123 = vmatprep.mubr.bf16.mxu0 %v659
  %1124 = vmatmul.mubr.bf16.gmra.mxu0 %v658
  %v1125 = vpop.f32.mrf.mxu0
  %v1126 = vadd.f32 0.0, %v1125
  %v1127 = vpop.f32.mrf.mxu0
  %v1128 = vpop.f32.mrf.mxu0
  %v1129 = vadd.f32 0.0, %v1128
  %v1130 = vpop.f32.mrf.mxu0
  %1131 = vmatprep.mubr.bf16.mxu0 %v662
  %1132 = vmatmul.mubr.bf16.gmra.mxu0 %v661
  %v1133 = vpop.f32.mrf.mxu0
  %v1134 = vadd.f32 0.0, %v1133
  %v1135 = vpop.f32.mrf.mxu0
  %v1136 = vpop.f32.mrf.mxu0
  %v1137 = vadd.f32 0.0, %v1136
  %v1138 = vpop.f32.mrf.mxu0
  %1139 = vmatprep.mubr.bf16.mxu0 %v665
  %1140 = vmatmul.mubr.bf16.gmra.mxu0 %v664
  %v1141 = vpop.f32.mrf.mxu0
  %v1142 = vadd.f32 0.0, %v1141
  %v1143 = vpop.f32.mrf.mxu0
  %v1144 = vpop.f32.mrf.mxu0
  %v1145 = vadd.f32 0.0, %v1144
  %v1146 = vpop.f32.mrf.mxu0
  %1147 = vmatprep.mubr.bf16.mxu0 %v668
  %1148 = vmatmul.mubr.bf16.gmra.mxu0 %v667
  %v1149 = vpop.f32.mrf.mxu0
  %v1150 = vadd.f32 0.0, %v1149
  %v1151 = vpop.f32.mrf.mxu0
  %v1152 = vpop.f32.mrf.mxu0
  %v1153 = vadd.f32 0.0, %v1152
  %v1154 = vpop.f32.mrf.mxu0
  %1155 = vmatprep.mubr.bf16.mxu0 %v671
  %1156 = vmatmul.mubr.bf16.gmra.mxu0 %v670
  %v1157 = vpop.f32.mrf.mxu0
  %v1158 = vadd.f32 0.0, %v1157
  %v1159 = vpop.f32.mrf.mxu0
  %v1160 = vpop.f32.mrf.mxu0
  %v1161 = vadd.f32 0.0, %v1160
  %v1162 = vpop.f32.mrf.mxu0
  %1163 = vmatprep.mubr.bf16.mxu0 %v674
  %1164 = vmatmul.mubr.bf16.gmra.mxu0 %v673
  %v1165 = vpop.f32.mrf.mxu0
  %v1166 = vadd.f32 0.0, %v1165
  %v1167 = vpop.f32.mrf.mxu0
  %v1168 = vpop.f32.mrf.mxu0
  %v1169 = vadd.f32 0.0, %v1168
  %v1170 = vpop.f32.mrf.mxu0
  %1171 = vdwg.mxu0
  %1172 = vmatprep.subr.bf16.mxu0 0
  %1173 = vmatpush1.bf16.msra.mxu0 %v882
  %1174 = vmatprep.subr.bf16.mxu0 0
  %1175 = vmatpush1.bf16.msra.mxu0 %v881
  %1176 = vmatprep.subr.bf16.mxu0 0
  %1177 = vmatpush1.bf16.msra.mxu0 %v880
  %1178 = vmatprep.subr.bf16.mxu0 0
  %1179 = vmatpush1.bf16.msra.mxu0 %v879
  %1180 = vmatprep.subr.bf16.mxu0 0
  %1181 = vmatpush1.bf16.msra.mxu0 %v878
  %1182 = vmatprep.subr.bf16.mxu0 0
  %1183 = vmatpush1.bf16.msra.mxu0 %v877
  %1184 = vmatprep.subr.bf16.mxu0 0
  %1185 = vmatpush1.bf16.msra.mxu0 %v876
  %1186 = vmatprep.subr.bf16.mxu0 0
  %1187 = vmatpush1.bf16.msra.mxu0 %v875
  %1188 = vmatprep.subr.bf16.mxu0 0
  %1189 = vmatpush2.bf16.msra.mxu0 0
  %1190 = vmatprep.subr.bf16.mxu0 0
  %1191 = vmatpush2.bf16.msra.mxu0 0
  %1192 = vmatprep.subr.bf16.mxu0 0
  %1193 = vmatpush2.bf16.msra.mxu0 0
  %1194 = vmatprep.subr.bf16.mxu0 0
  %1195 = vmatpush2.bf16.msra.mxu0 0
  %1196 = vmatprep.subr.bf16.mxu0 0
  %1197 = vmatpush2.bf16.msra.mxu0 0
  %1198 = vmatprep.subr.bf16.mxu0 0
  %1199 = vmatpush2.bf16.msra.mxu0 0
  %1200 = vmatprep.subr.bf16.mxu0 0
  %1201 = vmatpush2.bf16.msra.mxu0 0
  %1202 = vmatprep.subr.bf16.mxu0 0
  %1203 = vmatpush2.bf16.msra.mxu0 0
  %1204 = vmatprep.mubr.bf16.mxu0 0
  %1205 = vmatmul.mubr.bf16.gmra.mxu0 %v591
  %v1206 = vpop.f32.mrf.mxu0
  %v1207 = vadd.f32 %v942, %v1206
  %v1208 = vpop.f32.mrf.mxu0
  %v1209 = vpop.f32.mrf.mxu0
  %v1210 = vadd.f32 %v945, %v1209
  %v1211 = vpop.f32.mrf.mxu0
  %1212 = vmatprep.mubr.bf16.mxu0 0
  %1213 = vmatmul.mubr.bf16.gmra.mxu0 %v594
  %v1214 = vpop.f32.mrf.mxu0
  %v1215 = vadd.f32 %v950, %v1214
  %v1216 = vpop.f32.mrf.mxu0
  %v1217 = vpop.f32.mrf.mxu0
  %v1218 = vadd.f32 %v953, %v1217
  %v1219 = vpop.f32.mrf.mxu0
  %1220 = vmatprep.mubr.bf16.mxu0 0
  %1221 = vmatmul.mubr.bf16.gmra.mxu0 %v597
  %v1222 = vpop.f32.mrf.mxu0
  %v1223 = vadd.f32 %v958, %v1222
  %v1224 = vpop.f32.mrf.mxu0
  %v1225 = vpop.f32.mrf.mxu0
  %v1226 = vadd.f32 %v961, %v1225
  %v1227 = vpop.f32.mrf.mxu0
  %1228 = vmatprep.mubr.bf16.mxu0 0
  %1229 = vmatmul.mubr.bf16.gmra.mxu0 %v600
  %v1230 = vpop.f32.mrf.mxu0
  %v1231 = vadd.f32 %v966, %v1230
  %v1232 = vpop.f32.mrf.mxu0
  %v1233 = vpop.f32.mrf.mxu0
  %v1234 = vadd.f32 %v969, %v1233
  %v1235 = vpop.f32.mrf.mxu0
  %1236 = vmatprep.mubr.bf16.mxu0 0
  %1237 = vmatmul.mubr.bf16.gmra.mxu0 %v603
  %v1238 = vpop.f32.mrf.mxu0
  %v1239 = vadd.f32 %v974, %v1238
  %v1240 = vpop.f32.mrf.mxu0
  %v1241 = vpop.f32.mrf.mxu0
  %v1242 = vadd.f32 %v977, %v1241
  %v1243 = vpop.f32.mrf.mxu0
  %1244 = vmatprep.mubr.bf16.mxu0 0
  %1245 = vmatmul.mubr.bf16.gmra.mxu0 %v606
  %v1246 = vpop.f32.mrf.mxu0
  %v1247 = vadd.f32 %v982, %v1246
  %v1248 = vpop.f32.mrf.mxu0
  %v1249 = vpop.f32.mrf.mxu0
  %v1250 = vadd.f32 %v985, %v1249
  %v1251 = vpop.f32.mrf.mxu0
  %1252 = vmatprep.mubr.bf16.mxu0 0
  %1253 = vmatmul.mubr.bf16.gmra.mxu0 %v609
  %v1254 = vpop.f32.mrf.mxu0
  %v1255 = vadd.f32 %v990, %v1254
  %v1256 = vpop.f32.mrf.mxu0
  %v1257 = vpop.f32.mrf.mxu0
  %v1258 = vadd.f32 %v993, %v1257
  %v1259 = vpop.f32.mrf.mxu0
  %1260 = vmatprep.mubr.bf16.mxu0 0
  %1261 = vmatmul.mubr.bf16.gmra.mxu0 %v612
  %v1262 = vpop.f32.mrf.mxu0
  %v1263 = vadd.f32 %v998, %v1262
  %v1264 = vpop.f32.mrf.mxu0
  %v1265 = vpop.f32.mrf.mxu0
  %v1266 = vadd.f32 %v1001, %v1265
  %v1267 = vpop.f32.mrf.mxu0
  %1268 = vmatprep.mubr.bf16.mxu0 0
  %1269 = vmatmul.mubr.bf16.gmra.mxu0 %v615
  %v1270 = vpop.f32.mrf.mxu0
  %v1271 = vadd.f32 %v1006, %v1270
  %v1272 = vpop.f32.mrf.mxu0
  %v1273 = vpop.f32.mrf.mxu0
  %v1274 = vadd.f32 %v1009, %v1273
  %v1275 = vpop.f32.mrf.mxu0
  %1276 = vmatprep.mubr.bf16.mxu0 0
  %1277 = vmatmul.mubr.bf16.gmra.mxu0 %v618
  %v1278 = vpop.f32.mrf.mxu0
  %v1279 = vadd.f32 %v1014, %v1278
  %v1280 = vpop.f32.mrf.mxu0
  %v1281 = vpop.f32.mrf.mxu0
  %v1282 = vadd.f32 %v1017, %v1281
  %v1283 = vpop.f32.mrf.mxu0
  %1284 = vmatprep.mubr.bf16.mxu0 0
  %1285 = vmatmul.mubr.bf16.gmra.mxu0 %v621
  %v1286 = vpop.f32.mrf.mxu0
  %v1287 = vadd.f32 %v1022, %v1286
  %v1288 = vpop.f32.mrf.mxu0
  %v1289 = vpop.f32.mrf.mxu0
  %v1290 = vadd.f32 %v1025, %v1289
  %v1291 = vpop.f32.mrf.mxu0
  %1292 = vmatprep.mubr.bf16.mxu0 0
  %1293 = vmatmul.mubr.bf16.gmra.mxu0 %v624
  %v1294 = vpop.f32.mrf.mxu0
  %v1295 = vadd.f32 %v1030, %v1294
  %v1296 = vpop.f32.mrf.mxu0
  %v1297 = vpop.f32.mrf.mxu0
  %v1298 = vadd.f32 %v1033, %v1297
  %v1299 = vpop.f32.mrf.mxu0
  %1300 = vmatprep.mubr.bf16.mxu0 0
  %1301 = vmatmul.mubr.bf16.gmra.mxu0 %v627
  %v1302 = vpop.f32.mrf.mxu0
  %v1303 = vadd.f32 %v1038, %v1302
  %v1304 = vpop.f32.mrf.mxu0
  %v1305 = vpop.f32.mrf.mxu0
  %v1306 = vadd.f32 %v1041, %v1305
  %v1307 = vpop.f32.mrf.mxu0
  %1308 = vmatprep.mubr.bf16.mxu0 0
  %1309 = vmatmul.mubr.bf16.gmra.mxu0 %v630
  %v1310 = vpop.f32.mrf.mxu0
  %v1311 = vadd.f32 %v1046, %v1310
  %v1312 = vpop.f32.mrf.mxu0
  %v1313 = vpop.f32.mrf.mxu0
  %v1314 = vadd.f32 %v1049, %v1313
  %v1315 = vpop.f32.mrf.mxu0
  %1316 = vmatprep.mubr.bf16.mxu0 0
  %1317 = vmatmul.mubr.bf16.gmra.mxu0 %v633
  %v1318 = vpop.f32.mrf.mxu0
  %v1319 = vadd.f32 %v1054, %v1318
  %v1320 = vpop.f32.mrf.mxu0
  %v1321 = vpop.f32.mrf.mxu0
  %v1322 = vadd.f32 %v1057, %v1321
  %v1323 = vpop.f32.mrf.mxu0
  %1324 = vmatprep.mubr.bf16.mxu0 0
  %1325 = vmatmul.mubr.bf16.gmra.mxu0 %v636
  %v1326 = vpop.f32.mrf.mxu0
  %v1327 = vadd.f32 %v1062, %v1326
  %v1328 = vpop.f32.mrf.mxu0
  %v1329 = vpop.f32.mrf.mxu0
  %v1330 = vadd.f32 %v1065, %v1329
  %v1331 = vpop.f32.mrf.mxu0
  %1332 = vmatprep.mubr.bf16.mxu0 0
  %1333 = vmatmul.mubr.bf16.gmra.mxu0 %v639
  %v1334 = vpop.f32.mrf.mxu0
  %v1335 = vadd.f32 %v1070, %v1334
  %v1336 = vpop.f32.mrf.mxu0
  %v1337 = vpop.f32.mrf.mxu0
  %v1338 = vadd.f32 %v1073, %v1337
  %v1339 = vpop.f32.mrf.mxu0
  %1340 = vmatprep.mubr.bf16.mxu0 0
  %1341 = vmatmul.mubr.bf16.gmra.mxu0 %v642
  %v1342 = vpop.f32.mrf.mxu0
  %v1343 = vadd.f32 %v1078, %v1342
  %v1344 = vpop.f32.mrf.mxu0
  %v1345 = vpop.f32.mrf.mxu0
  %v1346 = vadd.f32 %v1081, %v1345
  %v1347 = vpop.f32.mrf.mxu0
  %1348 = vmatprep.mubr.bf16.mxu0 0
  %1349 = vmatmul.mubr.bf16.gmra.mxu0 %v645
  %v1350 = vpop.f32.mrf.mxu0
  %v1351 = vadd.f32 %v1086, %v1350
  %v1352 = vpop.f32.mrf.mxu0
  %v1353 = vpop.f32.mrf.mxu0
  %v1354 = vadd.f32 %v1089, %v1353
  %v1355 = vpop.f32.mrf.mxu0
  %1356 = vmatprep.mubr.bf16.mxu0 0
  %1357 = vmatmul.mubr.bf16.gmra.mxu0 %v648
  %v1358 = vpop.f32.mrf.mxu0
  %v1359 = vadd.f32 %v1094, %v1358
  %v1360 = vpop.f32.mrf.mxu0
  %v1361 = vpop.f32.mrf.mxu0
  %v1362 = vadd.f32 %v1097, %v1361
  %v1363 = vpop.f32.mrf.mxu0
  %1364 = vmatprep.mubr.bf16.mxu0 0
  %1365 = vmatmul.mubr.bf16.gmra.mxu0 %v651
  %v1366 = vpop.f32.mrf.mxu0
  %v1367 = vadd.f32 %v1102, %v1366
  %v1368 = vpop.f32.mrf.mxu0
  %v1369 = vpop.f32.mrf.mxu0
  %v1370 = vadd.f32 %v1105, %v1369
  %v1371 = vpop.f32.mrf.mxu0
  %1372 = vmatprep.mubr.bf16.mxu0 0
  %1373 = vmatmul.mubr.bf16.gmra.mxu0 %v654
  %v1374 = vpop.f32.mrf.mxu0
  %v1375 = vadd.f32 %v1110, %v1374
  %v1376 = vpop.f32.mrf.mxu0
  %v1377 = vpop.f32.mrf.mxu0
  %v1378 = vadd.f32 %v1113, %v1377
  %v1379 = vpop.f32.mrf.mxu0
  %1380 = vmatprep.mubr.bf16.mxu0 0
  %1381 = vmatmul.mubr.bf16.gmra.mxu0 %v657
  %v1382 = vpop.f32.mrf.mxu0
  %v1383 = vadd.f32 %v1118, %v1382
  %v1384 = vpop.f32.mrf.mxu0
  %v1385 = vpop.f32.mrf.mxu0
  %v1386 = vadd.f32 %v1121, %v1385
  %v1387 = vpop.f32.mrf.mxu0
  %1388 = vmatprep.mubr.bf16.mxu0 0
  %1389 = vmatmul.mubr.bf16.gmra.mxu0 %v660
  %v1390 = vpop.f32.mrf.mxu0
  %v1391 = vadd.f32 %v1126, %v1390
  %v1392 = vpop.f32.mrf.mxu0
  %v1393 = vpop.f32.mrf.mxu0
  %v1394 = vadd.f32 %v1129, %v1393
  %v1395 = vpop.f32.mrf.mxu0
  %1396 = vmatprep.mubr.bf16.mxu0 0
  %1397 = vmatmul.mubr.bf16.gmra.mxu0 %v663
  %v1398 = vpop.f32.mrf.mxu0
  %v1399 = vadd.f32 %v1134, %v1398
  %v1400 = vpop.f32.mrf.mxu0
  %v1401 = vpop.f32.mrf.mxu0
  %v1402 = vadd.f32 %v1137, %v1401
  %v1403 = vpop.f32.mrf.mxu0
  %1404 = vmatprep.mubr.bf16.mxu0 0
  %1405 = vmatmul.mubr.bf16.gmra.mxu0 %v666
  %v1406 = vpop.f32.mrf.mxu0
  %v1407 = vadd.f32 %v1142, %v1406
  %v1408 = vpop.f32.mrf.mxu0
  %v1409 = vpop.f32.mrf.mxu0
  %v1410 = vadd.f32 %v1145, %v1409
  %v1411 = vpop.f32.mrf.mxu0
  %1412 = vmatprep.mubr.bf16.mxu0 0
  %1413 = vmatmul.mubr.bf16.gmra.mxu0 %v669
  %v1414 = vpop.f32.mrf.mxu0
  %v1415 = vadd.f32 %v1150, %v1414
  %v1416 = vpop.f32.mrf.mxu0
  %v1417 = vpop.f32.mrf.mxu0
  %v1418 = vadd.f32 %v1153, %v1417
  %v1419 = vpop.f32.mrf.mxu0
  %1420 = vmatprep.mubr.bf16.mxu0 0
  %1421 = vmatmul.mubr.bf16.gmra.mxu0 %v672
  %v1422 = vpop.f32.mrf.mxu0
  %v1423 = vadd.f32 %v1158, %v1422
  %v1424 = vpop.f32.mrf.mxu0
  %v1425 = vpop.f32.mrf.mxu0
  %v1426 = vadd.f32 %v1161, %v1425
  %v1427 = vpop.f32.mrf.mxu0
  %1428 = vmatprep.mubr.bf16.mxu0 0
  %1429 = vmatmul.mubr.bf16.gmra.mxu0 %v675
  %v1430 = vpop.f32.mrf.mxu0
  %v1431 = vadd.f32 %v1166, %v1430
  %v1432 = vpop.f32.mrf.mxu0
  %v1433 = vpop.f32.mrf.mxu0
  %v1434 = vadd.f32 %v1169, %v1433
  %v1435 = vpop.f32.mrf.mxu0
  %1436 = vdwg.mxu0
  %v1437 = vadd.f32 %v77, %v1207
  %v1438 = vadd.f32 %v78, %v1210
  %v1439 = vadd.f32 %v79, %v1215
  %v1440 = vadd.f32 %v80, %v1218
  %v1441 = vadd.f32 %v81, %v1223
  %v1442 = vadd.f32 %v82, %v1226
  %v1443 = vadd.f32 %v83, %v1231
  %v1444 = vadd.f32 %v84, %v1234
  %v1445 = vadd.f32 %v85, %v1239
  %v1446 = vadd.f32 %v86, %v1242
  %v1447 = vadd.f32 %v87, %v1247
  %v1448 = vadd.f32 %v88, %v1250
  %v1449 = vadd.f32 %v89, %v1255
  %v1450 = vadd.f32 %v90, %v1258
  %v1451 = vadd.f32 %v91, %v1263
  %v1452 = vadd.f32 %v92, %v1266
  %v1453 = vadd.f32 %v93, %v1271
  %v1454 = vadd.f32 %v94, %v1274
  %v1455 = vadd.f32 %v95, %v1279
  %v1456 = vadd.f32 %v96, %v1282
  %v1457 = vadd.f32 %v97, %v1287
  %v1458 = vadd.f32 %v98, %v1290
  %v1459 = vadd.f32 %v99, %v1295
  %v1460 = vadd.f32 %v100, %v1298
  %v1461 = vadd.f32 %v101, %v1303
  %v1462 = vadd.f32 %v102, %v1306
  %v1463 = vadd.f32 %v103, %v1311
  %v1464 = vadd.f32 %v104, %v1314
  %v1465 = vadd.f32 %v105, %v1319
  %v1466 = vadd.f32 %v106, %v1322
  %v1467 = vadd.f32 %v107, %v1327
  %v1468 = vadd.f32 %v108, %v1330
  %v1469 = vadd.f32 %v109, %v1335
  %v1470 = vadd.f32 %v110, %v1338
  %v1471 = vadd.f32 %v111, %v1343
  %v1472 = vadd.f32 %v112, %v1346
  %v1473 = vadd.f32 %v113, %v1351
  %v1474 = vadd.f32 %v114, %v1354
  %v1475 = vadd.f32 %v115, %v1359
  %v1476 = vadd.f32 %v116, %v1362
  %v1477 = vadd.f32 %v117, %v1367
  %v1478 = vadd.f32 %v118, %v1370
  %v1479 = vadd.f32 %v119, %v1375
  %v1480 = vadd.f32 %v120, %v1378
  %v1481 = vadd.f32 %v121, %v1383
  %v1482 = vadd.f32 %v122, %v1386
  %v1483 = vadd.f32 %v123, %v1391
  %v1484 = vadd.f32 %v124, %v1394
  %v1485 = vadd.f32 %v125, %v1399
  %v1486 = vadd.f32 %v126, %v1402
  %v1487 = vadd.f32 %v127, %v1407
  %v1488 = vadd.f32 %v128, %v1410
  %v1489 = vadd.f32 %v129, %v1415
  %v1490 = vadd.f32 %v130, %v1418
  %v1491 = vadd.f32 %v131, %v1423
  %v1492 = vadd.f32 %v132, %v1426
  %v1493 = vadd.f32 %v133, %v1431
  %v1494 = vadd.f32 %v134, %v1434
  %1495 = vst [vmem:[#allocation2] sm:$0xff] %v1437
  %1496 = vst [vmem:[#allocation2 + $0x8] sm:$0xff] %v1438
  %1497 = vst [vmem:[#allocation2 + $0x10] sm:$0xff] %v1439
  %1498 = vst [vmem:[#allocation2 + $0x18] sm:$0xff] %v1440
  %1499 = vst [vmem:[#allocation2 + $0x20] sm:$0xff] %v1441
  %1500 = vst [vmem:[#allocation2 + $0x28] sm:$0xff] %v1442
  %1501 = vst [vmem:[#allocation2 + $0x30] sm:$0xff] %v1443
  %1502 = vst [vmem:[#allocation2 + $0x38] sm:$0xff] %v1444
  %1503 = vst [vmem:[#allocation2 + $0x40] sm:$0xff] %v1445
  %1504 = vst [vmem:[#allocation2 + $0x48] sm:$0xff] %v1446
  %1505 = vst [vmem:[#allocation2 + $0x50] sm:$0xff] %v1447
  %1506 = vst [vmem:[#allocation2 + $0x58] sm:$0xff] %v1448
  %1507 = vst [vmem:[#allocation2 + $0x60] sm:$0xff] %v1449
  %1508 = vst [vmem:[#allocation2 + $0x68] sm:$0xff] %v1450
  %1509 = vst [vmem:[#allocation2 + $0x70] sm:$0xff] %v1451
  %1510 = vst [vmem:[#allocation2 + $0x78] sm:$0xff] %v1452
  %1511 = vst [vmem:[#allocation2 + $0x80] sm:$0xff] %v1453
  %1512 = vst [vmem:[#allocation2 + $0x88] sm:$0xff] %v1454
  %1513 = vst [vmem:[#allocation2 + $0x90] sm:$0xff] %v1455
  %1514 = vst [vmem:[#allocation2 + $0x98] sm:$0xff] %v1456
  %1515 = vst [vmem:[#allocation2 + $0xa0] sm:$0xff] %v1457
  %1516 = vst [vmem:[#allocation2 + $0xa8] sm:$0xff] %v1458
  %1517 = vst [vmem:[#allocation2 + $0xb0] sm:$0xff] %v1459
  %1518 = vst [vmem:[#allocation2 + $0xb8] sm:$0xff] %v1460
  %1519 = vst [vmem:[#allocation2 + $0xc0] sm:$0xff] %v1461
  %1520 = vst [vmem:[#allocation2 + $0xc8] sm:$0xff] %v1462
  %1521 = vst [vmem:[#allocation2 + $0xd0] sm:$0xff] %v1463
  %1522 = vst [vmem:[#allocation2 + $0xd8] sm:$0xff] %v1464
  %1523 = vst [vmem:[#allocation2 + $0xe0] sm:$0xff] %v1465
  %1524 = vst [vmem:[#allocation2 + $0xe8] sm:$0xff] %v1466
  %1525 = vst [vmem:[#allocation2 + $0xf0] sm:$0xff] %v1467
  %1526 = vst [vmem:[#allocation2 + $0xf8] sm:$0xff] %v1468
  %1527 = vst [vmem:[#allocation2 + $0x100] sm:$0xff] %v1469
  %1528 = vst [vmem:[#allocation2 + $0x108] sm:$0xff] %v1470
  %1529 = vst [vmem:[#allocation2 + $0x110] sm:$0xff] %v1471
  %1530 = vst [vmem:[#allocation2 + $0x118] sm:$0xff] %v1472
  %1531 = vst [vmem:[#allocation2 + $0x120] sm:$0xff] %v1473
  %1532 = vst [vmem:[#allocation2 + $0x128] sm:$0xff] %v1474
  %1533 = vst [vmem:[#allocation2 + $0x130] sm:$0xff] %v1475
  %1534 = vst [vmem:[#allocation2 + $0x138] sm:$0xff] %v1476
  %1535 = vst [vmem:[#allocation2 + $0x140] sm:$0xff] %v1477
  %1536 = vst [vmem:[#allocation2 + $0x148] sm:$0xff] %v1478
  %1537 = vst [vmem:[#allocation2 + $0x150] sm:$0xff] %v1479
  %1538 = vst [vmem:[#allocation2 + $0x158] sm:$0xff] %v1480
  %1539 = vst [vmem:[#allocation2 + $0x160] sm:$0xff] %v1481
  %1540 = vst [vmem:[#allocation2 + $0x168] sm:$0xff] %v1482
  %1541 = vst [vmem:[#allocation2 + $0x170] sm:$0xff] %v1483
  %1542 = vst [vmem:[#allocation2 + $0x178] sm:$0xff] %v1484
  %1543 = vst [vmem:[#allocation2 + $0x180] sm:$0xff] %v1485
  %1544 = vst [vmem:[#allocation2 + $0x188] sm:$0xff] %v1486
  %1545 = vst [vmem:[#allocation2 + $0x190] sm:$0xff] %v1487
  %1546 = vst [vmem:[#allocation2 + $0x198] sm:$0xff] %v1488
  %1547 = vst [vmem:[#allocation2 + $0x1a0] sm:$0xff] %v1489
  %1548 = vst [vmem:[#allocation2 + $0x1a8] sm:$0xff] %v1490
  %1549 = vst [vmem:[#allocation2 + $0x1b0] sm:$0xff] %v1491
  %1550 = vst [vmem:[#allocation2 + $0x1b8] sm:$0xff] %v1492
  %1551 = vst [vmem:[#allocation2 + $0x1c0] sm:$0xff] %v1493
  %1552 = vst [vmem:[#allocation2 + $0x1c8] sm:$0xff] %v1494
  // Predicated region
  $region18: #{alexnet_forward.8} parent=0 // pred_check
    %p1553 = pneg %p15
  $region19: #{alexnet_forward.8} parent=0 // pred_check_branch
    %1555 = sbr.rel (%p1553) target = $region21
  $region20: #{alexnet_forward.8} parent=0 // pred_region
    %v1556 = vld [vmem:[#allocation2] sm:$0xff]
    %v1557 = vld [vmem:[#allocation2 + $0x8] sm:$0xff]
    %v1558 = vld [vmem:[#allocation2 + $0x10] sm:$0xff]
    %v1559 = vld [vmem:[#allocation2 + $0x18] sm:$0xff]
    %v1560 = vld [vmem:[#allocation2 + $0x20] sm:$0xff]
    %v1561 = vld [vmem:[#allocation2 + $0x28] sm:$0xff]
    %v1562 = vld [vmem:[#allocation2 + $0x30] sm:$0xff]
    %v1563 = vld [vmem:[#allocation2 + $0x38] sm:$0xff]
    %v1564 = vld [vmem:[#allocation2 + $0x40] sm:$0xff]
    %v1565 = vld [vmem:[#allocation2 + $0x48] sm:$0xff]
    %v1566 = vld [vmem:[#allocation2 + $0x50] sm:$0xff]
    %v1567 = vld [vmem:[#allocation2 + $0x58] sm:$0xff]
    %v1568 = vld [vmem:[#allocation2 + $0x60] sm:$0xff]
    %v1569 = vld [vmem:[#allocation2 + $0x68] sm:$0xff]
    %v1570 = vld [vmem:[#allocation2 + $0x70] sm:$0xff]
    %v1571 = vld [vmem:[#allocation2 + $0x78] sm:$0xff]
    %v1572 = vld [vmem:[#allocation2 + $0x80] sm:$0xff]
    %v1573 = vld [vmem:[#allocation2 + $0x88] sm:$0xff]
    %v1574 = vld [vmem:[#allocation2 + $0x90] sm:$0xff]
    %v1575 = vld [vmem:[#allocation2 + $0x98] sm:$0xff]
    %v1576 = vld [vmem:[#allocation2 + $0xa0] sm:$0xff]
    %v1577 = vld [vmem:[#allocation2 + $0xa8] sm:$0xff]
    %v1578 = vld [vmem:[#allocation2 + $0xb0] sm:$0xff]
    %v1579 = vld [vmem:[#allocation2 + $0xb8] sm:$0xff]
    %v1580 = vld [vmem:[#allocation2 + $0xc0] sm:$0xff]
    %v1581 = vld [vmem:[#allocation2 + $0xc8] sm:$0xff]
    %v1582 = vld [vmem:[#allocation2 + $0xd0] sm:$0xff]
    %v1583 = vld [vmem:[#allocation2 + $0xd8] sm:$0xff]
    %v1584 = vld [vmem:[#allocation2 + $0xe0] sm:$0xff]
    %v1585 = vld [vmem:[#allocation2 + $0xe8] sm:$0xff]
    %v1586 = vld [vmem:[#allocation2 + $0xf0] sm:$0xff]
    %v1587 = vld [vmem:[#allocation2 + $0xf8] sm:$0xff]
    %v1588 = vld [vmem:[#allocation2 + $0x100] sm:$0xff]
    %v1589 = vld [vmem:[#allocation2 + $0x108] sm:$0xff]
    %v1590 = vld [vmem:[#allocation2 + $0x110] sm:$0xff]
    %v1591 = vld [vmem:[#allocation2 + $0x118] sm:$0xff]
    %v1592 = vld [vmem:[#allocation2 + $0x120] sm:$0xff]
    %v1593 = vld [vmem:[#allocation2 + $0x128] sm:$0xff]
    %v1594 = vld [vmem:[#allocation2 + $0x130] sm:$0xff]
    %v1595 = vld [vmem:[#allocation2 + $0x138] sm:$0xff]
    %v1596 = vld [vmem:[#allocation2 + $0x140] sm:$0xff]
    %v1597 = vld [vmem:[#allocation2 + $0x148] sm:$0xff]
    %v1598 = vld [vmem:[#allocation2 + $0x150] sm:$0xff]
    %v1599 = vld [vmem:[#allocation2 + $0x158] sm:$0xff]
    %v1600 = vld [vmem:[#allocation2 + $0x160] sm:$0xff]
    %v1601 = vld [vmem:[#allocation2 + $0x168] sm:$0xff]
    %v1602 = vld [vmem:[#allocation2 + $0x170] sm:$0xff]
    %v1603 = vld [vmem:[#allocation2 + $0x178] sm:$0xff]
    %v1604 = vld [vmem:[#allocation2 + $0x180] sm:$0xff]
    %v1605 = vld [vmem:[#allocation2 + $0x188] sm:$0xff]
    %v1606 = vld [vmem:[#allocation2 + $0x190] sm:$0xff]
    %v1607 = vld [vmem:[#allocation2 + $0x198] sm:$0xff]
    %v1608 = vld [vmem:[#allocation2 + $0x1a0] sm:$0xff]
    %v1609 = vld [vmem:[#allocation2 + $0x1a8] sm:$0xff]
    %v1610 = vld [vmem:[#allocation2 + $0x1b0] sm:$0xff]
    %v1611 = vld [vmem:[#allocation2 + $0x1b8] sm:$0xff]
    %v1612 = vld [vmem:[#allocation2 + $0x1c0] sm:$0xff]
    %v1613 = vld [vmem:[#allocation2 + $0x1c8] sm:$0xff]
    %v1614 = vld [vmem:[%s2] sm:$0x1]
    %v1616 = vlaneseq
    %v1617 = vshrl.u32 %v1616, 7
    %v1618 = vsub.s32 0, %v1617
    %v1619 = vrot.slane %v1614, %v1618
    %v1621 = vadd.f32 %v1556, %v1619
    %v1622 = vadd.f32 %v1557, %v1619
    %v1623 = vadd.f32 %v1558, %v1619
    %v1624 = vadd.f32 %v1559, %v1619
    %v1625 = vadd.f32 %v1560, %v1619
    %v1626 = vadd.f32 %v1561, %v1619
    %v1627 = vadd.f32 %v1562, %v1619
    %v1628 = vadd.f32 %v1563, %v1619
    %v1629 = vadd.f32 %v1564, %v1619
    %v1630 = vadd.f32 %v1565, %v1619
    %v1631 = vadd.f32 %v1566, %v1619
    %v1632 = vadd.f32 %v1567, %v1619
    %v1633 = vadd.f32 %v1568, %v1619
    %v1634 = vadd.f32 %v1569, %v1619
    %v1635 = vadd.f32 %v1570, %v1619
    %v1636 = vadd.f32 %v1571, %v1619
    %v1637 = vadd.f32 %v1572, %v1619
    %v1638 = vadd.f32 %v1573, %v1619
    %v1639 = vadd.f32 %v1574, %v1619
    %v1640 = vadd.f32 %v1575, %v1619
    %v1641 = vadd.f32 %v1576, %v1619
    %v1642 = vadd.f32 %v1577, %v1619
    %v1643 = vadd.f32 %v1578, %v1619
    %v1644 = vadd.f32 %v1579, %v1619
    %v1645 = vadd.f32 %v1580, %v1619
    %v1646 = vadd.f32 %v1581, %v1619
    %v1647 = vadd.f32 %v1582, %v1619
    %v1648 = vadd.f32 %v1583, %v1619
    %v1649 = vadd.f32 %v1584, %v1619
    %v1650 = vadd.f32 %v1585, %v1619
    %v1651 = vadd.f32 %v1586, %v1619
    %v1652 = vadd.f32 %v1587, %v1619
    %v1653 = vadd.f32 %v1588, %v1619
    %v1654 = vadd.f32 %v1589, %v1619
    %v1655 = vadd.f32 %v1590, %v1619
    %v1656 = vadd.f32 %v1591, %v1619
    %v1657 = vadd.f32 %v1592, %v1619
    %v1658 = vadd.f32 %v1593, %v1619
    %v1659 = vadd.f32 %v1594, %v1619
    %v1660 = vadd.f32 %v1595, %v1619
    %v1661 = vadd.f32 %v1596, %v1619
    %v1662 = vadd.f32 %v1597, %v1619
    %v1663 = vadd.f32 %v1598, %v1619
    %v1664 = vadd.f32 %v1599, %v1619
    %v1665 = vadd.f32 %v1600, %v1619
    %v1666 = vadd.f32 %v1601, %v1619
    %v1667 = vadd.f32 %v1602, %v1619
    %v1668 = vadd.f32 %v1603, %v1619
    %v1669 = vadd.f32 %v1604, %v1619
    %v1670 = vadd.f32 %v1605, %v1619
    %v1671 = vadd.f32 %v1606, %v1619
    %v1672 = vadd.f32 %v1607, %v1619
    %v1673 = vadd.f32 %v1608, %v1619
    %v1674 = vadd.f32 %v1609, %v1619
    %v1675 = vadd.f32 %v1610, %v1619
    %v1676 = vadd.f32 %v1611, %v1619
    %v1677 = vadd.f32 %v1612, %v1619
    %v1678 = vadd.f32 %v1613, %v1619
    %v1679 = vmax.f32 %v1621, 0.0
    %v1680 = vmax.f32 %v1622, 0.0
    %v1681 = vmax.f32 %v1623, 0.0
    %v1682 = vmax.f32 %v1624, 0.0
    %v1683 = vmax.f32 %v1625, 0.0
    %v1684 = vmax.f32 %v1626, 0.0
    %v1685 = vmax.f32 %v1627, 0.0
    %v1686 = vmax.f32 %v1628, 0.0
    %v1687 = vmax.f32 %v1629, 0.0
    %v1688 = vmax.f32 %v1630, 0.0
    %v1689 = vmax.f32 %v1631, 0.0
    %v1690 = vmax.f32 %v1632, 0.0
    %v1691 = vmax.f32 %v1633, 0.0
    %v1692 = vmax.f32 %v1634, 0.0
    %v1693 = vmax.f32 %v1635, 0.0
    %v1694 = vmax.f32 %v1636, 0.0
    %v1695 = vmax.f32 %v1637, 0.0
    %v1696 = vmax.f32 %v1638, 0.0
    %v1697 = vmax.f32 %v1639, 0.0
    %v1698 = vmax.f32 %v1640, 0.0
    %v1699 = vmax.f32 %v1641, 0.0
    %v1700 = vmax.f32 %v1642, 0.0
    %v1701 = vmax.f32 %v1643, 0.0
    %v1702 = vmax.f32 %v1644, 0.0
    %v1703 = vmax.f32 %v1645, 0.0
    %v1704 = vmax.f32 %v1646, 0.0
    %v1705 = vmax.f32 %v1647, 0.0
    %v1706 = vmax.f32 %v1648, 0.0
    %v1707 = vmax.f32 %v1649, 0.0
    %v1708 = vmax.f32 %v1650, 0.0
    %v1709 = vmax.f32 %v1651, 0.0
    %v1710 = vmax.f32 %v1652, 0.0
    %v1711 = vmax.f32 %v1653, 0.0
    %v1712 = vmax.f32 %v1654, 0.0
    %v1713 = vmax.f32 %v1655, 0.0
    %v1714 = vmax.f32 %v1656, 0.0
    %v1715 = vmax.f32 %v1657, 0.0
    %v1716 = vmax.f32 %v1658, 0.0
    %v1717 = vmax.f32 %v1659, 0.0
    %v1718 = vmax.f32 %v1660, 0.0
    %v1719 = vmax.f32 %v1661, 0.0
    %v1720 = vmax.f32 %v1662, 0.0
    %v1721 = vmax.f32 %v1663, 0.0
    %v1722 = vmax.f32 %v1664, 0.0
    %v1723 = vmax.f32 %v1665, 0.0
    %v1724 = vmax.f32 %v1666, 0.0
    %v1725 = vmax.f32 %v1667, 0.0
    %v1726 = vmax.f32 %v1668, 0.0
    %v1727 = vmax.f32 %v1669, 0.0
    %v1728 = vmax.f32 %v1670, 0.0
    %v1729 = vmax.f32 %v1671, 0.0
    %v1730 = vmax.f32 %v1672, 0.0
    %v1731 = vmax.f32 %v1673, 0.0
    %v1732 = vmax.f32 %v1674, 0.0
    %v1733 = vmax.f32 %v1675, 0.0
    %v1734 = vmax.f32 %v1676, 0.0
    %v1735 = vmax.f32 %v1677, 0.0
    %v1736 = vmax.f32 %v1678, 0.0
    %v1737 = vpack.c.bf16 %v1680, %v1679
    %v1738 = vpack.c.bf16 %v1682, %v1681
    %v1739 = vpack.c.bf16 %v1684, %v1683
    %v1740 = vpack.c.bf16 %v1686, %v1685
    %v1741 = vpack.c.bf16 %v1688, %v1687
    %v1742 = vpack.c.bf16 %v1690, %v1689
    %v1743 = vpack.c.bf16 %v1692, %v1691
    %v1744 = vpack.c.bf16 %v1694, %v1693
    %v1745 = vpack.c.bf16 %v1696, %v1695
    %v1746 = vpack.c.bf16 %v1698, %v1697
    %v1747 = vpack.c.bf16 %v1700, %v1699
    %v1748 = vpack.c.bf16 %v1702, %v1701
    %v1749 = vpack.c.bf16 %v1704, %v1703
    %v1750 = vpack.c.bf16 %v1706, %v1705
    %v1751 = vpack.c.bf16 %v1708, %v1707
    %v1752 = vpack.c.bf16 %v1710, %v1709
    %v1753 = vpack.c.bf16 %v1712, %v1711
    %v1754 = vpack.c.bf16 %v1714, %v1713
    %v1755 = vpack.c.bf16 %v1716, %v1715
    %v1756 = vpack.c.bf16 %v1718, %v1717
    %v1757 = vpack.c.bf16 %v1720, %v1719
    %v1758 = vpack.c.bf16 %v1722, %v1721
    %v1759 = vpack.c.bf16 %v1724, %v1723
    %v1760 = vpack.c.bf16 %v1726, %v1725
    %v1761 = vpack.c.bf16 %v1728, %v1727
    %v1762 = vpack.c.bf16 %v1730, %v1729
    %v1763 = vpack.c.bf16 %v1732, %v1731
    %v1764 = vpack.c.bf16 %v1734, %v1733
    %v1765 = vpack.c.bf16 %v1736, %v1735
    %v1795 = vunpack.c.l.b16 %v1737
    %v1796 = vunpack.c.h.b16 %v1737
    %v1797 = vunpack.c.l.b16 %v1738
    %v1798 = vunpack.c.h.b16 %v1738
    %v1799 = vunpack.c.l.b16 %v1739
    %v1800 = vunpack.c.h.b16 %v1739
    %v1801 = vunpack.c.l.b16 %v1740
    %v1802 = vunpack.c.h.b16 %v1740
    %v1803 = vunpack.c.l.b16 %v1741
    %v1804 = vunpack.c.h.b16 %v1741
    %v1805 = vunpack.c.l.b16 %v1742
    %v1806 = vunpack.c.h.b16 %v1742
    %v1807 = vunpack.c.l.b16 %v1743
    %v1808 = vunpack.c.h.b16 %v1743
    %v1809 = vunpack.c.l.b16 %v1744
    %v1810 = vunpack.c.h.b16 %v1744
    %v1811 = vunpack.c.l.b16 %v1745
    %v1812 = vunpack.c.h.b16 %v1745
    %v1813 = vunpack.c.l.b16 %v1746
    %v1814 = vunpack.c.h.b16 %v1746
    %v1815 = vunpack.c.l.b16 %v1747
    %v1816 = vunpack.c.h.b16 %v1747
    %v1817 = vunpack.c.l.b16 %v1748
    %v1818 = vunpack.c.h.b16 %v1748
    %v1819 = vunpack.c.l.b16 %v1749
    %v1820 = vunpack.c.h.b16 %v1749
    %v1821 = vunpack.c.l.b16 %v1750
    %v1822 = vunpack.c.h.b16 %v1750
    %v1823 = vunpack.c.l.b16 %v1751
    %v1824 = vunpack.c.h.b16 %v1751
    %v1825 = vunpack.c.l.b16 %v1752
    %v1826 = vunpack.c.h.b16 %v1752
    %v1827 = vunpack.c.l.b16 %v1753
    %v1828 = vunpack.c.h.b16 %v1753
    %v1829 = vunpack.c.l.b16 %v1754
    %v1830 = vunpack.c.h.b16 %v1754
    %v1831 = vunpack.c.l.b16 %v1755
    %v1832 = vunpack.c.h.b16 %v1755
    %v1833 = vunpack.c.l.b16 %v1756
    %v1834 = vunpack.c.h.b16 %v1756
    %v1835 = vunpack.c.l.b16 %v1757
    %v1836 = vunpack.c.h.b16 %v1757
    %v1837 = vunpack.c.l.b16 %v1758
    %v1838 = vunpack.c.h.b16 %v1758
    %v1839 = vunpack.c.l.b16 %v1759
    %v1840 = vunpack.c.h.b16 %v1759
    %v1841 = vunpack.c.l.b16 %v1760
    %v1842 = vunpack.c.h.b16 %v1760
    %v1843 = vunpack.c.l.b16 %v1761
    %v1844 = vunpack.c.h.b16 %v1761
    %v1845 = vunpack.c.l.b16 %v1762
    %v1846 = vunpack.c.h.b16 %v1762
    %v1847 = vunpack.c.l.b16 %v1763
    %v1848 = vunpack.c.h.b16 %v1763
    %v1849 = vunpack.c.l.b16 %v1764
    %v1850 = vunpack.c.h.b16 %v1764
    %v1851 = vunpack.c.l.b16 %v1765
    %v1852 = vunpack.c.h.b16 %v1765
    %v1853 = vpack.c.b16 %v1795, %v1795
    %v1854 = vpack.c.b16 %v1796, %v1796
    %v1855 = vpack.c.b16 %v1797, %v1797
    %v1856 = vpack.c.b16 %v1798, %v1798
    %v1857 = vpack.c.b16 %v1799, %v1799
    %v1858 = vpack.c.b16 %v1800, %v1800
    %v1859 = vpack.c.b16 %v1801, %v1801
    %v1860 = vpack.c.b16 %v1802, %v1802
    %v1861 = vpack.c.b16 %v1803, %v1803
    %v1862 = vpack.c.b16 %v1804, %v1804
    %v1863 = vpack.c.b16 %v1805, %v1805
    %v1864 = vpack.c.b16 %v1806, %v1806
    %v1865 = vpack.c.b16 %v1807, %v1807
    %v1866 = vpack.c.b16 %v1808, %v1808
    %v1867 = vpack.c.b16 %v1809, %v1809
    %v1868 = vpack.c.b16 %v1810, %v1810
    %v1869 = vpack.c.b16 %v1811, %v1811
    %v1870 = vpack.c.b16 %v1812, %v1812
    %v1871 = vpack.c.b16 %v1813, %v1813
    %v1872 = vpack.c.b16 %v1814, %v1814
    %v1873 = vpack.c.b16 %v1815, %v1815
    %v1874 = vpack.c.b16 %v1816, %v1816
    %v1875 = vpack.c.b16 %v1817, %v1817
    %v1876 = vpack.c.b16 %v1818, %v1818
    %v1877 = vpack.c.b16 %v1819, %v1819
    %v1878 = vpack.c.b16 %v1820, %v1820
    %v1879 = vpack.c.b16 %v1821, %v1821
    %v1880 = vpack.c.b16 %v1822, %v1822
    %v1881 = vpack.c.b16 %v1823, %v1823
    %v1882 = vpack.c.b16 %v1824, %v1824
    %v1883 = vpack.c.b16 %v1825, %v1825
    %v1884 = vpack.c.b16 %v1826, %v1826
    %v1885 = vpack.c.b16 %v1827, %v1827
    %v1886 = vpack.c.b16 %v1828, %v1828
    %v1887 = vpack.c.b16 %v1829, %v1829
    %v1888 = vpack.c.b16 %v1830, %v1830
    %v1889 = vpack.c.b16 %v1831, %v1831
    %v1890 = vpack.c.b16 %v1832, %v1832
    %v1891 = vpack.c.b16 %v1833, %v1833
    %v1892 = vpack.c.b16 %v1834, %v1834
    %v1893 = vpack.c.b16 %v1835, %v1835
    %v1894 = vpack.c.b16 %v1836, %v1836
    %v1895 = vpack.c.b16 %v1837, %v1837
    %v1896 = vpack.c.b16 %v1838, %v1838
    %v1897 = vpack.c.b16 %v1839, %v1839
    %v1898 = vpack.c.b16 %v1840, %v1840
    %v1899 = vpack.c.b16 %v1841, %v1841
    %v1900 = vpack.c.b16 %v1842, %v1842
    %v1901 = vpack.c.b16 %v1843, %v1843
    %v1902 = vpack.c.b16 %v1844, %v1844
    %v1903 = vpack.c.b16 %v1845, %v1845
    %v1904 = vpack.c.b16 %v1846, %v1846
    %v1905 = vpack.c.b16 %v1847, %v1847
    %v1906 = vpack.c.b16 %v1848, %v1848
    %v1907 = vpack.c.b16 %v1849, %v1849
    %v1908 = vpack.c.b16 %v1850, %v1850
    %v1909 = vpack.c.b16 %v1851, %v1851
    %v1910 = vpack.c.b16 %v1852, %v1852
    %1969 = vst [vmem:[%s3] sm:$0xf] %v1853
    %1970 = vst [vmem:[%s3 + $0x4] sm:$0xf] %v1854
    %1971 = vst [vmem:[%s3 + $0x8] sm:$0xf] %v1855
    %1972 = vst [vmem:[%s3 + $0xc] sm:$0xf] %v1856
    %1973 = vst [vmem:[%s3 + $0x10] sm:$0xf] %v1857
    %1974 = vst [vmem:[%s3 + $0x14] sm:$0xf] %v1858
    %1975 = vst [vmem:[%s3 + $0x18] sm:$0xf] %v1859
    %1976 = vst [vmem:[%s3 + $0x1c] sm:$0xf] %v1860
    %1977 = vst [vmem:[%s3 + $0x20] sm:$0xf] %v1861
    %1978 = vst [vmem:[%s3 + $0x24] sm:$0xf] %v1862
    %1979 = vst [vmem:[%s3 + $0x28] sm:$0xf] %v1863
    %1980 = vst [vmem:[%s3 + $0x2c] sm:$0xf] %v1864
    %1981 = vst [vmem:[%s3 + $0x30] sm:$0xf] %v1865
    %1982 = vst [vmem:[%s3 + $0x34] sm:$0xf] %v1866
    %1983 = vst [vmem:[%s3 + $0x38] sm:$0xf] %v1867
    %1984 = vst [vmem:[%s3 + $0x3c] sm:$0xf] %v1868
    %1985 = vst [vmem:[%s3 + $0x40] sm:$0xf] %v1869
    %1986 = vst [vmem:[%s3 + $0x44] sm:$0xf] %v1870
    %1987 = vst [vmem:[%s3 + $0x48] sm:$0xf] %v1871
    %1988 = vst [vmem:[%s3 + $0x4c] sm:$0xf] %v1872
    %1989 = vst [vmem:[%s3 + $0x50] sm:$0xf] %v1873
    %1990 = vst [vmem:[%s3 + $0x54] sm:$0xf] %v1874
    %1991 = vst [vmem:[%s3 + $0x58] sm:$0xf] %v1875
    %1992 = vst [vmem:[%s3 + $0x5c] sm:$0xf] %v1876
    %1993 = vst [vmem:[%s3 + $0x60] sm:$0xf] %v1877
    %1994 = vst [vmem:[%s3 + $0x64] sm:$0xf] %v1878
    %1995 = vst [vmem:[%s3 + $0x68] sm:$0xf] %v1879
    %1996 = vst [vmem:[%s3 + $0x6c] sm:$0xf] %v1880
    %1997 = vst [vmem:[%s3 + $0x70] sm:$0xf] %v1881
    %1998 = vst [vmem:[%s3 + $0x74] sm:$0xf] %v1882
    %1999 = vst [vmem:[%s3 + $0x78] sm:$0xf] %v1883
    %2000 = vst [vmem:[%s3 + $0x7c] sm:$0xf] %v1884
    %2001 = vst [vmem:[%s3 + $0x80] sm:$0xf] %v1885
    %2002 = vst [vmem:[%s3 + $0x84] sm:$0xf] %v1886
    %2003 = vst [vmem:[%s3 + $0x88] sm:$0xf] %v1887
    %2004 = vst [vmem:[%s3 + $0x8c] sm:$0xf] %v1888
    %2005 = vst [vmem:[%s3 + $0x90] sm:$0xf] %v1889
    %2006 = vst [vmem:[%s3 + $0x94] sm:$0xf] %v1890
    %2007 = vst [vmem:[%s3 + $0x98] sm:$0xf] %v1891
    %2008 = vst [vmem:[%s3 + $0x9c] sm:$0xf] %v1892
    %2009 = vst [vmem:[%s3 + $0xa0] sm:$0xf] %v1893
    %2010 = vst [vmem:[%s3 + $0xa4] sm:$0xf] %v1894
    %2011 = vst [vmem:[%s3 + $0xa8] sm:$0xf] %v1895
    %2012 = vst [vmem:[%s3 + $0xac] sm:$0xf] %v1896
    %2013 = vst [vmem:[%s3 + $0xb0] sm:$0xf] %v1897
    %2014 = vst [vmem:[%s3 + $0xb4] sm:$0xf] %v1898
    %2015 = vst [vmem:[%s3 + $0xb8] sm:$0xf] %v1899
    %2016 = vst [vmem:[%s3 + $0xbc] sm:$0xf] %v1900
    %2017 = vst [vmem:[%s3 + $0xc0] sm:$0xf] %v1901
    %2018 = vst [vmem:[%s3 + $0xc4] sm:$0xf] %v1902
    %2019 = vst [vmem:[%s3 + $0xc8] sm:$0xf] %v1903
    %2020 = vst [vmem:[%s3 + $0xcc] sm:$0xf] %v1904
    %2021 = vst [vmem:[%s3 + $0xd0] sm:$0xf] %v1905
    %2022 = vst [vmem:[%s3 + $0xd4] sm:$0xf] %v1906
    %2023 = vst [vmem:[%s3 + $0xd8] sm:$0xf] %v1907
    %2024 = vst [vmem:[%s3 + $0xdc] sm:$0xf] %v1908
    %2025 = vst [vmem:[%s3 + $0xe0] sm:$0xf] %v1909
    %2026 = vst [vmem:[%s3 + $0xe4] sm:$0xf] %v1910
  $region21: #{alexnet_forward.8} parent=0 // pred_fallthru
    _
  // Predicated region
  $region22: #{alexnet_forward.8} parent=0 // pred_check
    _
  $region23: #{alexnet_forward.8} parent=0 // pred_check_branch
    %2028 = sbr.rel (0) target = $region25
  $region24: #{alexnet_forward.8} parent=0 // pred_region
    _
  $region25: #{alexnet_forward.8} parent=0 // pred_fallthru
    _
  // Predicated region
  $region26: #{alexnet_forward.8} parent=0 // pred_check
    _
  $region27: #{alexnet_forward.8} parent=0 // pred_check_branch
    %2030 = sbr.rel (0) target = $region29
  $region28: #{alexnet_forward.8} parent=0 // pred_region
    _
  $region29: #{alexnet_forward.8} parent=0 // pred_fallthru
    _

// kernel: alexnet_forward.9
$region0: #{alexnet_forward.9}
  #allocation0 [shape = 'u32[]', space=smem, size = 0x4, offset = 0x4, fixed_abs, tag = 'smem constant byte address 0x4 - core index']
  #allocation1 [shape = 'u32[144,128]{1,0:T(1,128)}', space=vmem, size = 0x12000, scoped, tag = 'internal scratch']
  #allocation2 [shape = 'f32[112,256]{1,0:T(8,128)}', space=vmem, size = 0x1c000, scoped, tag = 'scratch operand']
  %s0 = inlined_call_operand.vmem [shape: bf16[112,1664], index: 0, kind: input, shape index: {}]
  %s1 = inlined_call_operand.hbm [shape: bf16[1664,256], index: 1, kind: input, shape index: {}]
  %s2 = inlined_call_operand.vmem [shape: f32[1,256], index: 2, kind: input, shape index: {}]
  %s3 = inlined_call_operand.vmem [shape: bf16[112,256], index: 3, kind: output, shape index: {}]
  %s4 = sld [smem:[#allocation0]]
  $region98: #{alexnet_forward.9} parent=0
    _
  %s6 = ssub.s32 1, %s4
  %s7 = scalar_select 0, %s6, %s4
  $region1: #{alexnet_forward.9} parent=0
    #allocation3 [shape = 'u8[57344]{0}', space=vmem, size = 0xe000, scoped, tag = 'input window, operand 0']
    #allocation4 [shape = 'u8[131072]{0}', space=vmem, size = 0x20000, scoped, tag = 'input window, operand 1']
    #allocation5 [shape = 's32[2]{0}', space=sflag, size = 0x8, scoped, tag = 'scoped memory for alexnet_forward.9']
    %8 = vsyncpa [#allocation5], 0
    %s9 = scalar_lea.sflag [#allocation5], 1
    %10 = vsyncpa %s9, 0
    loop: start=0, step=1, limit=15
    $region2: #{alexnet_forward.9} parent=1 // loop_pre_header
      _
    $region3: #{alexnet_forward.9} parent=1 // loop_header
      %s12 = sphi 0, %s16
      %p13 = scmp.ge.s32.totalorder %s12, 15
      %s19 = sphi 0, %s38
      %s20 = sphi 0, %s34
      %s21 = sphi 0, %s30
      %s22 = sphi 0, %s19
      %s23 = sphi 0, %s20
      %s24 = sphi 0, %s21
      %s25 = sphi 0, %s22
      %s26 = sphi 0, %s23
      %s27 = sphi 0, %s24
      %s43 = sphi 0, %s45
      %s46 = sphi 0, %s43
      %s47 = sphi 0, %s46
      %s63 = sphi 0, %s47
      %s71 = sphi 0, %s73
      %s74 = sphi 0, %s71
      %s75 = sphi 0, %s74
      %s91 = sphi 0, %s75
      %s97 = sphi 0, %s99
      %s100 = sphi 0, %s97
      %s101 = sphi 0, %s100
      %s117 = sphi 0, %s101
      %s125 = sphi 0, %s127
      %s128 = sphi 0, %s125
      %s129 = sphi 0, %s128
      %s145 = sphi 0, %s129
    $region4: #{alexnet_forward.9} parent=1 // loop_header_branch
      %15 = sbr.rel (%p13) target = $region8
    $region5: #{alexnet_forward.9} parent=1 // loop_body
      %s17 = ssub.s32 %s12, 1
      %s18 = ssub.s32 %s12, 2
      %s28 = sadd.s32 1, %s21
      %p29 = scmp.ge.s32.totalorder %s28, 13
      %s30 = scalar_select %p29, 0, %s28
      %s31 = sadd.s32 1, %s20
      %s32 = scalar_select %p29, %s31, %s20
      %p33 = scmp.ge.s32.totalorder %s32, 1
      %s34 = scalar_select %p33, 0, %s32
      %s35 = sadd.s32 1, %s19
      %s36 = scalar_select %p33, %s35, %s19
      %p37 = scmp.ge.s32.totalorder %s36, 1
      %s38 = scalar_select %p37, 0, %s36
      %s39 = ssub.s32 %s19, %s38
      %s40 = ssub.s32 %s21, %s30
      %s41 = sor.u32 %s39, %s40
      %p42 = scmp.eq.s32.totalorder %s41, 0
      %s44 = sadd.s32 %s43, 1
      %s45 = scalar_select %p42, %s43, %s44
      %p48 = pneg %p42
      %p49 = scmp.eq.s32.totalorder %s12, 12
      %p50 = por %p48, %p49
      %p51 = scmp.ne.s32.totalorder %s43, %s46
      %p52 = scmp.eq.s32.totalorder %s12, 0
      %p53 = por %p51, %p52
      %p54 = scmp.ne.s32.totalorder %s43, %s46
      %p55 = scmp.eq.s32.totalorder %s17, 12
      %p56 = por %p54, %p55
      %p57 = scmp.ne.s32.totalorder %s46, %s47
      %p58 = scmp.eq.s32.totalorder %s17, 0
      %p59 = por %p57, %p58
      %p60 = scmp.ne.s32.totalorder %s46, %s47
      %p61 = scmp.eq.s32.totalorder %s18, 12
      %p62 = por %p60, %p61
      %p64 = scmp.ne.s32.totalorder %s47, %s63
      %p65 = scmp.eq.s32.totalorder %s18, 0
      %p66 = por %p64, %p65
      %s67 = ssub.s32 %s21, %s30
      %s68 = ssub.s32 %s20, %s34
      %s69 = sor.u32 %s67, %s68
      %p70 = scmp.eq.s32.totalorder %s69, 0
      %s72 = sadd.s32 %s71, 1
      %s73 = scalar_select %p70, %s71, %s72
      %p76 = pneg %p70
      %p77 = scmp.eq.s32.totalorder %s12, 12
      %p78 = por %p76, %p77
      %p79 = scmp.ne.s32.totalorder %s71, %s74
      %p80 = scmp.eq.s32.totalorder %s12, 0
      %p81 = por %p79, %p80
      %p82 = scmp.ne.s32.totalorder %s71, %s74
      %p83 = scmp.eq.s32.totalorder %s17, 12
      %p84 = por %p82, %p83
      %p85 = scmp.ne.s32.totalorder %s74, %s75
      %p86 = scmp.eq.s32.totalorder %s17, 0
      %p87 = por %p85, %p86
      %p88 = scmp.ne.s32.totalorder %s74, %s75
      %p89 = scmp.eq.s32.totalorder %s18, 12
      %p90 = por %p88, %p89
      %p92 = scmp.ne.s32.totalorder %s75, %s91
      %p93 = scmp.eq.s32.totalorder %s18, 0
      %p94 = por %p92, %p93
      %s95 = ssub.s32 %s20, %s34
      %p96 = scmp.eq.s32.totalorder %s95, 0
      %s98 = sadd.s32 %s97, 1
      %s99 = scalar_select %p96, %s97, %s98
      %p102 = pneg %p96
      %p103 = scmp.eq.s32.totalorder %s12, 12
      %p104 = por %p102, %p103
      %p105 = scmp.ne.s32.totalorder %s97, %s100
      %p106 = scmp.eq.s32.totalorder %s12, 0
      %p107 = por %p105, %p106
      %p108 = scmp.ne.s32.totalorder %s97, %s100
      %p109 = scmp.eq.s32.totalorder %s17, 12
      %p110 = por %p108, %p109
      %p111 = scmp.ne.s32.totalorder %s100, %s101
      %p112 = scmp.eq.s32.totalorder %s17, 0
      %p113 = por %p111, %p112
      %p114 = scmp.ne.s32.totalorder %s100, %s101
      %p115 = scmp.eq.s32.totalorder %s18, 12
      %p116 = por %p114, %p115
      %p118 = scmp.ne.s32.totalorder %s101, %s117
      %p119 = scmp.eq.s32.totalorder %s18, 0
      %p120 = por %p118, %p119
      %s121 = ssub.s32 %s19, %s38
      %s122 = ssub.s32 %s20, %s34
      %s123 = sor.u32 %s121, %s122
      %p124 = scmp.eq.s32.totalorder %s123, 0
      %s126 = sadd.s32 %s125, 1
      %s127 = scalar_select %p124, %s125, %s126
      %p130 = pneg %p124
      %p131 = scmp.eq.s32.totalorder %s12, 12
      %p132 = por %p130, %p131
      %p133 = scmp.ne.s32.totalorder %s125, %s128
      %p134 = scmp.eq.s32.totalorder %s12, 0
      %p135 = por %p133, %p134
      %p136 = scmp.ne.s32.totalorder %s125, %s128
      %p137 = scmp.eq.s32.totalorder %s17, 12
      %p138 = por %p136, %p137
      %p139 = scmp.ne.s32.totalorder %s128, %s129
      %p140 = scmp.eq.s32.totalorder %s17, 0
      %p141 = por %p139, %p140
      %p142 = scmp.ne.s32.totalorder %s128, %s129
      %p143 = scmp.eq.s32.totalorder %s18, 12
      %p144 = por %p142, %p143
      %p146 = scmp.ne.s32.totalorder %s129, %s145
      %p147 = scmp.eq.s32.totalorder %s18, 0
      %p148 = por %p146, %p147
      %p149 = scmp.le.s32.totalorder 1, %s12
      %p150 = scmp.lt.s32.totalorder %s12, 14
      %p151 = pnand %p149, %p150
      %p152 = pneg %p151
      // Predicated region
      $region9: #{alexnet_forward.9} parent=5 // pred_check
        _
      $region10: #{alexnet_forward.9} parent=5 // pred_check_branch
        %154 = sbr.rel (%p151) target = $region12
      $region11: #{alexnet_forward.9} parent=5 // pred_region
        %s155 = ssub.s32 %s12, 1
        // Predicated region
        $region13: #{alexnet_forward.9} parent=11 // pred_check
          %p156 = pneg %p113
        $region14: #{alexnet_forward.9} parent=11 // pred_check_branch
          %158 = sbr.rel (%p156) target = $region16
        $region15: #{alexnet_forward.9} parent=11 // pred_region
          %s159 = smul.u32 2, %s23
          %p160 = scmp.lt.s32.totalorder %s159, 1
          %s161 = scalar_select %p160, %s159, 1
          %s162 = scalar_lea.vmem %s2, %s161
          %s163 = smul.u32 2, %s23
        $region16: #{alexnet_forward.9} parent=11 // pred_fallthru
          _
      $region12: #{alexnet_forward.9} parent=5 // pred_fallthru
        _
      %p164 = scmp.lt.s32.totalorder %s12, 13
      // Predicated region
      $region17: #{alexnet_forward.9} parent=5 // pred_check
        %p165 = pneg %p164
      $region18: #{alexnet_forward.9} parent=5 // pred_check_branch
        %167 = sbr.rel (%p165) target = $region20
      $region19: #{alexnet_forward.9} parent=5 // pred_region
        // Predicated region
        $region21: #{alexnet_forward.9} parent=19 // pred_check
          %p168 = pneg %p53
        $region22: #{alexnet_forward.9} parent=19 // pred_check_branch
          %170 = sbr.rel (%p168) target = $region24
        $region23: #{alexnet_forward.9} parent=19 // pred_region
          %s171 = sand.u32 %s43, 1
          %s172 = sand.u32 %s43, 1
          %s173 = smul.addr %s172, 56
          %s174 = scalar_lea.vmem [#allocation3], %s173
          %s175 = smul.u32 14, %s19
          %s176 = smul.addr %s175, 13
          %s177 = sadd.s32 %s21, %s176
          %s178 = smul.addr %s177, 4
          %s179 = scalar_lea.vmem %s0, %s178
          // Predicated region
          $region25: #{alexnet_forward.9} parent=23 // pred_check
            _
          $region26: #{alexnet_forward.9} parent=23 // pred_check_branch
            %181 = sbr.rel (0) target = $region28
          $region27: #{alexnet_forward.9} parent=23 // pred_region
            // Predicated region
            $region29: #{alexnet_forward.9} parent=27 // pred_check
              _
            $region30: #{alexnet_forward.9} parent=27 // pred_check_branch
              %183 = sbr.rel target = $region32
            $region31: #{alexnet_forward.9} parent=27 // pred_region
              // Predicated region
              $region44: #{alexnet_forward.9} parent=31 // pred_check
                _
              $region45: #{alexnet_forward.9} parent=31 // pred_check_branch
                %225 = sbr.rel (0) target = $region47
              $region46: #{alexnet_forward.9} parent=31 // pred_region
                loop: start=0, step=1, limit=1
                $region48: #{alexnet_forward.9} parent=46 // loop_pre_header
                  _
                $region49: #{alexnet_forward.9} parent=46 // loop_header
                  %s227 = sphi 0, %s231
                  %p228 = scmp.ge.s32.totalorder %s227, 1
                  %s232 = sphi %s179, %s179
                  %s233 = sphi %s174, %s174
                $region50: #{alexnet_forward.9} parent=46 // loop_header_branch
                  %230 = sbr.rel (%p228) target = $region54
                $region51: #{alexnet_forward.9} parent=46 // loop_body
                  _
                $region52: #{alexnet_forward.9} parent=46 // loop_footer
                  %s231 = sadd.s32 1, %s227
                $region53: #{alexnet_forward.9} parent=46 // loop_footer_branch
                  %226 = sbr.rel target = $region49
                $region54: #{alexnet_forward.9} parent=46 // loop_exit
                  _
                %s235 = ssub.s32 16, 1
                loop: start=0, step=1, limit=1
                $region55: #{alexnet_forward.9} parent=46 // loop_pre_header
                  _
                $region56: #{alexnet_forward.9} parent=46 // loop_header
                  %s237 = sphi 0, %s241
                  %p238 = scmp.ge.s32.totalorder %s237, 1
                  %s242 = sphi %s179, %s179
                  %s243 = sphi %s174, %s174
                $region57: #{alexnet_forward.9} parent=46 // loop_header_branch
                  %240 = sbr.rel (%p238) target = $region61
                $region58: #{alexnet_forward.9} parent=46 // loop_body
                  %v244 = vld [vmem:[%s242] sm:%s235]
                  %245 = vst [vmem:[%s243] sm:%s235] %v244
                  %v246 = vld [vmem:[%s242 + $0x34] sm:%s235]
                  %247 = vst [vmem:[%s243 + $0x4] sm:%s235] %v246
                  %v248 = vld [vmem:[%s242 + $0x68] sm:%s235]
                  %249 = vst [vmem:[%s243 + $0x8] sm:%s235] %v248
                  %v250 = vld [vmem:[%s242 + $0x9c] sm:%s235]
                  %251 = vst [vmem:[%s243 + $0xc] sm:%s235] %v250
                  %v252 = vld [vmem:[%s242 + $0xd0] sm:%s235]
                  %253 = vst [vmem:[%s243 + $0x10] sm:%s235] %v252
                  %v254 = vld [vmem:[%s242 + $0x104] sm:%s235]
                  %255 = vst [vmem:[%s243 + $0x14] sm:%s235] %v254
                  %v256 = vld [vmem:[%s242 + $0x138] sm:%s235]
                  %257 = vst [vmem:[%s243 + $0x18] sm:%s235] %v256
                  %v258 = vld [vmem:[%s242 + $0x16c] sm:%s235]
                  %259 = vst [vmem:[%s243 + $0x1c] sm:%s235] %v258
                  %v260 = vld [vmem:[%s242 + $0x1a0] sm:%s235]
                  %261 = vst [vmem:[%s243 + $0x20] sm:%s235] %v260
                  %v262 = vld [vmem:[%s242 + $0x1d4] sm:%s235]
                  %263 = vst [vmem:[%s243 + $0x24] sm:%s235] %v262
                  %v264 = vld [vmem:[%s242 + $0x208] sm:%s235]
                  %265 = vst [vmem:[%s243 + $0x28] sm:%s235] %v264
                  %v266 = vld [vmem:[%s242 + $0x23c] sm:%s235]
                  %267 = vst [vmem:[%s243 + $0x2c] sm:%s235] %v266
                  %v268 = vld [vmem:[%s242 + $0x270] sm:%s235]
                  %269 = vst [vmem:[%s243 + $0x30] sm:%s235] %v268
                  %v270 = vld [vmem:[%s242 + $0x2a4] sm:%s235]
                  %271 = vst [vmem:[%s243 + $0x34] sm:%s235] %v270
                $region59: #{alexnet_forward.9} parent=46 // loop_footer
                  %s241 = sadd.s32 1, %s237
                $region60: #{alexnet_forward.9} parent=46 // loop_footer_branch
                  %236 = sbr.rel target = $region56
                $region61: #{alexnet_forward.9} parent=46 // loop_exit
                  _
              $region47: #{alexnet_forward.9} parent=31 // pred_fallthru
                _
            $region32: #{alexnet_forward.9} parent=27 // pred_fallthru
              _
            // Predicated region
            $region33: #{alexnet_forward.9} parent=27 // pred_check
              _
            $region34: #{alexnet_forward.9} parent=27 // pred_check_branch
              %185 = sbr.rel (0) target = $region36
            $region35: #{alexnet_forward.9} parent=27 // pred_region
              %s187 = ssub.s32 16, 1
              loop: start=0, step=1, limit=1
              $region37: #{alexnet_forward.9} parent=35 // loop_pre_header
                _
              $region38: #{alexnet_forward.9} parent=35 // loop_header
                %s189 = sphi 0, %s193
                %p190 = scmp.ge.s32.totalorder %s189, 1
                %s194 = sphi %s179, %s179
                %s195 = sphi %s174, %s174
              $region39: #{alexnet_forward.9} parent=35 // loop_header_branch
                %192 = sbr.rel (%p190) target = $region43
              $region40: #{alexnet_forward.9} parent=35 // loop_body
                %v196 = vld [vmem:[%s194] sm:%s187]
                %197 = vst [vmem:[%s195] sm:%s187] %v196
                %v198 = vld [vmem:[%s194 + $0x34] sm:%s187]
                %199 = vst [vmem:[%s195 + $0x4] sm:%s187] %v198
                %v200 = vld [vmem:[%s194 + $0x68] sm:%s187]
                %201 = vst [vmem:[%s195 + $0x8] sm:%s187] %v200
                %v202 = vld [vmem:[%s194 + $0x9c] sm:%s187]
                %203 = vst [vmem:[%s195 + $0xc] sm:%s187] %v202
                %v204 = vld [vmem:[%s194 + $0xd0] sm:%s187]
                %205 = vst [vmem:[%s195 + $0x10] sm:%s187] %v204
                %v206 = vld [vmem:[%s194 + $0x104] sm:%s187]
                %207 = vst [vmem:[%s195 + $0x14] sm:%s187] %v206
                %v208 = vld [vmem:[%s194 + $0x138] sm:%s187]
                %209 = vst [vmem:[%s195 + $0x18] sm:%s187] %v208
                %v210 = vld [vmem:[%s194 + $0x16c] sm:%s187]
                %211 = vst [vmem:[%s195 + $0x1c] sm:%s187] %v210
                %v212 = vld [vmem:[%s194 + $0x1a0] sm:%s187]
                %213 = vst [vmem:[%s195 + $0x20] sm:%s187] %v212
                %v214 = vld [vmem:[%s194 + $0x1d4] sm:%s187]
                %215 = vst [vmem:[%s195 + $0x24] sm:%s187] %v214
                %v216 = vld [vmem:[%s194 + $0x208] sm:%s187]
                %217 = vst [vmem:[%s195 + $0x28] sm:%s187] %v216
                %v218 = vld [vmem:[%s194 + $0x23c] sm:%s187]
                %219 = vst [vmem:[%s195 + $0x2c] sm:%s187] %v218
                %v220 = vld [vmem:[%s194 + $0x270] sm:%s187]
                %221 = vst [vmem:[%s195 + $0x30] sm:%s187] %v220
                %v222 = vld [vmem:[%s194 + $0x2a4] sm:%s187]
                %223 = vst [vmem:[%s195 + $0x34] sm:%s187] %v222
              $region41: #{alexnet_forward.9} parent=35 // loop_footer
                %s193 = sadd.s32 1, %s189
              $region42: #{alexnet_forward.9} parent=35 // loop_footer_branch
                %188 = sbr.rel target = $region38
              $region43: #{alexnet_forward.9} parent=35 // loop_exit
                _
            $region36: #{alexnet_forward.9} parent=27 // pred_fallthru
              _
          $region28: #{alexnet_forward.9} parent=23 // pred_fallthru
            _
          %272 = vnop
        $region24: #{alexnet_forward.9} parent=19 // pred_fallthru
          _
        // Predicated region
        $region62: #{alexnet_forward.9} parent=19 // pred_check
          %p273 = pneg %p81
        $region63: #{alexnet_forward.9} parent=19 // pred_check_branch
          %275 = sbr.rel (%p273) target = $region65
        $region64: #{alexnet_forward.9} parent=19 // pred_region
          %s276 = sand.u32 %s71, 1
          %s277 = scalar_lea.sflag [#allocation5], %s276
          %s278 = sand.u32 %s71, 1
          %s279 = smul.addr %s278, 128
          %s280 = scalar_lea.vmem [#allocation4], %s279
          %s281 = smul.u32 16, %s21
          %s282 = smul.u32 2, %s20
          %s284 = ssub.s32 2048, 2048
          %285 = vsyncadd %s277, %s284
          %s286 = smul.addr %s281, 2
          %s287 = sadd.s32 %s282, %s286
          %s288 = smul.addr %s287, 64
          %s289 = scalar_lea.hbm %s1, %s288
          %s290 = sshll.u32 %s280, 4
          %s291 = int_to_ptr.vmem [resolvable:$true] %s290
          %296 = dma.hbm_to_vmem [thread:$0]  %s289, 2048, %s291, %s277, 128, 128, 8
        $region65: #{alexnet_forward.9} parent=19 // pred_fallthru
          _
      $region20: #{alexnet_forward.9} parent=5 // pred_fallthru
        _
      %p297 = scmp.le.s32.totalorder 1, %s12
      %p298 = scmp.lt.s32.totalorder %s12, 14
      %p299 = pnand %p297, %p298
      %p300 = pneg %p299
      // Predicated region
      $region66: #{alexnet_forward.9} parent=5 // pred_check
        _
      $region67: #{alexnet_forward.9} parent=5 // pred_check_branch
        %302 = sbr.rel (%p299) target = $region69
      $region68: #{alexnet_forward.9} parent=5 // pred_region
        %s303 = ssub.s32 %s12, 1
        %s304 = sand.u32 %s46, 1
        %s305 = sand.u32 %s46, 1
        %s306 = smul.addr %s305, 56
        %s307 = scalar_lea.vmem [#allocation3], %s306
        // Predicated region
        $region70: #{alexnet_forward.9} parent=68 // pred_check
          %p308 = pneg %p59
        $region71: #{alexnet_forward.9} parent=68 // pred_check_branch
          %310 = sbr.rel (%p308) target = $region73
        $region72: #{alexnet_forward.9} parent=68 // pred_region
          _
        $region73: #{alexnet_forward.9} parent=68 // pred_fallthru
          _
        %s311 = sand.u32 %s74, 1
        %s312 = scalar_lea.sflag [#allocation5], %s311
        %s313 = sand.u32 %s74, 1
        %s314 = smul.addr %s313, 128
        %s315 = scalar_lea.vmem [#allocation4], %s314
        // Predicated region
        $region74: #{alexnet_forward.9} parent=68 // pred_check
          %p316 = pneg %p87
        $region75: #{alexnet_forward.9} parent=68 // pred_check_branch
          %318 = sbr.rel (%p316) target = $region77
        $region76: #{alexnet_forward.9} parent=68 // pred_region
          %319 = dma.done %s312, 2048
        $region77: #{alexnet_forward.9} parent=68 // pred_fallthru
          _
        %s320 = sand.u32 %s46, 1
        %s321 = sand.u32 %s46, 1
        %s322 = smul.addr %s321, 56
        %s323 = scalar_lea.vmem [#allocation3], %s322
        %p324 = pneg %p59
        %p325 = pneg %p56
        %s326 = sand.u32 %s74, 1
        %s327 = scalar_lea.sflag [#allocation5], %s326
        %s328 = sand.u32 %s74, 1
        %s329 = smul.addr %s328, 128
        %s330 = scalar_lea.vmem [#allocation4], %s329
        %p331 = pneg %p87
        %p332 = pneg %p84
        %s333 = smul.u32 2, %s23
        %p334 = scmp.lt.s32.totalorder %s333, 1
        %s335 = scalar_select %p334, %s333, 1
        %s336 = scalar_lea.vmem %s2, %s335
        %p337 = pneg %p113
        %p338 = pneg %p110
        %p339 = pneg %p141
        %p340 = pneg %p138
        %s341 = smul.u32 14, %s22
        %s342 = smul.u32 2, %s23
        %p343 = scmp.lt.s32.totalorder %s341, 13
        %s344 = scalar_select %p343, %s341, 13
        %p345 = scmp.lt.s32.totalorder %s342, 1
        %s346 = scalar_select %p345, %s342, 1
        %s347 = smul.addr %s344, 2
        %s348 = sadd.s32 %s346, %s347
        %s349 = smul.addr %s348, 4
        %s350 = scalar_lea.vmem %s3, %s349
        %s351 = smul.u32 14, %s22
        %s352 = smul.u32 16, %s24
        %s353 = smul.u32 2, %s23
        %s354 = smul.u32 2, %s23
        %p355 = scmp.lt.s32.totalorder %s354, 1
        %s356 = scalar_select %p355, %s354, 1
        %s357 = scalar_lea.vmem %s2, %s356
        %s358 = smul.u32 2, %s23
        %s359 = smul.u32 14, %s22
        %s360 = smul.u32 2, %s23
        %p361 = scmp.lt.s32.totalorder %s359, 13
        %s362 = scalar_select %p361, %s359, 13
        %p363 = scmp.lt.s32.totalorder %s360, 1
        %s364 = scalar_select %p363, %s360, 1
        %s365 = smul.addr %s362, 2
        %s366 = sadd.s32 %s364, %s365
        %s367 = smul.addr %s366, 4
        %s368 = scalar_lea.vmem %s3, %s367
        %s369 = smul.u32 14, %s22
        %s370 = smul.u32 2, %s23
        %p372 = scmp.eq.s32.totalorder %s24, 0
        // Predicated region
        $region78: #{alexnet_forward.9} parent=68 // pred_check
          %p373 = pneg %p372
        $region79: #{alexnet_forward.9} parent=68 // pred_check_branch
          %375 = sbr.rel (%p373) target = $region81
        $region80: #{alexnet_forward.9} parent=68 // pred_region
          %376 = vst [vmem:[#allocation2] sm:$0xff] 0.0
          %377 = vst [vmem:[#allocation2 + $0x8] sm:$0xff] 0.0
          %378 = vst [vmem:[#allocation2 + $0x10] sm:$0xff] 0.0
          %379 = vst [vmem:[#allocation2 + $0x18] sm:$0xff] 0.0
          %380 = vst [vmem:[#allocation2 + $0x20] sm:$0xff] 0.0
          %381 = vst [vmem:[#allocation2 + $0x28] sm:$0xff] 0.0
          %382 = vst [vmem:[#allocation2 + $0x30] sm:$0xff] 0.0
          %383 = vst [vmem:[#allocation2 + $0x38] sm:$0xff] 0.0
          %384 = vst [vmem:[#allocation2 + $0x40] sm:$0xff] 0.0
          %385 = vst [vmem:[#allocation2 + $0x48] sm:$0xff] 0.0
          %386 = vst [vmem:[#allocation2 + $0x50] sm:$0xff] 0.0
          %387 = vst [vmem:[#allocation2 + $0x58] sm:$0xff] 0.0
          %388 = vst [vmem:[#allocation2 + $0x60] sm:$0xff] 0.0
          %389 = vst [vmem:[#allocation2 + $0x68] sm:$0xff] 0.0
          %390 = vst [vmem:[#allocation2 + $0x70] sm:$0xff] 0.0
          %391 = vst [vmem:[#allocation2 + $0x78] sm:$0xff] 0.0
          %392 = vst [vmem:[#allocation2 + $0x80] sm:$0xff] 0.0
          %393 = vst [vmem:[#allocation2 + $0x88] sm:$0xff] 0.0
          %394 = vst [vmem:[#allocation2 + $0x90] sm:$0xff] 0.0
          %395 = vst [vmem:[#allocation2 + $0x98] sm:$0xff] 0.0
          %396 = vst [vmem:[#allocation2 + $0xa0] sm:$0xff] 0.0
          %397 = vst [vmem:[#allocation2 + $0xa8] sm:$0xff] 0.0
          %398 = vst [vmem:[#allocation2 + $0xb0] sm:$0xff] 0.0
          %399 = vst [vmem:[#allocation2 + $0xb8] sm:$0xff] 0.0
          %400 = vst [vmem:[#allocation2 + $0xc0] sm:$0xff] 0.0
          %401 = vst [vmem:[#allocation2 + $0xc8] sm:$0xff] 0.0
          %402 = vst [vmem:[#allocation2 + $0xd0] sm:$0xff] 0.0
          %403 = vst [vmem:[#allocation2 + $0xd8] sm:$0xff] 0.0
        $region81: #{alexnet_forward.9} parent=68 // pred_fallthru
          _
        %v404 = vld [vmem:[#allocation2] sm:$0xff]
        %v405 = vld [vmem:[#allocation2 + $0x8] sm:$0xff]
        %v406 = vld [vmem:[#allocation2 + $0x10] sm:$0xff]
        %v407 = vld [vmem:[#allocation2 + $0x18] sm:$0xff]
        %v408 = vld [vmem:[#allocation2 + $0x20] sm:$0xff]
        %v409 = vld [vmem:[#allocation2 + $0x28] sm:$0xff]
        %v410 = vld [vmem:[#allocation2 + $0x30] sm:$0xff]
        %v411 = vld [vmem:[#allocation2 + $0x38] sm:$0xff]
        %v412 = vld [vmem:[#allocation2 + $0x40] sm:$0xff]
        %v413 = vld [vmem:[#allocation2 + $0x48] sm:$0xff]
        %v414 = vld [vmem:[#allocation2 + $0x50] sm:$0xff]
        %v415 = vld [vmem:[#allocation2 + $0x58] sm:$0xff]
        %v416 = vld [vmem:[#allocation2 + $0x60] sm:$0xff]
        %v417 = vld [vmem:[#allocation2 + $0x68] sm:$0xff]
        %v418 = vld [vmem:[#allocation2 + $0x70] sm:$0xff]
        %v419 = vld [vmem:[#allocation2 + $0x78] sm:$0xff]
        %v420 = vld [vmem:[#allocation2 + $0x80] sm:$0xff]
        %v421 = vld [vmem:[#allocation2 + $0x88] sm:$0xff]
        %v422 = vld [vmem:[#allocation2 + $0x90] sm:$0xff]
        %v423 = vld [vmem:[#allocation2 + $0x98] sm:$0xff]
        %v424 = vld [vmem:[#allocation2 + $0xa0] sm:$0xff]
        %v425 = vld [vmem:[#allocation2 + $0xa8] sm:$0xff]
        %v426 = vld [vmem:[#allocation2 + $0xb0] sm:$0xff]
        %v427 = vld [vmem:[#allocation2 + $0xb8] sm:$0xff]
        %v428 = vld [vmem:[#allocation2 + $0xc0] sm:$0xff]
        %v429 = vld [vmem:[#allocation2 + $0xc8] sm:$0xff]
        %v430 = vld [vmem:[#allocation2 + $0xd0] sm:$0xff]
        %v431 = vld [vmem:[#allocation2 + $0xd8] sm:$0xff]
        %v432 = vld [vmem:[%s307] sm:$0xf]
        %v433 = vld [vmem:[%s307 + $0x4] sm:$0xf]
        %v434 = vld [vmem:[%s307 + $0x8] sm:$0xf]
        %v435 = vld [vmem:[%s307 + $0xc] sm:$0xf]
        %v436 = vld [vmem:[%s307 + $0x10] sm:$0xf]
        %v437 = vld [vmem:[%s307 + $0x14] sm:$0xf]
        %v438 = vld [vmem:[%s307 + $0x18] sm:$0xf]
        %v439 = vld [vmem:[%s307 + $0x1c] sm:$0xf]
        %v440 = vld [vmem:[%s307 + $0x20] sm:$0xf]
        %v441 = vld [vmem:[%s307 + $0x24] sm:$0xf]
        %v442 = vld [vmem:[%s307 + $0x28] sm:$0xf]
        %v443 = vld [vmem:[%s307 + $0x2c] sm:$0xf]
        %v444 = vld [vmem:[%s307 + $0x30] sm:$0xf]
        %v445 = vld [vmem:[%s307 + $0x34] sm:$0xf]
        %v446 = vld [vmem:[%s315] sm:$0xff]
        %v447 = vld [vmem:[%s315 + $0x8] sm:$0xff]
        %v448 = vld [vmem:[%s315 + $0x10] sm:$0xff]
        %v449 = vld [vmem:[%s315 + $0x18] sm:$0xff]
        %v450 = vld [vmem:[%s315 + $0x20] sm:$0xff]
        %v451 = vld [vmem:[%s315 + $0x28] sm:$0xff]
        %v452 = vld [vmem:[%s315 + $0x30] sm:$0xff]
        %v453 = vld [vmem:[%s315 + $0x38] sm:$0xff]
        %v454 = vld [vmem:[%s315 + $0x40] sm:$0xff]
        %v455 = vld [vmem:[%s315 + $0x48] sm:$0xff]
        %v456 = vld [vmem:[%s315 + $0x50] sm:$0xff]
        %v457 = vld [vmem:[%s315 + $0x58] sm:$0xff]
        %v458 = vld [vmem:[%s315 + $0x60] sm:$0xff]
        %v459 = vld [vmem:[%s315 + $0x68] sm:$0xff]
        %v460 = vld [vmem:[%s315 + $0x70] sm:$0xff]
        %v461 = vld [vmem:[%s315 + $0x78] sm:$0xff]
        %v476 = vunpack.c.l.b16 %v432
        %v477 = vunpack.c.l.b16 %v433
        %v478 = vunpack.c.l.b16 %v434
        %v479 = vunpack.c.l.b16 %v435
        %v480 = vunpack.c.l.b16 %v436
        %v481 = vunpack.c.l.b16 %v437
        %v482 = vunpack.c.l.b16 %v438
        %v483 = vunpack.c.l.b16 %v439
        %v484 = vunpack.c.l.b16 %v440
        %v485 = vunpack.c.l.b16 %v441
        %v486 = vunpack.c.l.b16 %v442
        %v487 = vunpack.c.l.b16 %v443
        %v488 = vunpack.c.l.b16 %v444
        %v489 = vunpack.c.l.b16 %v445
        %v490 = vpack.c.b16 %v477, %v476
        %v491 = vpack.c.b16 %v479, %v478
        %v492 = vpack.c.b16 %v481, %v480
        %v493 = vpack.c.b16 %v483, %v482
        %v494 = vpack.c.b16 %v485, %v484
        %v495 = vpack.c.b16 %v487, %v486
        %v496 = vpack.c.b16 %v489, %v488
        %v520 = vunpack.c.l.b16 %v446
        %v521 = vunpack.c.h.b16 %v446
        %v522 = vunpack.c.l.b16 %v447
        %v523 = vunpack.c.h.b16 %v447
        %v524 = vunpack.c.l.b16 %v448
        %v525 = vunpack.c.h.b16 %v448
        %v526 = vunpack.c.l.b16 %v449
        %v527 = vunpack.c.h.b16 %v449
        %v528 = vunpack.c.l.b16 %v450
        %v529 = vunpack.c.h.b16 %v450
        %v530 = vunpack.c.l.b16 %v451
        %v531 = vunpack.c.h.b16 %v451
        %v532 = vunpack.c.l.b16 %v452
        %v533 = vunpack.c.h.b16 %v452
        %v534 = vunpack.c.l.b16 %v453
        %v535 = vunpack.c.h.b16 %v453
        %v536 = vunpack.c.l.b16 %v454
        %v537 = vunpack.c.h.b16 %v454
        %v538 = vunpack.c.l.b16 %v455
        %v539 = vunpack.c.h.b16 %v455
        %v540 = vunpack.c.l.b16 %v456
        %v541 = vunpack.c.h.b16 %v456
        %v542 = vunpack.c.l.b16 %v457
        %v543 = vunpack.c.h.b16 %v457
        %v544 = vunpack.c.l.b16 %v458
        %v545 = vunpack.c.h.b16 %v458
        %v546 = vunpack.c.l.b16 %v459
        %v547 = vunpack.c.h.b16 %v459
        %v548 = vunpack.c.l.b16 %v460
        %v549 = vunpack.c.h.b16 %v460
        %v550 = vunpack.c.l.b16 %v461
        %v551 = vunpack.c.h.b16 %v461
        %v552 = vpack.c.b16 %v522, %v520
        %v553 = vpack.c.b16 %v523, %v521
        %v554 = vpack.c.b16 %v526, %v524
        %v555 = vpack.c.b16 %v527, %v525
        %v556 = vpack.c.b16 %v530, %v528
        %v557 = vpack.c.b16 %v531, %v529
        %v558 = vpack.c.b16 %v534, %v532
        %v559 = vpack.c.b16 %v535, %v533
        %v560 = vpack.c.b16 %v538, %v536
        %v561 = vpack.c.b16 %v539, %v537
        %v562 = vpack.c.b16 %v542, %v540
        %v563 = vpack.c.b16 %v543, %v541
        %v564 = vpack.c.b16 %v546, %v544
        %v565 = vpack.c.b16 %v547, %v545
        %v566 = vpack.c.b16 %v550, %v548
        %v567 = vpack.c.b16 %v551, %v549
        %584 = vmatprep.subr.bf16.mxu0 %v567
        %585 = vmatpush1.bf16.msra.mxu0 %v566
        %586 = vmatprep.subr.bf16.mxu0 %v565
        %587 = vmatpush1.bf16.msra.mxu0 %v564
        %588 = vmatprep.subr.bf16.mxu0 %v563
        %589 = vmatpush1.bf16.msra.mxu0 %v562
        %590 = vmatprep.subr.bf16.mxu0 %v561
        %591 = vmatpush1.bf16.msra.mxu0 %v560
        %592 = vmatprep.subr.bf16.mxu0 %v559
        %593 = vmatpush1.bf16.msra.mxu0 %v558
        %594 = vmatprep.subr.bf16.mxu0 %v557
        %595 = vmatpush1.bf16.msra.mxu0 %v556
        %596 = vmatprep.subr.bf16.mxu0 %v555
        %597 = vmatpush1.bf16.msra.mxu0 %v554
        %598 = vmatprep.subr.bf16.mxu0 %v553
        %599 = vmatpush1.bf16.msra.mxu0 %v552
        %600 = vmatprep.subr.bf16.mxu0 0
        %601 = vmatpush2.bf16.msra.mxu0 0
        %602 = vmatprep.subr.bf16.mxu0 0
        %603 = vmatpush2.bf16.msra.mxu0 0
        %604 = vmatprep.subr.bf16.mxu0 0
        %605 = vmatpush2.bf16.msra.mxu0 0
        %606 = vmatprep.subr.bf16.mxu0 0
        %607 = vmatpush2.bf16.msra.mxu0 0
        %608 = vmatprep.subr.bf16.mxu0 0
        %609 = vmatpush2.bf16.msra.mxu0 0
        %610 = vmatprep.subr.bf16.mxu0 0
        %611 = vmatpush2.bf16.msra.mxu0 0
        %612 = vmatprep.subr.bf16.mxu0 0
        %613 = vmatpush2.bf16.msra.mxu0 0
        %614 = vmatprep.subr.bf16.mxu0 0
        %615 = vmatpush2.bf16.msra.mxu0 0
        %616 = vmatprep.mubr.bf16.mxu0 0
        %617 = vmatmul.mubr.bf16.gmra.mxu0 %v490
        %v618 = vpop.f32.mrf.mxu0
        %v619 = vadd.f32 0.0, %v618
        %v620 = vpop.f32.mrf.mxu0
        %v621 = vadd.f32 0.0, %v620
        %v622 = vpop.f32.mrf.mxu0
        %v623 = vadd.f32 0.0, %v622
        %v624 = vpop.f32.mrf.mxu0
        %v625 = vadd.f32 0.0, %v624
        %626 = vmatprep.mubr.bf16.mxu0 0
        %627 = vmatmul.mubr.bf16.gmra.mxu0 %v491
        %v628 = vpop.f32.mrf.mxu0
        %v629 = vadd.f32 0.0, %v628
        %v630 = vpop.f32.mrf.mxu0
        %v631 = vadd.f32 0.0, %v630
        %v632 = vpop.f32.mrf.mxu0
        %v633 = vadd.f32 0.0, %v632
        %v634 = vpop.f32.mrf.mxu0
        %v635 = vadd.f32 0.0, %v634
        %636 = vmatprep.mubr.bf16.mxu0 0
        %637 = vmatmul.mubr.bf16.gmra.mxu0 %v492
        %v638 = vpop.f32.mrf.mxu0
        %v639 = vadd.f32 0.0, %v638
        %v640 = vpop.f32.mrf.mxu0
        %v641 = vadd.f32 0.0, %v640
        %v642 = vpop.f32.mrf.mxu0
        %v643 = vadd.f32 0.0, %v642
        %v644 = vpop.f32.mrf.mxu0
        %v645 = vadd.f32 0.0, %v644
        %646 = vmatprep.mubr.bf16.mxu0 0
        %647 = vmatmul.mubr.bf16.gmra.mxu0 %v493
        %v648 = vpop.f32.mrf.mxu0
        %v649 = vadd.f32 0.0, %v648
        %v650 = vpop.f32.mrf.mxu0
        %v651 = vadd.f32 0.0, %v650
        %v652 = vpop.f32.mrf.mxu0
        %v653 = vadd.f32 0.0, %v652
        %v654 = vpop.f32.mrf.mxu0
        %v655 = vadd.f32 0.0, %v654
        %656 = vmatprep.mubr.bf16.mxu0 0
        %657 = vmatmul.mubr.bf16.gmra.mxu0 %v494
        %v658 = vpop.f32.mrf.mxu0
        %v659 = vadd.f32 0.0, %v658
        %v660 = vpop.f32.mrf.mxu0
        %v661 = vadd.f32 0.0, %v660
        %v662 = vpop.f32.mrf.mxu0
        %v663 = vadd.f32 0.0, %v662
        %v664 = vpop.f32.mrf.mxu0
        %v665 = vadd.f32 0.0, %v664
        %666 = vmatprep.mubr.bf16.mxu0 0
        %667 = vmatmul.mubr.bf16.gmra.mxu0 %v495
        %v668 = vpop.f32.mrf.mxu0
        %v669 = vadd.f32 0.0, %v668
        %v670 = vpop.f32.mrf.mxu0
        %v671 = vadd.f32 0.0, %v670
        %v672 = vpop.f32.mrf.mxu0
        %v673 = vadd.f32 0.0, %v672
        %v674 = vpop.f32.mrf.mxu0
        %v675 = vadd.f32 0.0, %v674
        %676 = vmatprep.mubr.bf16.mxu0 0
        %677 = vmatmul.mubr.bf16.gmra.mxu0 %v496
        %v678 = vpop.f32.mrf.mxu0
        %v679 = vadd.f32 0.0, %v678
        %v680 = vpop.f32.mrf.mxu0
        %v681 = vadd.f32 0.0, %v680
        %v682 = vpop.f32.mrf.mxu0
        %v683 = vadd.f32 0.0, %v682
        %v684 = vpop.f32.mrf.mxu0
        %v685 = vadd.f32 0.0, %v684
        %686 = vdwg.mxu0
        %v687 = vadd.f32 %v404, %v619
        %v688 = vadd.f32 %v405, %v621
        %v689 = vadd.f32 %v406, %v623
        %v690 = vadd.f32 %v407, %v625
        %v691 = vadd.f32 %v408, %v629
        %v692 = vadd.f32 %v409, %v631
        %v693 = vadd.f32 %v410, %v633
        %v694 = vadd.f32 %v411, %v635
        %v695 = vadd.f32 %v412, %v639
        %v696 = vadd.f32 %v413, %v641
        %v697 = vadd.f32 %v414, %v643
        %v698 = vadd.f32 %v415, %v645
        %v699 = vadd.f32 %v416, %v649
        %v700 = vadd.f32 %v417, %v651
        %v701 = vadd.f32 %v418, %v653
        %v702 = vadd.f32 %v419, %v655
        %v703 = vadd.f32 %v420, %v659
        %v704 = vadd.f32 %v421, %v661
        %v705 = vadd.f32 %v422, %v663
        %v706 = vadd.f32 %v423, %v665
        %v707 = vadd.f32 %v424, %v669
        %v708 = vadd.f32 %v425, %v671
        %v709 = vadd.f32 %v426, %v673
        %v710 = vadd.f32 %v427, %v675
        %v711 = vadd.f32 %v428, %v679
        %v712 = vadd.f32 %v429, %v681
        %v713 = vadd.f32 %v430, %v683
        %v714 = vadd.f32 %v431, %v685
        %715 = vst [vmem:[#allocation2] sm:$0xff] %v687
        %716 = vst [vmem:[#allocation2 + $0x8] sm:$0xff] %v688
        %717 = vst [vmem:[#allocation2 + $0x10] sm:$0xff] %v689
        %718 = vst [vmem:[#allocation2 + $0x18] sm:$0xff] %v690
        %719 = vst [vmem:[#allocation2 + $0x20] sm:$0xff] %v691
        %720 = vst [vmem:[#allocation2 + $0x28] sm:$0xff] %v692
        %721 = vst [vmem:[#allocation2 + $0x30] sm:$0xff] %v693
        %722 = vst [vmem:[#allocation2 + $0x38] sm:$0xff] %v694
        %723 = vst [vmem:[#allocation2 + $0x40] sm:$0xff] %v695
        %724 = vst [vmem:[#allocation2 + $0x48] sm:$0xff] %v696
        %725 = vst [vmem:[#allocation2 + $0x50] sm:$0xff] %v697
        %726 = vst [vmem:[#allocation2 + $0x58] sm:$0xff] %v698
        %727 = vst [vmem:[#allocation2 + $0x60] sm:$0xff] %v699
        %728 = vst [vmem:[#allocation2 + $0x68] sm:$0xff] %v700
        %729 = vst [vmem:[#allocation2 + $0x70] sm:$0xff] %v701
        %730 = vst [vmem:[#allocation2 + $0x78] sm:$0xff] %v702
        %731 = vst [vmem:[#allocation2 + $0x80] sm:$0xff] %v703
        %732 = vst [vmem:[#allocation2 + $0x88] sm:$0xff] %v704
        %733 = vst [vmem:[#allocation2 + $0x90] sm:$0xff] %v705
        %734 = vst [vmem:[#allocation2 + $0x98] sm:$0xff] %v706
        %735 = vst [vmem:[#allocation2 + $0xa0] sm:$0xff] %v707
        %736 = vst [vmem:[#allocation2 + $0xa8] sm:$0xff] %v708
        %737 = vst [vmem:[#allocation2 + $0xb0] sm:$0xff] %v709
        %738 = vst [vmem:[#allocation2 + $0xb8] sm:$0xff] %v710
        %739 = vst [vmem:[#allocation2 + $0xc0] sm:$0xff] %v711
        %740 = vst [vmem:[#allocation2 + $0xc8] sm:$0xff] %v712
        %741 = vst [vmem:[#allocation2 + $0xd0] sm:$0xff] %v713
        %742 = vst [vmem:[#allocation2 + $0xd8] sm:$0xff] %v714
        %p743 = scmp.eq.s32.totalorder %s24, 12
        // Predicated region
        $region82: #{alexnet_forward.9} parent=68 // pred_check
          %p744 = pneg %p743
        $region83: #{alexnet_forward.9} parent=68 // pred_check_branch
          %746 = sbr.rel (%p744) target = $region85
        $region84: #{alexnet_forward.9} parent=68 // pred_region
          %v747 = vld [vmem:[#allocation2] sm:$0xff]
          %v748 = vld [vmem:[#allocation2 + $0x8] sm:$0xff]
          %v749 = vld [vmem:[#allocation2 + $0x10] sm:$0xff]
          %v750 = vld [vmem:[#allocation2 + $0x18] sm:$0xff]
          %v751 = vld [vmem:[#allocation2 + $0x20] sm:$0xff]
          %v752 = vld [vmem:[#allocation2 + $0x28] sm:$0xff]
          %v753 = vld [vmem:[#allocation2 + $0x30] sm:$0xff]
          %v754 = vld [vmem:[#allocation2 + $0x38] sm:$0xff]
          %v755 = vld [vmem:[#allocation2 + $0x40] sm:$0xff]
          %v756 = vld [vmem:[#allocation2 + $0x48] sm:$0xff]
          %v757 = vld [vmem:[#allocation2 + $0x50] sm:$0xff]
          %v758 = vld [vmem:[#allocation2 + $0x58] sm:$0xff]
          %v759 = vld [vmem:[#allocation2 + $0x60] sm:$0xff]
          %v760 = vld [vmem:[#allocation2 + $0x68] sm:$0xff]
          %v761 = vld [vmem:[#allocation2 + $0x70] sm:$0xff]
          %v762 = vld [vmem:[#allocation2 + $0x78] sm:$0xff]
          %v763 = vld [vmem:[#allocation2 + $0x80] sm:$0xff]
          %v764 = vld [vmem:[#allocation2 + $0x88] sm:$0xff]
          %v765 = vld [vmem:[#allocation2 + $0x90] sm:$0xff]
          %v766 = vld [vmem:[#allocation2 + $0x98] sm:$0xff]
          %v767 = vld [vmem:[#allocation2 + $0xa0] sm:$0xff]
          %v768 = vld [vmem:[#allocation2 + $0xa8] sm:$0xff]
          %v769 = vld [vmem:[#allocation2 + $0xb0] sm:$0xff]
          %v770 = vld [vmem:[#allocation2 + $0xb8] sm:$0xff]
          %v771 = vld [vmem:[#allocation2 + $0xc0] sm:$0xff]
          %v772 = vld [vmem:[#allocation2 + $0xc8] sm:$0xff]
          %v773 = vld [vmem:[#allocation2 + $0xd0] sm:$0xff]
          %v774 = vld [vmem:[#allocation2 + $0xd8] sm:$0xff]
          %v775 = vld [vmem:[%s357] sm:$0x3]
          %v777 = vlaneseq
          %v778 = vshrl.u32 %v777, 7
          %v779 = vsub.s32 0, %v778
          %v780 = vrot.slane %v775, %v779
          %v781 = vlaneseq
          %v782 = vshrl.u32 %v781, 7
          %v783 = vsub.s32 1, %v782
          %v784 = vrot.slane %v775, %v783
          %v787 = vadd.f32 %v747, %v780
          %v788 = vadd.f32 %v748, %v784
          %v789 = vadd.f32 %v749, %v780
          %v790 = vadd.f32 %v750, %v784
          %v791 = vadd.f32 %v751, %v780
          %v792 = vadd.f32 %v752, %v784
          %v793 = vadd.f32 %v753, %v780
          %v794 = vadd.f32 %v754, %v784
          %v795 = vadd.f32 %v755, %v780
          %v796 = vadd.f32 %v756, %v784
          %v797 = vadd.f32 %v757, %v780
          %v798 = vadd.f32 %v758, %v784
          %v799 = vadd.f32 %v759, %v780
          %v800 = vadd.f32 %v760, %v784
          %v801 = vadd.f32 %v761, %v780
          %v802 = vadd.f32 %v762, %v784
          %v803 = vadd.f32 %v763, %v780
          %v804 = vadd.f32 %v764, %v784
          %v805 = vadd.f32 %v765, %v780
          %v806 = vadd.f32 %v766, %v784
          %v807 = vadd.f32 %v767, %v780
          %v808 = vadd.f32 %v768, %v784
          %v809 = vadd.f32 %v769, %v780
          %v810 = vadd.f32 %v770, %v784
          %v811 = vadd.f32 %v771, %v780
          %v812 = vadd.f32 %v772, %v784
          %v813 = vadd.f32 %v773, %v780
          %v814 = vadd.f32 %v774, %v784
          %v815 = vmax.f32 %v787, 0.0
          %v816 = vmax.f32 %v788, 0.0
          %v817 = vmax.f32 %v789, 0.0
          %v818 = vmax.f32 %v790, 0.0
          %v819 = vmax.f32 %v791, 0.0
          %v820 = vmax.f32 %v792, 0.0
          %v821 = vmax.f32 %v793, 0.0
          %v822 = vmax.f32 %v794, 0.0
          %v823 = vmax.f32 %v795, 0.0
          %v824 = vmax.f32 %v796, 0.0
          %v825 = vmax.f32 %v797, 0.0
          %v826 = vmax.f32 %v798, 0.0
          %v827 = vmax.f32 %v799, 0.0
          %v828 = vmax.f32 %v800, 0.0
          %v829 = vmax.f32 %v801, 0.0
          %v830 = vmax.f32 %v802, 0.0
          %v831 = vmax.f32 %v803, 0.0
          %v832 = vmax.f32 %v804, 0.0
          %v833 = vmax.f32 %v805, 0.0
          %v834 = vmax.f32 %v806, 0.0
          %v835 = vmax.f32 %v807, 0.0
          %v836 = vmax.f32 %v808, 0.0
          %v837 = vmax.f32 %v809, 0.0
          %v838 = vmax.f32 %v810, 0.0
          %v839 = vmax.f32 %v811, 0.0
          %v840 = vmax.f32 %v812, 0.0
          %v841 = vmax.f32 %v813, 0.0
          %v842 = vmax.f32 %v814, 0.0
          %v843 = vpack.c.bf16 %v817, %v815
          %v844 = vpack.c.bf16 %v818, %v816
          %v845 = vpack.c.bf16 %v821, %v819
          %v846 = vpack.c.bf16 %v822, %v820
          %v847 = vpack.c.bf16 %v825, %v823
          %v848 = vpack.c.bf16 %v826, %v824
          %v849 = vpack.c.bf16 %v829, %v827
          %v850 = vpack.c.bf16 %v830, %v828
          %v851 = vpack.c.bf16 %v833, %v831
          %v852 = vpack.c.bf16 %v834, %v832
          %v853 = vpack.c.bf16 %v837, %v835
          %v854 = vpack.c.bf16 %v838, %v836
          %v855 = vpack.c.bf16 %v841, %v839
          %v856 = vpack.c.bf16 %v842, %v840
          %v871 = vunpack.c.l.b16 %v843
          %v872 = vunpack.c.l.b16 %v844
          %v873 = vunpack.c.h.b16 %v843
          %v874 = vunpack.c.h.b16 %v844
          %v875 = vunpack.c.l.b16 %v845
          %v876 = vunpack.c.l.b16 %v846
          %v877 = vunpack.c.h.b16 %v845
          %v878 = vunpack.c.h.b16 %v846
          %v879 = vunpack.c.l.b16 %v847
          %v880 = vunpack.c.l.b16 %v848
          %v881 = vunpack.c.h.b16 %v847
          %v882 = vunpack.c.h.b16 %v848
          %v883 = vunpack.c.l.b16 %v849
          %v884 = vunpack.c.l.b16 %v850
          %v885 = vunpack.c.h.b16 %v849
          %v886 = vunpack.c.h.b16 %v850
          %v887 = vunpack.c.l.b16 %v851
          %v888 = vunpack.c.l.b16 %v852
          %v889 = vunpack.c.h.b16 %v851
          %v890 = vunpack.c.h.b16 %v852
          %v891 = vunpack.c.l.b16 %v853
          %v892 = vunpack.c.l.b16 %v854
          %v893 = vunpack.c.h.b16 %v853
          %v894 = vunpack.c.h.b16 %v854
          %v895 = vunpack.c.l.b16 %v855
          %v896 = vunpack.c.l.b16 %v856
          %v897 = vunpack.c.h.b16 %v855
          %v898 = vunpack.c.h.b16 %v856
          %v899 = vpack.c.b16 %v872, %v871
          %v900 = vpack.c.b16 %v874, %v873
          %v901 = vpack.c.b16 %v876, %v875
          %v902 = vpack.c.b16 %v878, %v877
          %v903 = vpack.c.b16 %v880, %v879
          %v904 = vpack.c.b16 %v882, %v881
          %v905 = vpack.c.b16 %v884, %v883
          %v906 = vpack.c.b16 %v886, %v885
          %v907 = vpack.c.b16 %v888, %v887
          %v908 = vpack.c.b16 %v890, %v889
          %v909 = vpack.c.b16 %v892, %v891
          %v910 = vpack.c.b16 %v894, %v893
          %v911 = vpack.c.b16 %v896, %v895
          %v912 = vpack.c.b16 %v898, %v897
          %927 = vst [vmem:[%s368] sm:$0xff] %v899
          %928 = vst [vmem:[%s368 + $0x8] sm:$0xff] %v900
          %929 = vst [vmem:[%s368 + $0x10] sm:$0xff] %v901
          %930 = vst [vmem:[%s368 + $0x18] sm:$0xff] %v902
          %931 = vst [vmem:[%s368 + $0x20] sm:$0xff] %v903
          %932 = vst [vmem:[%s368 + $0x28] sm:$0xff] %v904
          %933 = vst [vmem:[%s368 + $0x30] sm:$0xff] %v905
          %934 = vst [vmem:[%s368 + $0x38] sm:$0xff] %v906
          %935 = vst [vmem:[%s368 + $0x40] sm:$0xff] %v907
          %936 = vst [vmem:[%s368 + $0x48] sm:$0xff] %v908
          %937 = vst [vmem:[%s368 + $0x50] sm:$0xff] %v909
          %938 = vst [vmem:[%s368 + $0x58] sm:$0xff] %v910
          %939 = vst [vmem:[%s368 + $0x60] sm:$0xff] %v911
          %940 = vst [vmem:[%s368 + $0x68] sm:$0xff] %v912
        $region85: #{alexnet_forward.9} parent=68 // pred_fallthru
          _
        %s941 = smul.u32 14, %s22
        %s942 = smul.u32 2, %s23
        %p943 = scmp.lt.s32.totalorder %s941, 13
        %s944 = scalar_select %p943, %s941, 13
        %p945 = scmp.lt.s32.totalorder %s942, 1
        %s946 = scalar_select %p945, %s942, 1
        %s947 = smul.addr %s944, 2
        %s948 = sadd.s32 %s946, %s947
        %s949 = smul.addr %s948, 4
        %s950 = scalar_lea.vmem %s3, %s949
        // Predicated region
        $region86: #{alexnet_forward.9} parent=68 // pred_check
          %p951 = pneg %p138
        $region87: #{alexnet_forward.9} parent=68 // pred_check_branch
          %953 = sbr.rel (%p951) target = $region89
        $region88: #{alexnet_forward.9} parent=68 // pred_region
          %s954 = smul.u32 14, %s22
          %s955 = smul.u32 2, %s23
        $region89: #{alexnet_forward.9} parent=68 // pred_fallthru
          _
        // Predicated region
        $region90: #{alexnet_forward.9} parent=68 // pred_check
          %p956 = pneg %p138
        $region91: #{alexnet_forward.9} parent=68 // pred_check_branch
          %958 = sbr.rel (%p956) target = $region93
        $region92: #{alexnet_forward.9} parent=68 // pred_region
          %s959 = smul.u32 14, %s22
          %s960 = smul.u32 2, %s23
          %p961 = scmp.lt.s32.totalorder %s959, 13
          %s962 = scalar_select %p961, %s959, 13
          %p963 = scmp.lt.s32.totalorder %s960, 1
          %s964 = scalar_select %p963, %s960, 1
          %s965 = smul.addr %s962, 2
          %s966 = sadd.s32 %s964, %s965
          %s967 = smul.addr %s966, 4
          %s968 = scalar_lea.vmem %s3, %s967
        $region93: #{alexnet_forward.9} parent=68 // pred_fallthru
          _
      $region69: #{alexnet_forward.9} parent=5 // pred_fallthru
        _
      %p969 = scmp.le.s32.totalorder 2, %s12
      // Predicated region
      $region94: #{alexnet_forward.9} parent=5 // pred_check
        %p970 = pneg %p969
      $region95: #{alexnet_forward.9} parent=5 // pred_check_branch
        %972 = sbr.rel (%p970) target = $region97
      $region96: #{alexnet_forward.9} parent=5 // pred_region
        %s973 = ssub.s32 %s12, 2
      $region97: #{alexnet_forward.9} parent=5 // pred_fallthru
        _
    $region6: #{alexnet_forward.9} parent=1 // loop_footer
      %s16 = sadd.s32 1, %s12
    $region7: #{alexnet_forward.9} parent=1 // loop_footer_branch
      %11 = sbr.rel target = $region3
    $region8: #{alexnet_forward.9} parent=1 // loop_exit
      _
    %974 = vsyncpa [#allocation5], 1
    %s975 = scalar_lea.sflag [#allocation5], 1
    %976 = vsyncpa %s975, 1

// kernel: alexnet_forward.10
$region0: #{alexnet_forward.10}
  #allocation0 [shape = 'u32[]', space=smem, size = 0x4, offset = 0x4, fixed_abs, tag = 'smem constant byte address 0x4 - core index']
  #allocation1 [shape = 'u32[144,128]{1,0:T(1,128)}', space=vmem, size = 0x12000, scoped, tag = 'internal scratch']
  #allocation2 [shape = 'f32[32,384]{1,0:T(8,128)}', space=vmem, size = 0xc000, scoped, tag = 'scratch operand']
  %s0 = inlined_call_operand.vmem [shape: bf16[32,1792], index: 0, kind: input, shape index: {}]
  %s1 = inlined_call_operand.hbm [shape: bf16[1792,384], index: 1, kind: input, shape index: {}]
  %s2 = inlined_call_operand.vmem [shape: f32[1,384], index: 2, kind: input, shape index: {}]
  %s3 = inlined_call_operand.vmem [shape: bf16[32,384], index: 3, kind: output, shape index: {}]
  %s4 = sld [smem:[#allocation0]]
  $region95: #{alexnet_forward.10} parent=0
    _
  %s6 = ssub.s32 1, %s4
  %s7 = scalar_select 0, %s6, %s4
  $region1: #{alexnet_forward.10} parent=0
    #allocation3 [shape = 'u8[32768]{0}', space=vmem, size = 0x8000, scoped, tag = 'input window, operand 0']
    #allocation4 [shape = 'u8[393216]{0}', space=vmem, size = 0x60000, scoped, tag = 'input window, operand 1']
    #allocation5 [shape = 's32[2]{0}', space=sflag, size = 0x8, scoped, tag = 'scoped memory for alexnet_forward.10']
    %8 = vsyncpa [#allocation5], 0
    %s9 = scalar_lea.sflag [#allocation5], 1
    %10 = vsyncpa %s9, 0
    loop: start=0, step=1, limit=9
    $region2: #{alexnet_forward.10} parent=1 // loop_pre_header
      _
    $region3: #{alexnet_forward.10} parent=1 // loop_header
      %s12 = sphi 0, %s16
      %p13 = scmp.ge.s32.totalorder %s12, 9
      %s19 = sphi 0, %s38
      %s20 = sphi 0, %s34
      %s21 = sphi 0, %s30
      %s22 = sphi 0, %s19
      %s23 = sphi 0, %s20
      %s24 = sphi 0, %s21
      %s25 = sphi 0, %s22
      %s26 = sphi 0, %s23
      %s27 = sphi 0, %s24
      %s43 = sphi 0, %s45
      %s46 = sphi 0, %s43
      %s47 = sphi 0, %s46
      %s63 = sphi 0, %s47
      %s71 = sphi 0, %s73
      %s74 = sphi 0, %s71
      %s75 = sphi 0, %s74
      %s91 = sphi 0, %s75
      %s97 = sphi 0, %s99
      %s100 = sphi 0, %s97
      %s101 = sphi 0, %s100
      %s117 = sphi 0, %s101
      %s125 = sphi 0, %s127
      %s128 = sphi 0, %s125
      %s129 = sphi 0, %s128
      %s145 = sphi 0, %s129
    $region4: #{alexnet_forward.10} parent=1 // loop_header_branch
      %15 = sbr.rel (%p13) target = $region8
    $region5: #{alexnet_forward.10} parent=1 // loop_body
      %s17 = ssub.s32 %s12, 1
      %s18 = ssub.s32 %s12, 2
      %s28 = sadd.s32 1, %s21
      %p29 = scmp.ge.s32.totalorder %s28, 7
      %s30 = scalar_select %p29, 0, %s28
      %s31 = sadd.s32 1, %s20
      %s32 = scalar_select %p29, %s31, %s20
      %p33 = scmp.ge.s32.totalorder %s32, 1
      %s34 = scalar_select %p33, 0, %s32
      %s35 = sadd.s32 1, %s19
      %s36 = scalar_select %p33, %s35, %s19
      %p37 = scmp.ge.s32.totalorder %s36, 1
      %s38 = scalar_select %p37, 0, %s36
      %s39 = ssub.s32 %s19, %s38
      %s40 = ssub.s32 %s21, %s30
      %s41 = sor.u32 %s39, %s40
      %p42 = scmp.eq.s32.totalorder %s41, 0
      %s44 = sadd.s32 %s43, 1
      %s45 = scalar_select %p42, %s43, %s44
      %p48 = pneg %p42
      %p49 = scmp.eq.s32.totalorder %s12, 6
      %p50 = por %p48, %p49
      %p51 = scmp.ne.s32.totalorder %s43, %s46
      %p52 = scmp.eq.s32.totalorder %s12, 0
      %p53 = por %p51, %p52
      %p54 = scmp.ne.s32.totalorder %s43, %s46
      %p55 = scmp.eq.s32.totalorder %s17, 6
      %p56 = por %p54, %p55
      %p57 = scmp.ne.s32.totalorder %s46, %s47
      %p58 = scmp.eq.s32.totalorder %s17, 0
      %p59 = por %p57, %p58
      %p60 = scmp.ne.s32.totalorder %s46, %s47
      %p61 = scmp.eq.s32.totalorder %s18, 6
      %p62 = por %p60, %p61
      %p64 = scmp.ne.s32.totalorder %s47, %s63
      %p65 = scmp.eq.s32.totalorder %s18, 0
      %p66 = por %p64, %p65
      %s67 = ssub.s32 %s21, %s30
      %s68 = ssub.s32 %s20, %s34
      %s69 = sor.u32 %s67, %s68
      %p70 = scmp.eq.s32.totalorder %s69, 0
      %s72 = sadd.s32 %s71, 1
      %s73 = scalar_select %p70, %s71, %s72
      %p76 = pneg %p70
      %p77 = scmp.eq.s32.totalorder %s12, 6
      %p78 = por %p76, %p77
      %p79 = scmp.ne.s32.totalorder %s71, %s74
      %p80 = scmp.eq.s32.totalorder %s12, 0
      %p81 = por %p79, %p80
      %p82 = scmp.ne.s32.totalorder %s71, %s74
      %p83 = scmp.eq.s32.totalorder %s17, 6
      %p84 = por %p82, %p83
      %p85 = scmp.ne.s32.totalorder %s74, %s75
      %p86 = scmp.eq.s32.totalorder %s17, 0
      %p87 = por %p85, %p86
      %p88 = scmp.ne.s32.totalorder %s74, %s75
      %p89 = scmp.eq.s32.totalorder %s18, 6
      %p90 = por %p88, %p89
      %p92 = scmp.ne.s32.totalorder %s75, %s91
      %p93 = scmp.eq.s32.totalorder %s18, 0
      %p94 = por %p92, %p93
      %s95 = ssub.s32 %s20, %s34
      %p96 = scmp.eq.s32.totalorder %s95, 0
      %s98 = sadd.s32 %s97, 1
      %s99 = scalar_select %p96, %s97, %s98
      %p102 = pneg %p96
      %p103 = scmp.eq.s32.totalorder %s12, 6
      %p104 = por %p102, %p103
      %p105 = scmp.ne.s32.totalorder %s97, %s100
      %p106 = scmp.eq.s32.totalorder %s12, 0
      %p107 = por %p105, %p106
      %p108 = scmp.ne.s32.totalorder %s97, %s100
      %p109 = scmp.eq.s32.totalorder %s17, 6
      %p110 = por %p108, %p109
      %p111 = scmp.ne.s32.totalorder %s100, %s101
      %p112 = scmp.eq.s32.totalorder %s17, 0
      %p113 = por %p111, %p112
      %p114 = scmp.ne.s32.totalorder %s100, %s101
      %p115 = scmp.eq.s32.totalorder %s18, 6
      %p116 = por %p114, %p115
      %p118 = scmp.ne.s32.totalorder %s101, %s117
      %p119 = scmp.eq.s32.totalorder %s18, 0
      %p120 = por %p118, %p119
      %s121 = ssub.s32 %s19, %s38
      %s122 = ssub.s32 %s20, %s34
      %s123 = sor.u32 %s121, %s122
      %p124 = scmp.eq.s32.totalorder %s123, 0
      %s126 = sadd.s32 %s125, 1
      %s127 = scalar_select %p124, %s125, %s126
      %p130 = pneg %p124
      %p131 = scmp.eq.s32.totalorder %s12, 6
      %p132 = por %p130, %p131
      %p133 = scmp.ne.s32.totalorder %s125, %s128
      %p134 = scmp.eq.s32.totalorder %s12, 0
      %p135 = por %p133, %p134
      %p136 = scmp.ne.s32.totalorder %s125, %s128
      %p137 = scmp.eq.s32.totalorder %s17, 6
      %p138 = por %p136, %p137
      %p139 = scmp.ne.s32.totalorder %s128, %s129
      %p140 = scmp.eq.s32.totalorder %s17, 0
      %p141 = por %p139, %p140
      %p142 = scmp.ne.s32.totalorder %s128, %s129
      %p143 = scmp.eq.s32.totalorder %s18, 6
      %p144 = por %p142, %p143
      %p146 = scmp.ne.s32.totalorder %s129, %s145
      %p147 = scmp.eq.s32.totalorder %s18, 0
      %p148 = por %p146, %p147
      %p149 = scmp.le.s32.totalorder 1, %s12
      %p150 = scmp.lt.s32.totalorder %s12, 8
      %p151 = pnand %p149, %p150
      %p152 = pneg %p151
      // Predicated region
      $region9: #{alexnet_forward.10} parent=5 // pred_check
        _
      $region10: #{alexnet_forward.10} parent=5 // pred_check_branch
        %154 = sbr.rel (%p151) target = $region12
      $region11: #{alexnet_forward.10} parent=5 // pred_region
        %s155 = ssub.s32 %s12, 1
        // Predicated region
        $region13: #{alexnet_forward.10} parent=11 // pred_check
          %p156 = pneg %p113
        $region14: #{alexnet_forward.10} parent=11 // pred_check_branch
          %158 = sbr.rel (%p156) target = $region16
        $region15: #{alexnet_forward.10} parent=11 // pred_region
          %s159 = smul.u32 3, %s23
          %p160 = scmp.lt.s32.totalorder %s159, 2
          %s161 = scalar_select %p160, %s159, 2
          %s162 = scalar_lea.vmem %s2, %s161
          %s163 = smul.u32 3, %s23
        $region16: #{alexnet_forward.10} parent=11 // pred_fallthru
          _
      $region12: #{alexnet_forward.10} parent=5 // pred_fallthru
        _
      %p164 = scmp.lt.s32.totalorder %s12, 7
      // Predicated region
      $region17: #{alexnet_forward.10} parent=5 // pred_check
        %p165 = pneg %p164
      $region18: #{alexnet_forward.10} parent=5 // pred_check_branch
        %167 = sbr.rel (%p165) target = $region20
      $region19: #{alexnet_forward.10} parent=5 // pred_region
        // Predicated region
        $region21: #{alexnet_forward.10} parent=19 // pred_check
          %p168 = pneg %p53
        $region22: #{alexnet_forward.10} parent=19 // pred_check_branch
          %170 = sbr.rel (%p168) target = $region24
        $region23: #{alexnet_forward.10} parent=19 // pred_region
          %s171 = sand.u32 %s43, 1
          %s172 = sand.u32 %s43, 1
          %s173 = smul.addr %s172, 32
          %s174 = scalar_lea.vmem [#allocation3], %s173
          %s175 = smul.u32 4, %s19
          %s176 = smul.u32 2, %s21
          %s177 = smul.addr %s175, 14
          %s178 = sadd.s32 %s176, %s177
          %s179 = smul.addr %s178, 4
          %s180 = scalar_lea.vmem %s0, %s179
          // Predicated region
          $region25: #{alexnet_forward.10} parent=23 // pred_check
            _
          $region26: #{alexnet_forward.10} parent=23 // pred_check_branch
            %182 = sbr.rel (0) target = $region28
          $region27: #{alexnet_forward.10} parent=23 // pred_region
            // Predicated region
            $region29: #{alexnet_forward.10} parent=27 // pred_check
              _
            $region30: #{alexnet_forward.10} parent=27 // pred_check_branch
              %184 = sbr.rel (0) target = $region32
            $region31: #{alexnet_forward.10} parent=27 // pred_region
              // Predicated region
              $region44: #{alexnet_forward.10} parent=31 // pred_check
                _
              $region45: #{alexnet_forward.10} parent=31 // pred_check_branch
                %206 = sbr.rel (0) target = $region47
              $region46: #{alexnet_forward.10} parent=31 // pred_region
                loop: start=0, step=1, limit=1
                $region48: #{alexnet_forward.10} parent=46 // loop_pre_header
                  _
                $region49: #{alexnet_forward.10} parent=46 // loop_header
                  %s208 = sphi 0, %s212
                  %p209 = scmp.ge.s32.totalorder %s208, 1
                  %s213 = sphi %s180, %s180
                  %s214 = sphi %s174, %s174
                $region50: #{alexnet_forward.10} parent=46 // loop_header_branch
                  %211 = sbr.rel (%p209) target = $region54
                $region51: #{alexnet_forward.10} parent=46 // loop_body
                  %v215 = vld [vmem:[%s213] sm:$0xff]
                  %216 = vst [vmem:[%s214] sm:$0xff] %v215
                  %v217 = vld [vmem:[%s213 + $0x38] sm:$0xff]
                  %218 = vst [vmem:[%s214 + $0x8] sm:$0xff] %v217
                  %v219 = vld [vmem:[%s213 + $0x70] sm:$0xff]
                  %220 = vst [vmem:[%s214 + $0x10] sm:$0xff] %v219
                  %v221 = vld [vmem:[%s213 + $0xa8] sm:$0xff]
                  %222 = vst [vmem:[%s214 + $0x18] sm:$0xff] %v221
                $region52: #{alexnet_forward.10} parent=46 // loop_footer
                  %s212 = sadd.s32 1, %s208
                $region53: #{alexnet_forward.10} parent=46 // loop_footer_branch
                  %207 = sbr.rel target = $region49
                $region54: #{alexnet_forward.10} parent=46 // loop_exit
                  _
              $region47: #{alexnet_forward.10} parent=31 // pred_fallthru
                _
              // Predicated region
              $region55: #{alexnet_forward.10} parent=31 // pred_check
                _
              $region56: #{alexnet_forward.10} parent=31 // pred_check_branch
                %224 = sbr.rel target = $region58
              $region57: #{alexnet_forward.10} parent=31 // pred_region
                _
              $region58: #{alexnet_forward.10} parent=31 // pred_fallthru
                _
            $region32: #{alexnet_forward.10} parent=27 // pred_fallthru
              _
            // Predicated region
            $region33: #{alexnet_forward.10} parent=27 // pred_check
              _
            $region34: #{alexnet_forward.10} parent=27 // pred_check_branch
              %186 = sbr.rel target = $region36
            $region35: #{alexnet_forward.10} parent=27 // pred_region
              %s188 = ssub.s32 256, 1
              loop: start=0, step=1, limit=1
              $region37: #{alexnet_forward.10} parent=35 // loop_pre_header
                _
              $region38: #{alexnet_forward.10} parent=35 // loop_header
                %s190 = sphi 0, %s194
                %p191 = scmp.ge.s32.totalorder %s190, 1
                %s195 = sphi %s180, %s180
                %s196 = sphi %s174, %s174
              $region39: #{alexnet_forward.10} parent=35 // loop_header_branch
                %193 = sbr.rel (%p191) target = $region43
              $region40: #{alexnet_forward.10} parent=35 // loop_body
                %v197 = vld [vmem:[%s195] sm:%s188]
                %198 = vst [vmem:[%s196] sm:%s188] %v197
                %v199 = vld [vmem:[%s195 + $0x38] sm:%s188]
                %200 = vst [vmem:[%s196 + $0x8] sm:%s188] %v199
                %v201 = vld [vmem:[%s195 + $0x70] sm:%s188]
                %202 = vst [vmem:[%s196 + $0x10] sm:%s188] %v201
                %v203 = vld [vmem:[%s195 + $0xa8] sm:%s188]
                %204 = vst [vmem:[%s196 + $0x18] sm:%s188] %v203
              $region41: #{alexnet_forward.10} parent=35 // loop_footer
                %s194 = sadd.s32 1, %s190
              $region42: #{alexnet_forward.10} parent=35 // loop_footer_branch
                %189 = sbr.rel target = $region38
              $region43: #{alexnet_forward.10} parent=35 // loop_exit
                _
            $region36: #{alexnet_forward.10} parent=27 // pred_fallthru
              _
          $region28: #{alexnet_forward.10} parent=23 // pred_fallthru
            _
          %225 = vnop
        $region24: #{alexnet_forward.10} parent=19 // pred_fallthru
          _
        // Predicated region
        $region59: #{alexnet_forward.10} parent=19 // pred_check
          %p226 = pneg %p81
        $region60: #{alexnet_forward.10} parent=19 // pred_check_branch
          %228 = sbr.rel (%p226) target = $region62
        $region61: #{alexnet_forward.10} parent=19 // pred_region
          %s229 = sand.u32 %s71, 1
          %s230 = scalar_lea.sflag [#allocation5], %s229
          %s231 = sand.u32 %s71, 1
          %s232 = smul.addr %s231, 384
          %s233 = scalar_lea.vmem [#allocation4], %s232
          %s234 = smul.u32 32, %s21
          %s235 = smul.u32 3, %s20
          %s237 = ssub.s32 6144, 6144
          %238 = vsyncadd %s230, %s237
          %s239 = smul.addr %s234, 3
          %s240 = sadd.s32 %s235, %s239
          %s241 = smul.addr %s240, 64
          %s242 = scalar_lea.hbm %s1, %s241
          %s243 = sshll.u32 %s233, 4
          %s244 = int_to_ptr.vmem [resolvable:$true] %s243
          %249 = dma.hbm_to_vmem [thread:$0]  %s242, 6144, %s244, %s230, 192, 192, 12
        $region62: #{alexnet_forward.10} parent=19 // pred_fallthru
          _
      $region20: #{alexnet_forward.10} parent=5 // pred_fallthru
        _
      %p250 = scmp.le.s32.totalorder 1, %s12
      %p251 = scmp.lt.s32.totalorder %s12, 8
      %p252 = pnand %p250, %p251
      %p253 = pneg %p252
      // Predicated region
      $region63: #{alexnet_forward.10} parent=5 // pred_check
        _
      $region64: #{alexnet_forward.10} parent=5 // pred_check_branch
        %255 = sbr.rel (%p252) target = $region66
      $region65: #{alexnet_forward.10} parent=5 // pred_region
        %s256 = ssub.s32 %s12, 1
        %s257 = sand.u32 %s46, 1
        %s258 = sand.u32 %s46, 1
        %s259 = smul.addr %s258, 32
        %s260 = scalar_lea.vmem [#allocation3], %s259
        // Predicated region
        $region67: #{alexnet_forward.10} parent=65 // pred_check
          %p261 = pneg %p59
        $region68: #{alexnet_forward.10} parent=65 // pred_check_branch
          %263 = sbr.rel (%p261) target = $region70
        $region69: #{alexnet_forward.10} parent=65 // pred_region
          _
        $region70: #{alexnet_forward.10} parent=65 // pred_fallthru
          _
        %s264 = sand.u32 %s74, 1
        %s265 = scalar_lea.sflag [#allocation5], %s264
        %s266 = sand.u32 %s74, 1
        %s267 = smul.addr %s266, 384
        %s268 = scalar_lea.vmem [#allocation4], %s267
        // Predicated region
        $region71: #{alexnet_forward.10} parent=65 // pred_check
          %p269 = pneg %p87
        $region72: #{alexnet_forward.10} parent=65 // pred_check_branch
          %271 = sbr.rel (%p269) target = $region74
        $region73: #{alexnet_forward.10} parent=65 // pred_region
          %272 = dma.done %s265, 6144
        $region74: #{alexnet_forward.10} parent=65 // pred_fallthru
          _
        %s273 = sand.u32 %s46, 1
        %s274 = sand.u32 %s46, 1
        %s275 = smul.addr %s274, 32
        %s276 = scalar_lea.vmem [#allocation3], %s275
        %p277 = pneg %p59
        %p278 = pneg %p56
        %s279 = sand.u32 %s74, 1
        %s280 = scalar_lea.sflag [#allocation5], %s279
        %s281 = sand.u32 %s74, 1
        %s282 = smul.addr %s281, 384
        %s283 = scalar_lea.vmem [#allocation4], %s282
        %p284 = pneg %p87
        %p285 = pneg %p84
        %s286 = smul.u32 3, %s23
        %p287 = scmp.lt.s32.totalorder %s286, 2
        %s288 = scalar_select %p287, %s286, 2
        %s289 = scalar_lea.vmem %s2, %s288
        %p290 = pneg %p113
        %p291 = pneg %p110
        %p292 = pneg %p141
        %p293 = pneg %p138
        %s294 = smul.u32 4, %s22
        %s295 = smul.u32 3, %s23
        %p296 = scmp.lt.s32.totalorder %s294, 3
        %s297 = scalar_select %p296, %s294, 3
        %p298 = scmp.lt.s32.totalorder %s295, 2
        %s299 = scalar_select %p298, %s295, 2
        %s300 = smul.addr %s297, 3
        %s301 = sadd.s32 %s299, %s300
        %s302 = smul.addr %s301, 4
        %s303 = scalar_lea.vmem %s3, %s302
        %s304 = smul.u32 4, %s22
        %s305 = smul.u32 2, %s24
        %s306 = smul.u32 32, %s24
        %s307 = smul.u32 3, %s23
        %s308 = smul.u32 3, %s23
        %p309 = scmp.lt.s32.totalorder %s308, 2
        %s310 = scalar_select %p309, %s308, 2
        %s311 = scalar_lea.vmem %s2, %s310
        %s312 = smul.u32 3, %s23
        %s313 = smul.u32 4, %s22
        %s314 = smul.u32 3, %s23
        %p315 = scmp.lt.s32.totalorder %s313, 3
        %s316 = scalar_select %p315, %s313, 3
        %p317 = scmp.lt.s32.totalorder %s314, 2
        %s318 = scalar_select %p317, %s314, 2
        %s319 = smul.addr %s316, 3
        %s320 = sadd.s32 %s318, %s319
        %s321 = smul.addr %s320, 4
        %s322 = scalar_lea.vmem %s3, %s321
        %s323 = smul.u32 4, %s22
        %s324 = smul.u32 3, %s23
        %p326 = scmp.eq.s32.totalorder %s24, 0
        // Predicated region
        $region75: #{alexnet_forward.10} parent=65 // pred_check
          %p327 = pneg %p326
        $region76: #{alexnet_forward.10} parent=65 // pred_check_branch
          %329 = sbr.rel (%p327) target = $region78
        $region77: #{alexnet_forward.10} parent=65 // pred_region
          %330 = vst [vmem:[#allocation2] sm:$0xff] 0.0
          %331 = vst [vmem:[#allocation2 + $0x8] sm:$0xff] 0.0
          %332 = vst [vmem:[#allocation2 + $0x10] sm:$0xff] 0.0
          %333 = vst [vmem:[#allocation2 + $0x18] sm:$0xff] 0.0
          %334 = vst [vmem:[#allocation2 + $0x20] sm:$0xff] 0.0
          %335 = vst [vmem:[#allocation2 + $0x28] sm:$0xff] 0.0
          %336 = vst [vmem:[#allocation2 + $0x30] sm:$0xff] 0.0
          %337 = vst [vmem:[#allocation2 + $0x38] sm:$0xff] 0.0
          %338 = vst [vmem:[#allocation2 + $0x40] sm:$0xff] 0.0
          %339 = vst [vmem:[#allocation2 + $0x48] sm:$0xff] 0.0
          %340 = vst [vmem:[#allocation2 + $0x50] sm:$0xff] 0.0
          %341 = vst [vmem:[#allocation2 + $0x58] sm:$0xff] 0.0
        $region78: #{alexnet_forward.10} parent=65 // pred_fallthru
          _
        %v342 = vld [vmem:[#allocation2] sm:$0xff]
        %v343 = vld [vmem:[#allocation2 + $0x8] sm:$0xff]
        %v344 = vld [vmem:[#allocation2 + $0x10] sm:$0xff]
        %v345 = vld [vmem:[#allocation2 + $0x18] sm:$0xff]
        %v346 = vld [vmem:[#allocation2 + $0x20] sm:$0xff]
        %v347 = vld [vmem:[#allocation2 + $0x28] sm:$0xff]
        %v348 = vld [vmem:[#allocation2 + $0x30] sm:$0xff]
        %v349 = vld [vmem:[#allocation2 + $0x38] sm:$0xff]
        %v350 = vld [vmem:[#allocation2 + $0x40] sm:$0xff]
        %v351 = vld [vmem:[#allocation2 + $0x48] sm:$0xff]
        %v352 = vld [vmem:[#allocation2 + $0x50] sm:$0xff]
        %v353 = vld [vmem:[#allocation2 + $0x58] sm:$0xff]
        %v354 = vld [vmem:[%s260] sm:$0xff]
        %v355 = vld [vmem:[%s260 + $0x8] sm:$0xff]
        %v356 = vld [vmem:[%s260 + $0x10] sm:$0xff]
        %v357 = vld [vmem:[%s260 + $0x18] sm:$0xff]
        %v358 = vld [vmem:[%s268] sm:$0xff]
        %v359 = vld [vmem:[%s268 + $0x8] sm:$0xf]
        %v360 = vld [vmem:[%s268 + $0xc] sm:$0xff]
        %v361 = vld [vmem:[%s268 + $0x14] sm:$0xf]
        %v362 = vld [vmem:[%s268 + $0x18] sm:$0xff]
        %v363 = vld [vmem:[%s268 + $0x20] sm:$0xf]
        %v364 = vld [vmem:[%s268 + $0x24] sm:$0xff]
        %v365 = vld [vmem:[%s268 + $0x2c] sm:$0xf]
        %v366 = vld [vmem:[%s268 + $0x30] sm:$0xff]
        %v367 = vld [vmem:[%s268 + $0x38] sm:$0xf]
        %v368 = vld [vmem:[%s268 + $0x3c] sm:$0xff]
        %v369 = vld [vmem:[%s268 + $0x44] sm:$0xf]
        %v370 = vld [vmem:[%s268 + $0x48] sm:$0xff]
        %v371 = vld [vmem:[%s268 + $0x50] sm:$0xf]
        %v372 = vld [vmem:[%s268 + $0x54] sm:$0xff]
        %v373 = vld [vmem:[%s268 + $0x5c] sm:$0xf]
        %v374 = vld [vmem:[%s268 + $0x60] sm:$0xff]
        %v375 = vld [vmem:[%s268 + $0x68] sm:$0xf]
        %v376 = vld [vmem:[%s268 + $0x6c] sm:$0xff]
        %v377 = vld [vmem:[%s268 + $0x74] sm:$0xf]
        %v378 = vld [vmem:[%s268 + $0x78] sm:$0xff]
        %v379 = vld [vmem:[%s268 + $0x80] sm:$0xf]
        %v380 = vld [vmem:[%s268 + $0x84] sm:$0xff]
        %v381 = vld [vmem:[%s268 + $0x8c] sm:$0xf]
        %v382 = vld [vmem:[%s268 + $0x90] sm:$0xff]
        %v383 = vld [vmem:[%s268 + $0x98] sm:$0xf]
        %v384 = vld [vmem:[%s268 + $0x9c] sm:$0xff]
        %v385 = vld [vmem:[%s268 + $0xa4] sm:$0xf]
        %v386 = vld [vmem:[%s268 + $0xa8] sm:$0xff]
        %v387 = vld [vmem:[%s268 + $0xb0] sm:$0xf]
        %v388 = vld [vmem:[%s268 + $0xb4] sm:$0xff]
        %v389 = vld [vmem:[%s268 + $0xbc] sm:$0xf]
        %v390 = vld [vmem:[%s268 + $0xc0] sm:$0xff]
        %v391 = vld [vmem:[%s268 + $0xc8] sm:$0xf]
        %v392 = vld [vmem:[%s268 + $0xcc] sm:$0xff]
        %v393 = vld [vmem:[%s268 + $0xd4] sm:$0xf]
        %v394 = vld [vmem:[%s268 + $0xd8] sm:$0xff]
        %v395 = vld [vmem:[%s268 + $0xe0] sm:$0xf]
        %v396 = vld [vmem:[%s268 + $0xe4] sm:$0xff]
        %v397 = vld [vmem:[%s268 + $0xec] sm:$0xf]
        %v398 = vld [vmem:[%s268 + $0xf0] sm:$0xff]
        %v399 = vld [vmem:[%s268 + $0xf8] sm:$0xf]
        %v400 = vld [vmem:[%s268 + $0xfc] sm:$0xff]
        %v401 = vld [vmem:[%s268 + $0x104] sm:$0xf]
        %v402 = vld [vmem:[%s268 + $0x108] sm:$0xff]
        %v403 = vld [vmem:[%s268 + $0x110] sm:$0xf]
        %v404 = vld [vmem:[%s268 + $0x114] sm:$0xff]
        %v405 = vld [vmem:[%s268 + $0x11c] sm:$0xf]
        %v406 = vld [vmem:[%s268 + $0x120] sm:$0xff]
        %v407 = vld [vmem:[%s268 + $0x128] sm:$0xf]
        %v408 = vld [vmem:[%s268 + $0x12c] sm:$0xff]
        %v409 = vld [vmem:[%s268 + $0x134] sm:$0xf]
        %v410 = vld [vmem:[%s268 + $0x138] sm:$0xff]
        %v411 = vld [vmem:[%s268 + $0x140] sm:$0xf]
        %v412 = vld [vmem:[%s268 + $0x144] sm:$0xff]
        %v413 = vld [vmem:[%s268 + $0x14c] sm:$0xf]
        %v414 = vld [vmem:[%s268 + $0x150] sm:$0xff]
        %v415 = vld [vmem:[%s268 + $0x158] sm:$0xf]
        %v416 = vld [vmem:[%s268 + $0x15c] sm:$0xff]
        %v417 = vld [vmem:[%s268 + $0x164] sm:$0xf]
        %v418 = vld [vmem:[%s268 + $0x168] sm:$0xff]
        %v419 = vld [vmem:[%s268 + $0x170] sm:$0xf]
        %v420 = vld [vmem:[%s268 + $0x174] sm:$0xff]
        %v421 = vld [vmem:[%s268 + $0x17c] sm:$0xf]
        %v426 = vunpack.c.l.b16 %v354
        %v427 = vunpack.c.h.b16 %v354
        %v428 = vunpack.c.l.b16 %v355
        %v429 = vunpack.c.h.b16 %v355
        %v430 = vunpack.c.l.b16 %v356
        %v431 = vunpack.c.h.b16 %v356
        %v432 = vunpack.c.l.b16 %v357
        %v433 = vunpack.c.h.b16 %v357
        %v434 = vpack.c.b16 %v428, %v426
        %v435 = vpack.c.b16 %v429, %v427
        %v436 = vpack.c.b16 %v432, %v430
        %v437 = vpack.c.b16 %v433, %v431
        %v506 = vunpack.c.l.b16 %v358
        %v507 = vunpack.c.h.b16 %v358
        %v508 = vunpack.c.l.b16 %v359
        %v509 = vunpack.c.l.b16 %v360
        %v510 = vunpack.c.h.b16 %v360
        %v511 = vunpack.c.l.b16 %v361
        %v512 = vunpack.c.l.b16 %v362
        %v513 = vunpack.c.h.b16 %v362
        %v514 = vunpack.c.l.b16 %v363
        %v515 = vunpack.c.l.b16 %v364
        %v516 = vunpack.c.h.b16 %v364
        %v517 = vunpack.c.l.b16 %v365
        %v518 = vunpack.c.l.b16 %v366
        %v519 = vunpack.c.h.b16 %v366
        %v520 = vunpack.c.l.b16 %v367
        %v521 = vunpack.c.l.b16 %v368
        %v522 = vunpack.c.h.b16 %v368
        %v523 = vunpack.c.l.b16 %v369
        %v524 = vunpack.c.l.b16 %v370
        %v525 = vunpack.c.h.b16 %v370
        %v526 = vunpack.c.l.b16 %v371
        %v527 = vunpack.c.l.b16 %v372
        %v528 = vunpack.c.h.b16 %v372
        %v529 = vunpack.c.l.b16 %v373
        %v530 = vunpack.c.l.b16 %v374
        %v531 = vunpack.c.h.b16 %v374
        %v532 = vunpack.c.l.b16 %v375
        %v533 = vunpack.c.l.b16 %v376
        %v534 = vunpack.c.h.b16 %v376
        %v535 = vunpack.c.l.b16 %v377
        %v536 = vunpack.c.l.b16 %v378
        %v537 = vunpack.c.h.b16 %v378
        %v538 = vunpack.c.l.b16 %v379
        %v539 = vunpack.c.l.b16 %v380
        %v540 = vunpack.c.h.b16 %v380
        %v541 = vunpack.c.l.b16 %v381
        %v542 = vunpack.c.l.b16 %v382
        %v543 = vunpack.c.h.b16 %v382
        %v544 = vunpack.c.l.b16 %v383
        %v545 = vunpack.c.l.b16 %v384
        %v546 = vunpack.c.h.b16 %v384
        %v547 = vunpack.c.l.b16 %v385
        %v548 = vunpack.c.l.b16 %v386
        %v549 = vunpack.c.h.b16 %v386
        %v550 = vunpack.c.l.b16 %v387
        %v551 = vunpack.c.l.b16 %v388
        %v552 = vunpack.c.h.b16 %v388
        %v553 = vunpack.c.l.b16 %v389
        %v554 = vunpack.c.l.b16 %v390
        %v555 = vunpack.c.h.b16 %v390
        %v556 = vunpack.c.l.b16 %v391
        %v557 = vunpack.c.l.b16 %v392
        %v558 = vunpack.c.h.b16 %v392
        %v559 = vunpack.c.l.b16 %v393
        %v560 = vunpack.c.l.b16 %v394
        %v561 = vunpack.c.h.b16 %v394
        %v562 = vunpack.c.l.b16 %v395
        %v563 = vunpack.c.l.b16 %v396
        %v564 = vunpack.c.h.b16 %v396
        %v565 = vunpack.c.l.b16 %v397
        %v566 = vunpack.c.l.b16 %v398
        %v567 = vunpack.c.h.b16 %v398
        %v568 = vunpack.c.l.b16 %v399
        %v569 = vunpack.c.l.b16 %v400
        %v570 = vunpack.c.h.b16 %v400
        %v571 = vunpack.c.l.b16 %v401
        %v572 = vunpack.c.l.b16 %v402
        %v573 = vunpack.c.h.b16 %v402
        %v574 = vunpack.c.l.b16 %v403
        %v575 = vunpack.c.l.b16 %v404
        %v576 = vunpack.c.h.b16 %v404
        %v577 = vunpack.c.l.b16 %v405
        %v578 = vunpack.c.l.b16 %v406
        %v579 = vunpack.c.h.b16 %v406
        %v580 = vunpack.c.l.b16 %v407
        %v581 = vunpack.c.l.b16 %v408
        %v582 = vunpack.c.h.b16 %v408
        %v583 = vunpack.c.l.b16 %v409
        %v584 = vunpack.c.l.b16 %v410
        %v585 = vunpack.c.h.b16 %v410
        %v586 = vunpack.c.l.b16 %v411
        %v587 = vunpack.c.l.b16 %v412
        %v588 = vunpack.c.h.b16 %v412
        %v589 = vunpack.c.l.b16 %v413
        %v590 = vunpack.c.l.b16 %v414
        %v591 = vunpack.c.h.b16 %v414
        %v592 = vunpack.c.l.b16 %v415
        %v593 = vunpack.c.l.b16 %v416
        %v594 = vunpack.c.h.b16 %v416
        %v595 = vunpack.c.l.b16 %v417
        %v596 = vunpack.c.l.b16 %v418
        %v597 = vunpack.c.h.b16 %v418
        %v598 = vunpack.c.l.b16 %v419
        %v599 = vunpack.c.l.b16 %v420
        %v600 = vunpack.c.h.b16 %v420
        %v601 = vunpack.c.l.b16 %v421
        %v602 = vpack.c.b16 %v509, %v506
        %v603 = vpack.c.b16 %v510, %v507
        %v604 = vpack.c.b16 %v511, %v508
        %v605 = vpack.c.b16 %v515, %v512
        %v606 = vpack.c.b16 %v516, %v513
        %v607 = vpack.c.b16 %v517, %v514
        %v608 = vpack.c.b16 %v521, %v518
        %v609 = vpack.c.b16 %v522, %v519
        %v610 = vpack.c.b16 %v523, %v520
        %v611 = vpack.c.b16 %v527, %v524
        %v612 = vpack.c.b16 %v528, %v525
        %v613 = vpack.c.b16 %v529, %v526
        %v614 = vpack.c.b16 %v533, %v530
        %v615 = vpack.c.b16 %v534, %v531
        %v616 = vpack.c.b16 %v535, %v532
        %v617 = vpack.c.b16 %v539, %v536
        %v618 = vpack.c.b16 %v540, %v537
        %v619 = vpack.c.b16 %v541, %v538
        %v620 = vpack.c.b16 %v545, %v542
        %v621 = vpack.c.b16 %v546, %v543
        %v622 = vpack.c.b16 %v547, %v544
        %v623 = vpack.c.b16 %v551, %v548
        %v624 = vpack.c.b16 %v552, %v549
        %v625 = vpack.c.b16 %v553, %v550
        %v626 = vpack.c.b16 %v557, %v554
        %v627 = vpack.c.b16 %v558, %v555
        %v628 = vpack.c.b16 %v559, %v556
        %v629 = vpack.c.b16 %v563, %v560
        %v630 = vpack.c.b16 %v564, %v561
        %v631 = vpack.c.b16 %v565, %v562
        %v632 = vpack.c.b16 %v569, %v566
        %v633 = vpack.c.b16 %v570, %v567
        %v634 = vpack.c.b16 %v571, %v568
        %v635 = vpack.c.b16 %v575, %v572
        %v636 = vpack.c.b16 %v576, %v573
        %v637 = vpack.c.b16 %v577, %v574
        %v638 = vpack.c.b16 %v581, %v578
        %v639 = vpack.c.b16 %v582, %v579
        %v640 = vpack.c.b16 %v583, %v580
        %v641 = vpack.c.b16 %v587, %v584
        %v642 = vpack.c.b16 %v588, %v585
        %v643 = vpack.c.b16 %v589, %v586
        %v644 = vpack.c.b16 %v593, %v590
        %v645 = vpack.c.b16 %v594, %v591
        %v646 = vpack.c.b16 %v595, %v592
        %v647 = vpack.c.b16 %v599, %v596
        %v648 = vpack.c.b16 %v600, %v597
        %v649 = vpack.c.b16 %v601, %v598
        %698 = vmatprep.subr.bf16.mxu0 %v624
        %699 = vmatpush1.bf16.msra.mxu0 %v623
        %700 = vmatprep.subr.bf16.mxu0 %v621
        %701 = vmatpush1.bf16.msra.mxu0 %v620
        %702 = vmatprep.subr.bf16.mxu0 %v618
        %703 = vmatpush1.bf16.msra.mxu0 %v617
        %704 = vmatprep.subr.bf16.mxu0 %v615
        %705 = vmatpush1.bf16.msra.mxu0 %v614
        %706 = vmatprep.subr.bf16.mxu0 %v612
        %707 = vmatpush1.bf16.msra.mxu0 %v611
        %708 = vmatprep.subr.bf16.mxu0 %v609
        %709 = vmatpush1.bf16.msra.mxu0 %v608
        %710 = vmatprep.subr.bf16.mxu0 %v606
        %711 = vmatpush1.bf16.msra.mxu0 %v605
        %712 = vmatprep.subr.bf16.mxu0 %v603
        %713 = vmatpush1.bf16.msra.mxu0 %v602
        %714 = vmatprep.subr.bf16.mxu0 %v648
        %715 = vmatpush2.bf16.msra.mxu0 %v647
        %716 = vmatprep.subr.bf16.mxu0 %v645
        %717 = vmatpush2.bf16.msra.mxu0 %v644
        %718 = vmatprep.subr.bf16.mxu0 %v642
        %719 = vmatpush2.bf16.msra.mxu0 %v641
        %720 = vmatprep.subr.bf16.mxu0 %v639
        %721 = vmatpush2.bf16.msra.mxu0 %v638
        %722 = vmatprep.subr.bf16.mxu0 %v636
        %723 = vmatpush2.bf16.msra.mxu0 %v635
        %724 = vmatprep.subr.bf16.mxu0 %v633
        %725 = vmatpush2.bf16.msra.mxu0 %v632
        %726 = vmatprep.subr.bf16.mxu0 %v630
        %727 = vmatpush2.bf16.msra.mxu0 %v629
        %728 = vmatprep.subr.bf16.mxu0 %v627
        %729 = vmatpush2.bf16.msra.mxu0 %v626
        %730 = vmatprep.mubr.bf16.mxu0 %v435
        %731 = vmatmul.mubr.bf16.gmra.mxu0 %v434
        %v732 = vpop.f32.mrf.mxu0
        %v733 = vadd.f32 0.0, %v732
        %v734 = vpop.f32.mrf.mxu0
        %v735 = vadd.f32 0.0, %v734
        %v736 = vpop.f32.mrf.mxu0
        %v737 = vadd.f32 0.0, %v736
        %v738 = vpop.f32.mrf.mxu0
        %v739 = vadd.f32 0.0, %v738
        %740 = vmatprep.mubr.bf16.mxu0 %v437
        %741 = vmatmul.mubr.bf16.gmra.mxu0 %v436
        %v742 = vpop.f32.mrf.mxu0
        %v743 = vadd.f32 0.0, %v742
        %v744 = vpop.f32.mrf.mxu0
        %v745 = vadd.f32 0.0, %v744
        %v746 = vpop.f32.mrf.mxu0
        %v747 = vadd.f32 0.0, %v746
        %v748 = vpop.f32.mrf.mxu0
        %v749 = vadd.f32 0.0, %v748
        %750 = vdwg.mxu0
        %751 = vmatprep.subr.bf16.mxu0 0
        %752 = vmatpush1.bf16.msra.mxu0 %v625
        %753 = vmatprep.subr.bf16.mxu0 0
        %754 = vmatpush1.bf16.msra.mxu0 %v622
        %755 = vmatprep.subr.bf16.mxu0 0
        %756 = vmatpush1.bf16.msra.mxu0 %v619
        %757 = vmatprep.subr.bf16.mxu0 0
        %758 = vmatpush1.bf16.msra.mxu0 %v616
        %759 = vmatprep.subr.bf16.mxu0 0
        %760 = vmatpush1.bf16.msra.mxu0 %v613
        %761 = vmatprep.subr.bf16.mxu0 0
        %762 = vmatpush1.bf16.msra.mxu0 %v610
        %763 = vmatprep.subr.bf16.mxu0 0
        %764 = vmatpush1.bf16.msra.mxu0 %v607
        %765 = vmatprep.subr.bf16.mxu0 0
        %766 = vmatpush1.bf16.msra.mxu0 %v604
        %767 = vmatprep.subr.bf16.mxu0 0
        %768 = vmatpush2.bf16.msra.mxu0 %v649
        %769 = vmatprep.subr.bf16.mxu0 0
        %770 = vmatpush2.bf16.msra.mxu0 %v646
        %771 = vmatprep.subr.bf16.mxu0 0
        %772 = vmatpush2.bf16.msra.mxu0 %v643
        %773 = vmatprep.subr.bf16.mxu0 0
        %774 = vmatpush2.bf16.msra.mxu0 %v640
        %775 = vmatprep.subr.bf16.mxu0 0
        %776 = vmatpush2.bf16.msra.mxu0 %v637
        %777 = vmatprep.subr.bf16.mxu0 0
        %778 = vmatpush2.bf16.msra.mxu0 %v634
        %779 = vmatprep.subr.bf16.mxu0 0
        %780 = vmatpush2.bf16.msra.mxu0 %v631
        %781 = vmatprep.subr.bf16.mxu0 0
        %782 = vmatpush2.bf16.msra.mxu0 %v628
        %783 = vmatprep.mubr.bf16.mxu0 %v435
        %784 = vmatmul.mubr.bf16.gmra.mxu0 %v434
        %v785 = vpop.f32.mrf.mxu0
        %v786 = vadd.f32 0.0, %v785
        %v787 = vpop.f32.mrf.mxu0
        %v788 = vpop.f32.mrf.mxu0
        %v789 = vadd.f32 0.0, %v788
        %v790 = vpop.f32.mrf.mxu0
        %791 = vmatprep.mubr.bf16.mxu0 %v437
        %792 = vmatmul.mubr.bf16.gmra.mxu0 %v436
        %v793 = vpop.f32.mrf.mxu0
        %v794 = vadd.f32 0.0, %v793
        %v795 = vpop.f32.mrf.mxu0
        %v796 = vpop.f32.mrf.mxu0
        %v797 = vadd.f32 0.0, %v796
        %v798 = vpop.f32.mrf.mxu0
        %799 = vdwg.mxu0
        %v800 = vadd.f32 %v342, %v733
        %v801 = vadd.f32 %v343, %v735
        %v802 = vadd.f32 %v344, %v786
        %v803 = vadd.f32 %v345, %v737
        %v804 = vadd.f32 %v346, %v739
        %v805 = vadd.f32 %v347, %v789
        %v806 = vadd.f32 %v348, %v743
        %v807 = vadd.f32 %v349, %v745
        %v808 = vadd.f32 %v350, %v794
        %v809 = vadd.f32 %v351, %v747
        %v810 = vadd.f32 %v352, %v749
        %v811 = vadd.f32 %v353, %v797
        %812 = vst [vmem:[#allocation2] sm:$0xff] %v800
        %813 = vst [vmem:[#allocation2 + $0x8] sm:$0xff] %v801
        %814 = vst [vmem:[#allocation2 + $0x10] sm:$0xff] %v802
        %815 = vst [vmem:[#allocation2 + $0x18] sm:$0xff] %v803
        %816 = vst [vmem:[#allocation2 + $0x20] sm:$0xff] %v804
        %817 = vst [vmem:[#allocation2 + $0x28] sm:$0xff] %v805
        %818 = vst [vmem:[#allocation2 + $0x30] sm:$0xff] %v806
        %819 = vst [vmem:[#allocation2 + $0x38] sm:$0xff] %v807
        %820 = vst [vmem:[#allocation2 + $0x40] sm:$0xff] %v808
        %821 = vst [vmem:[#allocation2 + $0x48] sm:$0xff] %v809
        %822 = vst [vmem:[#allocation2 + $0x50] sm:$0xff] %v810
        %823 = vst [vmem:[#allocation2 + $0x58] sm:$0xff] %v811
        %p824 = scmp.eq.s32.totalorder %s24, 6
        // Predicated region
        $region79: #{alexnet_forward.10} parent=65 // pred_check
          %p825 = pneg %p824
        $region80: #{alexnet_forward.10} parent=65 // pred_check_branch
          %827 = sbr.rel (%p825) target = $region82
        $region81: #{alexnet_forward.10} parent=65 // pred_region
          %v828 = vld [vmem:[#allocation2] sm:$0xff]
          %v829 = vld [vmem:[#allocation2 + $0x8] sm:$0xff]
          %v830 = vld [vmem:[#allocation2 + $0x10] sm:$0xff]
          %v831 = vld [vmem:[#allocation2 + $0x18] sm:$0xff]
          %v832 = vld [vmem:[#allocation2 + $0x20] sm:$0xff]
          %v833 = vld [vmem:[#allocation2 + $0x28] sm:$0xff]
          %v834 = vld [vmem:[#allocation2 + $0x30] sm:$0xff]
          %v835 = vld [vmem:[#allocation2 + $0x38] sm:$0xff]
          %v836 = vld [vmem:[#allocation2 + $0x40] sm:$0xff]
          %v837 = vld [vmem:[#allocation2 + $0x48] sm:$0xff]
          %v838 = vld [vmem:[#allocation2 + $0x50] sm:$0xff]
          %v839 = vld [vmem:[#allocation2 + $0x58] sm:$0xff]
          %v840 = vld [vmem:[%s311] sm:$0x7]
          %v842 = vlaneseq
          %v843 = vshrl.u32 %v842, 7
          %v844 = vsub.s32 0, %v843
          %v845 = vrot.slane %v840, %v844
          %v846 = vlaneseq
          %v847 = vshrl.u32 %v846, 7
          %v848 = vsub.s32 1, %v847
          %v849 = vrot.slane %v840, %v848
          %v850 = vlaneseq
          %v851 = vshrl.u32 %v850, 7
          %v852 = vsub.s32 2, %v851
          %v853 = vrot.slane %v840, %v852
          %v857 = vadd.f32 %v828, %v845
          %v858 = vadd.f32 %v829, %v849
          %v859 = vadd.f32 %v830, %v853
          %v860 = vadd.f32 %v831, %v845
          %v861 = vadd.f32 %v832, %v849
          %v862 = vadd.f32 %v833, %v853
          %v863 = vadd.f32 %v834, %v845
          %v864 = vadd.f32 %v835, %v849
          %v865 = vadd.f32 %v836, %v853
          %v866 = vadd.f32 %v837, %v845
          %v867 = vadd.f32 %v838, %v849
          %v868 = vadd.f32 %v839, %v853
          %v869 = vmax.f32 %v857, 0.0
          %v870 = vmax.f32 %v858, 0.0
          %v871 = vmax.f32 %v859, 0.0
          %v872 = vmax.f32 %v860, 0.0
          %v873 = vmax.f32 %v861, 0.0
          %v874 = vmax.f32 %v862, 0.0
          %v875 = vmax.f32 %v863, 0.0
          %v876 = vmax.f32 %v864, 0.0
          %v877 = vmax.f32 %v865, 0.0
          %v878 = vmax.f32 %v866, 0.0
          %v879 = vmax.f32 %v867, 0.0
          %v880 = vmax.f32 %v868, 0.0
          %v881 = vpack.c.bf16 %v872, %v869
          %v882 = vpack.c.bf16 %v873, %v870
          %v883 = vpack.c.bf16 %v874, %v871
          %v884 = vpack.c.bf16 %v878, %v875
          %v885 = vpack.c.bf16 %v879, %v876
          %v886 = vpack.c.bf16 %v880, %v877
          %v893 = vunpack.c.l.b16 %v881
          %v894 = vunpack.c.l.b16 %v882
          %v895 = vunpack.c.l.b16 %v883
          %v896 = vunpack.c.h.b16 %v881
          %v897 = vunpack.c.h.b16 %v882
          %v898 = vunpack.c.h.b16 %v883
          %v899 = vunpack.c.l.b16 %v884
          %v900 = vunpack.c.l.b16 %v885
          %v901 = vunpack.c.l.b16 %v886
          %v902 = vunpack.c.h.b16 %v884
          %v903 = vunpack.c.h.b16 %v885
          %v904 = vunpack.c.h.b16 %v886
          %v905 = vpack.c.b16 %v894, %v893
          %v906 = vpack.c.b16 %v895, %v895
          %v907 = vpack.c.b16 %v897, %v896
          %v908 = vpack.c.b16 %v898, %v898
          %v909 = vpack.c.b16 %v900, %v899
          %v910 = vpack.c.b16 %v901, %v901
          %v911 = vpack.c.b16 %v903, %v902
          %v912 = vpack.c.b16 %v904, %v904
          %921 = vst [vmem:[%s322] sm:$0xff] %v905
          %922 = vst [vmem:[%s322 + $0x8] sm:$0xf] %v906
          %923 = vst [vmem:[%s322 + $0xc] sm:$0xff] %v907
          %924 = vst [vmem:[%s322 + $0x14] sm:$0xf] %v908
          %925 = vst [vmem:[%s322 + $0x18] sm:$0xff] %v909
          %926 = vst [vmem:[%s322 + $0x20] sm:$0xf] %v910
          %927 = vst [vmem:[%s322 + $0x24] sm:$0xff] %v911
          %928 = vst [vmem:[%s322 + $0x2c] sm:$0xf] %v912
        $region82: #{alexnet_forward.10} parent=65 // pred_fallthru
          _
        %s929 = smul.u32 4, %s22
        %s930 = smul.u32 3, %s23
        %p931 = scmp.lt.s32.totalorder %s929, 3
        %s932 = scalar_select %p931, %s929, 3
        %p933 = scmp.lt.s32.totalorder %s930, 2
        %s934 = scalar_select %p933, %s930, 2
        %s935 = smul.addr %s932, 3
        %s936 = sadd.s32 %s934, %s935
        %s937 = smul.addr %s936, 4
        %s938 = scalar_lea.vmem %s3, %s937
        // Predicated region
        $region83: #{alexnet_forward.10} parent=65 // pred_check
          %p939 = pneg %p138
        $region84: #{alexnet_forward.10} parent=65 // pred_check_branch
          %941 = sbr.rel (%p939) target = $region86
        $region85: #{alexnet_forward.10} parent=65 // pred_region
          %s942 = smul.u32 4, %s22
          %s943 = smul.u32 3, %s23
        $region86: #{alexnet_forward.10} parent=65 // pred_fallthru
          _
        // Predicated region
        $region87: #{alexnet_forward.10} parent=65 // pred_check
          %p944 = pneg %p138
        $region88: #{alexnet_forward.10} parent=65 // pred_check_branch
          %946 = sbr.rel (%p944) target = $region90
        $region89: #{alexnet_forward.10} parent=65 // pred_region
          %s947 = smul.u32 4, %s22
          %s948 = smul.u32 3, %s23
          %p949 = scmp.lt.s32.totalorder %s947, 3
          %s950 = scalar_select %p949, %s947, 3
          %p951 = scmp.lt.s32.totalorder %s948, 2
          %s952 = scalar_select %p951, %s948, 2
          %s953 = smul.addr %s950, 3
          %s954 = sadd.s32 %s952, %s953
          %s955 = smul.addr %s954, 4
          %s956 = scalar_lea.vmem %s3, %s955
        $region90: #{alexnet_forward.10} parent=65 // pred_fallthru
          _
      $region66: #{alexnet_forward.10} parent=5 // pred_fallthru
        _
      %p957 = scmp.le.s32.totalorder 2, %s12
      // Predicated region
      $region91: #{alexnet_forward.10} parent=5 // pred_check
        %p958 = pneg %p957
      $region92: #{alexnet_forward.10} parent=5 // pred_check_branch
        %960 = sbr.rel (%p958) target = $region94
      $region93: #{alexnet_forward.10} parent=5 // pred_region
        %s961 = ssub.s32 %s12, 2
      $region94: #{alexnet_forward.10} parent=5 // pred_fallthru
        _
    $region6: #{alexnet_forward.10} parent=1 // loop_footer
      %s16 = sadd.s32 1, %s12
    $region7: #{alexnet_forward.10} parent=1 // loop_footer_branch
      %11 = sbr.rel target = $region3
    $region8: #{alexnet_forward.10} parent=1 // loop_exit
      _
    %962 = vsyncpa [#allocation5], 1
    %s963 = scalar_lea.sflag [#allocation5], 1
    %964 = vsyncpa %s963, 1

// kernel: alexnet_forward.11
$region0: #{alexnet_forward.11}
  #allocation0 [shape = 'u32[]', space=smem, size = 0x4, offset = 0x4, fixed_abs, tag = 'smem constant byte address 0x4 - core index']
  #allocation1 [shape = 'u32[144,128]{1,0:T(1,128)}', space=vmem, size = 0x12000, scoped, tag = 'internal scratch']
  #allocation2 [shape = 'f32[32,256]{1,0:T(8,128)}', space=vmem, size = 0x8000, scoped, tag = 'scratch operand']
  %s0 = inlined_call_operand.vmem [shape: bf16[32,3456], index: 0, kind: input, shape index: {}]
  %s1 = inlined_call_operand.vmem [shape: bf16[3456,256], index: 1, kind: input, shape index: {}]
  %s2 = inlined_call_operand.vmem [shape: f32[1,256], index: 2, kind: input, shape index: {}]
  %s3 = inlined_call_operand.vmem [shape: bf16[32,256], index: 3, kind: output, shape index: {}]
  %s4 = sld [smem:[#allocation0]]
  $region79: #{alexnet_forward.11} parent=0
    _
  %s6 = ssub.s32 1, %s4
  %s7 = scalar_select 0, %s6, %s4
  $region1: #{alexnet_forward.11} parent=0
    #allocation3 [shape = 'u8[49152]{0}', space=vmem, size = 0xc000, scoped, tag = 'input window, operand 0']
    loop: start=0, step=1, limit=11
    $region2: #{alexnet_forward.11} parent=1 // loop_pre_header
      _
    $region3: #{alexnet_forward.11} parent=1 // loop_header
      %s9 = sphi 0, %s13
      %p10 = scmp.ge.s32.totalorder %s9, 11
      %s16 = sphi 0, %s35
      %s17 = sphi 0, %s31
      %s18 = sphi 0, %s27
      %s19 = sphi 0, %s16
      %s20 = sphi 0, %s17
      %s21 = sphi 0, %s18
      %s22 = sphi 0, %s19
      %s23 = sphi 0, %s20
      %s24 = sphi 0, %s21
      %s40 = sphi 0, %s42
      %s43 = sphi 0, %s40
      %s44 = sphi 0, %s43
      %s60 = sphi 0, %s44
      %s68 = sphi 0, %s70
      %s71 = sphi 0, %s68
      %s72 = sphi 0, %s71
      %s88 = sphi 0, %s72
      %s94 = sphi 0, %s96
      %s97 = sphi 0, %s94
      %s98 = sphi 0, %s97
      %s114 = sphi 0, %s98
      %s122 = sphi 0, %s124
      %s125 = sphi 0, %s122
      %s126 = sphi 0, %s125
      %s142 = sphi 0, %s126
    $region4: #{alexnet_forward.11} parent=1 // loop_header_branch
      %12 = sbr.rel (%p10) target = $region8
    $region5: #{alexnet_forward.11} parent=1 // loop_body
      %s14 = ssub.s32 %s9, 1
      %s15 = ssub.s32 %s9, 2
      %s25 = sadd.s32 1, %s18
      %p26 = scmp.ge.s32.totalorder %s25, 9
      %s27 = scalar_select %p26, 0, %s25
      %s28 = sadd.s32 1, %s17
      %s29 = scalar_select %p26, %s28, %s17
      %p30 = scmp.ge.s32.totalorder %s29, 1
      %s31 = scalar_select %p30, 0, %s29
      %s32 = sadd.s32 1, %s16
      %s33 = scalar_select %p30, %s32, %s16
      %p34 = scmp.ge.s32.totalorder %s33, 1
      %s35 = scalar_select %p34, 0, %s33
      %s36 = ssub.s32 %s16, %s35
      %s37 = ssub.s32 %s18, %s27
      %s38 = sor.u32 %s36, %s37
      %p39 = scmp.eq.s32.totalorder %s38, 0
      %s41 = sadd.s32 %s40, 1
      %s42 = scalar_select %p39, %s40, %s41
      %p45 = pneg %p39
      %p46 = scmp.eq.s32.totalorder %s9, 8
      %p47 = por %p45, %p46
      %p48 = scmp.ne.s32.totalorder %s40, %s43
      %p49 = scmp.eq.s32.totalorder %s9, 0
      %p50 = por %p48, %p49
      %p51 = scmp.ne.s32.totalorder %s40, %s43
      %p52 = scmp.eq.s32.totalorder %s14, 8
      %p53 = por %p51, %p52
      %p54 = scmp.ne.s32.totalorder %s43, %s44
      %p55 = scmp.eq.s32.totalorder %s14, 0
      %p56 = por %p54, %p55
      %p57 = scmp.ne.s32.totalorder %s43, %s44
      %p58 = scmp.eq.s32.totalorder %s15, 8
      %p59 = por %p57, %p58
      %p61 = scmp.ne.s32.totalorder %s44, %s60
      %p62 = scmp.eq.s32.totalorder %s15, 0
      %p63 = por %p61, %p62
      %s64 = ssub.s32 %s18, %s27
      %s65 = ssub.s32 %s17, %s31
      %s66 = sor.u32 %s64, %s65
      %p67 = scmp.eq.s32.totalorder %s66, 0
      %s69 = sadd.s32 %s68, 1
      %s70 = scalar_select %p67, %s68, %s69
      %p73 = pneg %p67
      %p74 = scmp.eq.s32.totalorder %s9, 8
      %p75 = por %p73, %p74
      %p76 = scmp.ne.s32.totalorder %s68, %s71
      %p77 = scmp.eq.s32.totalorder %s9, 0
      %p78 = por %p76, %p77
      %p79 = scmp.ne.s32.totalorder %s68, %s71
      %p80 = scmp.eq.s32.totalorder %s14, 8
      %p81 = por %p79, %p80
      %p82 = scmp.ne.s32.totalorder %s71, %s72
      %p83 = scmp.eq.s32.totalorder %s14, 0
      %p84 = por %p82, %p83
      %p85 = scmp.ne.s32.totalorder %s71, %s72
      %p86 = scmp.eq.s32.totalorder %s15, 8
      %p87 = por %p85, %p86
      %p89 = scmp.ne.s32.totalorder %s72, %s88
      %p90 = scmp.eq.s32.totalorder %s15, 0
      %p91 = por %p89, %p90
      %s92 = ssub.s32 %s17, %s31
      %p93 = scmp.eq.s32.totalorder %s92, 0
      %s95 = sadd.s32 %s94, 1
      %s96 = scalar_select %p93, %s94, %s95
      %p99 = pneg %p93
      %p100 = scmp.eq.s32.totalorder %s9, 8
      %p101 = por %p99, %p100
      %p102 = scmp.ne.s32.totalorder %s94, %s97
      %p103 = scmp.eq.s32.totalorder %s9, 0
      %p104 = por %p102, %p103
      %p105 = scmp.ne.s32.totalorder %s94, %s97
      %p106 = scmp.eq.s32.totalorder %s14, 8
      %p107 = por %p105, %p106
      %p108 = scmp.ne.s32.totalorder %s97, %s98
      %p109 = scmp.eq.s32.totalorder %s14, 0
      %p110 = por %p108, %p109
      %p111 = scmp.ne.s32.totalorder %s97, %s98
      %p112 = scmp.eq.s32.totalorder %s15, 8
      %p113 = por %p111, %p112
      %p115 = scmp.ne.s32.totalorder %s98, %s114
      %p116 = scmp.eq.s32.totalorder %s15, 0
      %p117 = por %p115, %p116
      %s118 = ssub.s32 %s16, %s35
      %s119 = ssub.s32 %s17, %s31
      %s120 = sor.u32 %s118, %s119
      %p121 = scmp.eq.s32.totalorder %s120, 0
      %s123 = sadd.s32 %s122, 1
      %s124 = scalar_select %p121, %s122, %s123
      %p127 = pneg %p121
      %p128 = scmp.eq.s32.totalorder %s9, 8
      %p129 = por %p127, %p128
      %p130 = scmp.ne.s32.totalorder %s122, %s125
      %p131 = scmp.eq.s32.totalorder %s9, 0
      %p132 = por %p130, %p131
      %p133 = scmp.ne.s32.totalorder %s122, %s125
      %p134 = scmp.eq.s32.totalorder %s14, 8
      %p135 = por %p133, %p134
      %p136 = scmp.ne.s32.totalorder %s125, %s126
      %p137 = scmp.eq.s32.totalorder %s14, 0
      %p138 = por %p136, %p137
      %p139 = scmp.ne.s32.totalorder %s125, %s126
      %p140 = scmp.eq.s32.totalorder %s15, 8
      %p141 = por %p139, %p140
      %p143 = scmp.ne.s32.totalorder %s126, %s142
      %p144 = scmp.eq.s32.totalorder %s15, 0
      %p145 = por %p143, %p144
      %p146 = scmp.le.s32.totalorder 1, %s9
      %p147 = scmp.lt.s32.totalorder %s9, 10
      %p148 = pnand %p146, %p147
      %p149 = pneg %p148
      // Predicated region
      $region9: #{alexnet_forward.11} parent=5 // pred_check
        _
      $region10: #{alexnet_forward.11} parent=5 // pred_check_branch
        %151 = sbr.rel (%p148) target = $region12
      $region11: #{alexnet_forward.11} parent=5 // pred_region
        %s152 = ssub.s32 %s9, 1
        // Predicated region
        $region13: #{alexnet_forward.11} parent=11 // pred_check
          %p153 = pneg %p110
        $region14: #{alexnet_forward.11} parent=11 // pred_check_branch
          %155 = sbr.rel (%p153) target = $region16
        $region15: #{alexnet_forward.11} parent=11 // pred_region
          %s156 = smul.u32 2, %s20
          %p157 = scmp.lt.s32.totalorder %s156, 1
          %s158 = scalar_select %p157, %s156, 1
          %s159 = scalar_lea.vmem %s2, %s158
          %s160 = smul.u32 2, %s20
        $region16: #{alexnet_forward.11} parent=11 // pred_fallthru
          _
      $region12: #{alexnet_forward.11} parent=5 // pred_fallthru
        _
      %p161 = scmp.lt.s32.totalorder %s9, 9
      // Predicated region
      $region17: #{alexnet_forward.11} parent=5 // pred_check
        %p162 = pneg %p161
      $region18: #{alexnet_forward.11} parent=5 // pred_check_branch
        %164 = sbr.rel (%p162) target = $region20
      $region19: #{alexnet_forward.11} parent=5 // pred_region
        // Predicated region
        $region21: #{alexnet_forward.11} parent=19 // pred_check
          %p165 = pneg %p50
        $region22: #{alexnet_forward.11} parent=19 // pred_check_branch
          %167 = sbr.rel (%p165) target = $region24
        $region23: #{alexnet_forward.11} parent=19 // pred_region
          %s168 = sand.u32 %s40, 1
          %s169 = sand.u32 %s40, 1
          %s170 = smul.addr %s169, 48
          %s171 = scalar_lea.vmem [#allocation3], %s170
          %s172 = smul.u32 4, %s16
          %s173 = smul.u32 3, %s18
          %s174 = smul.addr %s172, 27
          %s175 = sadd.s32 %s173, %s174
          %s176 = smul.addr %s175, 4
          %s177 = scalar_lea.vmem %s0, %s176
          // Predicated region
          $region25: #{alexnet_forward.11} parent=23 // pred_check
            _
          $region26: #{alexnet_forward.11} parent=23 // pred_check_branch
            %179 = sbr.rel (0) target = $region28
          $region27: #{alexnet_forward.11} parent=23 // pred_region
            // Predicated region
            $region29: #{alexnet_forward.11} parent=27 // pred_check
              _
            $region30: #{alexnet_forward.11} parent=27 // pred_check_branch
              %181 = sbr.rel (0) target = $region32
            $region31: #{alexnet_forward.11} parent=27 // pred_region
              %s182 = scalar_lea.vmem %s177, 8
              %s183 = scalar_lea.vmem %s171, 8 [#allocation3]
              loop: start=0, step=1, limit=1
              $region33: #{alexnet_forward.11} parent=31 // loop_pre_header
                _
              $region34: #{alexnet_forward.11} parent=31 // loop_header
                %s185 = sphi 0, %s189
                %p186 = scmp.ge.s32.totalorder %s185, 1
                %s190 = sphi %s177, %s177
                %s191 = sphi %s171, %s171
              $region35: #{alexnet_forward.11} parent=31 // loop_header_branch
                %188 = sbr.rel (%p186) target = $region39
              $region36: #{alexnet_forward.11} parent=31 // loop_body
                %v192 = vld [vmem:[%s190] sm:$0xff]
                %193 = vst [vmem:[%s191] sm:$0xff] %v192
                %v194 = vld [vmem:[%s190 + $0x6c] sm:$0xff]
                %195 = vst [vmem:[%s191 + $0xc] sm:$0xff] %v194
                %v196 = vld [vmem:[%s190 + $0xd8] sm:$0xff]
                %197 = vst [vmem:[%s191 + $0x18] sm:$0xff] %v196
                %v198 = vld [vmem:[%s190 + $0x144] sm:$0xff]
                %199 = vst [vmem:[%s191 + $0x24] sm:$0xff] %v198
              $region37: #{alexnet_forward.11} parent=31 // loop_footer
                %s189 = sadd.s32 1, %s185
              $region38: #{alexnet_forward.11} parent=31 // loop_footer_branch
                %184 = sbr.rel target = $region34
              $region39: #{alexnet_forward.11} parent=31 // loop_exit
                _
              %s201 = ssub.s32 16, 1
              loop: start=0, step=1, limit=1
              $region40: #{alexnet_forward.11} parent=31 // loop_pre_header
                _
              $region41: #{alexnet_forward.11} parent=31 // loop_header
                %s203 = sphi 0, %s207
                %p204 = scmp.ge.s32.totalorder %s203, 1
                %s208 = sphi %s182, %s182
                %s209 = sphi %s183, %s183
              $region42: #{alexnet_forward.11} parent=31 // loop_header_branch
                %206 = sbr.rel (%p204) target = $region46
              $region43: #{alexnet_forward.11} parent=31 // loop_body
                %v210 = vld [vmem:[%s208] sm:%s201]
                %211 = vst [vmem:[%s209] sm:%s201] %v210
                %v212 = vld [vmem:[%s208 + $0x6c] sm:%s201]
                %213 = vst [vmem:[%s209 + $0xc] sm:%s201] %v212
                %v214 = vld [vmem:[%s208 + $0xd8] sm:%s201]
                %215 = vst [vmem:[%s209 + $0x18] sm:%s201] %v214
                %v216 = vld [vmem:[%s208 + $0x144] sm:%s201]
                %217 = vst [vmem:[%s209 + $0x24] sm:%s201] %v216
              $region44: #{alexnet_forward.11} parent=31 // loop_footer
                %s207 = sadd.s32 1, %s203
              $region45: #{alexnet_forward.11} parent=31 // loop_footer_branch
                %202 = sbr.rel target = $region41
              $region46: #{alexnet_forward.11} parent=31 // loop_exit
                _
            $region32: #{alexnet_forward.11} parent=27 // pred_fallthru
              _
          $region28: #{alexnet_forward.11} parent=23 // pred_fallthru
            _
          %218 = vnop
        $region24: #{alexnet_forward.11} parent=19 // pred_fallthru
          _
        // Predicated region
        $region47: #{alexnet_forward.11} parent=19 // pred_check
          %p219 = pneg %p78
        $region48: #{alexnet_forward.11} parent=19 // pred_check_branch
          %221 = sbr.rel (%p219) target = $region50
        $region49: #{alexnet_forward.11} parent=19 // pred_region
          %s222 = smul.u32 48, %s18
          %s223 = smul.u32 2, %s17
          %p224 = scmp.lt.s32.totalorder %s222, 431
          %s225 = scalar_select %p224, %s222, 431
          %p226 = scmp.lt.s32.totalorder %s223, 1
          %s227 = scalar_select %p226, %s223, 1
          %s228 = smul.addr %s225, 2
          %s229 = sadd.s32 %s227, %s228
          %s230 = smul.addr %s229, 4
          %s231 = scalar_lea.vmem %s1, %s230
          %s232 = smul.u32 48, %s18
          %s233 = smul.u32 2, %s17
        $region50: #{alexnet_forward.11} parent=19 // pred_fallthru
          _
      $region20: #{alexnet_forward.11} parent=5 // pred_fallthru
        _
      %p234 = scmp.le.s32.totalorder 1, %s9
      %p235 = scmp.lt.s32.totalorder %s9, 10
      %p236 = pnand %p234, %p235
      %p237 = pneg %p236
      // Predicated region
      $region51: #{alexnet_forward.11} parent=5 // pred_check
        _
      $region52: #{alexnet_forward.11} parent=5 // pred_check_branch
        %239 = sbr.rel (%p236) target = $region54
      $region53: #{alexnet_forward.11} parent=5 // pred_region
        %s240 = ssub.s32 %s9, 1
        %s241 = sand.u32 %s43, 1
        %s242 = sand.u32 %s43, 1
        %s243 = smul.addr %s242, 48
        %s244 = scalar_lea.vmem [#allocation3], %s243
        // Predicated region
        $region55: #{alexnet_forward.11} parent=53 // pred_check
          %p245 = pneg %p56
        $region56: #{alexnet_forward.11} parent=53 // pred_check_branch
          %247 = sbr.rel (%p245) target = $region58
        $region57: #{alexnet_forward.11} parent=53 // pred_region
          _
        $region58: #{alexnet_forward.11} parent=53 // pred_fallthru
          _
        %s248 = sand.u32 %s43, 1
        %s249 = sand.u32 %s43, 1
        %s250 = smul.addr %s249, 48
        %s251 = scalar_lea.vmem [#allocation3], %s250
        %p252 = pneg %p56
        %p253 = pneg %p53
        %s254 = smul.u32 48, %s21
        %s255 = smul.u32 2, %s20
        %p256 = scmp.lt.s32.totalorder %s254, 431
        %s257 = scalar_select %p256, %s254, 431
        %p258 = scmp.lt.s32.totalorder %s255, 1
        %s259 = scalar_select %p258, %s255, 1
        %s260 = smul.addr %s257, 2
        %s261 = sadd.s32 %s259, %s260
        %s262 = smul.addr %s261, 4
        %s263 = scalar_lea.vmem %s1, %s262
        %p264 = pneg %p84
        %p265 = pneg %p81
        %s266 = smul.u32 2, %s20
        %p267 = scmp.lt.s32.totalorder %s266, 1
        %s268 = scalar_select %p267, %s266, 1
        %s269 = scalar_lea.vmem %s2, %s268
        %p270 = pneg %p110
        %p271 = pneg %p107
        %p272 = pneg %p138
        %p273 = pneg %p135
        %s274 = smul.u32 4, %s19
        %s275 = smul.u32 2, %s20
        %p276 = scmp.lt.s32.totalorder %s274, 3
        %s277 = scalar_select %p276, %s274, 3
        %p278 = scmp.lt.s32.totalorder %s275, 1
        %s279 = scalar_select %p278, %s275, 1
        %s280 = smul.addr %s277, 2
        %s281 = sadd.s32 %s279, %s280
        %s282 = smul.addr %s281, 4
        %s283 = scalar_lea.vmem %s3, %s282
        %s284 = smul.u32 4, %s19
        %s285 = smul.u32 3, %s21
        %s286 = smul.u32 48, %s21
        %s287 = smul.u32 2, %s20
        %p288 = scmp.lt.s32.totalorder %s286, 431
        %s289 = scalar_select %p288, %s286, 431
        %p290 = scmp.lt.s32.totalorder %s287, 1
        %s291 = scalar_select %p290, %s287, 1
        %s292 = smul.addr %s289, 2
        %s293 = sadd.s32 %s291, %s292
        %s294 = smul.addr %s293, 4
        %s295 = scalar_lea.vmem %s1, %s294
        %s296 = smul.u32 48, %s21
        %s297 = smul.u32 2, %s20
        %s298 = smul.u32 2, %s20
        %p299 = scmp.lt.s32.totalorder %s298, 1
        %s300 = scalar_select %p299, %s298, 1
        %s301 = scalar_lea.vmem %s2, %s300
        %s302 = smul.u32 2, %s20
        %s303 = smul.u32 4, %s19
        %s304 = smul.u32 2, %s20
        %p305 = scmp.lt.s32.totalorder %s303, 3
        %s306 = scalar_select %p305, %s303, 3
        %p307 = scmp.lt.s32.totalorder %s304, 1
        %s308 = scalar_select %p307, %s304, 1
        %s309 = smul.addr %s306, 2
        %s310 = sadd.s32 %s308, %s309
        %s311 = smul.addr %s310, 4
        %s312 = scalar_lea.vmem %s3, %s311
        %s313 = smul.u32 4, %s19
        %s314 = smul.u32 2, %s20
        %p316 = scmp.eq.s32.totalorder %s21, 0
        // Predicated region
        $region59: #{alexnet_forward.11} parent=53 // pred_check
          %p317 = pneg %p316
        $region60: #{alexnet_forward.11} parent=53 // pred_check_branch
          %319 = sbr.rel (%p317) target = $region62
        $region61: #{alexnet_forward.11} parent=53 // pred_region
          %320 = vst [vmem:[#allocation2] sm:$0xff] 0.0
          %321 = vst [vmem:[#allocation2 + $0x8] sm:$0xff] 0.0
          %322 = vst [vmem:[#allocation2 + $0x10] sm:$0xff] 0.0
          %323 = vst [vmem:[#allocation2 + $0x18] sm:$0xff] 0.0
          %324 = vst [vmem:[#allocation2 + $0x20] sm:$0xff] 0.0
          %325 = vst [vmem:[#allocation2 + $0x28] sm:$0xff] 0.0
          %326 = vst [vmem:[#allocation2 + $0x30] sm:$0xff] 0.0
          %327 = vst [vmem:[#allocation2 + $0x38] sm:$0xff] 0.0
        $region62: #{alexnet_forward.11} parent=53 // pred_fallthru
          _
        %v328 = vld [vmem:[#allocation2] sm:$0xff]
        %v329 = vld [vmem:[#allocation2 + $0x8] sm:$0xff]
        %v330 = vld [vmem:[#allocation2 + $0x10] sm:$0xff]
        %v331 = vld [vmem:[#allocation2 + $0x18] sm:$0xff]
        %v332 = vld [vmem:[#allocation2 + $0x20] sm:$0xff]
        %v333 = vld [vmem:[#allocation2 + $0x28] sm:$0xff]
        %v334 = vld [vmem:[#allocation2 + $0x30] sm:$0xff]
        %v335 = vld [vmem:[#allocation2 + $0x38] sm:$0xff]
        %v336 = vld [vmem:[%s244] sm:$0xff]
        %v337 = vld [vmem:[%s244 + $0x8] sm:$0xf]
        %v338 = vld [vmem:[%s244 + $0xc] sm:$0xff]
        %v339 = vld [vmem:[%s244 + $0x14] sm:$0xf]
        %v340 = vld [vmem:[%s244 + $0x18] sm:$0xff]
        %v341 = vld [vmem:[%s244 + $0x20] sm:$0xf]
        %v342 = vld [vmem:[%s244 + $0x24] sm:$0xff]
        %v343 = vld [vmem:[%s244 + $0x2c] sm:$0xf]
        %v344 = vld [vmem:[%s295] sm:$0xff]
        %v345 = vld [vmem:[%s295 + $0x8] sm:$0xff]
        %v346 = vld [vmem:[%s295 + $0x10] sm:$0xff]
        %v347 = vld [vmem:[%s295 + $0x18] sm:$0xff]
        %v348 = vld [vmem:[%s295 + $0x20] sm:$0xff]
        %v349 = vld [vmem:[%s295 + $0x28] sm:$0xff]
        %v350 = vld [vmem:[%s295 + $0x30] sm:$0xff]
        %v351 = vld [vmem:[%s295 + $0x38] sm:$0xff]
        %v352 = vld [vmem:[%s295 + $0x40] sm:$0xff]
        %v353 = vld [vmem:[%s295 + $0x48] sm:$0xff]
        %v354 = vld [vmem:[%s295 + $0x50] sm:$0xff]
        %v355 = vld [vmem:[%s295 + $0x58] sm:$0xff]
        %v356 = vld [vmem:[%s295 + $0x60] sm:$0xff]
        %v357 = vld [vmem:[%s295 + $0x68] sm:$0xff]
        %v358 = vld [vmem:[%s295 + $0x70] sm:$0xff]
        %v359 = vld [vmem:[%s295 + $0x78] sm:$0xff]
        %v360 = vld [vmem:[%s295 + $0x80] sm:$0xff]
        %v361 = vld [vmem:[%s295 + $0x88] sm:$0xff]
        %v362 = vld [vmem:[%s295 + $0x90] sm:$0xff]
        %v363 = vld [vmem:[%s295 + $0x98] sm:$0xff]
        %v364 = vld [vmem:[%s295 + $0xa0] sm:$0xff]
        %v365 = vld [vmem:[%s295 + $0xa8] sm:$0xff]
        %v366 = vld [vmem:[%s295 + $0xb0] sm:$0xff]
        %v367 = vld [vmem:[%s295 + $0xb8] sm:$0xff]
        %v368 = vld [vmem:[%s295 + $0xc0] sm:$0xff]
        %v369 = vld [vmem:[%s295 + $0xc8] sm:$0xff]
        %v370 = vld [vmem:[%s295 + $0xd0] sm:$0xff]
        %v371 = vld [vmem:[%s295 + $0xd8] sm:$0xff]
        %v372 = vld [vmem:[%s295 + $0xe0] sm:$0xff]
        %v373 = vld [vmem:[%s295 + $0xe8] sm:$0xff]
        %v374 = vld [vmem:[%s295 + $0xf0] sm:$0xff]
        %v375 = vld [vmem:[%s295 + $0xf8] sm:$0xff]
        %v376 = vld [vmem:[%s295 + $0x100] sm:$0xff]
        %v377 = vld [vmem:[%s295 + $0x108] sm:$0xff]
        %v378 = vld [vmem:[%s295 + $0x110] sm:$0xff]
        %v379 = vld [vmem:[%s295 + $0x118] sm:$0xff]
        %v380 = vld [vmem:[%s295 + $0x120] sm:$0xff]
        %v381 = vld [vmem:[%s295 + $0x128] sm:$0xff]
        %v382 = vld [vmem:[%s295 + $0x130] sm:$0xff]
        %v383 = vld [vmem:[%s295 + $0x138] sm:$0xff]
        %v384 = vld [vmem:[%s295 + $0x140] sm:$0xff]
        %v385 = vld [vmem:[%s295 + $0x148] sm:$0xff]
        %v386 = vld [vmem:[%s295 + $0x150] sm:$0xff]
        %v387 = vld [vmem:[%s295 + $0x158] sm:$0xff]
        %v388 = vld [vmem:[%s295 + $0x160] sm:$0xff]
        %v389 = vld [vmem:[%s295 + $0x168] sm:$0xff]
        %v390 = vld [vmem:[%s295 + $0x170] sm:$0xff]
        %v391 = vld [vmem:[%s295 + $0x178] sm:$0xff]
        %v400 = vunpack.c.l.b16 %v336
        %v401 = vunpack.c.h.b16 %v336
        %v402 = vunpack.c.l.b16 %v337
        %v403 = vunpack.c.l.b16 %v338
        %v404 = vunpack.c.h.b16 %v338
        %v405 = vunpack.c.l.b16 %v339
        %v406 = vunpack.c.l.b16 %v340
        %v407 = vunpack.c.h.b16 %v340
        %v408 = vunpack.c.l.b16 %v341
        %v409 = vunpack.c.l.b16 %v342
        %v410 = vunpack.c.h.b16 %v342
        %v411 = vunpack.c.l.b16 %v343
        %v412 = vpack.c.b16 %v403, %v400
        %v413 = vpack.c.b16 %v404, %v401
        %v414 = vpack.c.b16 %v405, %v402
        %v415 = vpack.c.b16 %v409, %v406
        %v416 = vpack.c.b16 %v410, %v407
        %v417 = vpack.c.b16 %v411, %v408
        %v472 = vunpack.c.l.b16 %v344
        %v473 = vunpack.c.h.b16 %v344
        %v474 = vunpack.c.l.b16 %v345
        %v475 = vunpack.c.h.b16 %v345
        %v476 = vunpack.c.l.b16 %v346
        %v477 = vunpack.c.h.b16 %v346
        %v478 = vunpack.c.l.b16 %v347
        %v479 = vunpack.c.h.b16 %v347
        %v480 = vunpack.c.l.b16 %v348
        %v481 = vunpack.c.h.b16 %v348
        %v482 = vunpack.c.l.b16 %v349
        %v483 = vunpack.c.h.b16 %v349
        %v484 = vunpack.c.l.b16 %v350
        %v485 = vunpack.c.h.b16 %v350
        %v486 = vunpack.c.l.b16 %v351
        %v487 = vunpack.c.h.b16 %v351
        %v488 = vunpack.c.l.b16 %v352
        %v489 = vunpack.c.h.b16 %v352
        %v490 = vunpack.c.l.b16 %v353
        %v491 = vunpack.c.h.b16 %v353
        %v492 = vunpack.c.l.b16 %v354
        %v493 = vunpack.c.h.b16 %v354
        %v494 = vunpack.c.l.b16 %v355
        %v495 = vunpack.c.h.b16 %v355
        %v496 = vunpack.c.l.b16 %v356
        %v497 = vunpack.c.h.b16 %v356
        %v498 = vunpack.c.l.b16 %v357
        %v499 = vunpack.c.h.b16 %v357
        %v500 = vunpack.c.l.b16 %v358
        %v501 = vunpack.c.h.b16 %v358
        %v502 = vunpack.c.l.b16 %v359
        %v503 = vunpack.c.h.b16 %v359
        %v504 = vunpack.c.l.b16 %v360
        %v505 = vunpack.c.h.b16 %v360
        %v506 = vunpack.c.l.b16 %v361
        %v507 = vunpack.c.h.b16 %v361
        %v508 = vunpack.c.l.b16 %v362
        %v509 = vunpack.c.h.b16 %v362
        %v510 = vunpack.c.l.b16 %v363
        %v511 = vunpack.c.h.b16 %v363
        %v512 = vunpack.c.l.b16 %v364
        %v513 = vunpack.c.h.b16 %v364
        %v514 = vunpack.c.l.b16 %v365
        %v515 = vunpack.c.h.b16 %v365
        %v516 = vunpack.c.l.b16 %v366
        %v517 = vunpack.c.h.b16 %v366
        %v518 = vunpack.c.l.b16 %v367
        %v519 = vunpack.c.h.b16 %v367
        %v520 = vunpack.c.l.b16 %v368
        %v521 = vunpack.c.h.b16 %v368
        %v522 = vunpack.c.l.b16 %v369
        %v523 = vunpack.c.h.b16 %v369
        %v524 = vunpack.c.l.b16 %v370
        %v525 = vunpack.c.h.b16 %v370
        %v526 = vunpack.c.l.b16 %v371
        %v527 = vunpack.c.h.b16 %v371
        %v528 = vunpack.c.l.b16 %v372
        %v529 = vunpack.c.h.b16 %v372
        %v530 = vunpack.c.l.b16 %v373
        %v531 = vunpack.c.h.b16 %v373
        %v532 = vunpack.c.l.b16 %v374
        %v533 = vunpack.c.h.b16 %v374
        %v534 = vunpack.c.l.b16 %v375
        %v535 = vunpack.c.h.b16 %v375
        %v536 = vunpack.c.l.b16 %v376
        %v537 = vunpack.c.h.b16 %v376
        %v538 = vunpack.c.l.b16 %v377
        %v539 = vunpack.c.h.b16 %v377
        %v540 = vunpack.c.l.b16 %v378
        %v541 = vunpack.c.h.b16 %v378
        %v542 = vunpack.c.l.b16 %v379
        %v543 = vunpack.c.h.b16 %v379
        %v544 = vunpack.c.l.b16 %v380
        %v545 = vunpack.c.h.b16 %v380
        %v546 = vunpack.c.l.b16 %v381
        %v547 = vunpack.c.h.b16 %v381
        %v548 = vunpack.c.l.b16 %v382
        %v549 = vunpack.c.h.b16 %v382
        %v550 = vunpack.c.l.b16 %v383
        %v551 = vunpack.c.h.b16 %v383
        %v552 = vunpack.c.l.b16 %v384
        %v553 = vunpack.c.h.b16 %v384
        %v554 = vunpack.c.l.b16 %v385
        %v555 = vunpack.c.h.b16 %v385
        %v556 = vunpack.c.l.b16 %v386
        %v557 = vunpack.c.h.b16 %v386
        %v558 = vunpack.c.l.b16 %v387
        %v559 = vunpack.c.h.b16 %v387
        %v560 = vunpack.c.l.b16 %v388
        %v561 = vunpack.c.h.b16 %v388
        %v562 = vunpack.c.l.b16 %v389
        %v563 = vunpack.c.h.b16 %v389
        %v564 = vunpack.c.l.b16 %v390
        %v565 = vunpack.c.h.b16 %v390
        %v566 = vunpack.c.l.b16 %v391
        %v567 = vunpack.c.h.b16 %v391
        %v568 = vpack.c.b16 %v474, %v472
        %v569 = vpack.c.b16 %v475, %v473
        %v570 = vpack.c.b16 %v478, %v476
        %v571 = vpack.c.b16 %v479, %v477
        %v572 = vpack.c.b16 %v482, %v480
        %v573 = vpack.c.b16 %v483, %v481
        %v574 = vpack.c.b16 %v486, %v484
        %v575 = vpack.c.b16 %v487, %v485
        %v576 = vpack.c.b16 %v490, %v488
        %v577 = vpack.c.b16 %v491, %v489
        %v578 = vpack.c.b16 %v494, %v492
        %v579 = vpack.c.b16 %v495, %v493
        %v580 = vpack.c.b16 %v498, %v496
        %v581 = vpack.c.b16 %v499, %v497
        %v582 = vpack.c.b16 %v502, %v500
        %v583 = vpack.c.b16 %v503, %v501
        %v584 = vpack.c.b16 %v506, %v504
        %v585 = vpack.c.b16 %v507, %v505
        %v586 = vpack.c.b16 %v510, %v508
        %v587 = vpack.c.b16 %v511, %v509
        %v588 = vpack.c.b16 %v514, %v512
        %v589 = vpack.c.b16 %v515, %v513
        %v590 = vpack.c.b16 %v518, %v516
        %v591 = vpack.c.b16 %v519, %v517
        %v592 = vpack.c.b16 %v522, %v520
        %v593 = vpack.c.b16 %v523, %v521
        %v594 = vpack.c.b16 %v526, %v524
        %v595 = vpack.c.b16 %v527, %v525
        %v596 = vpack.c.b16 %v530, %v528
        %v597 = vpack.c.b16 %v531, %v529
        %v598 = vpack.c.b16 %v534, %v532
        %v599 = vpack.c.b16 %v535, %v533
        %v600 = vpack.c.b16 %v538, %v536
        %v601 = vpack.c.b16 %v539, %v537
        %v602 = vpack.c.b16 %v542, %v540
        %v603 = vpack.c.b16 %v543, %v541
        %v604 = vpack.c.b16 %v546, %v544
        %v605 = vpack.c.b16 %v547, %v545
        %v606 = vpack.c.b16 %v550, %v548
        %v607 = vpack.c.b16 %v551, %v549
        %v608 = vpack.c.b16 %v554, %v552
        %v609 = vpack.c.b16 %v555, %v553
        %v610 = vpack.c.b16 %v558, %v556
        %v611 = vpack.c.b16 %v559, %v557
        %v612 = vpack.c.b16 %v562, %v560
        %v613 = vpack.c.b16 %v563, %v561
        %v614 = vpack.c.b16 %v566, %v564
        %v615 = vpack.c.b16 %v567, %v565
        %664 = vmatprep.subr.bf16.mxu0 %v583
        %665 = vmatpush1.bf16.msra.mxu0 %v582
        %666 = vmatprep.subr.bf16.mxu0 %v581
        %667 = vmatpush1.bf16.msra.mxu0 %v580
        %668 = vmatprep.subr.bf16.mxu0 %v579
        %669 = vmatpush1.bf16.msra.mxu0 %v578
        %670 = vmatprep.subr.bf16.mxu0 %v577
        %671 = vmatpush1.bf16.msra.mxu0 %v576
        %672 = vmatprep.subr.bf16.mxu0 %v575
        %673 = vmatpush1.bf16.msra.mxu0 %v574
        %674 = vmatprep.subr.bf16.mxu0 %v573
        %675 = vmatpush1.bf16.msra.mxu0 %v572
        %676 = vmatprep.subr.bf16.mxu0 %v571
        %677 = vmatpush1.bf16.msra.mxu0 %v570
        %678 = vmatprep.subr.bf16.mxu0 %v569
        %679 = vmatpush1.bf16.msra.mxu0 %v568
        %680 = vmatprep.subr.bf16.mxu0 %v599
        %681 = vmatpush2.bf16.msra.mxu0 %v598
        %682 = vmatprep.subr.bf16.mxu0 %v597
        %683 = vmatpush2.bf16.msra.mxu0 %v596
        %684 = vmatprep.subr.bf16.mxu0 %v595
        %685 = vmatpush2.bf16.msra.mxu0 %v594
        %686 = vmatprep.subr.bf16.mxu0 %v593
        %687 = vmatpush2.bf16.msra.mxu0 %v592
        %688 = vmatprep.subr.bf16.mxu0 %v591
        %689 = vmatpush2.bf16.msra.mxu0 %v590
        %690 = vmatprep.subr.bf16.mxu0 %v589
        %691 = vmatpush2.bf16.msra.mxu0 %v588
        %692 = vmatprep.subr.bf16.mxu0 %v587
        %693 = vmatpush2.bf16.msra.mxu0 %v586
        %694 = vmatprep.subr.bf16.mxu0 %v585
        %695 = vmatpush2.bf16.msra.mxu0 %v584
        %696 = vmatprep.mubr.bf16.mxu0 %v413
        %697 = vmatmul.mubr.bf16.gmra.mxu0 %v412
        %v698 = vpop.f32.mrf.mxu0
        %v699 = vadd.f32 0.0, %v698
        %v700 = vpop.f32.mrf.mxu0
        %v701 = vadd.f32 0.0, %v700
        %v702 = vpop.f32.mrf.mxu0
        %v703 = vadd.f32 0.0, %v702
        %v704 = vpop.f32.mrf.mxu0
        %v705 = vadd.f32 0.0, %v704
        %706 = vmatprep.mubr.bf16.mxu0 %v416
        %707 = vmatmul.mubr.bf16.gmra.mxu0 %v415
        %v708 = vpop.f32.mrf.mxu0
        %v709 = vadd.f32 0.0, %v708
        %v710 = vpop.f32.mrf.mxu0
        %v711 = vadd.f32 0.0, %v710
        %v712 = vpop.f32.mrf.mxu0
        %v713 = vadd.f32 0.0, %v712
        %v714 = vpop.f32.mrf.mxu0
        %v715 = vadd.f32 0.0, %v714
        %716 = vdwg.mxu0
        %717 = vmatprep.subr.bf16.mxu0 %v615
        %718 = vmatpush1.bf16.msra.mxu0 %v614
        %719 = vmatprep.subr.bf16.mxu0 %v613
        %720 = vmatpush1.bf16.msra.mxu0 %v612
        %721 = vmatprep.subr.bf16.mxu0 %v611
        %722 = vmatpush1.bf16.msra.mxu0 %v610
        %723 = vmatprep.subr.bf16.mxu0 %v609
        %724 = vmatpush1.bf16.msra.mxu0 %v608
        %725 = vmatprep.subr.bf16.mxu0 %v607
        %726 = vmatpush1.bf16.msra.mxu0 %v606
        %727 = vmatprep.subr.bf16.mxu0 %v605
        %728 = vmatpush1.bf16.msra.mxu0 %v604
        %729 = vmatprep.subr.bf16.mxu0 %v603
        %730 = vmatpush1.bf16.msra.mxu0 %v602
        %731 = vmatprep.subr.bf16.mxu0 %v601
        %732 = vmatpush1.bf16.msra.mxu0 %v600
        %733 = vmatprep.subr.bf16.mxu0 0
        %734 = vmatpush2.bf16.msra.mxu0 0
        %735 = vmatprep.subr.bf16.mxu0 0
        %736 = vmatpush2.bf16.msra.mxu0 0
        %737 = vmatprep.subr.bf16.mxu0 0
        %738 = vmatpush2.bf16.msra.mxu0 0
        %739 = vmatprep.subr.bf16.mxu0 0
        %740 = vmatpush2.bf16.msra.mxu0 0
        %741 = vmatprep.subr.bf16.mxu0 0
        %742 = vmatpush2.bf16.msra.mxu0 0
        %743 = vmatprep.subr.bf16.mxu0 0
        %744 = vmatpush2.bf16.msra.mxu0 0
        %745 = vmatprep.subr.bf16.mxu0 0
        %746 = vmatpush2.bf16.msra.mxu0 0
        %747 = vmatprep.subr.bf16.mxu0 0
        %748 = vmatpush2.bf16.msra.mxu0 0
        %749 = vmatprep.mubr.bf16.mxu0 0
        %750 = vmatmul.mubr.bf16.gmra.mxu0 %v414
        %v751 = vpop.f32.mrf.mxu0
        %v752 = vadd.f32 %v699, %v751
        %v753 = vpop.f32.mrf.mxu0
        %v754 = vadd.f32 %v701, %v753
        %v755 = vpop.f32.mrf.mxu0
        %v756 = vadd.f32 %v703, %v755
        %v757 = vpop.f32.mrf.mxu0
        %v758 = vadd.f32 %v705, %v757
        %759 = vmatprep.mubr.bf16.mxu0 0
        %760 = vmatmul.mubr.bf16.gmra.mxu0 %v417
        %v761 = vpop.f32.mrf.mxu0
        %v762 = vadd.f32 %v709, %v761
        %v763 = vpop.f32.mrf.mxu0
        %v764 = vadd.f32 %v711, %v763
        %v765 = vpop.f32.mrf.mxu0
        %v766 = vadd.f32 %v713, %v765
        %v767 = vpop.f32.mrf.mxu0
        %v768 = vadd.f32 %v715, %v767
        %769 = vdwg.mxu0
        %v770 = vadd.f32 %v328, %v752
        %v771 = vadd.f32 %v329, %v754
        %v772 = vadd.f32 %v330, %v756
        %v773 = vadd.f32 %v331, %v758
        %v774 = vadd.f32 %v332, %v762
        %v775 = vadd.f32 %v333, %v764
        %v776 = vadd.f32 %v334, %v766
        %v777 = vadd.f32 %v335, %v768
        %778 = vst [vmem:[#allocation2] sm:$0xff] %v770
        %779 = vst [vmem:[#allocation2 + $0x8] sm:$0xff] %v771
        %780 = vst [vmem:[#allocation2 + $0x10] sm:$0xff] %v772
        %781 = vst [vmem:[#allocation2 + $0x18] sm:$0xff] %v773
        %782 = vst [vmem:[#allocation2 + $0x20] sm:$0xff] %v774
        %783 = vst [vmem:[#allocation2 + $0x28] sm:$0xff] %v775
        %784 = vst [vmem:[#allocation2 + $0x30] sm:$0xff] %v776
        %785 = vst [vmem:[#allocation2 + $0x38] sm:$0xff] %v777
        %p786 = scmp.eq.s32.totalorder %s21, 8
        // Predicated region
        $region63: #{alexnet_forward.11} parent=53 // pred_check
          %p787 = pneg %p786
        $region64: #{alexnet_forward.11} parent=53 // pred_check_branch
          %789 = sbr.rel (%p787) target = $region66
        $region65: #{alexnet_forward.11} parent=53 // pred_region
          %v790 = vld [vmem:[#allocation2] sm:$0xff]
          %v791 = vld [vmem:[#allocation2 + $0x8] sm:$0xff]
          %v792 = vld [vmem:[#allocation2 + $0x10] sm:$0xff]
          %v793 = vld [vmem:[#allocation2 + $0x18] sm:$0xff]
          %v794 = vld [vmem:[#allocation2 + $0x20] sm:$0xff]
          %v795 = vld [vmem:[#allocation2 + $0x28] sm:$0xff]
          %v796 = vld [vmem:[#allocation2 + $0x30] sm:$0xff]
          %v797 = vld [vmem:[#allocation2 + $0x38] sm:$0xff]
          %v798 = vld [vmem:[%s301] sm:$0x3]
          %v800 = vlaneseq
          %v801 = vshrl.u32 %v800, 7
          %v802 = vsub.s32 0, %v801
          %v803 = vrot.slane %v798, %v802
          %v804 = vlaneseq
          %v805 = vshrl.u32 %v804, 7
          %v806 = vsub.s32 1, %v805
          %v807 = vrot.slane %v798, %v806
          %v810 = vadd.f32 %v790, %v803
          %v811 = vadd.f32 %v791, %v807
          %v812 = vadd.f32 %v792, %v803
          %v813 = vadd.f32 %v793, %v807
          %v814 = vadd.f32 %v794, %v803
          %v815 = vadd.f32 %v795, %v807
          %v816 = vadd.f32 %v796, %v803
          %v817 = vadd.f32 %v797, %v807
          %v818 = vmax.f32 %v810, 0.0
          %v819 = vmax.f32 %v811, 0.0
          %v820 = vmax.f32 %v812, 0.0
          %v821 = vmax.f32 %v813, 0.0
          %v822 = vmax.f32 %v814, 0.0
          %v823 = vmax.f32 %v815, 0.0
          %v824 = vmax.f32 %v816, 0.0
          %v825 = vmax.f32 %v817, 0.0
          %v826 = vpack.c.bf16 %v820, %v818
          %v827 = vpack.c.bf16 %v821, %v819
          %v828 = vpack.c.bf16 %v824, %v822
          %v829 = vpack.c.bf16 %v825, %v823
          %v834 = vunpack.c.l.b16 %v826
          %v835 = vunpack.c.l.b16 %v827
          %v836 = vunpack.c.h.b16 %v826
          %v837 = vunpack.c.h.b16 %v827
          %v838 = vunpack.c.l.b16 %v828
          %v839 = vunpack.c.l.b16 %v829
          %v840 = vunpack.c.h.b16 %v828
          %v841 = vunpack.c.h.b16 %v829
          %v842 = vpack.c.b16 %v835, %v834
          %v843 = vpack.c.b16 %v837, %v836
          %v844 = vpack.c.b16 %v839, %v838
          %v845 = vpack.c.b16 %v841, %v840
          %850 = vst [vmem:[%s312] sm:$0xff] %v842
          %851 = vst [vmem:[%s312 + $0x8] sm:$0xff] %v843
          %852 = vst [vmem:[%s312 + $0x10] sm:$0xff] %v844
          %853 = vst [vmem:[%s312 + $0x18] sm:$0xff] %v845
        $region66: #{alexnet_forward.11} parent=53 // pred_fallthru
          _
        %s854 = smul.u32 4, %s19
        %s855 = smul.u32 2, %s20
        %p856 = scmp.lt.s32.totalorder %s854, 3
        %s857 = scalar_select %p856, %s854, 3
        %p858 = scmp.lt.s32.totalorder %s855, 1
        %s859 = scalar_select %p858, %s855, 1
        %s860 = smul.addr %s857, 2
        %s861 = sadd.s32 %s859, %s860
        %s862 = smul.addr %s861, 4
        %s863 = scalar_lea.vmem %s3, %s862
        // Predicated region
        $region67: #{alexnet_forward.11} parent=53 // pred_check
          %p864 = pneg %p135
        $region68: #{alexnet_forward.11} parent=53 // pred_check_branch
          %866 = sbr.rel (%p864) target = $region70
        $region69: #{alexnet_forward.11} parent=53 // pred_region
          %s867 = smul.u32 4, %s19
          %s868 = smul.u32 2, %s20
        $region70: #{alexnet_forward.11} parent=53 // pred_fallthru
          _
        // Predicated region
        $region71: #{alexnet_forward.11} parent=53 // pred_check
          %p869 = pneg %p135
        $region72: #{alexnet_forward.11} parent=53 // pred_check_branch
          %871 = sbr.rel (%p869) target = $region74
        $region73: #{alexnet_forward.11} parent=53 // pred_region
          %s872 = smul.u32 4, %s19
          %s873 = smul.u32 2, %s20
          %p874 = scmp.lt.s32.totalorder %s872, 3
          %s875 = scalar_select %p874, %s872, 3
          %p876 = scmp.lt.s32.totalorder %s873, 1
          %s877 = scalar_select %p876, %s873, 1
          %s878 = smul.addr %s875, 2
          %s879 = sadd.s32 %s877, %s878
          %s880 = smul.addr %s879, 4
          %s881 = scalar_lea.vmem %s3, %s880
        $region74: #{alexnet_forward.11} parent=53 // pred_fallthru
          _
      $region54: #{alexnet_forward.11} parent=5 // pred_fallthru
        _
      %p882 = scmp.le.s32.totalorder 2, %s9
      // Predicated region
      $region75: #{alexnet_forward.11} parent=5 // pred_check
        %p883 = pneg %p882
      $region76: #{alexnet_forward.11} parent=5 // pred_check_branch
        %885 = sbr.rel (%p883) target = $region78
      $region77: #{alexnet_forward.11} parent=5 // pred_region
        %s886 = ssub.s32 %s9, 2
      $region78: #{alexnet_forward.11} parent=5 // pred_fallthru
        _
    $region6: #{alexnet_forward.11} parent=1 // loop_footer
      %s13 = sadd.s32 1, %s9
    $region7: #{alexnet_forward.11} parent=1 // loop_footer_branch
      %8 = sbr.rel target = $region3
    $region8: #{alexnet_forward.11} parent=1 // loop_exit
      _

// kernel: alexnet_forward.12
$region0: #{alexnet_forward.12}
  #allocation0 [shape = 'u32[]', space=smem, size = 0x4, offset = 0x4, fixed_abs, tag = 'smem constant byte address 0x4 - core index']
  #allocation1 [shape = 'u32[144,128]{1,0:T(1,128)}', space=vmem, size = 0x12000, scoped, tag = 'internal scratch']
  #allocation2 [shape = 'f32[32,256]{1,0:T(8,128)}', space=vmem, size = 0x8000, scoped, tag = 'scratch operand']
  %s0 = inlined_call_operand.vmem [shape: bf16[32,2304], index: 0, kind: input, shape index: {}]
  %s1 = inlined_call_operand.hbm [shape: bf16[2304,256], index: 1, kind: input, shape index: {}]
  %s2 = inlined_call_operand.vmem [shape: f32[1,256], index: 2, kind: input, shape index: {}]
  %s3 = inlined_call_operand.vmem [shape: bf16[32,256], index: 3, kind: output, shape index: {}]
  %s4 = sld [smem:[#allocation0]]
  $region83: #{alexnet_forward.12} parent=0
    _
  %s6 = ssub.s32 1, %s4
  %s7 = scalar_select 0, %s6, %s4
  $region1: #{alexnet_forward.12} parent=0
    #allocation3 [shape = 'u8[49152]{0}', space=vmem, size = 0xc000, scoped, tag = 'input window, operand 0']
    #allocation4 [shape = 'u8[393216]{0}', space=vmem, size = 0x60000, scoped, tag = 'input window, operand 1']
    #allocation5 [shape = 's32[2]{0}', space=sflag, size = 0x8, scoped, tag = 'scoped memory for alexnet_forward.12']
    %8 = vsyncpa [#allocation5], 0
    %s9 = scalar_lea.sflag [#allocation5], 1
    %10 = vsyncpa %s9, 0
    loop: start=0, step=1, limit=8
    $region2: #{alexnet_forward.12} parent=1 // loop_pre_header
      _
    $region3: #{alexnet_forward.12} parent=1 // loop_header
      %s12 = sphi 0, %s16
      %p13 = scmp.ge.s32.totalorder %s12, 8
      %s19 = sphi 0, %s38
      %s20 = sphi 0, %s34
      %s21 = sphi 0, %s30
      %s22 = sphi 0, %s19
      %s23 = sphi 0, %s20
      %s24 = sphi 0, %s21
      %s25 = sphi 0, %s22
      %s26 = sphi 0, %s23
      %s27 = sphi 0, %s24
      %s43 = sphi 0, %s45
      %s46 = sphi 0, %s43
      %s47 = sphi 0, %s46
      %s63 = sphi 0, %s47
      %s71 = sphi 0, %s73
      %s74 = sphi 0, %s71
      %s75 = sphi 0, %s74
      %s91 = sphi 0, %s75
      %s97 = sphi 0, %s99
      %s100 = sphi 0, %s97
      %s101 = sphi 0, %s100
      %s117 = sphi 0, %s101
      %s125 = sphi 0, %s127
      %s128 = sphi 0, %s125
      %s129 = sphi 0, %s128
      %s145 = sphi 0, %s129
    $region4: #{alexnet_forward.12} parent=1 // loop_header_branch
      %15 = sbr.rel (%p13) target = $region8
    $region5: #{alexnet_forward.12} parent=1 // loop_body
      %s17 = ssub.s32 %s12, 1
      %s18 = ssub.s32 %s12, 2
      %s28 = sadd.s32 1, %s21
      %p29 = scmp.ge.s32.totalorder %s28, 6
      %s30 = scalar_select %p29, 0, %s28
      %s31 = sadd.s32 1, %s20
      %s32 = scalar_select %p29, %s31, %s20
      %p33 = scmp.ge.s32.totalorder %s32, 1
      %s34 = scalar_select %p33, 0, %s32
      %s35 = sadd.s32 1, %s19
      %s36 = scalar_select %p33, %s35, %s19
      %p37 = scmp.ge.s32.totalorder %s36, 1
      %s38 = scalar_select %p37, 0, %s36
      %s39 = ssub.s32 %s19, %s38
      %s40 = ssub.s32 %s21, %s30
      %s41 = sor.u32 %s39, %s40
      %p42 = scmp.eq.s32.totalorder %s41, 0
      %s44 = sadd.s32 %s43, 1
      %s45 = scalar_select %p42, %s43, %s44
      %p48 = pneg %p42
      %p49 = scmp.eq.s32.totalorder %s12, 5
      %p50 = por %p48, %p49
      %p51 = scmp.ne.s32.totalorder %s43, %s46
      %p52 = scmp.eq.s32.totalorder %s12, 0
      %p53 = por %p51, %p52
      %p54 = scmp.ne.s32.totalorder %s43, %s46
      %p55 = scmp.eq.s32.totalorder %s17, 5
      %p56 = por %p54, %p55
      %p57 = scmp.ne.s32.totalorder %s46, %s47
      %p58 = scmp.eq.s32.totalorder %s17, 0
      %p59 = por %p57, %p58
      %p60 = scmp.ne.s32.totalorder %s46, %s47
      %p61 = scmp.eq.s32.totalorder %s18, 5
      %p62 = por %p60, %p61
      %p64 = scmp.ne.s32.totalorder %s47, %s63
      %p65 = scmp.eq.s32.totalorder %s18, 0
      %p66 = por %p64, %p65
      %s67 = ssub.s32 %s21, %s30
      %s68 = ssub.s32 %s20, %s34
      %s69 = sor.u32 %s67, %s68
      %p70 = scmp.eq.s32.totalorder %s69, 0
      %s72 = sadd.s32 %s71, 1
      %s73 = scalar_select %p70, %s71, %s72
      %p76 = pneg %p70
      %p77 = scmp.eq.s32.totalorder %s12, 5
      %p78 = por %p76, %p77
      %p79 = scmp.ne.s32.totalorder %s71, %s74
      %p80 = scmp.eq.s32.totalorder %s12, 0
      %p81 = por %p79, %p80
      %p82 = scmp.ne.s32.totalorder %s71, %s74
      %p83 = scmp.eq.s32.totalorder %s17, 5
      %p84 = por %p82, %p83
      %p85 = scmp.ne.s32.totalorder %s74, %s75
      %p86 = scmp.eq.s32.totalorder %s17, 0
      %p87 = por %p85, %p86
      %p88 = scmp.ne.s32.totalorder %s74, %s75
      %p89 = scmp.eq.s32.totalorder %s18, 5
      %p90 = por %p88, %p89
      %p92 = scmp.ne.s32.totalorder %s75, %s91
      %p93 = scmp.eq.s32.totalorder %s18, 0
      %p94 = por %p92, %p93
      %s95 = ssub.s32 %s20, %s34
      %p96 = scmp.eq.s32.totalorder %s95, 0
      %s98 = sadd.s32 %s97, 1
      %s99 = scalar_select %p96, %s97, %s98
      %p102 = pneg %p96
      %p103 = scmp.eq.s32.totalorder %s12, 5
      %p104 = por %p102, %p103
      %p105 = scmp.ne.s32.totalorder %s97, %s100
      %p106 = scmp.eq.s32.totalorder %s12, 0
      %p107 = por %p105, %p106
      %p108 = scmp.ne.s32.totalorder %s97, %s100
      %p109 = scmp.eq.s32.totalorder %s17, 5
      %p110 = por %p108, %p109
      %p111 = scmp.ne.s32.totalorder %s100, %s101
      %p112 = scmp.eq.s32.totalorder %s17, 0
      %p113 = por %p111, %p112
      %p114 = scmp.ne.s32.totalorder %s100, %s101
      %p115 = scmp.eq.s32.totalorder %s18, 5
      %p116 = por %p114, %p115
      %p118 = scmp.ne.s32.totalorder %s101, %s117
      %p119 = scmp.eq.s32.totalorder %s18, 0
      %p120 = por %p118, %p119
      %s121 = ssub.s32 %s19, %s38
      %s122 = ssub.s32 %s20, %s34
      %s123 = sor.u32 %s121, %s122
      %p124 = scmp.eq.s32.totalorder %s123, 0
      %s126 = sadd.s32 %s125, 1
      %s127 = scalar_select %p124, %s125, %s126
      %p130 = pneg %p124
      %p131 = scmp.eq.s32.totalorder %s12, 5
      %p132 = por %p130, %p131
      %p133 = scmp.ne.s32.totalorder %s125, %s128
      %p134 = scmp.eq.s32.totalorder %s12, 0
      %p135 = por %p133, %p134
      %p136 = scmp.ne.s32.totalorder %s125, %s128
      %p137 = scmp.eq.s32.totalorder %s17, 5
      %p138 = por %p136, %p137
      %p139 = scmp.ne.s32.totalorder %s128, %s129
      %p140 = scmp.eq.s32.totalorder %s17, 0
      %p141 = por %p139, %p140
      %p142 = scmp.ne.s32.totalorder %s128, %s129
      %p143 = scmp.eq.s32.totalorder %s18, 5
      %p144 = por %p142, %p143
      %p146 = scmp.ne.s32.totalorder %s129, %s145
      %p147 = scmp.eq.s32.totalorder %s18, 0
      %p148 = por %p146, %p147
      %p149 = scmp.le.s32.totalorder 1, %s12
      %p150 = scmp.lt.s32.totalorder %s12, 7
      %p151 = pnand %p149, %p150
      %p152 = pneg %p151
      // Predicated region
      $region9: #{alexnet_forward.12} parent=5 // pred_check
        _
      $region10: #{alexnet_forward.12} parent=5 // pred_check_branch
        %154 = sbr.rel (%p151) target = $region12
      $region11: #{alexnet_forward.12} parent=5 // pred_region
        %s155 = ssub.s32 %s12, 1
        // Predicated region
        $region13: #{alexnet_forward.12} parent=11 // pred_check
          %p156 = pneg %p113
        $region14: #{alexnet_forward.12} parent=11 // pred_check_branch
          %158 = sbr.rel (%p156) target = $region16
        $region15: #{alexnet_forward.12} parent=11 // pred_region
          %s159 = smul.u32 2, %s23
          %p160 = scmp.lt.s32.totalorder %s159, 1
          %s161 = scalar_select %p160, %s159, 1
          %s162 = scalar_lea.vmem %s2, %s161
          %s163 = smul.u32 2, %s23
        $region16: #{alexnet_forward.12} parent=11 // pred_fallthru
          _
      $region12: #{alexnet_forward.12} parent=5 // pred_fallthru
        _
      %p164 = scmp.lt.s32.totalorder %s12, 6
      // Predicated region
      $region17: #{alexnet_forward.12} parent=5 // pred_check
        %p165 = pneg %p164
      $region18: #{alexnet_forward.12} parent=5 // pred_check_branch
        %167 = sbr.rel (%p165) target = $region20
      $region19: #{alexnet_forward.12} parent=5 // pred_region
        // Predicated region
        $region21: #{alexnet_forward.12} parent=19 // pred_check
          %p168 = pneg %p53
        $region22: #{alexnet_forward.12} parent=19 // pred_check_branch
          %170 = sbr.rel (%p168) target = $region24
        $region23: #{alexnet_forward.12} parent=19 // pred_region
          %s171 = sand.u32 %s43, 1
          %s172 = sand.u32 %s43, 1
          %s173 = smul.addr %s172, 48
          %s174 = scalar_lea.vmem [#allocation3], %s173
          %s175 = smul.u32 4, %s19
          %s176 = smul.u32 3, %s21
          %s177 = smul.addr %s175, 18
          %s178 = sadd.s32 %s176, %s177
          %s179 = smul.addr %s178, 4
          %s180 = scalar_lea.vmem %s0, %s179
          // Predicated region
          $region25: #{alexnet_forward.12} parent=23 // pred_check
            _
          $region26: #{alexnet_forward.12} parent=23 // pred_check_branch
            %182 = sbr.rel (0) target = $region28
          $region27: #{alexnet_forward.12} parent=23 // pred_region
            // Predicated region
            $region29: #{alexnet_forward.12} parent=27 // pred_check
              _
            $region30: #{alexnet_forward.12} parent=27 // pred_check_branch
              %184 = sbr.rel (0) target = $region32
            $region31: #{alexnet_forward.12} parent=27 // pred_region
              %s185 = scalar_lea.vmem %s180, 8
              %s186 = scalar_lea.vmem %s174, 8 [#allocation3]
              loop: start=0, step=1, limit=1
              $region33: #{alexnet_forward.12} parent=31 // loop_pre_header
                _
              $region34: #{alexnet_forward.12} parent=31 // loop_header
                %s188 = sphi 0, %s192
                %p189 = scmp.ge.s32.totalorder %s188, 1
                %s193 = sphi %s180, %s180
                %s194 = sphi %s174, %s174
              $region35: #{alexnet_forward.12} parent=31 // loop_header_branch
                %191 = sbr.rel (%p189) target = $region39
              $region36: #{alexnet_forward.12} parent=31 // loop_body
                %v195 = vld [vmem:[%s193] sm:$0xff]
                %196 = vst [vmem:[%s194] sm:$0xff] %v195
                %v197 = vld [vmem:[%s193 + $0x48] sm:$0xff]
                %198 = vst [vmem:[%s194 + $0xc] sm:$0xff] %v197
                %v199 = vld [vmem:[%s193 + $0x90] sm:$0xff]
                %200 = vst [vmem:[%s194 + $0x18] sm:$0xff] %v199
                %v201 = vld [vmem:[%s193 + $0xd8] sm:$0xff]
                %202 = vst [vmem:[%s194 + $0x24] sm:$0xff] %v201
              $region37: #{alexnet_forward.12} parent=31 // loop_footer
                %s192 = sadd.s32 1, %s188
              $region38: #{alexnet_forward.12} parent=31 // loop_footer_branch
                %187 = sbr.rel target = $region34
              $region39: #{alexnet_forward.12} parent=31 // loop_exit
                _
              %s204 = ssub.s32 16, 1
              loop: start=0, step=1, limit=1
              $region40: #{alexnet_forward.12} parent=31 // loop_pre_header
                _
              $region41: #{alexnet_forward.12} parent=31 // loop_header
                %s206 = sphi 0, %s210
                %p207 = scmp.ge.s32.totalorder %s206, 1
                %s211 = sphi %s185, %s185
                %s212 = sphi %s186, %s186
              $region42: #{alexnet_forward.12} parent=31 // loop_header_branch
                %209 = sbr.rel (%p207) target = $region46
              $region43: #{alexnet_forward.12} parent=31 // loop_body
                %v213 = vld [vmem:[%s211] sm:%s204]
                %214 = vst [vmem:[%s212] sm:%s204] %v213
                %v215 = vld [vmem:[%s211 + $0x48] sm:%s204]
                %216 = vst [vmem:[%s212 + $0xc] sm:%s204] %v215
                %v217 = vld [vmem:[%s211 + $0x90] sm:%s204]
                %218 = vst [vmem:[%s212 + $0x18] sm:%s204] %v217
                %v219 = vld [vmem:[%s211 + $0xd8] sm:%s204]
                %220 = vst [vmem:[%s212 + $0x24] sm:%s204] %v219
              $region44: #{alexnet_forward.12} parent=31 // loop_footer
                %s210 = sadd.s32 1, %s206
              $region45: #{alexnet_forward.12} parent=31 // loop_footer_branch
                %205 = sbr.rel target = $region41
              $region46: #{alexnet_forward.12} parent=31 // loop_exit
                _
            $region32: #{alexnet_forward.12} parent=27 // pred_fallthru
              _
          $region28: #{alexnet_forward.12} parent=23 // pred_fallthru
            _
          %221 = vnop
        $region24: #{alexnet_forward.12} parent=19 // pred_fallthru
          _
        // Predicated region
        $region47: #{alexnet_forward.12} parent=19 // pred_check
          %p222 = pneg %p81
        $region48: #{alexnet_forward.12} parent=19 // pred_check_branch
          %224 = sbr.rel (%p222) target = $region50
        $region49: #{alexnet_forward.12} parent=19 // pred_region
          %s225 = sand.u32 %s71, 1
          %s226 = scalar_lea.sflag [#allocation5], %s225
          %s227 = sand.u32 %s71, 1
          %s228 = smul.addr %s227, 384
          %s229 = scalar_lea.vmem [#allocation4], %s228
          %s230 = smul.u32 48, %s21
          %s231 = smul.u32 2, %s20
          %s233 = ssub.s32 6144, 6144
          %234 = vsyncadd %s226, %s233
          %s235 = smul.addr %s230, 2
          %s236 = sadd.s32 %s231, %s235
          %s237 = smul.addr %s236, 64
          %s238 = scalar_lea.hbm %s1, %s237
          %s239 = sshll.u32 %s229, 4
          %s240 = int_to_ptr.vmem [resolvable:$true] %s239
          %245 = dma.hbm_to_vmem [thread:$0]  %s238, 6144, %s240, %s226, 128, 128, 8
        $region50: #{alexnet_forward.12} parent=19 // pred_fallthru
          _
      $region20: #{alexnet_forward.12} parent=5 // pred_fallthru
        _
      %p246 = scmp.le.s32.totalorder 1, %s12
      %p247 = scmp.lt.s32.totalorder %s12, 7
      %p248 = pnand %p246, %p247
      %p249 = pneg %p248
      // Predicated region
      $region51: #{alexnet_forward.12} parent=5 // pred_check
        _
      $region52: #{alexnet_forward.12} parent=5 // pred_check_branch
        %251 = sbr.rel (%p248) target = $region54
      $region53: #{alexnet_forward.12} parent=5 // pred_region
        %s252 = ssub.s32 %s12, 1
        %s253 = sand.u32 %s46, 1
        %s254 = sand.u32 %s46, 1
        %s255 = smul.addr %s254, 48
        %s256 = scalar_lea.vmem [#allocation3], %s255
        // Predicated region
        $region55: #{alexnet_forward.12} parent=53 // pred_check
          %p257 = pneg %p59
        $region56: #{alexnet_forward.12} parent=53 // pred_check_branch
          %259 = sbr.rel (%p257) target = $region58
        $region57: #{alexnet_forward.12} parent=53 // pred_region
          _
        $region58: #{alexnet_forward.12} parent=53 // pred_fallthru
          _
        %s260 = sand.u32 %s74, 1
        %s261 = scalar_lea.sflag [#allocation5], %s260
        %s262 = sand.u32 %s74, 1
        %s263 = smul.addr %s262, 384
        %s264 = scalar_lea.vmem [#allocation4], %s263
        // Predicated region
        $region59: #{alexnet_forward.12} parent=53 // pred_check
          %p265 = pneg %p87
        $region60: #{alexnet_forward.12} parent=53 // pred_check_branch
          %267 = sbr.rel (%p265) target = $region62
        $region61: #{alexnet_forward.12} parent=53 // pred_region
          %268 = dma.done %s261, 6144
        $region62: #{alexnet_forward.12} parent=53 // pred_fallthru
          _
        %s269 = sand.u32 %s46, 1
        %s270 = sand.u32 %s46, 1
        %s271 = smul.addr %s270, 48
        %s272 = scalar_lea.vmem [#allocation3], %s271
        %p273 = pneg %p59
        %p274 = pneg %p56
        %s275 = sand.u32 %s74, 1
        %s276 = scalar_lea.sflag [#allocation5], %s275
        %s277 = sand.u32 %s74, 1
        %s278 = smul.addr %s277, 384
        %s279 = scalar_lea.vmem [#allocation4], %s278
        %p280 = pneg %p87
        %p281 = pneg %p84
        %s282 = smul.u32 2, %s23
        %p283 = scmp.lt.s32.totalorder %s282, 1
        %s284 = scalar_select %p283, %s282, 1
        %s285 = scalar_lea.vmem %s2, %s284
        %p286 = pneg %p113
        %p287 = pneg %p110
        %p288 = pneg %p141
        %p289 = pneg %p138
        %s290 = smul.u32 4, %s22
        %s291 = smul.u32 2, %s23
        %p292 = scmp.lt.s32.totalorder %s290, 3
        %s293 = scalar_select %p292, %s290, 3
        %p294 = scmp.lt.s32.totalorder %s291, 1
        %s295 = scalar_select %p294, %s291, 1
        %s296 = smul.addr %s293, 2
        %s297 = sadd.s32 %s295, %s296
        %s298 = smul.addr %s297, 4
        %s299 = scalar_lea.vmem %s3, %s298
        %s300 = smul.u32 4, %s22
        %s301 = smul.u32 3, %s24
        %s302 = smul.u32 48, %s24
        %s303 = smul.u32 2, %s23
        %s304 = smul.u32 2, %s23
        %p305 = scmp.lt.s32.totalorder %s304, 1
        %s306 = scalar_select %p305, %s304, 1
        %s307 = scalar_lea.vmem %s2, %s306
        %s308 = smul.u32 2, %s23
        %s309 = smul.u32 4, %s22
        %s310 = smul.u32 2, %s23
        %p311 = scmp.lt.s32.totalorder %s309, 3
        %s312 = scalar_select %p311, %s309, 3
        %p313 = scmp.lt.s32.totalorder %s310, 1
        %s314 = scalar_select %p313, %s310, 1
        %s315 = smul.addr %s312, 2
        %s316 = sadd.s32 %s314, %s315
        %s317 = smul.addr %s316, 4
        %s318 = scalar_lea.vmem %s3, %s317
        %s319 = smul.u32 4, %s22
        %s320 = smul.u32 2, %s23
        %p322 = scmp.eq.s32.totalorder %s24, 0
        // Predicated region
        $region63: #{alexnet_forward.12} parent=53 // pred_check
          %p323 = pneg %p322
        $region64: #{alexnet_forward.12} parent=53 // pred_check_branch
          %325 = sbr.rel (%p323) target = $region66
        $region65: #{alexnet_forward.12} parent=53 // pred_region
          %326 = vst [vmem:[#allocation2] sm:$0xff] 0.0
          %327 = vst [vmem:[#allocation2 + $0x8] sm:$0xff] 0.0
          %328 = vst [vmem:[#allocation2 + $0x10] sm:$0xff] 0.0
          %329 = vst [vmem:[#allocation2 + $0x18] sm:$0xff] 0.0
          %330 = vst [vmem:[#allocation2 + $0x20] sm:$0xff] 0.0
          %331 = vst [vmem:[#allocation2 + $0x28] sm:$0xff] 0.0
          %332 = vst [vmem:[#allocation2 + $0x30] sm:$0xff] 0.0
          %333 = vst [vmem:[#allocation2 + $0x38] sm:$0xff] 0.0
        $region66: #{alexnet_forward.12} parent=53 // pred_fallthru
          _
        %v334 = vld [vmem:[#allocation2] sm:$0xff]
        %v335 = vld [vmem:[#allocation2 + $0x8] sm:$0xff]
        %v336 = vld [vmem:[#allocation2 + $0x10] sm:$0xff]
        %v337 = vld [vmem:[#allocation2 + $0x18] sm:$0xff]
        %v338 = vld [vmem:[#allocation2 + $0x20] sm:$0xff]
        %v339 = vld [vmem:[#allocation2 + $0x28] sm:$0xff]
        %v340 = vld [vmem:[#allocation2 + $0x30] sm:$0xff]
        %v341 = vld [vmem:[#allocation2 + $0x38] sm:$0xff]
        %v342 = vld [vmem:[%s256] sm:$0xff]
        %v343 = vld [vmem:[%s256 + $0x8] sm:$0xf]
        %v344 = vld [vmem:[%s256 + $0xc] sm:$0xff]
        %v345 = vld [vmem:[%s256 + $0x14] sm:$0xf]
        %v346 = vld [vmem:[%s256 + $0x18] sm:$0xff]
        %v347 = vld [vmem:[%s256 + $0x20] sm:$0xf]
        %v348 = vld [vmem:[%s256 + $0x24] sm:$0xff]
        %v349 = vld [vmem:[%s256 + $0x2c] sm:$0xf]
        %v350 = vld [vmem:[%s264] sm:$0xff]
        %v351 = vld [vmem:[%s264 + $0x8] sm:$0xff]
        %v352 = vld [vmem:[%s264 + $0x10] sm:$0xff]
        %v353 = vld [vmem:[%s264 + $0x18] sm:$0xff]
        %v354 = vld [vmem:[%s264 + $0x20] sm:$0xff]
        %v355 = vld [vmem:[%s264 + $0x28] sm:$0xff]
        %v356 = vld [vmem:[%s264 + $0x30] sm:$0xff]
        %v357 = vld [vmem:[%s264 + $0x38] sm:$0xff]
        %v358 = vld [vmem:[%s264 + $0x40] sm:$0xff]
        %v359 = vld [vmem:[%s264 + $0x48] sm:$0xff]
        %v360 = vld [vmem:[%s264 + $0x50] sm:$0xff]
        %v361 = vld [vmem:[%s264 + $0x58] sm:$0xff]
        %v362 = vld [vmem:[%s264 + $0x60] sm:$0xff]
        %v363 = vld [vmem:[%s264 + $0x68] sm:$0xff]
        %v364 = vld [vmem:[%s264 + $0x70] sm:$0xff]
        %v365 = vld [vmem:[%s264 + $0x78] sm:$0xff]
        %v366 = vld [vmem:[%s264 + $0x80] sm:$0xff]
        %v367 = vld [vmem:[%s264 + $0x88] sm:$0xff]
        %v368 = vld [vmem:[%s264 + $0x90] sm:$0xff]
        %v369 = vld [vmem:[%s264 + $0x98] sm:$0xff]
        %v370 = vld [vmem:[%s264 + $0xa0] sm:$0xff]
        %v371 = vld [vmem:[%s264 + $0xa8] sm:$0xff]
        %v372 = vld [vmem:[%s264 + $0xb0] sm:$0xff]
        %v373 = vld [vmem:[%s264 + $0xb8] sm:$0xff]
        %v374 = vld [vmem:[%s264 + $0xc0] sm:$0xff]
        %v375 = vld [vmem:[%s264 + $0xc8] sm:$0xff]
        %v376 = vld [vmem:[%s264 + $0xd0] sm:$0xff]
        %v377 = vld [vmem:[%s264 + $0xd8] sm:$0xff]
        %v378 = vld [vmem:[%s264 + $0xe0] sm:$0xff]
        %v379 = vld [vmem:[%s264 + $0xe8] sm:$0xff]
        %v380 = vld [vmem:[%s264 + $0xf0] sm:$0xff]
        %v381 = vld [vmem:[%s264 + $0xf8] sm:$0xff]
        %v382 = vld [vmem:[%s264 + $0x100] sm:$0xff]
        %v383 = vld [vmem:[%s264 + $0x108] sm:$0xff]
        %v384 = vld [vmem:[%s264 + $0x110] sm:$0xff]
        %v385 = vld [vmem:[%s264 + $0x118] sm:$0xff]
        %v386 = vld [vmem:[%s264 + $0x120] sm:$0xff]
        %v387 = vld [vmem:[%s264 + $0x128] sm:$0xff]
        %v388 = vld [vmem:[%s264 + $0x130] sm:$0xff]
        %v389 = vld [vmem:[%s264 + $0x138] sm:$0xff]
        %v390 = vld [vmem:[%s264 + $0x140] sm:$0xff]
        %v391 = vld [vmem:[%s264 + $0x148] sm:$0xff]
        %v392 = vld [vmem:[%s264 + $0x150] sm:$0xff]
        %v393 = vld [vmem:[%s264 + $0x158] sm:$0xff]
        %v394 = vld [vmem:[%s264 + $0x160] sm:$0xff]
        %v395 = vld [vmem:[%s264 + $0x168] sm:$0xff]
        %v396 = vld [vmem:[%s264 + $0x170] sm:$0xff]
        %v397 = vld [vmem:[%s264 + $0x178] sm:$0xff]
        %v406 = vunpack.c.l.b16 %v342
        %v407 = vunpack.c.h.b16 %v342
        %v408 = vunpack.c.l.b16 %v343
        %v409 = vunpack.c.l.b16 %v344
        %v410 = vunpack.c.h.b16 %v344
        %v411 = vunpack.c.l.b16 %v345
        %v412 = vunpack.c.l.b16 %v346
        %v413 = vunpack.c.h.b16 %v346
        %v414 = vunpack.c.l.b16 %v347
        %v415 = vunpack.c.l.b16 %v348
        %v416 = vunpack.c.h.b16 %v348
        %v417 = vunpack.c.l.b16 %v349
        %v418 = vpack.c.b16 %v409, %v406
        %v419 = vpack.c.b16 %v410, %v407
        %v420 = vpack.c.b16 %v411, %v408
        %v421 = vpack.c.b16 %v415, %v412
        %v422 = vpack.c.b16 %v416, %v413
        %v423 = vpack.c.b16 %v417, %v414
        %v478 = vunpack.c.l.b16 %v350
        %v479 = vunpack.c.h.b16 %v350
        %v480 = vunpack.c.l.b16 %v351
        %v481 = vunpack.c.h.b16 %v351
        %v482 = vunpack.c.l.b16 %v352
        %v483 = vunpack.c.h.b16 %v352
        %v484 = vunpack.c.l.b16 %v353
        %v485 = vunpack.c.h.b16 %v353
        %v486 = vunpack.c.l.b16 %v354
        %v487 = vunpack.c.h.b16 %v354
        %v488 = vunpack.c.l.b16 %v355
        %v489 = vunpack.c.h.b16 %v355
        %v490 = vunpack.c.l.b16 %v356
        %v491 = vunpack.c.h.b16 %v356
        %v492 = vunpack.c.l.b16 %v357
        %v493 = vunpack.c.h.b16 %v357
        %v494 = vunpack.c.l.b16 %v358
        %v495 = vunpack.c.h.b16 %v358
        %v496 = vunpack.c.l.b16 %v359
        %v497 = vunpack.c.h.b16 %v359
        %v498 = vunpack.c.l.b16 %v360
        %v499 = vunpack.c.h.b16 %v360
        %v500 = vunpack.c.l.b16 %v361
        %v501 = vunpack.c.h.b16 %v361
        %v502 = vunpack.c.l.b16 %v362
        %v503 = vunpack.c.h.b16 %v362
        %v504 = vunpack.c.l.b16 %v363
        %v505 = vunpack.c.h.b16 %v363
        %v506 = vunpack.c.l.b16 %v364
        %v507 = vunpack.c.h.b16 %v364
        %v508 = vunpack.c.l.b16 %v365
        %v509 = vunpack.c.h.b16 %v365
        %v510 = vunpack.c.l.b16 %v366
        %v511 = vunpack.c.h.b16 %v366
        %v512 = vunpack.c.l.b16 %v367
        %v513 = vunpack.c.h.b16 %v367
        %v514 = vunpack.c.l.b16 %v368
        %v515 = vunpack.c.h.b16 %v368
        %v516 = vunpack.c.l.b16 %v369
        %v517 = vunpack.c.h.b16 %v369
        %v518 = vunpack.c.l.b16 %v370
        %v519 = vunpack.c.h.b16 %v370
        %v520 = vunpack.c.l.b16 %v371
        %v521 = vunpack.c.h.b16 %v371
        %v522 = vunpack.c.l.b16 %v372
        %v523 = vunpack.c.h.b16 %v372
        %v524 = vunpack.c.l.b16 %v373
        %v525 = vunpack.c.h.b16 %v373
        %v526 = vunpack.c.l.b16 %v374
        %v527 = vunpack.c.h.b16 %v374
        %v528 = vunpack.c.l.b16 %v375
        %v529 = vunpack.c.h.b16 %v375
        %v530 = vunpack.c.l.b16 %v376
        %v531 = vunpack.c.h.b16 %v376
        %v532 = vunpack.c.l.b16 %v377
        %v533 = vunpack.c.h.b16 %v377
        %v534 = vunpack.c.l.b16 %v378
        %v535 = vunpack.c.h.b16 %v378
        %v536 = vunpack.c.l.b16 %v379
        %v537 = vunpack.c.h.b16 %v379
        %v538 = vunpack.c.l.b16 %v380
        %v539 = vunpack.c.h.b16 %v380
        %v540 = vunpack.c.l.b16 %v381
        %v541 = vunpack.c.h.b16 %v381
        %v542 = vunpack.c.l.b16 %v382
        %v543 = vunpack.c.h.b16 %v382
        %v544 = vunpack.c.l.b16 %v383
        %v545 = vunpack.c.h.b16 %v383
        %v546 = vunpack.c.l.b16 %v384
        %v547 = vunpack.c.h.b16 %v384
        %v548 = vunpack.c.l.b16 %v385
        %v549 = vunpack.c.h.b16 %v385
        %v550 = vunpack.c.l.b16 %v386
        %v551 = vunpack.c.h.b16 %v386
        %v552 = vunpack.c.l.b16 %v387
        %v553 = vunpack.c.h.b16 %v387
        %v554 = vunpack.c.l.b16 %v388
        %v555 = vunpack.c.h.b16 %v388
        %v556 = vunpack.c.l.b16 %v389
        %v557 = vunpack.c.h.b16 %v389
        %v558 = vunpack.c.l.b16 %v390
        %v559 = vunpack.c.h.b16 %v390
        %v560 = vunpack.c.l.b16 %v391
        %v561 = vunpack.c.h.b16 %v391
        %v562 = vunpack.c.l.b16 %v392
        %v563 = vunpack.c.h.b16 %v392
        %v564 = vunpack.c.l.b16 %v393
        %v565 = vunpack.c.h.b16 %v393
        %v566 = vunpack.c.l.b16 %v394
        %v567 = vunpack.c.h.b16 %v394
        %v568 = vunpack.c.l.b16 %v395
        %v569 = vunpack.c.h.b16 %v395
        %v570 = vunpack.c.l.b16 %v396
        %v571 = vunpack.c.h.b16 %v396
        %v572 = vunpack.c.l.b16 %v397
        %v573 = vunpack.c.h.b16 %v397
        %v574 = vpack.c.b16 %v480, %v478
        %v575 = vpack.c.b16 %v481, %v479
        %v576 = vpack.c.b16 %v484, %v482
        %v577 = vpack.c.b16 %v485, %v483
        %v578 = vpack.c.b16 %v488, %v486
        %v579 = vpack.c.b16 %v489, %v487
        %v580 = vpack.c.b16 %v492, %v490
        %v581 = vpack.c.b16 %v493, %v491
        %v582 = vpack.c.b16 %v496, %v494
        %v583 = vpack.c.b16 %v497, %v495
        %v584 = vpack.c.b16 %v500, %v498
        %v585 = vpack.c.b16 %v501, %v499
        %v586 = vpack.c.b16 %v504, %v502
        %v587 = vpack.c.b16 %v505, %v503
        %v588 = vpack.c.b16 %v508, %v506
        %v589 = vpack.c.b16 %v509, %v507
        %v590 = vpack.c.b16 %v512, %v510
        %v591 = vpack.c.b16 %v513, %v511
        %v592 = vpack.c.b16 %v516, %v514
        %v593 = vpack.c.b16 %v517, %v515
        %v594 = vpack.c.b16 %v520, %v518
        %v595 = vpack.c.b16 %v521, %v519
        %v596 = vpack.c.b16 %v524, %v522
        %v597 = vpack.c.b16 %v525, %v523
        %v598 = vpack.c.b16 %v528, %v526
        %v599 = vpack.c.b16 %v529, %v527
        %v600 = vpack.c.b16 %v532, %v530
        %v601 = vpack.c.b16 %v533, %v531
        %v602 = vpack.c.b16 %v536, %v534
        %v603 = vpack.c.b16 %v537, %v535
        %v604 = vpack.c.b16 %v540, %v538
        %v605 = vpack.c.b16 %v541, %v539
        %v606 = vpack.c.b16 %v544, %v542
        %v607 = vpack.c.b16 %v545, %v543
        %v608 = vpack.c.b16 %v548, %v546
        %v609 = vpack.c.b16 %v549, %v547
        %v610 = vpack.c.b16 %v552, %v550
        %v611 = vpack.c.b16 %v553, %v551
        %v612 = vpack.c.b16 %v556, %v554
        %v613 = vpack.c.b16 %v557, %v555
        %v614 = vpack.c.b16 %v560, %v558
        %v615 = vpack.c.b16 %v561, %v559
        %v616 = vpack.c.b16 %v564, %v562
        %v617 = vpack.c.b16 %v565, %v563
        %v618 = vpack.c.b16 %v568, %v566
        %v619 = vpack.c.b16 %v569, %v567
        %v620 = vpack.c.b16 %v572, %v570
        %v621 = vpack.c.b16 %v573, %v571
        %670 = vmatprep.subr.bf16.mxu0 %v589
        %671 = vmatpush1.bf16.msra.mxu0 %v588
        %672 = vmatprep.subr.bf16.mxu0 %v587
        %673 = vmatpush1.bf16.msra.mxu0 %v586
        %674 = vmatprep.subr.bf16.mxu0 %v585
        %675 = vmatpush1.bf16.msra.mxu0 %v584
        %676 = vmatprep.subr.bf16.mxu0 %v583
        %677 = vmatpush1.bf16.msra.mxu0 %v582
        %678 = vmatprep.subr.bf16.mxu0 %v581
        %679 = vmatpush1.bf16.msra.mxu0 %v580
        %680 = vmatprep.subr.bf16.mxu0 %v579
        %681 = vmatpush1.bf16.msra.mxu0 %v578
        %682 = vmatprep.subr.bf16.mxu0 %v577
        %683 = vmatpush1.bf16.msra.mxu0 %v576
        %684 = vmatprep.subr.bf16.mxu0 %v575
        %685 = vmatpush1.bf16.msra.mxu0 %v574
        %686 = vmatprep.subr.bf16.mxu0 %v605
        %687 = vmatpush2.bf16.msra.mxu0 %v604
        %688 = vmatprep.subr.bf16.mxu0 %v603
        %689 = vmatpush2.bf16.msra.mxu0 %v602
        %690 = vmatprep.subr.bf16.mxu0 %v601
        %691 = vmatpush2.bf16.msra.mxu0 %v600
        %692 = vmatprep.subr.bf16.mxu0 %v599
        %693 = vmatpush2.bf16.msra.mxu0 %v598
        %694 = vmatprep.subr.bf16.mxu0 %v597
        %695 = vmatpush2.bf16.msra.mxu0 %v596
        %696 = vmatprep.subr.bf16.mxu0 %v595
        %697 = vmatpush2.bf16.msra.mxu0 %v594
        %698 = vmatprep.subr.bf16.mxu0 %v593
        %699 = vmatpush2.bf16.msra.mxu0 %v592
        %700 = vmatprep.subr.bf16.mxu0 %v591
        %701 = vmatpush2.bf16.msra.mxu0 %v590
        %702 = vmatprep.mubr.bf16.mxu0 %v419
        %703 = vmatmul.mubr.bf16.gmra.mxu0 %v418
        %v704 = vpop.f32.mrf.mxu0
        %v705 = vadd.f32 0.0, %v704
        %v706 = vpop.f32.mrf.mxu0
        %v707 = vadd.f32 0.0, %v706
        %v708 = vpop.f32.mrf.mxu0
        %v709 = vadd.f32 0.0, %v708
        %v710 = vpop.f32.mrf.mxu0
        %v711 = vadd.f32 0.0, %v710
        %712 = vmatprep.mubr.bf16.mxu0 %v422
        %713 = vmatmul.mubr.bf16.gmra.mxu0 %v421
        %v714 = vpop.f32.mrf.mxu0
        %v715 = vadd.f32 0.0, %v714
        %v716 = vpop.f32.mrf.mxu0
        %v717 = vadd.f32 0.0, %v716
        %v718 = vpop.f32.mrf.mxu0
        %v719 = vadd.f32 0.0, %v718
        %v720 = vpop.f32.mrf.mxu0
        %v721 = vadd.f32 0.0, %v720
        %722 = vdwg.mxu0
        %723 = vmatprep.subr.bf16.mxu0 %v621
        %724 = vmatpush1.bf16.msra.mxu0 %v620
        %725 = vmatprep.subr.bf16.mxu0 %v619
        %726 = vmatpush1.bf16.msra.mxu0 %v618
        %727 = vmatprep.subr.bf16.mxu0 %v617
        %728 = vmatpush1.bf16.msra.mxu0 %v616
        %729 = vmatprep.subr.bf16.mxu0 %v615
        %730 = vmatpush1.bf16.msra.mxu0 %v614
        %731 = vmatprep.subr.bf16.mxu0 %v613
        %732 = vmatpush1.bf16.msra.mxu0 %v612
        %733 = vmatprep.subr.bf16.mxu0 %v611
        %734 = vmatpush1.bf16.msra.mxu0 %v610
        %735 = vmatprep.subr.bf16.mxu0 %v609
        %736 = vmatpush1.bf16.msra.mxu0 %v608
        %737 = vmatprep.subr.bf16.mxu0 %v607
        %738 = vmatpush1.bf16.msra.mxu0 %v606
        %739 = vmatprep.subr.bf16.mxu0 0
        %740 = vmatpush2.bf16.msra.mxu0 0
        %741 = vmatprep.subr.bf16.mxu0 0
        %742 = vmatpush2.bf16.msra.mxu0 0
        %743 = vmatprep.subr.bf16.mxu0 0
        %744 = vmatpush2.bf16.msra.mxu0 0
        %745 = vmatprep.subr.bf16.mxu0 0
        %746 = vmatpush2.bf16.msra.mxu0 0
        %747 = vmatprep.subr.bf16.mxu0 0
        %748 = vmatpush2.bf16.msra.mxu0 0
        %749 = vmatprep.subr.bf16.mxu0 0
        %750 = vmatpush2.bf16.msra.mxu0 0
        %751 = vmatprep.subr.bf16.mxu0 0
        %752 = vmatpush2.bf16.msra.mxu0 0
        %753 = vmatprep.subr.bf16.mxu0 0
        %754 = vmatpush2.bf16.msra.mxu0 0
        %755 = vmatprep.mubr.bf16.mxu0 0
        %756 = vmatmul.mubr.bf16.gmra.mxu0 %v420
        %v757 = vpop.f32.mrf.mxu0
        %v758 = vadd.f32 %v705, %v757
        %v759 = vpop.f32.mrf.mxu0
        %v760 = vadd.f32 %v707, %v759
        %v761 = vpop.f32.mrf.mxu0
        %v762 = vadd.f32 %v709, %v761
        %v763 = vpop.f32.mrf.mxu0
        %v764 = vadd.f32 %v711, %v763
        %765 = vmatprep.mubr.bf16.mxu0 0
        %766 = vmatmul.mubr.bf16.gmra.mxu0 %v423
        %v767 = vpop.f32.mrf.mxu0
        %v768 = vadd.f32 %v715, %v767
        %v769 = vpop.f32.mrf.mxu0
        %v770 = vadd.f32 %v717, %v769
        %v771 = vpop.f32.mrf.mxu0
        %v772 = vadd.f32 %v719, %v771
        %v773 = vpop.f32.mrf.mxu0
        %v774 = vadd.f32 %v721, %v773
        %775 = vdwg.mxu0
        %v776 = vadd.f32 %v334, %v758
        %v777 = vadd.f32 %v335, %v760
        %v778 = vadd.f32 %v336, %v762
        %v779 = vadd.f32 %v337, %v764
        %v780 = vadd.f32 %v338, %v768
        %v781 = vadd.f32 %v339, %v770
        %v782 = vadd.f32 %v340, %v772
        %v783 = vadd.f32 %v341, %v774
        %784 = vst [vmem:[#allocation2] sm:$0xff] %v776
        %785 = vst [vmem:[#allocation2 + $0x8] sm:$0xff] %v777
        %786 = vst [vmem:[#allocation2 + $0x10] sm:$0xff] %v778
        %787 = vst [vmem:[#allocation2 + $0x18] sm:$0xff] %v779
        %788 = vst [vmem:[#allocation2 + $0x20] sm:$0xff] %v780
        %789 = vst [vmem:[#allocation2 + $0x28] sm:$0xff] %v781
        %790 = vst [vmem:[#allocation2 + $0x30] sm:$0xff] %v782
        %791 = vst [vmem:[#allocation2 + $0x38] sm:$0xff] %v783
        %p792 = scmp.eq.s32.totalorder %s24, 5
        // Predicated region
        $region67: #{alexnet_forward.12} parent=53 // pred_check
          %p793 = pneg %p792
        $region68: #{alexnet_forward.12} parent=53 // pred_check_branch
          %795 = sbr.rel (%p793) target = $region70
        $region69: #{alexnet_forward.12} parent=53 // pred_region
          %v796 = vld [vmem:[#allocation2] sm:$0xff]
          %v797 = vld [vmem:[#allocation2 + $0x8] sm:$0xff]
          %v798 = vld [vmem:[#allocation2 + $0x10] sm:$0xff]
          %v799 = vld [vmem:[#allocation2 + $0x18] sm:$0xff]
          %v800 = vld [vmem:[#allocation2 + $0x20] sm:$0xff]
          %v801 = vld [vmem:[#allocation2 + $0x28] sm:$0xff]
          %v802 = vld [vmem:[#allocation2 + $0x30] sm:$0xff]
          %v803 = vld [vmem:[#allocation2 + $0x38] sm:$0xff]
          %v804 = vld [vmem:[%s307] sm:$0x3]
          %v806 = vlaneseq
          %v807 = vshrl.u32 %v806, 7
          %v808 = vsub.s32 0, %v807
          %v809 = vrot.slane %v804, %v808
          %v810 = vlaneseq
          %v811 = vshrl.u32 %v810, 7
          %v812 = vsub.s32 1, %v811
          %v813 = vrot.slane %v804, %v812
          %v816 = vadd.f32 %v796, %v809
          %v817 = vadd.f32 %v797, %v813
          %v818 = vadd.f32 %v798, %v809
          %v819 = vadd.f32 %v799, %v813
          %v820 = vadd.f32 %v800, %v809
          %v821 = vadd.f32 %v801, %v813
          %v822 = vadd.f32 %v802, %v809
          %v823 = vadd.f32 %v803, %v813
          %v824 = vmax.f32 %v816, 0.0
          %v825 = vmax.f32 %v817, 0.0
          %v826 = vmax.f32 %v818, 0.0
          %v827 = vmax.f32 %v819, 0.0
          %v828 = vmax.f32 %v820, 0.0
          %v829 = vmax.f32 %v821, 0.0
          %v830 = vmax.f32 %v822, 0.0
          %v831 = vmax.f32 %v823, 0.0
          %v832 = vpack.c.bf16 %v826, %v824
          %v833 = vpack.c.bf16 %v827, %v825
          %v834 = vpack.c.bf16 %v830, %v828
          %v835 = vpack.c.bf16 %v831, %v829
          %v840 = vunpack.c.l.b16 %v832
          %v841 = vunpack.c.l.b16 %v833
          %v842 = vunpack.c.h.b16 %v832
          %v843 = vunpack.c.h.b16 %v833
          %v844 = vunpack.c.l.b16 %v834
          %v845 = vunpack.c.l.b16 %v835
          %v846 = vunpack.c.h.b16 %v834
          %v847 = vunpack.c.h.b16 %v835
          %v848 = vpack.c.b16 %v841, %v840
          %v849 = vpack.c.b16 %v843, %v842
          %v850 = vpack.c.b16 %v845, %v844
          %v851 = vpack.c.b16 %v847, %v846
          %856 = vst [vmem:[%s318] sm:$0xff] %v848
          %857 = vst [vmem:[%s318 + $0x8] sm:$0xff] %v849
          %858 = vst [vmem:[%s318 + $0x10] sm:$0xff] %v850
          %859 = vst [vmem:[%s318 + $0x18] sm:$0xff] %v851
        $region70: #{alexnet_forward.12} parent=53 // pred_fallthru
          _
        %s860 = smul.u32 4, %s22
        %s861 = smul.u32 2, %s23
        %p862 = scmp.lt.s32.totalorder %s860, 3
        %s863 = scalar_select %p862, %s860, 3
        %p864 = scmp.lt.s32.totalorder %s861, 1
        %s865 = scalar_select %p864, %s861, 1
        %s866 = smul.addr %s863, 2
        %s867 = sadd.s32 %s865, %s866
        %s868 = smul.addr %s867, 4
        %s869 = scalar_lea.vmem %s3, %s868
        // Predicated region
        $region71: #{alexnet_forward.12} parent=53 // pred_check
          %p870 = pneg %p138
        $region72: #{alexnet_forward.12} parent=53 // pred_check_branch
          %872 = sbr.rel (%p870) target = $region74
        $region73: #{alexnet_forward.12} parent=53 // pred_region
          %s873 = smul.u32 4, %s22
          %s874 = smul.u32 2, %s23
        $region74: #{alexnet_forward.12} parent=53 // pred_fallthru
          _
        // Predicated region
        $region75: #{alexnet_forward.12} parent=53 // pred_check
          %p875 = pneg %p138
        $region76: #{alexnet_forward.12} parent=53 // pred_check_branch
          %877 = sbr.rel (%p875) target = $region78
        $region77: #{alexnet_forward.12} parent=53 // pred_region
          %s878 = smul.u32 4, %s22
          %s879 = smul.u32 2, %s23
          %p880 = scmp.lt.s32.totalorder %s878, 3
          %s881 = scalar_select %p880, %s878, 3
          %p882 = scmp.lt.s32.totalorder %s879, 1
          %s883 = scalar_select %p882, %s879, 1
          %s884 = smul.addr %s881, 2
          %s885 = sadd.s32 %s883, %s884
          %s886 = smul.addr %s885, 4
          %s887 = scalar_lea.vmem %s3, %s886
        $region78: #{alexnet_forward.12} parent=53 // pred_fallthru
          _
      $region54: #{alexnet_forward.12} parent=5 // pred_fallthru
        _
      %p888 = scmp.le.s32.totalorder 2, %s12
      // Predicated region
      $region79: #{alexnet_forward.12} parent=5 // pred_check
        %p889 = pneg %p888
      $region80: #{alexnet_forward.12} parent=5 // pred_check_branch
        %891 = sbr.rel (%p889) target = $region82
      $region81: #{alexnet_forward.12} parent=5 // pred_region
        %s892 = ssub.s32 %s12, 2
      $region82: #{alexnet_forward.12} parent=5 // pred_fallthru
        _
    $region6: #{alexnet_forward.12} parent=1 // loop_footer
      %s16 = sadd.s32 1, %s12
    $region7: #{alexnet_forward.12} parent=1 // loop_footer_branch
      %11 = sbr.rel target = $region3
    $region8: #{alexnet_forward.12} parent=1 // loop_exit
      _
    %893 = vsyncpa [#allocation5], 1
    %s894 = scalar_lea.sflag [#allocation5], 1
    %895 = vsyncpa %s894, 1

// kernel: alexnet_forward.13
$region0: #{alexnet_forward.13}
  #allocation0 [shape = 'u32[]', space=smem, size = 0x4, offset = 0x4, fixed_abs, tag = 'smem constant byte address 0x4 - core index']
  #allocation1 [shape = 'u32[144,128]{1,0:T(1,128)}', space=vmem, size = 0x12000, scoped, tag = 'internal scratch']
  #allocation2 [shape = 'f32[16,512]{1,0:T(8,128)}', space=vmem, size = 0x8000, scoped, tag = 'scratch operand']
  %s0 = inlined_call_operand.vmem [shape: bf16[16,9216], index: 0, kind: input, shape index: {}]
  %s1 = inlined_call_operand.vmem [shape: bf16[9216,4096], index: 1, kind: input, shape index: {}]
  %s2 = inlined_call_operand.vmem [shape: f32[1,4096], index: 2, kind: input, shape index: {}]
  %s3 = inlined_call_operand.vmem [shape: bf16[16,4096], index: 3, kind: output, shape index: {}]
  %s4 = sld [smem:[#allocation0]]
  $region118: #{alexnet_forward.13} parent=0
    _
  %s6 = ssub.s32 1, %s4
  %s7 = scalar_select 0, %s6, %s4
  $region1: #{alexnet_forward.13} parent=0
    #allocation3 [shape = 'u8[32768]{0}', space=vmem, size = 0x8000, scoped, tag = 'input window, operand 0']
    #allocation4 [shape = 'u8[1048576]{0}', space=vmem, size = 0x100000, scoped, tag = 'input window, operand 1']
    #allocation5 [shape = 'u8[32768]{0}', space=vmem, size = 0x8000, scoped, tag = 'output window, operand 0']
    loop: start=0, step=1, limit=146
    $region2: #{alexnet_forward.13} parent=1 // loop_pre_header
      _
    $region3: #{alexnet_forward.13} parent=1 // loop_header
      %s9 = sphi 0, %s13
      %p10 = scmp.ge.s32.totalorder %s9, 146
      %s16 = sphi 0, %s35
      %s17 = sphi 0, %s31
      %s18 = sphi 0, %s27
      %s19 = sphi 0, %s16
      %s20 = sphi 0, %s17
      %s21 = sphi 0, %s18
      %s22 = sphi 0, %s19
      %s23 = sphi 0, %s20
      %s24 = sphi 0, %s21
      %s40 = sphi 0, %s42
      %s43 = sphi 0, %s40
      %s44 = sphi 0, %s43
      %s60 = sphi 0, %s44
      %s68 = sphi 0, %s70
      %s71 = sphi 0, %s68
      %s72 = sphi 0, %s71
      %s88 = sphi 0, %s72
      %s94 = sphi 0, %s96
      %s97 = sphi 0, %s94
      %s98 = sphi 0, %s97
      %s114 = sphi 0, %s98
      %s122 = sphi 0, %s124
      %s125 = sphi 0, %s122
      %s126 = sphi 0, %s125
      %s142 = sphi 0, %s126
    $region4: #{alexnet_forward.13} parent=1 // loop_header_branch
      %12 = sbr.rel (%p10) target = $region8
    $region5: #{alexnet_forward.13} parent=1 // loop_body
      %s14 = ssub.s32 %s9, 1
      %s15 = ssub.s32 %s9, 2
      %s25 = sadd.s32 1, %s18
      %p26 = scmp.ge.s32.totalorder %s25, 18
      %s27 = scalar_select %p26, 0, %s25
      %s28 = sadd.s32 1, %s17
      %s29 = scalar_select %p26, %s28, %s17
      %p30 = scmp.ge.s32.totalorder %s29, 8
      %s31 = scalar_select %p30, 0, %s29
      %s32 = sadd.s32 1, %s16
      %s33 = scalar_select %p30, %s32, %s16
      %p34 = scmp.ge.s32.totalorder %s33, 1
      %s35 = scalar_select %p34, 0, %s33
      %s36 = ssub.s32 %s16, %s35
      %s37 = ssub.s32 %s18, %s27
      %s38 = sor.u32 %s36, %s37
      %p39 = scmp.eq.s32.totalorder %s38, 0
      %s41 = sadd.s32 %s40, 1
      %s42 = scalar_select %p39, %s40, %s41
      %p45 = pneg %p39
      %p46 = scmp.eq.s32.totalorder %s9, 143
      %p47 = por %p45, %p46
      %p48 = scmp.ne.s32.totalorder %s40, %s43
      %p49 = scmp.eq.s32.totalorder %s9, 0
      %p50 = por %p48, %p49
      %p51 = scmp.ne.s32.totalorder %s40, %s43
      %p52 = scmp.eq.s32.totalorder %s14, 143
      %p53 = por %p51, %p52
      %p54 = scmp.ne.s32.totalorder %s43, %s44
      %p55 = scmp.eq.s32.totalorder %s14, 0
      %p56 = por %p54, %p55
      %p57 = scmp.ne.s32.totalorder %s43, %s44
      %p58 = scmp.eq.s32.totalorder %s15, 143
      %p59 = por %p57, %p58
      %p61 = scmp.ne.s32.totalorder %s44, %s60
      %p62 = scmp.eq.s32.totalorder %s15, 0
      %p63 = por %p61, %p62
      %s64 = ssub.s32 %s18, %s27
      %s65 = ssub.s32 %s17, %s31
      %s66 = sor.u32 %s64, %s65
      %p67 = scmp.eq.s32.totalorder %s66, 0
      %s69 = sadd.s32 %s68, 1
      %s70 = scalar_select %p67, %s68, %s69
      %p73 = pneg %p67
      %p74 = scmp.eq.s32.totalorder %s9, 143
      %p75 = por %p73, %p74
      %p76 = scmp.ne.s32.totalorder %s68, %s71
      %p77 = scmp.eq.s32.totalorder %s9, 0
      %p78 = por %p76, %p77
      %p79 = scmp.ne.s32.totalorder %s68, %s71
      %p80 = scmp.eq.s32.totalorder %s14, 143
      %p81 = por %p79, %p80
      %p82 = scmp.ne.s32.totalorder %s71, %s72
      %p83 = scmp.eq.s32.totalorder %s14, 0
      %p84 = por %p82, %p83
      %p85 = scmp.ne.s32.totalorder %s71, %s72
      %p86 = scmp.eq.s32.totalorder %s15, 143
      %p87 = por %p85, %p86
      %p89 = scmp.ne.s32.totalorder %s72, %s88
      %p90 = scmp.eq.s32.totalorder %s15, 0
      %p91 = por %p89, %p90
      %s92 = ssub.s32 %s17, %s31
      %p93 = scmp.eq.s32.totalorder %s92, 0
      %s95 = sadd.s32 %s94, 1
      %s96 = scalar_select %p93, %s94, %s95
      %p99 = pneg %p93
      %p100 = scmp.eq.s32.totalorder %s9, 143
      %p101 = por %p99, %p100
      %p102 = scmp.ne.s32.totalorder %s94, %s97
      %p103 = scmp.eq.s32.totalorder %s9, 0
      %p104 = por %p102, %p103
      %p105 = scmp.ne.s32.totalorder %s94, %s97
      %p106 = scmp.eq.s32.totalorder %s14, 143
      %p107 = por %p105, %p106
      %p108 = scmp.ne.s32.totalorder %s97, %s98
      %p109 = scmp.eq.s32.totalorder %s14, 0
      %p110 = por %p108, %p109
      %p111 = scmp.ne.s32.totalorder %s97, %s98
      %p112 = scmp.eq.s32.totalorder %s15, 143
      %p113 = por %p111, %p112
      %p115 = scmp.ne.s32.totalorder %s98, %s114
      %p116 = scmp.eq.s32.totalorder %s15, 0
      %p117 = por %p115, %p116
      %s118 = ssub.s32 %s16, %s35
      %s119 = ssub.s32 %s17, %s31
      %s120 = sor.u32 %s118, %s119
      %p121 = scmp.eq.s32.totalorder %s120, 0
      %s123 = sadd.s32 %s122, 1
      %s124 = scalar_select %p121, %s122, %s123
      %p127 = pneg %p121
      %p128 = scmp.eq.s32.totalorder %s9, 143
      %p129 = por %p127, %p128
      %p130 = scmp.ne.s32.totalorder %s122, %s125
      %p131 = scmp.eq.s32.totalorder %s9, 0
      %p132 = por %p130, %p131
      %p133 = scmp.ne.s32.totalorder %s122, %s125
      %p134 = scmp.eq.s32.totalorder %s14, 143
      %p135 = por %p133, %p134
      %p136 = scmp.ne.s32.totalorder %s125, %s126
      %p137 = scmp.eq.s32.totalorder %s14, 0
      %p138 = por %p136, %p137
      %p139 = scmp.ne.s32.totalorder %s125, %s126
      %p140 = scmp.eq.s32.totalorder %s15, 143
      %p141 = por %p139, %p140
      %p143 = scmp.ne.s32.totalorder %s126, %s142
      %p144 = scmp.eq.s32.totalorder %s15, 0
      %p145 = por %p143, %p144
      %p146 = scmp.le.s32.totalorder 1, %s9
      %p147 = scmp.lt.s32.totalorder %s9, 145
      %p148 = pnand %p146, %p147
      %p149 = pneg %p148
      // Predicated region
      $region9: #{alexnet_forward.13} parent=5 // pred_check
        _
      $region10: #{alexnet_forward.13} parent=5 // pred_check_branch
        %151 = sbr.rel (%p148) target = $region12
      $region11: #{alexnet_forward.13} parent=5 // pred_region
        %s152 = ssub.s32 %s9, 1
      $region12: #{alexnet_forward.13} parent=5 // pred_fallthru
        _
      %p153 = scmp.lt.s32.totalorder %s9, 144
      // Predicated region
      $region13: #{alexnet_forward.13} parent=5 // pred_check
        %p154 = pneg %p153
      $region14: #{alexnet_forward.13} parent=5 // pred_check_branch
        %156 = sbr.rel (%p154) target = $region16
      $region15: #{alexnet_forward.13} parent=5 // pred_region
        // Predicated region
        $region17: #{alexnet_forward.13} parent=15 // pred_check
          %p157 = pneg %p50
        $region18: #{alexnet_forward.13} parent=15 // pred_check_branch
          %159 = sbr.rel (%p157) target = $region20
        $region19: #{alexnet_forward.13} parent=15 // pred_region
          %s160 = sand.u32 %s40, 1
          %s161 = sand.u32 %s40, 1
          %s162 = smul.addr %s161, 32
          %s163 = scalar_lea.vmem [#allocation3], %s162
          %s164 = smul.u32 2, %s16
          %s165 = smul.u32 4, %s18
          %s166 = smul.addr %s164, 72
          %s167 = sadd.s32 %s165, %s166
          %s168 = smul.addr %s167, 4
          %s169 = scalar_lea.vmem %s0, %s168
          // Predicated region
          $region21: #{alexnet_forward.13} parent=19 // pred_check
            _
          $region22: #{alexnet_forward.13} parent=19 // pred_check_branch
            %171 = sbr.rel (0) target = $region24
          $region23: #{alexnet_forward.13} parent=19 // pred_region
            // Predicated region
            $region25: #{alexnet_forward.13} parent=23 // pred_check
              _
            $region26: #{alexnet_forward.13} parent=23 // pred_check_branch
              %173 = sbr.rel (0) target = $region28
            $region27: #{alexnet_forward.13} parent=23 // pred_region
              loop: start=0, step=1, limit=1
              $region29: #{alexnet_forward.13} parent=27 // loop_pre_header
                _
              $region30: #{alexnet_forward.13} parent=27 // loop_header
                %s175 = sphi 0, %s179
                %p176 = scmp.ge.s32.totalorder %s175, 1
                %s180 = sphi %s169, %s169
                %s181 = sphi %s163, %s163
              $region31: #{alexnet_forward.13} parent=27 // loop_header_branch
                %178 = sbr.rel (%p176) target = $region35
              $region32: #{alexnet_forward.13} parent=27 // loop_body
                %v182 = vld [vmem:[%s180] sm:$0xff]
                %183 = vst [vmem:[%s181] sm:$0xff] %v182
                %v184 = vld [vmem:[%s180 + $0x8] sm:$0xff]
                %185 = vst [vmem:[%s181 + $0x8] sm:$0xff] %v184
                %v186 = vld [vmem:[%s180 + $0x120] sm:$0xff]
                %187 = vst [vmem:[%s181 + $0x10] sm:$0xff] %v186
                %v188 = vld [vmem:[%s180 + $0x128] sm:$0xff]
                %189 = vst [vmem:[%s181 + $0x18] sm:$0xff] %v188
              $region33: #{alexnet_forward.13} parent=27 // loop_footer
                %s179 = sadd.s32 1, %s175
              $region34: #{alexnet_forward.13} parent=27 // loop_footer_branch
                %174 = sbr.rel target = $region30
              $region35: #{alexnet_forward.13} parent=27 // loop_exit
                _
            $region28: #{alexnet_forward.13} parent=23 // pred_fallthru
              _
            // Predicated region
            $region36: #{alexnet_forward.13} parent=23 // pred_check
              _
            $region37: #{alexnet_forward.13} parent=23 // pred_check_branch
              %191 = sbr.rel target = $region39
            $region38: #{alexnet_forward.13} parent=23 // pred_region
              _
            $region39: #{alexnet_forward.13} parent=23 // pred_fallthru
              _
          $region24: #{alexnet_forward.13} parent=19 // pred_fallthru
            _
          %192 = vnop
        $region20: #{alexnet_forward.13} parent=15 // pred_fallthru
          _
        // Predicated region
        $region40: #{alexnet_forward.13} parent=15 // pred_check
          %p193 = pneg %p78
        $region41: #{alexnet_forward.13} parent=15 // pred_check_branch
          %195 = sbr.rel (%p193) target = $region43
        $region42: #{alexnet_forward.13} parent=15 // pred_region
          %s196 = sand.u32 %s68, 1
          %s197 = sand.u32 %s68, 1
          %s198 = smul.addr %s197, 1024
          %s199 = scalar_lea.vmem [#allocation4], %s198
          %s200 = smul.u32 64, %s18
          %s201 = smul.u32 4, %s17
          %s202 = smul.addr %s200, 32
          %s203 = sadd.s32 %s201, %s202
          %s204 = smul.addr %s203, 4
          %s205 = scalar_lea.vmem %s1, %s204
          // Predicated region
          $region44: #{alexnet_forward.13} parent=42 // pred_check
            _
          $region45: #{alexnet_forward.13} parent=42 // pred_check_branch
            %207 = sbr.rel (0) target = $region47
          $region46: #{alexnet_forward.13} parent=42 // pred_region
            // Predicated region
            $region48: #{alexnet_forward.13} parent=46 // pred_check
              _
            $region49: #{alexnet_forward.13} parent=46 // pred_check_branch
              %209 = sbr.rel (0) target = $region51
            $region50: #{alexnet_forward.13} parent=46 // pred_region
              loop: start=0, step=1, limit=1
              $region52: #{alexnet_forward.13} parent=50 // loop_pre_header
                _
              $region53: #{alexnet_forward.13} parent=50 // loop_header
                %s211 = sphi 0, %s215
                %p212 = scmp.ge.s32.totalorder %s211, 1
                %s216 = sphi %s205, %s205
                %s217 = sphi %s199, %s199
              $region54: #{alexnet_forward.13} parent=50 // loop_header_branch
                %214 = sbr.rel (%p212) target = $region58
              $region55: #{alexnet_forward.13} parent=50 // loop_body
                %v218 = vld [vmem:[%s216] sm:$0xff]
                %219 = vst [vmem:[%s217] sm:$0xff] %v218
                %v220 = vld [vmem:[%s216 + $0x8] sm:$0xff]
                %221 = vst [vmem:[%s217 + $0x8] sm:$0xff] %v220
                %v222 = vld [vmem:[%s216 + $0x80] sm:$0xff]
                %223 = vst [vmem:[%s217 + $0x10] sm:$0xff] %v222
                %v224 = vld [vmem:[%s216 + $0x88] sm:$0xff]
                %225 = vst [vmem:[%s217 + $0x18] sm:$0xff] %v224
                %v226 = vld [vmem:[%s216 + $0x100] sm:$0xff]
                %227 = vst [vmem:[%s217 + $0x20] sm:$0xff] %v226
                %v228 = vld [vmem:[%s216 + $0x108] sm:$0xff]
                %229 = vst [vmem:[%s217 + $0x28] sm:$0xff] %v228
                %v230 = vld [vmem:[%s216 + $0x180] sm:$0xff]
                %231 = vst [vmem:[%s217 + $0x30] sm:$0xff] %v230
                %v232 = vld [vmem:[%s216 + $0x188] sm:$0xff]
                %233 = vst [vmem:[%s217 + $0x38] sm:$0xff] %v232
                %v234 = vld [vmem:[%s216 + $0x200] sm:$0xff]
                %235 = vst [vmem:[%s217 + $0x40] sm:$0xff] %v234
                %v236 = vld [vmem:[%s216 + $0x208] sm:$0xff]
                %237 = vst [vmem:[%s217 + $0x48] sm:$0xff] %v236
                %v238 = vld [vmem:[%s216 + $0x280] sm:$0xff]
                %239 = vst [vmem:[%s217 + $0x50] sm:$0xff] %v238
                %v240 = vld [vmem:[%s216 + $0x288] sm:$0xff]
                %241 = vst [vmem:[%s217 + $0x58] sm:$0xff] %v240
                %v242 = vld [vmem:[%s216 + $0x300] sm:$0xff]
                %243 = vst [vmem:[%s217 + $0x60] sm:$0xff] %v242
                %v244 = vld [vmem:[%s216 + $0x308] sm:$0xff]
                %245 = vst [vmem:[%s217 + $0x68] sm:$0xff] %v244
                %v246 = vld [vmem:[%s216 + $0x380] sm:$0xff]
                %247 = vst [vmem:[%s217 + $0x70] sm:$0xff] %v246
                %v248 = vld [vmem:[%s216 + $0x388] sm:$0xff]
                %249 = vst [vmem:[%s217 + $0x78] sm:$0xff] %v248
                %v250 = vld [vmem:[%s216 + $0x400] sm:$0xff]
                %251 = vst [vmem:[%s217 + $0x80] sm:$0xff] %v250
                %v252 = vld [vmem:[%s216 + $0x408] sm:$0xff]
                %253 = vst [vmem:[%s217 + $0x88] sm:$0xff] %v252
                %v254 = vld [vmem:[%s216 + $0x480] sm:$0xff]
                %255 = vst [vmem:[%s217 + $0x90] sm:$0xff] %v254
                %v256 = vld [vmem:[%s216 + $0x488] sm:$0xff]
                %257 = vst [vmem:[%s217 + $0x98] sm:$0xff] %v256
                %v258 = vld [vmem:[%s216 + $0x500] sm:$0xff]
                %259 = vst [vmem:[%s217 + $0xa0] sm:$0xff] %v258
                %v260 = vld [vmem:[%s216 + $0x508] sm:$0xff]
                %261 = vst [vmem:[%s217 + $0xa8] sm:$0xff] %v260
                %v262 = vld [vmem:[%s216 + $0x580] sm:$0xff]
                %263 = vst [vmem:[%s217 + $0xb0] sm:$0xff] %v262
                %v264 = vld [vmem:[%s216 + $0x588] sm:$0xff]
                %265 = vst [vmem:[%s217 + $0xb8] sm:$0xff] %v264
                %v266 = vld [vmem:[%s216 + $0x600] sm:$0xff]
                %267 = vst [vmem:[%s217 + $0xc0] sm:$0xff] %v266
                %v268 = vld [vmem:[%s216 + $0x608] sm:$0xff]
                %269 = vst [vmem:[%s217 + $0xc8] sm:$0xff] %v268
                %v270 = vld [vmem:[%s216 + $0x680] sm:$0xff]
                %271 = vst [vmem:[%s217 + $0xd0] sm:$0xff] %v270
                %v272 = vld [vmem:[%s216 + $0x688] sm:$0xff]
                %273 = vst [vmem:[%s217 + $0xd8] sm:$0xff] %v272
                %v274 = vld [vmem:[%s216 + $0x700] sm:$0xff]
                %275 = vst [vmem:[%s217 + $0xe0] sm:$0xff] %v274
                %v276 = vld [vmem:[%s216 + $0x708] sm:$0xff]
                %277 = vst [vmem:[%s217 + $0xe8] sm:$0xff] %v276
                %v278 = vld [vmem:[%s216 + $0x780] sm:$0xff]
                %279 = vst [vmem:[%s217 + $0xf0] sm:$0xff] %v278
                %v280 = vld [vmem:[%s216 + $0x788] sm:$0xff]
                %281 = vst [vmem:[%s217 + $0xf8] sm:$0xff] %v280
                %v282 = vld [vmem:[%s216 + $0x800] sm:$0xff]
                %283 = vst [vmem:[%s217 + $0x100] sm:$0xff] %v282
                %v284 = vld [vmem:[%s216 + $0x808] sm:$0xff]
                %285 = vst [vmem:[%s217 + $0x108] sm:$0xff] %v284
                %v286 = vld [vmem:[%s216 + $0x880] sm:$0xff]
                %287 = vst [vmem:[%s217 + $0x110] sm:$0xff] %v286
                %v288 = vld [vmem:[%s216 + $0x888] sm:$0xff]
                %289 = vst [vmem:[%s217 + $0x118] sm:$0xff] %v288
                %v290 = vld [vmem:[%s216 + $0x900] sm:$0xff]
                %291 = vst [vmem:[%s217 + $0x120] sm:$0xff] %v290
                %v292 = vld [vmem:[%s216 + $0x908] sm:$0xff]
                %293 = vst [vmem:[%s217 + $0x128] sm:$0xff] %v292
                %v294 = vld [vmem:[%s216 + $0x980] sm:$0xff]
                %295 = vst [vmem:[%s217 + $0x130] sm:$0xff] %v294
                %v296 = vld [vmem:[%s216 + $0x988] sm:$0xff]
                %297 = vst [vmem:[%s217 + $0x138] sm:$0xff] %v296
                %v298 = vld [vmem:[%s216 + $0xa00] sm:$0xff]
                %299 = vst [vmem:[%s217 + $0x140] sm:$0xff] %v298
                %v300 = vld [vmem:[%s216 + $0xa08] sm:$0xff]
                %301 = vst [vmem:[%s217 + $0x148] sm:$0xff] %v300
                %v302 = vld [vmem:[%s216 + $0xa80] sm:$0xff]
                %303 = vst [vmem:[%s217 + $0x150] sm:$0xff] %v302
                %v304 = vld [vmem:[%s216 + $0xa88] sm:$0xff]
                %305 = vst [vmem:[%s217 + $0x158] sm:$0xff] %v304
                %v306 = vld [vmem:[%s216 + $0xb00] sm:$0xff]
                %307 = vst [vmem:[%s217 + $0x160] sm:$0xff] %v306
                %v308 = vld [vmem:[%s216 + $0xb08] sm:$0xff]
                %309 = vst [vmem:[%s217 + $0x168] sm:$0xff] %v308
                %v310 = vld [vmem:[%s216 + $0xb80] sm:$0xff]
                %311 = vst [vmem:[%s217 + $0x170] sm:$0xff] %v310
                %v312 = vld [vmem:[%s216 + $0xb88] sm:$0xff]
                %313 = vst [vmem:[%s217 + $0x178] sm:$0xff] %v312
                %v314 = vld [vmem:[%s216 + $0xc00] sm:$0xff]
                %315 = vst [vmem:[%s217 + $0x180] sm:$0xff] %v314
                %v316 = vld [vmem:[%s216 + $0xc08] sm:$0xff]
                %317 = vst [vmem:[%s217 + $0x188] sm:$0xff] %v316
                %v318 = vld [vmem:[%s216 + $0xc80] sm:$0xff]
                %319 = vst [vmem:[%s217 + $0x190] sm:$0xff] %v318
                %v320 = vld [vmem:[%s216 + $0xc88] sm:$0xff]
                %321 = vst [vmem:[%s217 + $0x198] sm:$0xff] %v320
                %v322 = vld [vmem:[%s216 + $0xd00] sm:$0xff]
                %323 = vst [vmem:[%s217 + $0x1a0] sm:$0xff] %v322
                %v324 = vld [vmem:[%s216 + $0xd08] sm:$0xff]
                %325 = vst [vmem:[%s217 + $0x1a8] sm:$0xff] %v324
                %v326 = vld [vmem:[%s216 + $0xd80] sm:$0xff]
                %327 = vst [vmem:[%s217 + $0x1b0] sm:$0xff] %v326
                %v328 = vld [vmem:[%s216 + $0xd88] sm:$0xff]
                %329 = vst [vmem:[%s217 + $0x1b8] sm:$0xff] %v328
                %v330 = vld [vmem:[%s216 + $0xe00] sm:$0xff]
                %331 = vst [vmem:[%s217 + $0x1c0] sm:$0xff] %v330
                %v332 = vld [vmem:[%s216 + $0xe08] sm:$0xff]
                %333 = vst [vmem:[%s217 + $0x1c8] sm:$0xff] %v332
                %v334 = vld [vmem:[%s216 + $0xe80] sm:$0xff]
                %335 = vst [vmem:[%s217 + $0x1d0] sm:$0xff] %v334
                %v336 = vld [vmem:[%s216 + $0xe88] sm:$0xff]
                %337 = vst [vmem:[%s217 + $0x1d8] sm:$0xff] %v336
                %v338 = vld [vmem:[%s216 + $0xf00] sm:$0xff]
                %339 = vst [vmem:[%s217 + $0x1e0] sm:$0xff] %v338
                %v340 = vld [vmem:[%s216 + $0xf08] sm:$0xff]
                %341 = vst [vmem:[%s217 + $0x1e8] sm:$0xff] %v340
                %v342 = vld [vmem:[%s216 + $0xf80] sm:$0xff]
                %343 = vst [vmem:[%s217 + $0x1f0] sm:$0xff] %v342
                %v344 = vld [vmem:[%s216 + $0xf88] sm:$0xff]
                %345 = vst [vmem:[%s217 + $0x1f8] sm:$0xff] %v344
                %v346 = vld [vmem:[%s216 + $0x1000] sm:$0xff]
                %347 = vst [vmem:[%s217 + $0x200] sm:$0xff] %v346
                %v348 = vld [vmem:[%s216 + $0x1008] sm:$0xff]
                %349 = vst [vmem:[%s217 + $0x208] sm:$0xff] %v348
                %v350 = vld [vmem:[%s216 + $0x1080] sm:$0xff]
                %351 = vst [vmem:[%s217 + $0x210] sm:$0xff] %v350
                %v352 = vld [vmem:[%s216 + $0x1088] sm:$0xff]
                %353 = vst [vmem:[%s217 + $0x218] sm:$0xff] %v352
                %v354 = vld [vmem:[%s216 + $0x1100] sm:$0xff]
                %355 = vst [vmem:[%s217 + $0x220] sm:$0xff] %v354
                %v356 = vld [vmem:[%s216 + $0x1108] sm:$0xff]
                %357 = vst [vmem:[%s217 + $0x228] sm:$0xff] %v356
                %v358 = vld [vmem:[%s216 + $0x1180] sm:$0xff]
                %359 = vst [vmem:[%s217 + $0x230] sm:$0xff] %v358
                %v360 = vld [vmem:[%s216 + $0x1188] sm:$0xff]
                %361 = vst [vmem:[%s217 + $0x238] sm:$0xff] %v360
                %v362 = vld [vmem:[%s216 + $0x1200] sm:$0xff]
                %363 = vst [vmem:[%s217 + $0x240] sm:$0xff] %v362
                %v364 = vld [vmem:[%s216 + $0x1208] sm:$0xff]
                %365 = vst [vmem:[%s217 + $0x248] sm:$0xff] %v364
                %v366 = vld [vmem:[%s216 + $0x1280] sm:$0xff]
                %367 = vst [vmem:[%s217 + $0x250] sm:$0xff] %v366
                %v368 = vld [vmem:[%s216 + $0x1288] sm:$0xff]
                %369 = vst [vmem:[%s217 + $0x258] sm:$0xff] %v368
                %v370 = vld [vmem:[%s216 + $0x1300] sm:$0xff]
                %371 = vst [vmem:[%s217 + $0x260] sm:$0xff] %v370
                %v372 = vld [vmem:[%s216 + $0x1308] sm:$0xff]
                %373 = vst [vmem:[%s217 + $0x268] sm:$0xff] %v372
                %v374 = vld [vmem:[%s216 + $0x1380] sm:$0xff]
                %375 = vst [vmem:[%s217 + $0x270] sm:$0xff] %v374
                %v376 = vld [vmem:[%s216 + $0x1388] sm:$0xff]
                %377 = vst [vmem:[%s217 + $0x278] sm:$0xff] %v376
                %v378 = vld [vmem:[%s216 + $0x1400] sm:$0xff]
                %379 = vst [vmem:[%s217 + $0x280] sm:$0xff] %v378
                %v380 = vld [vmem:[%s216 + $0x1408] sm:$0xff]
                %381 = vst [vmem:[%s217 + $0x288] sm:$0xff] %v380
                %v382 = vld [vmem:[%s216 + $0x1480] sm:$0xff]
                %383 = vst [vmem:[%s217 + $0x290] sm:$0xff] %v382
                %v384 = vld [vmem:[%s216 + $0x1488] sm:$0xff]
                %385 = vst [vmem:[%s217 + $0x298] sm:$0xff] %v384
                %v386 = vld [vmem:[%s216 + $0x1500] sm:$0xff]
                %387 = vst [vmem:[%s217 + $0x2a0] sm:$0xff] %v386
                %v388 = vld [vmem:[%s216 + $0x1508] sm:$0xff]
                %389 = vst [vmem:[%s217 + $0x2a8] sm:$0xff] %v388
                %v390 = vld [vmem:[%s216 + $0x1580] sm:$0xff]
                %391 = vst [vmem:[%s217 + $0x2b0] sm:$0xff] %v390
                %v392 = vld [vmem:[%s216 + $0x1588] sm:$0xff]
                %393 = vst [vmem:[%s217 + $0x2b8] sm:$0xff] %v392
                %v394 = vld [vmem:[%s216 + $0x1600] sm:$0xff]
                %395 = vst [vmem:[%s217 + $0x2c0] sm:$0xff] %v394
                %v396 = vld [vmem:[%s216 + $0x1608] sm:$0xff]
                %397 = vst [vmem:[%s217 + $0x2c8] sm:$0xff] %v396
                %v398 = vld [vmem:[%s216 + $0x1680] sm:$0xff]
                %399 = vst [vmem:[%s217 + $0x2d0] sm:$0xff] %v398
                %v400 = vld [vmem:[%s216 + $0x1688] sm:$0xff]
                %401 = vst [vmem:[%s217 + $0x2d8] sm:$0xff] %v400
                %v402 = vld [vmem:[%s216 + $0x1700] sm:$0xff]
                %403 = vst [vmem:[%s217 + $0x2e0] sm:$0xff] %v402
                %v404 = vld [vmem:[%s216 + $0x1708] sm:$0xff]
                %405 = vst [vmem:[%s217 + $0x2e8] sm:$0xff] %v404
                %v406 = vld [vmem:[%s216 + $0x1780] sm:$0xff]
                %407 = vst [vmem:[%s217 + $0x2f0] sm:$0xff] %v406
                %v408 = vld [vmem:[%s216 + $0x1788] sm:$0xff]
                %409 = vst [vmem:[%s217 + $0x2f8] sm:$0xff] %v408
                %v410 = vld [vmem:[%s216 + $0x1800] sm:$0xff]
                %411 = vst [vmem:[%s217 + $0x300] sm:$0xff] %v410
                %v412 = vld [vmem:[%s216 + $0x1808] sm:$0xff]
                %413 = vst [vmem:[%s217 + $0x308] sm:$0xff] %v412
                %v414 = vld [vmem:[%s216 + $0x1880] sm:$0xff]
                %415 = vst [vmem:[%s217 + $0x310] sm:$0xff] %v414
                %v416 = vld [vmem:[%s216 + $0x1888] sm:$0xff]
                %417 = vst [vmem:[%s217 + $0x318] sm:$0xff] %v416
                %v418 = vld [vmem:[%s216 + $0x1900] sm:$0xff]
                %419 = vst [vmem:[%s217 + $0x320] sm:$0xff] %v418
                %v420 = vld [vmem:[%s216 + $0x1908] sm:$0xff]
                %421 = vst [vmem:[%s217 + $0x328] sm:$0xff] %v420
                %v422 = vld [vmem:[%s216 + $0x1980] sm:$0xff]
                %423 = vst [vmem:[%s217 + $0x330] sm:$0xff] %v422
                %v424 = vld [vmem:[%s216 + $0x1988] sm:$0xff]
                %425 = vst [vmem:[%s217 + $0x338] sm:$0xff] %v424
                %v426 = vld [vmem:[%s216 + $0x1a00] sm:$0xff]
                %427 = vst [vmem:[%s217 + $0x340] sm:$0xff] %v426
                %v428 = vld [vmem:[%s216 + $0x1a08] sm:$0xff]
                %429 = vst [vmem:[%s217 + $0x348] sm:$0xff] %v428
                %v430 = vld [vmem:[%s216 + $0x1a80] sm:$0xff]
                %431 = vst [vmem:[%s217 + $0x350] sm:$0xff] %v430
                %v432 = vld [vmem:[%s216 + $0x1a88] sm:$0xff]
                %433 = vst [vmem:[%s217 + $0x358] sm:$0xff] %v432
                %v434 = vld [vmem:[%s216 + $0x1b00] sm:$0xff]
                %435 = vst [vmem:[%s217 + $0x360] sm:$0xff] %v434
                %v436 = vld [vmem:[%s216 + $0x1b08] sm:$0xff]
                %437 = vst [vmem:[%s217 + $0x368] sm:$0xff] %v436
                %v438 = vld [vmem:[%s216 + $0x1b80] sm:$0xff]
                %439 = vst [vmem:[%s217 + $0x370] sm:$0xff] %v438
                %v440 = vld [vmem:[%s216 + $0x1b88] sm:$0xff]
                %441 = vst [vmem:[%s217 + $0x378] sm:$0xff] %v440
                %v442 = vld [vmem:[%s216 + $0x1c00] sm:$0xff]
                %443 = vst [vmem:[%s217 + $0x380] sm:$0xff] %v442
                %v444 = vld [vmem:[%s216 + $0x1c08] sm:$0xff]
                %445 = vst [vmem:[%s217 + $0x388] sm:$0xff] %v444
                %v446 = vld [vmem:[%s216 + $0x1c80] sm:$0xff]
                %447 = vst [vmem:[%s217 + $0x390] sm:$0xff] %v446
                %v448 = vld [vmem:[%s216 + $0x1c88] sm:$0xff]
                %449 = vst [vmem:[%s217 + $0x398] sm:$0xff] %v448
                %v450 = vld [vmem:[%s216 + $0x1d00] sm:$0xff]
                %451 = vst [vmem:[%s217 + $0x3a0] sm:$0xff] %v450
                %v452 = vld [vmem:[%s216 + $0x1d08] sm:$0xff]
                %453 = vst [vmem:[%s217 + $0x3a8] sm:$0xff] %v452
                %v454 = vld [vmem:[%s216 + $0x1d80] sm:$0xff]
                %455 = vst [vmem:[%s217 + $0x3b0] sm:$0xff] %v454
                %v456 = vld [vmem:[%s216 + $0x1d88] sm:$0xff]
                %457 = vst [vmem:[%s217 + $0x3b8] sm:$0xff] %v456
                %v458 = vld [vmem:[%s216 + $0x1e00] sm:$0xff]
                %459 = vst [vmem:[%s217 + $0x3c0] sm:$0xff] %v458
                %v460 = vld [vmem:[%s216 + $0x1e08] sm:$0xff]
                %461 = vst [vmem:[%s217 + $0x3c8] sm:$0xff] %v460
                %v462 = vld [vmem:[%s216 + $0x1e80] sm:$0xff]
                %463 = vst [vmem:[%s217 + $0x3d0] sm:$0xff] %v462
                %v464 = vld [vmem:[%s216 + $0x1e88] sm:$0xff]
                %465 = vst [vmem:[%s217 + $0x3d8] sm:$0xff] %v464
                %v466 = vld [vmem:[%s216 + $0x1f00] sm:$0xff]
                %467 = vst [vmem:[%s217 + $0x3e0] sm:$0xff] %v466
                %v468 = vld [vmem:[%s216 + $0x1f08] sm:$0xff]
                %469 = vst [vmem:[%s217 + $0x3e8] sm:$0xff] %v468
                %v470 = vld [vmem:[%s216 + $0x1f80] sm:$0xff]
                %471 = vst [vmem:[%s217 + $0x3f0] sm:$0xff] %v470
                %v472 = vld [vmem:[%s216 + $0x1f88] sm:$0xff]
                %473 = vst [vmem:[%s217 + $0x3f8] sm:$0xff] %v472
              $region56: #{alexnet_forward.13} parent=50 // loop_footer
                %s215 = sadd.s32 1, %s211
              $region57: #{alexnet_forward.13} parent=50 // loop_footer_branch
                %210 = sbr.rel target = $region53
              $region58: #{alexnet_forward.13} parent=50 // loop_exit
                _
            $region51: #{alexnet_forward.13} parent=46 // pred_fallthru
              _
            // Predicated region
            $region59: #{alexnet_forward.13} parent=46 // pred_check
              _
            $region60: #{alexnet_forward.13} parent=46 // pred_check_branch
              %475 = sbr.rel target = $region62
            $region61: #{alexnet_forward.13} parent=46 // pred_region
              _
            $region62: #{alexnet_forward.13} parent=46 // pred_fallthru
              _
          $region47: #{alexnet_forward.13} parent=42 // pred_fallthru
            _
          %476 = vnop
        $region43: #{alexnet_forward.13} parent=15 // pred_fallthru
          _
        // Predicated region
        $region63: #{alexnet_forward.13} parent=15 // pred_check
          %p477 = pneg %p104
        $region64: #{alexnet_forward.13} parent=15 // pred_check_branch
          %479 = sbr.rel (%p477) target = $region66
        $region65: #{alexnet_forward.13} parent=15 // pred_region
          %s480 = smul.u32 4, %s17
          %p481 = scmp.lt.s32.totalorder %s480, 31
          %s482 = scalar_select %p481, %s480, 31
          %s483 = scalar_lea.vmem %s2, %s482
          %s484 = smul.u32 4, %s17
        $region66: #{alexnet_forward.13} parent=15 // pred_fallthru
          _
      $region16: #{alexnet_forward.13} parent=5 // pred_fallthru
        _
      %p485 = scmp.le.s32.totalorder 1, %s9
      %p486 = scmp.lt.s32.totalorder %s9, 145
      %p487 = pnand %p485, %p486
      %p488 = pneg %p487
      // Predicated region
      $region67: #{alexnet_forward.13} parent=5 // pred_check
        _
      $region68: #{alexnet_forward.13} parent=5 // pred_check_branch
        %490 = sbr.rel (%p487) target = $region70
      $region69: #{alexnet_forward.13} parent=5 // pred_region
        %s491 = ssub.s32 %s9, 1
        %s492 = sand.u32 %s43, 1
        %s493 = sand.u32 %s43, 1
        %s494 = smul.addr %s493, 32
        %s495 = scalar_lea.vmem [#allocation3], %s494
        // Predicated region
        $region71: #{alexnet_forward.13} parent=69 // pred_check
          %p496 = pneg %p56
        $region72: #{alexnet_forward.13} parent=69 // pred_check_branch
          %498 = sbr.rel (%p496) target = $region74
        $region73: #{alexnet_forward.13} parent=69 // pred_region
          _
        $region74: #{alexnet_forward.13} parent=69 // pred_fallthru
          _
        %s499 = sand.u32 %s71, 1
        %s500 = sand.u32 %s71, 1
        %s501 = smul.addr %s500, 1024
        %s502 = scalar_lea.vmem [#allocation4], %s501
        // Predicated region
        $region75: #{alexnet_forward.13} parent=69 // pred_check
          %p503 = pneg %p84
        $region76: #{alexnet_forward.13} parent=69 // pred_check_branch
          %505 = sbr.rel (%p503) target = $region78
        $region77: #{alexnet_forward.13} parent=69 // pred_region
          _
        $region78: #{alexnet_forward.13} parent=69 // pred_fallthru
          _
        %s506 = sand.u32 %s43, 1
        %s507 = sand.u32 %s43, 1
        %s508 = smul.addr %s507, 32
        %s509 = scalar_lea.vmem [#allocation3], %s508
        %p510 = pneg %p56
        %p511 = pneg %p53
        %s512 = sand.u32 %s71, 1
        %s513 = sand.u32 %s71, 1
        %s514 = smul.addr %s513, 1024
        %s515 = scalar_lea.vmem [#allocation4], %s514
        %p516 = pneg %p84
        %p517 = pneg %p81
        %s518 = smul.u32 4, %s20
        %p519 = scmp.lt.s32.totalorder %s518, 31
        %s520 = scalar_select %p519, %s518, 31
        %s521 = scalar_lea.vmem %s2, %s520
        %p522 = pneg %p110
        %p523 = pneg %p107
        %p524 = pneg %p138
        %p525 = pneg %p135
        %s526 = sand.u32 %s125, 1
        %s527 = sand.u32 %s125, 1
        %s528 = smul.addr %s527, 32
        %s529 = scalar_lea.vmem [#allocation5], %s528
        %s530 = smul.u32 2, %s19
        %s531 = smul.u32 4, %s21
        %s532 = smul.u32 64, %s21
        %s533 = smul.u32 4, %s20
        %s534 = smul.u32 4, %s20
        %p535 = scmp.lt.s32.totalorder %s534, 31
        %s536 = scalar_select %p535, %s534, 31
        %s537 = scalar_lea.vmem %s2, %s536
        %s538 = smul.u32 4, %s20
        %s539 = smul.u32 2, %s19
        %s540 = smul.u32 4, %s20
        %p541 = scmp.eq.s32.totalorder %s21, 0
        // Predicated region
        $region79: #{alexnet_forward.13} parent=69 // pred_check
          %p542 = pneg %p541
        $region80: #{alexnet_forward.13} parent=69 // pred_check_branch
          %544 = sbr.rel (%p542) target = $region82
        $region81: #{alexnet_forward.13} parent=69 // pred_region
          %545 = vst [vmem:[#allocation2] sm:$0xff] 0.0
          %546 = vst [vmem:[#allocation2 + $0x8] sm:$0xff] 0.0
          %547 = vst [vmem:[#allocation2 + $0x10] sm:$0xff] 0.0
          %548 = vst [vmem:[#allocation2 + $0x18] sm:$0xff] 0.0
          %549 = vst [vmem:[#allocation2 + $0x20] sm:$0xff] 0.0
          %550 = vst [vmem:[#allocation2 + $0x28] sm:$0xff] 0.0
          %551 = vst [vmem:[#allocation2 + $0x30] sm:$0xff] 0.0
          %552 = vst [vmem:[#allocation2 + $0x38] sm:$0xff] 0.0
        $region82: #{alexnet_forward.13} parent=69 // pred_fallthru
          _
        %v553 = vld [vmem:[#allocation2] sm:$0xff]
        %v554 = vld [vmem:[#allocation2 + $0x8] sm:$0xff]
        %v555 = vld [vmem:[#allocation2 + $0x10] sm:$0xff]
        %v556 = vld [vmem:[#allocation2 + $0x18] sm:$0xff]
        %v557 = vld [vmem:[#allocation2 + $0x20] sm:$0xff]
        %v558 = vld [vmem:[#allocation2 + $0x28] sm:$0xff]
        %v559 = vld [vmem:[#allocation2 + $0x30] sm:$0xff]
        %v560 = vld [vmem:[#allocation2 + $0x38] sm:$0xff]
        %v561 = vld [vmem:[%s495] sm:$0xff]
        %v562 = vld [vmem:[%s495 + $0x8] sm:$0xff]
        %v563 = vld [vmem:[%s495 + $0x10] sm:$0xff]
        %v564 = vld [vmem:[%s495 + $0x18] sm:$0xff]
        %v565 = vld [vmem:[%s502] sm:$0xff]
        %v566 = vld [vmem:[%s502 + $0x8] sm:$0xff]
        %v567 = vld [vmem:[%s502 + $0x10] sm:$0xff]
        %v568 = vld [vmem:[%s502 + $0x18] sm:$0xff]
        %v569 = vld [vmem:[%s502 + $0x20] sm:$0xff]
        %v570 = vld [vmem:[%s502 + $0x28] sm:$0xff]
        %v571 = vld [vmem:[%s502 + $0x30] sm:$0xff]
        %v572 = vld [vmem:[%s502 + $0x38] sm:$0xff]
        %v573 = vld [vmem:[%s502 + $0x40] sm:$0xff]
        %v574 = vld [vmem:[%s502 + $0x48] sm:$0xff]
        %v575 = vld [vmem:[%s502 + $0x50] sm:$0xff]
        %v576 = vld [vmem:[%s502 + $0x58] sm:$0xff]
        %v577 = vld [vmem:[%s502 + $0x60] sm:$0xff]
        %v578 = vld [vmem:[%s502 + $0x68] sm:$0xff]
        %v579 = vld [vmem:[%s502 + $0x70] sm:$0xff]
        %v580 = vld [vmem:[%s502 + $0x78] sm:$0xff]
        %v581 = vld [vmem:[%s502 + $0x80] sm:$0xff]
        %v582 = vld [vmem:[%s502 + $0x88] sm:$0xff]
        %v583 = vld [vmem:[%s502 + $0x90] sm:$0xff]
        %v584 = vld [vmem:[%s502 + $0x98] sm:$0xff]
        %v585 = vld [vmem:[%s502 + $0xa0] sm:$0xff]
        %v586 = vld [vmem:[%s502 + $0xa8] sm:$0xff]
        %v587 = vld [vmem:[%s502 + $0xb0] sm:$0xff]
        %v588 = vld [vmem:[%s502 + $0xb8] sm:$0xff]
        %v589 = vld [vmem:[%s502 + $0xc0] sm:$0xff]
        %v590 = vld [vmem:[%s502 + $0xc8] sm:$0xff]
        %v591 = vld [vmem:[%s502 + $0xd0] sm:$0xff]
        %v592 = vld [vmem:[%s502 + $0xd8] sm:$0xff]
        %v593 = vld [vmem:[%s502 + $0xe0] sm:$0xff]
        %v594 = vld [vmem:[%s502 + $0xe8] sm:$0xff]
        %v595 = vld [vmem:[%s502 + $0xf0] sm:$0xff]
        %v596 = vld [vmem:[%s502 + $0xf8] sm:$0xff]
        %v597 = vld [vmem:[%s502 + $0x100] sm:$0xff]
        %v598 = vld [vmem:[%s502 + $0x108] sm:$0xff]
        %v599 = vld [vmem:[%s502 + $0x110] sm:$0xff]
        %v600 = vld [vmem:[%s502 + $0x118] sm:$0xff]
        %v601 = vld [vmem:[%s502 + $0x120] sm:$0xff]
        %v602 = vld [vmem:[%s502 + $0x128] sm:$0xff]
        %v603 = vld [vmem:[%s502 + $0x130] sm:$0xff]
        %v604 = vld [vmem:[%s502 + $0x138] sm:$0xff]
        %v605 = vld [vmem:[%s502 + $0x140] sm:$0xff]
        %v606 = vld [vmem:[%s502 + $0x148] sm:$0xff]
        %v607 = vld [vmem:[%s502 + $0x150] sm:$0xff]
        %v608 = vld [vmem:[%s502 + $0x158] sm:$0xff]
        %v609 = vld [vmem:[%s502 + $0x160] sm:$0xff]
        %v610 = vld [vmem:[%s502 + $0x168] sm:$0xff]
        %v611 = vld [vmem:[%s502 + $0x170] sm:$0xff]
        %v612 = vld [vmem:[%s502 + $0x178] sm:$0xff]
        %v613 = vld [vmem:[%s502 + $0x180] sm:$0xff]
        %v614 = vld [vmem:[%s502 + $0x188] sm:$0xff]
        %v615 = vld [vmem:[%s502 + $0x190] sm:$0xff]
        %v616 = vld [vmem:[%s502 + $0x198] sm:$0xff]
        %v617 = vld [vmem:[%s502 + $0x1a0] sm:$0xff]
        %v618 = vld [vmem:[%s502 + $0x1a8] sm:$0xff]
        %v619 = vld [vmem:[%s502 + $0x1b0] sm:$0xff]
        %v620 = vld [vmem:[%s502 + $0x1b8] sm:$0xff]
        %v621 = vld [vmem:[%s502 + $0x1c0] sm:$0xff]
        %v622 = vld [vmem:[%s502 + $0x1c8] sm:$0xff]
        %v623 = vld [vmem:[%s502 + $0x1d0] sm:$0xff]
        %v624 = vld [vmem:[%s502 + $0x1d8] sm:$0xff]
        %v625 = vld [vmem:[%s502 + $0x1e0] sm:$0xff]
        %v626 = vld [vmem:[%s502 + $0x1e8] sm:$0xff]
        %v627 = vld [vmem:[%s502 + $0x1f0] sm:$0xff]
        %v628 = vld [vmem:[%s502 + $0x1f8] sm:$0xff]
        %v629 = vld [vmem:[%s502 + $0x200] sm:$0xff]
        %v630 = vld [vmem:[%s502 + $0x208] sm:$0xff]
        %v631 = vld [vmem:[%s502 + $0x210] sm:$0xff]
        %v632 = vld [vmem:[%s502 + $0x218] sm:$0xff]
        %v633 = vld [vmem:[%s502 + $0x220] sm:$0xff]
        %v634 = vld [vmem:[%s502 + $0x228] sm:$0xff]
        %v635 = vld [vmem:[%s502 + $0x230] sm:$0xff]
        %v636 = vld [vmem:[%s502 + $0x238] sm:$0xff]
        %v637 = vld [vmem:[%s502 + $0x240] sm:$0xff]
        %v638 = vld [vmem:[%s502 + $0x248] sm:$0xff]
        %v639 = vld [vmem:[%s502 + $0x250] sm:$0xff]
        %v640 = vld [vmem:[%s502 + $0x258] sm:$0xff]
        %v641 = vld [vmem:[%s502 + $0x260] sm:$0xff]
        %v642 = vld [vmem:[%s502 + $0x268] sm:$0xff]
        %v643 = vld [vmem:[%s502 + $0x270] sm:$0xff]
        %v644 = vld [vmem:[%s502 + $0x278] sm:$0xff]
        %v645 = vld [vmem:[%s502 + $0x280] sm:$0xff]
        %v646 = vld [vmem:[%s502 + $0x288] sm:$0xff]
        %v647 = vld [vmem:[%s502 + $0x290] sm:$0xff]
        %v648 = vld [vmem:[%s502 + $0x298] sm:$0xff]
        %v649 = vld [vmem:[%s502 + $0x2a0] sm:$0xff]
        %v650 = vld [vmem:[%s502 + $0x2a8] sm:$0xff]
        %v651 = vld [vmem:[%s502 + $0x2b0] sm:$0xff]
        %v652 = vld [vmem:[%s502 + $0x2b8] sm:$0xff]
        %v653 = vld [vmem:[%s502 + $0x2c0] sm:$0xff]
        %v654 = vld [vmem:[%s502 + $0x2c8] sm:$0xff]
        %v655 = vld [vmem:[%s502 + $0x2d0] sm:$0xff]
        %v656 = vld [vmem:[%s502 + $0x2d8] sm:$0xff]
        %v657 = vld [vmem:[%s502 + $0x2e0] sm:$0xff]
        %v658 = vld [vmem:[%s502 + $0x2e8] sm:$0xff]
        %v659 = vld [vmem:[%s502 + $0x2f0] sm:$0xff]
        %v660 = vld [vmem:[%s502 + $0x2f8] sm:$0xff]
        %v661 = vld [vmem:[%s502 + $0x300] sm:$0xff]
        %v662 = vld [vmem:[%s502 + $0x308] sm:$0xff]
        %v663 = vld [vmem:[%s502 + $0x310] sm:$0xff]
        %v664 = vld [vmem:[%s502 + $0x318] sm:$0xff]
        %v665 = vld [vmem:[%s502 + $0x320] sm:$0xff]
        %v666 = vld [vmem:[%s502 + $0x328] sm:$0xff]
        %v667 = vld [vmem:[%s502 + $0x330] sm:$0xff]
        %v668 = vld [vmem:[%s502 + $0x338] sm:$0xff]
        %v669 = vld [vmem:[%s502 + $0x340] sm:$0xff]
        %v670 = vld [vmem:[%s502 + $0x348] sm:$0xff]
        %v671 = vld [vmem:[%s502 + $0x350] sm:$0xff]
        %v672 = vld [vmem:[%s502 + $0x358] sm:$0xff]
        %v673 = vld [vmem:[%s502 + $0x360] sm:$0xff]
        %v674 = vld [vmem:[%s502 + $0x368] sm:$0xff]
        %v675 = vld [vmem:[%s502 + $0x370] sm:$0xff]
        %v676 = vld [vmem:[%s502 + $0x378] sm:$0xff]
        %v677 = vld [vmem:[%s502 + $0x380] sm:$0xff]
        %v678 = vld [vmem:[%s502 + $0x388] sm:$0xff]
        %v679 = vld [vmem:[%s502 + $0x390] sm:$0xff]
        %v680 = vld [vmem:[%s502 + $0x398] sm:$0xff]
        %v681 = vld [vmem:[%s502 + $0x3a0] sm:$0xff]
        %v682 = vld [vmem:[%s502 + $0x3a8] sm:$0xff]
        %v683 = vld [vmem:[%s502 + $0x3b0] sm:$0xff]
        %v684 = vld [vmem:[%s502 + $0x3b8] sm:$0xff]
        %v685 = vld [vmem:[%s502 + $0x3c0] sm:$0xff]
        %v686 = vld [vmem:[%s502 + $0x3c8] sm:$0xff]
        %v687 = vld [vmem:[%s502 + $0x3d0] sm:$0xff]
        %v688 = vld [vmem:[%s502 + $0x3d8] sm:$0xff]
        %v689 = vld [vmem:[%s502 + $0x3e0] sm:$0xff]
        %v690 = vld [vmem:[%s502 + $0x3e8] sm:$0xff]
        %v691 = vld [vmem:[%s502 + $0x3f0] sm:$0xff]
        %v692 = vld [vmem:[%s502 + $0x3f8] sm:$0xff]
        %v697 = vunpack.c.l.b16 %v561
        %v698 = vunpack.c.h.b16 %v561
        %v699 = vunpack.c.l.b16 %v562
        %v700 = vunpack.c.h.b16 %v562
        %v701 = vunpack.c.l.b16 %v563
        %v702 = vunpack.c.h.b16 %v563
        %v703 = vunpack.c.l.b16 %v564
        %v704 = vunpack.c.h.b16 %v564
        %v705 = vpack.c.b16 %v701, %v697
        %v706 = vpack.c.b16 %v702, %v698
        %v707 = vpack.c.b16 %v703, %v699
        %v708 = vpack.c.b16 %v704, %v700
        %v841 = vunpack.c.l.b16 %v565
        %v842 = vunpack.c.h.b16 %v565
        %v843 = vunpack.c.l.b16 %v566
        %v844 = vunpack.c.h.b16 %v566
        %v845 = vunpack.c.l.b16 %v567
        %v846 = vunpack.c.h.b16 %v567
        %v847 = vunpack.c.l.b16 %v568
        %v848 = vunpack.c.h.b16 %v568
        %v849 = vunpack.c.l.b16 %v569
        %v850 = vunpack.c.h.b16 %v569
        %v851 = vunpack.c.l.b16 %v570
        %v852 = vunpack.c.h.b16 %v570
        %v853 = vunpack.c.l.b16 %v571
        %v854 = vunpack.c.h.b16 %v571
        %v855 = vunpack.c.l.b16 %v572
        %v856 = vunpack.c.h.b16 %v572
        %v857 = vunpack.c.l.b16 %v573
        %v858 = vunpack.c.h.b16 %v573
        %v859 = vunpack.c.l.b16 %v574
        %v860 = vunpack.c.h.b16 %v574
        %v861 = vunpack.c.l.b16 %v575
        %v862 = vunpack.c.h.b16 %v575
        %v863 = vunpack.c.l.b16 %v576
        %v864 = vunpack.c.h.b16 %v576
        %v865 = vunpack.c.l.b16 %v577
        %v866 = vunpack.c.h.b16 %v577
        %v867 = vunpack.c.l.b16 %v578
        %v868 = vunpack.c.h.b16 %v578
        %v869 = vunpack.c.l.b16 %v579
        %v870 = vunpack.c.h.b16 %v579
        %v871 = vunpack.c.l.b16 %v580
        %v872 = vunpack.c.h.b16 %v580
        %v873 = vunpack.c.l.b16 %v581
        %v874 = vunpack.c.h.b16 %v581
        %v875 = vunpack.c.l.b16 %v582
        %v876 = vunpack.c.h.b16 %v582
        %v877 = vunpack.c.l.b16 %v583
        %v878 = vunpack.c.h.b16 %v583
        %v879 = vunpack.c.l.b16 %v584
        %v880 = vunpack.c.h.b16 %v584
        %v881 = vunpack.c.l.b16 %v585
        %v882 = vunpack.c.h.b16 %v585
        %v883 = vunpack.c.l.b16 %v586
        %v884 = vunpack.c.h.b16 %v586
        %v885 = vunpack.c.l.b16 %v587
        %v886 = vunpack.c.h.b16 %v587
        %v887 = vunpack.c.l.b16 %v588
        %v888 = vunpack.c.h.b16 %v588
        %v889 = vunpack.c.l.b16 %v589
        %v890 = vunpack.c.h.b16 %v589
        %v891 = vunpack.c.l.b16 %v590
        %v892 = vunpack.c.h.b16 %v590
        %v893 = vunpack.c.l.b16 %v591
        %v894 = vunpack.c.h.b16 %v591
        %v895 = vunpack.c.l.b16 %v592
        %v896 = vunpack.c.h.b16 %v592
        %v897 = vunpack.c.l.b16 %v593
        %v898 = vunpack.c.h.b16 %v593
        %v899 = vunpack.c.l.b16 %v594
        %v900 = vunpack.c.h.b16 %v594
        %v901 = vunpack.c.l.b16 %v595
        %v902 = vunpack.c.h.b16 %v595
        %v903 = vunpack.c.l.b16 %v596
        %v904 = vunpack.c.h.b16 %v596
        %v905 = vunpack.c.l.b16 %v597
        %v906 = vunpack.c.h.b16 %v597
        %v907 = vunpack.c.l.b16 %v598
        %v908 = vunpack.c.h.b16 %v598
        %v909 = vunpack.c.l.b16 %v599
        %v910 = vunpack.c.h.b16 %v599
        %v911 = vunpack.c.l.b16 %v600
        %v912 = vunpack.c.h.b16 %v600
        %v913 = vunpack.c.l.b16 %v601
        %v914 = vunpack.c.h.b16 %v601
        %v915 = vunpack.c.l.b16 %v602
        %v916 = vunpack.c.h.b16 %v602
        %v917 = vunpack.c.l.b16 %v603
        %v918 = vunpack.c.h.b16 %v603
        %v919 = vunpack.c.l.b16 %v604
        %v920 = vunpack.c.h.b16 %v604
        %v921 = vunpack.c.l.b16 %v605
        %v922 = vunpack.c.h.b16 %v605
        %v923 = vunpack.c.l.b16 %v606
        %v924 = vunpack.c.h.b16 %v606
        %v925 = vunpack.c.l.b16 %v607
        %v926 = vunpack.c.h.b16 %v607
        %v927 = vunpack.c.l.b16 %v608
        %v928 = vunpack.c.h.b16 %v608
        %v929 = vunpack.c.l.b16 %v609
        %v930 = vunpack.c.h.b16 %v609
        %v931 = vunpack.c.l.b16 %v610
        %v932 = vunpack.c.h.b16 %v610
        %v933 = vunpack.c.l.b16 %v611
        %v934 = vunpack.c.h.b16 %v611
        %v935 = vunpack.c.l.b16 %v612
        %v936 = vunpack.c.h.b16 %v612
        %v937 = vunpack.c.l.b16 %v613
        %v938 = vunpack.c.h.b16 %v613
        %v939 = vunpack.c.l.b16 %v614
        %v940 = vunpack.c.h.b16 %v614
        %v941 = vunpack.c.l.b16 %v615
        %v942 = vunpack.c.h.b16 %v615
        %v943 = vunpack.c.l.b16 %v616
        %v944 = vunpack.c.h.b16 %v616
        %v945 = vunpack.c.l.b16 %v617
        %v946 = vunpack.c.h.b16 %v617
        %v947 = vunpack.c.l.b16 %v618
        %v948 = vunpack.c.h.b16 %v618
        %v949 = vunpack.c.l.b16 %v619
        %v950 = vunpack.c.h.b16 %v619
        %v951 = vunpack.c.l.b16 %v620
        %v952 = vunpack.c.h.b16 %v620
        %v953 = vunpack.c.l.b16 %v621
        %v954 = vunpack.c.h.b16 %v621
        %v955 = vunpack.c.l.b16 %v622
        %v956 = vunpack.c.h.b16 %v622
        %v957 = vunpack.c.l.b16 %v623
        %v958 = vunpack.c.h.b16 %v623
        %v959 = vunpack.c.l.b16 %v624
        %v960 = vunpack.c.h.b16 %v624
        %v961 = vunpack.c.l.b16 %v625
        %v962 = vunpack.c.h.b16 %v625
        %v963 = vunpack.c.l.b16 %v626
        %v964 = vunpack.c.h.b16 %v626
        %v965 = vunpack.c.l.b16 %v627
        %v966 = vunpack.c.h.b16 %v627
        %v967 = vunpack.c.l.b16 %v628
        %v968 = vunpack.c.h.b16 %v628
        %v969 = vunpack.c.l.b16 %v629
        %v970 = vunpack.c.h.b16 %v629
        %v971 = vunpack.c.l.b16 %v630
        %v972 = vunpack.c.h.b16 %v630
        %v973 = vunpack.c.l.b16 %v631
        %v974 = vunpack.c.h.b16 %v631
        %v975 = vunpack.c.l.b16 %v632
        %v976 = vunpack.c.h.b16 %v632
        %v977 = vunpack.c.l.b16 %v633
        %v978 = vunpack.c.h.b16 %v633
        %v979 = vunpack.c.l.b16 %v634
        %v980 = vunpack.c.h.b16 %v634
        %v981 = vunpack.c.l.b16 %v635
        %v982 = vunpack.c.h.b16 %v635
        %v983 = vunpack.c.l.b16 %v636
        %v984 = vunpack.c.h.b16 %v636
        %v985 = vunpack.c.l.b16 %v637
        %v986 = vunpack.c.h.b16 %v637
        %v987 = vunpack.c.l.b16 %v638
        %v988 = vunpack.c.h.b16 %v638
        %v989 = vunpack.c.l.b16 %v639
        %v990 = vunpack.c.h.b16 %v639
        %v991 = vunpack.c.l.b16 %v640
        %v992 = vunpack.c.h.b16 %v640
        %v993 = vunpack.c.l.b16 %v641
        %v994 = vunpack.c.h.b16 %v641
        %v995 = vunpack.c.l.b16 %v642
        %v996 = vunpack.c.h.b16 %v642
        %v997 = vunpack.c.l.b16 %v643
        %v998 = vunpack.c.h.b16 %v643
        %v999 = vunpack.c.l.b16 %v644
        %v1000 = vunpack.c.h.b16 %v644
        %v1001 = vunpack.c.l.b16 %v645
        %v1002 = vunpack.c.h.b16 %v645
        %v1003 = vunpack.c.l.b16 %v646
        %v1004 = vunpack.c.h.b16 %v646
        %v1005 = vunpack.c.l.b16 %v647
        %v1006 = vunpack.c.h.b16 %v647
        %v1007 = vunpack.c.l.b16 %v648
        %v1008 = vunpack.c.h.b16 %v648
        %v1009 = vunpack.c.l.b16 %v649
        %v1010 = vunpack.c.h.b16 %v649
        %v1011 = vunpack.c.l.b16 %v650
        %v1012 = vunpack.c.h.b16 %v650
        %v1013 = vunpack.c.l.b16 %v651
        %v1014 = vunpack.c.h.b16 %v651
        %v1015 = vunpack.c.l.b16 %v652
        %v1016 = vunpack.c.h.b16 %v652
        %v1017 = vunpack.c.l.b16 %v653
        %v1018 = vunpack.c.h.b16 %v653
        %v1019 = vunpack.c.l.b16 %v654
        %v1020 = vunpack.c.h.b16 %v654
        %v1021 = vunpack.c.l.b16 %v655
        %v1022 = vunpack.c.h.b16 %v655
        %v1023 = vunpack.c.l.b16 %v656
        %v1024 = vunpack.c.h.b16 %v656
        %v1025 = vunpack.c.l.b16 %v657
        %v1026 = vunpack.c.h.b16 %v657
        %v1027 = vunpack.c.l.b16 %v658
        %v1028 = vunpack.c.h.b16 %v658
        %v1029 = vunpack.c.l.b16 %v659
        %v1030 = vunpack.c.h.b16 %v659
        %v1031 = vunpack.c.l.b16 %v660
        %v1032 = vunpack.c.h.b16 %v660
        %v1033 = vunpack.c.l.b16 %v661
        %v1034 = vunpack.c.h.b16 %v661
        %v1035 = vunpack.c.l.b16 %v662
        %v1036 = vunpack.c.h.b16 %v662
        %v1037 = vunpack.c.l.b16 %v663
        %v1038 = vunpack.c.h.b16 %v663
        %v1039 = vunpack.c.l.b16 %v664
        %v1040 = vunpack.c.h.b16 %v664
        %v1041 = vunpack.c.l.b16 %v665
        %v1042 = vunpack.c.h.b16 %v665
        %v1043 = vunpack.c.l.b16 %v666
        %v1044 = vunpack.c.h.b16 %v666
        %v1045 = vunpack.c.l.b16 %v667
        %v1046 = vunpack.c.h.b16 %v667
        %v1047 = vunpack.c.l.b16 %v668
        %v1048 = vunpack.c.h.b16 %v668
        %v1049 = vunpack.c.l.b16 %v669
        %v1050 = vunpack.c.h.b16 %v669
        %v1051 = vunpack.c.l.b16 %v670
        %v1052 = vunpack.c.h.b16 %v670
        %v1053 = vunpack.c.l.b16 %v671
        %v1054 = vunpack.c.h.b16 %v671
        %v1055 = vunpack.c.l.b16 %v672
        %v1056 = vunpack.c.h.b16 %v672
        %v1057 = vunpack.c.l.b16 %v673
        %v1058 = vunpack.c.h.b16 %v673
        %v1059 = vunpack.c.l.b16 %v674
        %v1060 = vunpack.c.h.b16 %v674
        %v1061 = vunpack.c.l.b16 %v675
        %v1062 = vunpack.c.h.b16 %v675
        %v1063 = vunpack.c.l.b16 %v676
        %v1064 = vunpack.c.h.b16 %v676
        %v1065 = vunpack.c.l.b16 %v677
        %v1066 = vunpack.c.h.b16 %v677
        %v1067 = vunpack.c.l.b16 %v678
        %v1068 = vunpack.c.h.b16 %v678
        %v1069 = vunpack.c.l.b16 %v679
        %v1070 = vunpack.c.h.b16 %v679
        %v1071 = vunpack.c.l.b16 %v680
        %v1072 = vunpack.c.h.b16 %v680
        %v1073 = vunpack.c.l.b16 %v681
        %v1074 = vunpack.c.h.b16 %v681
        %v1075 = vunpack.c.l.b16 %v682
        %v1076 = vunpack.c.h.b16 %v682
        %v1077 = vunpack.c.l.b16 %v683
        %v1078 = vunpack.c.h.b16 %v683
        %v1079 = vunpack.c.l.b16 %v684
        %v1080 = vunpack.c.h.b16 %v684
        %v1081 = vunpack.c.l.b16 %v685
        %v1082 = vunpack.c.h.b16 %v685
        %v1083 = vunpack.c.l.b16 %v686
        %v1084 = vunpack.c.h.b16 %v686
        %v1085 = vunpack.c.l.b16 %v687
        %v1086 = vunpack.c.h.b16 %v687
        %v1087 = vunpack.c.l.b16 %v688
        %v1088 = vunpack.c.h.b16 %v688
        %v1089 = vunpack.c.l.b16 %v689
        %v1090 = vunpack.c.h.b16 %v689
        %v1091 = vunpack.c.l.b16 %v690
        %v1092 = vunpack.c.h.b16 %v690
        %v1093 = vunpack.c.l.b16 %v691
        %v1094 = vunpack.c.h.b16 %v691
        %v1095 = vunpack.c.l.b16 %v692
        %v1096 = vunpack.c.h.b16 %v692
        %v1097 = vpack.c.b16 %v845, %v841
        %v1098 = vpack.c.b16 %v846, %v842
        %v1099 = vpack.c.b16 %v847, %v843
        %v1100 = vpack.c.b16 %v848, %v844
        %v1101 = vpack.c.b16 %v853, %v849
        %v1102 = vpack.c.b16 %v854, %v850
        %v1103 = vpack.c.b16 %v855, %v851
        %v1104 = vpack.c.b16 %v856, %v852
        %v1105 = vpack.c.b16 %v861, %v857
        %v1106 = vpack.c.b16 %v862, %v858
        %v1107 = vpack.c.b16 %v863, %v859
        %v1108 = vpack.c.b16 %v864, %v860
        %v1109 = vpack.c.b16 %v869, %v865
        %v1110 = vpack.c.b16 %v870, %v866
        %v1111 = vpack.c.b16 %v871, %v867
        %v1112 = vpack.c.b16 %v872, %v868
        %v1113 = vpack.c.b16 %v877, %v873
        %v1114 = vpack.c.b16 %v878, %v874
        %v1115 = vpack.c.b16 %v879, %v875
        %v1116 = vpack.c.b16 %v880, %v876
        %v1117 = vpack.c.b16 %v885, %v881
        %v1118 = vpack.c.b16 %v886, %v882
        %v1119 = vpack.c.b16 %v887, %v883
        %v1120 = vpack.c.b16 %v888, %v884
        %v1121 = vpack.c.b16 %v893, %v889
        %v1122 = vpack.c.b16 %v894, %v890
        %v1123 = vpack.c.b16 %v895, %v891
        %v1124 = vpack.c.b16 %v896, %v892
        %v1125 = vpack.c.b16 %v901, %v897
        %v1126 = vpack.c.b16 %v902, %v898
        %v1127 = vpack.c.b16 %v903, %v899
        %v1128 = vpack.c.b16 %v904, %v900
        %v1129 = vpack.c.b16 %v909, %v905
        %v1130 = vpack.c.b16 %v910, %v906
        %v1131 = vpack.c.b16 %v911, %v907
        %v1132 = vpack.c.b16 %v912, %v908
        %v1133 = vpack.c.b16 %v917, %v913
        %v1134 = vpack.c.b16 %v918, %v914
        %v1135 = vpack.c.b16 %v919, %v915
        %v1136 = vpack.c.b16 %v920, %v916
        %v1137 = vpack.c.b16 %v925, %v921
        %v1138 = vpack.c.b16 %v926, %v922
        %v1139 = vpack.c.b16 %v927, %v923
        %v1140 = vpack.c.b16 %v928, %v924
        %v1141 = vpack.c.b16 %v933, %v929
        %v1142 = vpack.c.b16 %v934, %v930
        %v1143 = vpack.c.b16 %v935, %v931
        %v1144 = vpack.c.b16 %v936, %v932
        %v1145 = vpack.c.b16 %v941, %v937
        %v1146 = vpack.c.b16 %v942, %v938
        %v1147 = vpack.c.b16 %v943, %v939
        %v1148 = vpack.c.b16 %v944, %v940
        %v1149 = vpack.c.b16 %v949, %v945
        %v1150 = vpack.c.b16 %v950, %v946
        %v1151 = vpack.c.b16 %v951, %v947
        %v1152 = vpack.c.b16 %v952, %v948
        %v1153 = vpack.c.b16 %v957, %v953
        %v1154 = vpack.c.b16 %v958, %v954
        %v1155 = vpack.c.b16 %v959, %v955
        %v1156 = vpack.c.b16 %v960, %v956
        %v1157 = vpack.c.b16 %v965, %v961
        %v1158 = vpack.c.b16 %v966, %v962
        %v1159 = vpack.c.b16 %v967, %v963
        %v1160 = vpack.c.b16 %v968, %v964
        %v1161 = vpack.c.b16 %v973, %v969
        %v1162 = vpack.c.b16 %v974, %v970
        %v1163 = vpack.c.b16 %v975, %v971
        %v1164 = vpack.c.b16 %v976, %v972
        %v1165 = vpack.c.b16 %v981, %v977
        %v1166 = vpack.c.b16 %v982, %v978
        %v1167 = vpack.c.b16 %v983, %v979
        %v1168 = vpack.c.b16 %v984, %v980
        %v1169 = vpack.c.b16 %v989, %v985
        %v1170 = vpack.c.b16 %v990, %v986
        %v1171 = vpack.c.b16 %v991, %v987
        %v1172 = vpack.c.b16 %v992, %v988
        %v1173 = vpack.c.b16 %v997, %v993
        %v1174 = vpack.c.b16 %v998, %v994
        %v1175 = vpack.c.b16 %v999, %v995
        %v1176 = vpack.c.b16 %v1000, %v996
        %v1177 = vpack.c.b16 %v1005, %v1001
        %v1178 = vpack.c.b16 %v1006, %v1002
        %v1179 = vpack.c.b16 %v1007, %v1003
        %v1180 = vpack.c.b16 %v1008, %v1004
        %v1181 = vpack.c.b16 %v1013, %v1009
        %v1182 = vpack.c.b16 %v1014, %v1010
        %v1183 = vpack.c.b16 %v1015, %v1011
        %v1184 = vpack.c.b16 %v1016, %v1012
        %v1185 = vpack.c.b16 %v1021, %v1017
        %v1186 = vpack.c.b16 %v1022, %v1018
        %v1187 = vpack.c.b16 %v1023, %v1019
        %v1188 = vpack.c.b16 %v1024, %v1020
        %v1189 = vpack.c.b16 %v1029, %v1025
        %v1190 = vpack.c.b16 %v1030, %v1026
        %v1191 = vpack.c.b16 %v1031, %v1027
        %v1192 = vpack.c.b16 %v1032, %v1028
        %v1193 = vpack.c.b16 %v1037, %v1033
        %v1194 = vpack.c.b16 %v1038, %v1034
        %v1195 = vpack.c.b16 %v1039, %v1035
        %v1196 = vpack.c.b16 %v1040, %v1036
        %v1197 = vpack.c.b16 %v1045, %v1041
        %v1198 = vpack.c.b16 %v1046, %v1042
        %v1199 = vpack.c.b16 %v1047, %v1043
        %v1200 = vpack.c.b16 %v1048, %v1044
        %v1201 = vpack.c.b16 %v1053, %v1049
        %v1202 = vpack.c.b16 %v1054, %v1050
        %v1203 = vpack.c.b16 %v1055, %v1051
        %v1204 = vpack.c.b16 %v1056, %v1052
        %v1205 = vpack.c.b16 %v1061, %v1057
        %v1206 = vpack.c.b16 %v1062, %v1058
        %v1207 = vpack.c.b16 %v1063, %v1059
        %v1208 = vpack.c.b16 %v1064, %v1060
        %v1209 = vpack.c.b16 %v1069, %v1065
        %v1210 = vpack.c.b16 %v1070, %v1066
        %v1211 = vpack.c.b16 %v1071, %v1067
        %v1212 = vpack.c.b16 %v1072, %v1068
        %v1213 = vpack.c.b16 %v1077, %v1073
        %v1214 = vpack.c.b16 %v1078, %v1074
        %v1215 = vpack.c.b16 %v1079, %v1075
        %v1216 = vpack.c.b16 %v1080, %v1076
        %v1217 = vpack.c.b16 %v1085, %v1081
        %v1218 = vpack.c.b16 %v1086, %v1082
        %v1219 = vpack.c.b16 %v1087, %v1083
        %v1220 = vpack.c.b16 %v1088, %v1084
        %v1221 = vpack.c.b16 %v1093, %v1089
        %v1222 = vpack.c.b16 %v1094, %v1090
        %v1223 = vpack.c.b16 %v1095, %v1091
        %v1224 = vpack.c.b16 %v1096, %v1092
        %1353 = vmatprep.subr.bf16.mxu0 %v1126
        %1354 = vmatpush1.bf16.msra.mxu0 %v1125
        %1355 = vmatprep.subr.bf16.mxu0 %v1122
        %1356 = vmatpush1.bf16.msra.mxu0 %v1121
        %1357 = vmatprep.subr.bf16.mxu0 %v1118
        %1358 = vmatpush1.bf16.msra.mxu0 %v1117
        %1359 = vmatprep.subr.bf16.mxu0 %v1114
        %1360 = vmatpush1.bf16.msra.mxu0 %v1113
        %1361 = vmatprep.subr.bf16.mxu0 %v1110
        %1362 = vmatpush1.bf16.msra.mxu0 %v1109
        %1363 = vmatprep.subr.bf16.mxu0 %v1106
        %1364 = vmatpush1.bf16.msra.mxu0 %v1105
        %1365 = vmatprep.subr.bf16.mxu0 %v1102
        %1366 = vmatpush1.bf16.msra.mxu0 %v1101
        %1367 = vmatprep.subr.bf16.mxu0 %v1098
        %1368 = vmatpush1.bf16.msra.mxu0 %v1097
        %1369 = vmatprep.subr.bf16.mxu0 %v1158
        %1370 = vmatpush2.bf16.msra.mxu0 %v1157
        %1371 = vmatprep.subr.bf16.mxu0 %v1154
        %1372 = vmatpush2.bf16.msra.mxu0 %v1153
        %1373 = vmatprep.subr.bf16.mxu0 %v1150
        %1374 = vmatpush2.bf16.msra.mxu0 %v1149
        %1375 = vmatprep.subr.bf16.mxu0 %v1146
        %1376 = vmatpush2.bf16.msra.mxu0 %v1145
        %1377 = vmatprep.subr.bf16.mxu0 %v1142
        %1378 = vmatpush2.bf16.msra.mxu0 %v1141
        %1379 = vmatprep.subr.bf16.mxu0 %v1138
        %1380 = vmatpush2.bf16.msra.mxu0 %v1137
        %1381 = vmatprep.subr.bf16.mxu0 %v1134
        %1382 = vmatpush2.bf16.msra.mxu0 %v1133
        %1383 = vmatprep.subr.bf16.mxu0 %v1130
        %1384 = vmatpush2.bf16.msra.mxu0 %v1129
        %1385 = vmatprep.mubr.bf16.mxu0 %v706
        %1386 = vmatmul.mubr.bf16.gmra.mxu0 %v705
        %v1387 = vpop.f32.mrf.mxu0
        %v1388 = vadd.f32 0.0, %v1387
        %v1389 = vpop.f32.mrf.mxu0
        %v1390 = vadd.f32 0.0, %v1389
        %v1391 = vpop.f32.mrf.mxu0
        %v1392 = vadd.f32 0.0, %v1391
        %v1393 = vpop.f32.mrf.mxu0
        %v1394 = vadd.f32 0.0, %v1393
        %1395 = vdwg.mxu0
        %1396 = vmatprep.subr.bf16.mxu0 %v1190
        %1397 = vmatpush1.bf16.msra.mxu0 %v1189
        %1398 = vmatprep.subr.bf16.mxu0 %v1186
        %1399 = vmatpush1.bf16.msra.mxu0 %v1185
        %1400 = vmatprep.subr.bf16.mxu0 %v1182
        %1401 = vmatpush1.bf16.msra.mxu0 %v1181
        %1402 = vmatprep.subr.bf16.mxu0 %v1178
        %1403 = vmatpush1.bf16.msra.mxu0 %v1177
        %1404 = vmatprep.subr.bf16.mxu0 %v1174
        %1405 = vmatpush1.bf16.msra.mxu0 %v1173
        %1406 = vmatprep.subr.bf16.mxu0 %v1170
        %1407 = vmatpush1.bf16.msra.mxu0 %v1169
        %1408 = vmatprep.subr.bf16.mxu0 %v1166
        %1409 = vmatpush1.bf16.msra.mxu0 %v1165
        %1410 = vmatprep.subr.bf16.mxu0 %v1162
        %1411 = vmatpush1.bf16.msra.mxu0 %v1161
        %1412 = vmatprep.subr.bf16.mxu0 %v1222
        %1413 = vmatpush2.bf16.msra.mxu0 %v1221
        %1414 = vmatprep.subr.bf16.mxu0 %v1218
        %1415 = vmatpush2.bf16.msra.mxu0 %v1217
        %1416 = vmatprep.subr.bf16.mxu0 %v1214
        %1417 = vmatpush2.bf16.msra.mxu0 %v1213
        %1418 = vmatprep.subr.bf16.mxu0 %v1210
        %1419 = vmatpush2.bf16.msra.mxu0 %v1209
        %1420 = vmatprep.subr.bf16.mxu0 %v1206
        %1421 = vmatpush2.bf16.msra.mxu0 %v1205
        %1422 = vmatprep.subr.bf16.mxu0 %v1202
        %1423 = vmatpush2.bf16.msra.mxu0 %v1201
        %1424 = vmatprep.subr.bf16.mxu0 %v1198
        %1425 = vmatpush2.bf16.msra.mxu0 %v1197
        %1426 = vmatprep.subr.bf16.mxu0 %v1194
        %1427 = vmatpush2.bf16.msra.mxu0 %v1193
        %1428 = vmatprep.mubr.bf16.mxu0 %v708
        %1429 = vmatmul.mubr.bf16.gmra.mxu0 %v707
        %v1430 = vpop.f32.mrf.mxu0
        %v1431 = vadd.f32 %v1388, %v1430
        %v1432 = vpop.f32.mrf.mxu0
        %v1433 = vadd.f32 %v1390, %v1432
        %v1434 = vpop.f32.mrf.mxu0
        %v1435 = vadd.f32 %v1392, %v1434
        %v1436 = vpop.f32.mrf.mxu0
        %v1437 = vadd.f32 %v1394, %v1436
        %1438 = vdwg.mxu0
        %1439 = vmatprep.subr.bf16.mxu0 %v1128
        %1440 = vmatpush1.bf16.msra.mxu0 %v1127
        %1441 = vmatprep.subr.bf16.mxu0 %v1124
        %1442 = vmatpush1.bf16.msra.mxu0 %v1123
        %1443 = vmatprep.subr.bf16.mxu0 %v1120
        %1444 = vmatpush1.bf16.msra.mxu0 %v1119
        %1445 = vmatprep.subr.bf16.mxu0 %v1116
        %1446 = vmatpush1.bf16.msra.mxu0 %v1115
        %1447 = vmatprep.subr.bf16.mxu0 %v1112
        %1448 = vmatpush1.bf16.msra.mxu0 %v1111
        %1449 = vmatprep.subr.bf16.mxu0 %v1108
        %1450 = vmatpush1.bf16.msra.mxu0 %v1107
        %1451 = vmatprep.subr.bf16.mxu0 %v1104
        %1452 = vmatpush1.bf16.msra.mxu0 %v1103
        %1453 = vmatprep.subr.bf16.mxu0 %v1100
        %1454 = vmatpush1.bf16.msra.mxu0 %v1099
        %1455 = vmatprep.subr.bf16.mxu0 %v1160
        %1456 = vmatpush2.bf16.msra.mxu0 %v1159
        %1457 = vmatprep.subr.bf16.mxu0 %v1156
        %1458 = vmatpush2.bf16.msra.mxu0 %v1155
        %1459 = vmatprep.subr.bf16.mxu0 %v1152
        %1460 = vmatpush2.bf16.msra.mxu0 %v1151
        %1461 = vmatprep.subr.bf16.mxu0 %v1148
        %1462 = vmatpush2.bf16.msra.mxu0 %v1147
        %1463 = vmatprep.subr.bf16.mxu0 %v1144
        %1464 = vmatpush2.bf16.msra.mxu0 %v1143
        %1465 = vmatprep.subr.bf16.mxu0 %v1140
        %1466 = vmatpush2.bf16.msra.mxu0 %v1139
        %1467 = vmatprep.subr.bf16.mxu0 %v1136
        %1468 = vmatpush2.bf16.msra.mxu0 %v1135
        %1469 = vmatprep.subr.bf16.mxu0 %v1132
        %1470 = vmatpush2.bf16.msra.mxu0 %v1131
        %1471 = vmatprep.mubr.bf16.mxu0 %v706
        %1472 = vmatmul.mubr.bf16.gmra.mxu0 %v705
        %v1473 = vpop.f32.mrf.mxu0
        %v1474 = vadd.f32 0.0, %v1473
        %v1475 = vpop.f32.mrf.mxu0
        %v1476 = vadd.f32 0.0, %v1475
        %v1477 = vpop.f32.mrf.mxu0
        %v1478 = vadd.f32 0.0, %v1477
        %v1479 = vpop.f32.mrf.mxu0
        %v1480 = vadd.f32 0.0, %v1479
        %1481 = vdwg.mxu0
        %1482 = vmatprep.subr.bf16.mxu0 %v1192
        %1483 = vmatpush1.bf16.msra.mxu0 %v1191
        %1484 = vmatprep.subr.bf16.mxu0 %v1188
        %1485 = vmatpush1.bf16.msra.mxu0 %v1187
        %1486 = vmatprep.subr.bf16.mxu0 %v1184
        %1487 = vmatpush1.bf16.msra.mxu0 %v1183
        %1488 = vmatprep.subr.bf16.mxu0 %v1180
        %1489 = vmatpush1.bf16.msra.mxu0 %v1179
        %1490 = vmatprep.subr.bf16.mxu0 %v1176
        %1491 = vmatpush1.bf16.msra.mxu0 %v1175
        %1492 = vmatprep.subr.bf16.mxu0 %v1172
        %1493 = vmatpush1.bf16.msra.mxu0 %v1171
        %1494 = vmatprep.subr.bf16.mxu0 %v1168
        %1495 = vmatpush1.bf16.msra.mxu0 %v1167
        %1496 = vmatprep.subr.bf16.mxu0 %v1164
        %1497 = vmatpush1.bf16.msra.mxu0 %v1163
        %1498 = vmatprep.subr.bf16.mxu0 %v1224
        %1499 = vmatpush2.bf16.msra.mxu0 %v1223
        %1500 = vmatprep.subr.bf16.mxu0 %v1220
        %1501 = vmatpush2.bf16.msra.mxu0 %v1219
        %1502 = vmatprep.subr.bf16.mxu0 %v1216
        %1503 = vmatpush2.bf16.msra.mxu0 %v1215
        %1504 = vmatprep.subr.bf16.mxu0 %v1212
        %1505 = vmatpush2.bf16.msra.mxu0 %v1211
        %1506 = vmatprep.subr.bf16.mxu0 %v1208
        %1507 = vmatpush2.bf16.msra.mxu0 %v1207
        %1508 = vmatprep.subr.bf16.mxu0 %v1204
        %1509 = vmatpush2.bf16.msra.mxu0 %v1203
        %1510 = vmatprep.subr.bf16.mxu0 %v1200
        %1511 = vmatpush2.bf16.msra.mxu0 %v1199
        %1512 = vmatprep.subr.bf16.mxu0 %v1196
        %1513 = vmatpush2.bf16.msra.mxu0 %v1195
        %1514 = vmatprep.mubr.bf16.mxu0 %v708
        %1515 = vmatmul.mubr.bf16.gmra.mxu0 %v707
        %v1516 = vpop.f32.mrf.mxu0
        %v1517 = vadd.f32 %v1474, %v1516
        %v1518 = vpop.f32.mrf.mxu0
        %v1519 = vadd.f32 %v1476, %v1518
        %v1520 = vpop.f32.mrf.mxu0
        %v1521 = vadd.f32 %v1478, %v1520
        %v1522 = vpop.f32.mrf.mxu0
        %v1523 = vadd.f32 %v1480, %v1522
        %1524 = vdwg.mxu0
        %v1525 = vadd.f32 %v553, %v1431
        %v1526 = vadd.f32 %v554, %v1433
        %v1527 = vadd.f32 %v555, %v1517
        %v1528 = vadd.f32 %v556, %v1519
        %v1529 = vadd.f32 %v557, %v1435
        %v1530 = vadd.f32 %v558, %v1437
        %v1531 = vadd.f32 %v559, %v1521
        %v1532 = vadd.f32 %v560, %v1523
        %1533 = vst [vmem:[#allocation2] sm:$0xff] %v1525
        %1534 = vst [vmem:[#allocation2 + $0x8] sm:$0xff] %v1526
        %1535 = vst [vmem:[#allocation2 + $0x10] sm:$0xff] %v1527
        %1536 = vst [vmem:[#allocation2 + $0x18] sm:$0xff] %v1528
        %1537 = vst [vmem:[#allocation2 + $0x20] sm:$0xff] %v1529
        %1538 = vst [vmem:[#allocation2 + $0x28] sm:$0xff] %v1530
        %1539 = vst [vmem:[#allocation2 + $0x30] sm:$0xff] %v1531
        %1540 = vst [vmem:[#allocation2 + $0x38] sm:$0xff] %v1532
        %p1541 = scmp.eq.s32.totalorder %s21, 17
        // Predicated region
        $region83: #{alexnet_forward.13} parent=69 // pred_check
          %p1542 = pneg %p1541
        $region84: #{alexnet_forward.13} parent=69 // pred_check_branch
          %1544 = sbr.rel (%p1542) target = $region86
        $region85: #{alexnet_forward.13} parent=69 // pred_region
          %v1545 = vld [vmem:[#allocation2] sm:$0xff]
          %v1546 = vld [vmem:[#allocation2 + $0x8] sm:$0xff]
          %v1547 = vld [vmem:[#allocation2 + $0x10] sm:$0xff]
          %v1548 = vld [vmem:[#allocation2 + $0x18] sm:$0xff]
          %v1549 = vld [vmem:[#allocation2 + $0x20] sm:$0xff]
          %v1550 = vld [vmem:[#allocation2 + $0x28] sm:$0xff]
          %v1551 = vld [vmem:[#allocation2 + $0x30] sm:$0xff]
          %v1552 = vld [vmem:[#allocation2 + $0x38] sm:$0xff]
          %v1553 = vld [vmem:[%s537] sm:$0xf]
          %v1555 = vlaneseq
          %v1556 = vshrl.u32 %v1555, 7
          %v1557 = vsub.s32 0, %v1556
          %v1558 = vrot.slane %v1553, %v1557
          %v1559 = vlaneseq
          %v1560 = vshrl.u32 %v1559, 7
          %v1561 = vsub.s32 1, %v1560
          %v1562 = vrot.slane %v1553, %v1561
          %v1563 = vlaneseq
          %v1564 = vshrl.u32 %v1563, 7
          %v1565 = vsub.s32 2, %v1564
          %v1566 = vrot.slane %v1553, %v1565
          %v1567 = vlaneseq
          %v1568 = vshrl.u32 %v1567, 7
          %v1569 = vsub.s32 3, %v1568
          %v1570 = vrot.slane %v1553, %v1569
          %v1575 = vadd.f32 %v1545, %v1558
          %v1576 = vadd.f32 %v1546, %v1562
          %v1577 = vadd.f32 %v1547, %v1566
          %v1578 = vadd.f32 %v1548, %v1570
          %v1579 = vadd.f32 %v1549, %v1558
          %v1580 = vadd.f32 %v1550, %v1562
          %v1581 = vadd.f32 %v1551, %v1566
          %v1582 = vadd.f32 %v1552, %v1570
          %v1583 = vmax.f32 %v1575, 0.0
          %v1584 = vmax.f32 %v1576, 0.0
          %v1585 = vmax.f32 %v1577, 0.0
          %v1586 = vmax.f32 %v1578, 0.0
          %v1587 = vmax.f32 %v1579, 0.0
          %v1588 = vmax.f32 %v1580, 0.0
          %v1589 = vmax.f32 %v1581, 0.0
          %v1590 = vmax.f32 %v1582, 0.0
          %v1591 = vpack.c.bf16 %v1587, %v1583
          %v1592 = vpack.c.bf16 %v1588, %v1584
          %v1593 = vpack.c.bf16 %v1589, %v1585
          %v1594 = vpack.c.bf16 %v1590, %v1586
          %v1599 = vunpack.c.l.b16 %v1591
          %v1600 = vunpack.c.l.b16 %v1592
          %v1601 = vunpack.c.l.b16 %v1593
          %v1602 = vunpack.c.l.b16 %v1594
          %v1603 = vunpack.c.h.b16 %v1591
          %v1604 = vunpack.c.h.b16 %v1592
          %v1605 = vunpack.c.h.b16 %v1593
          %v1606 = vunpack.c.h.b16 %v1594
          %v1607 = vpack.c.b16 %v1600, %v1599
          %v1608 = vpack.c.b16 %v1602, %v1601
          %v1609 = vpack.c.b16 %v1604, %v1603
          %v1610 = vpack.c.b16 %v1606, %v1605
          %1615 = vst [vmem:[%s529] sm:$0xff] %v1607
          %1616 = vst [vmem:[%s529 + $0x8] sm:$0xff] %v1608
          %1617 = vst [vmem:[%s529 + $0x10] sm:$0xff] %v1609
          %1618 = vst [vmem:[%s529 + $0x18] sm:$0xff] %v1610
        $region86: #{alexnet_forward.13} parent=69 // pred_fallthru
          _
        %s1619 = sand.u32 %s125, 1
        %s1620 = sand.u32 %s125, 1
        %s1621 = smul.addr %s1620, 32
        %s1622 = scalar_lea.vmem [#allocation5], %s1621
        // Predicated region
        $region87: #{alexnet_forward.13} parent=69 // pred_check
          %p1623 = pneg %p135
        $region88: #{alexnet_forward.13} parent=69 // pred_check_branch
          %1625 = sbr.rel (%p1623) target = $region90
        $region89: #{alexnet_forward.13} parent=69 // pred_region
          %s1626 = smul.u32 2, %s19
          %s1627 = smul.u32 4, %s20
          %s1628 = smul.addr %s1626, 32
          %s1629 = sadd.s32 %s1627, %s1628
          %s1630 = smul.addr %s1629, 4
          %s1631 = scalar_lea.vmem %s3, %s1630
          // Predicated region
          $region91: #{alexnet_forward.13} parent=89 // pred_check
            _
          $region92: #{alexnet_forward.13} parent=89 // pred_check_branch
            %1633 = sbr.rel (0) target = $region94
          $region93: #{alexnet_forward.13} parent=89 // pred_region
            // Predicated region
            $region95: #{alexnet_forward.13} parent=93 // pred_check
              _
            $region96: #{alexnet_forward.13} parent=93 // pred_check_branch
              %1635 = sbr.rel (0) target = $region98
            $region97: #{alexnet_forward.13} parent=93 // pred_region
              loop: start=0, step=1, limit=1
              $region99: #{alexnet_forward.13} parent=97 // loop_pre_header
                _
              $region100: #{alexnet_forward.13} parent=97 // loop_header
                %s1637 = sphi 0, %s1641
                %p1638 = scmp.ge.s32.totalorder %s1637, 1
                %s1642 = sphi %s1622, %s1622
                %s1643 = sphi %s1631, %s1631
              $region101: #{alexnet_forward.13} parent=97 // loop_header_branch
                %1640 = sbr.rel (%p1638) target = $region105
              $region102: #{alexnet_forward.13} parent=97 // loop_body
                %v1644 = vld [vmem:[%s1642] sm:$0xff]
                %1645 = vst [vmem:[%s1643] sm:$0xff] %v1644
                %v1646 = vld [vmem:[%s1642 + $0x8] sm:$0xff]
                %1647 = vst [vmem:[%s1643 + $0x8] sm:$0xff] %v1646
                %v1648 = vld [vmem:[%s1642 + $0x10] sm:$0xff]
                %1649 = vst [vmem:[%s1643 + $0x80] sm:$0xff] %v1648
                %v1650 = vld [vmem:[%s1642 + $0x18] sm:$0xff]
                %1651 = vst [vmem:[%s1643 + $0x88] sm:$0xff] %v1650
              $region103: #{alexnet_forward.13} parent=97 // loop_footer
                %s1641 = sadd.s32 1, %s1637
              $region104: #{alexnet_forward.13} parent=97 // loop_footer_branch
                %1636 = sbr.rel target = $region100
              $region105: #{alexnet_forward.13} parent=97 // loop_exit
                _
            $region98: #{alexnet_forward.13} parent=93 // pred_fallthru
              _
            // Predicated region
            $region106: #{alexnet_forward.13} parent=93 // pred_check
              _
            $region107: #{alexnet_forward.13} parent=93 // pred_check_branch
              %1653 = sbr.rel target = $region109
            $region108: #{alexnet_forward.13} parent=93 // pred_region
              _
            $region109: #{alexnet_forward.13} parent=93 // pred_fallthru
              _
          $region94: #{alexnet_forward.13} parent=89 // pred_fallthru
            _
          %1654 = vnop
        $region90: #{alexnet_forward.13} parent=69 // pred_fallthru
          _
      $region70: #{alexnet_forward.13} parent=5 // pred_fallthru
        _
      %p1655 = scmp.le.s32.totalorder 2, %s9
      // Predicated region
      $region110: #{alexnet_forward.13} parent=5 // pred_check
        %p1656 = pneg %p1655
      $region111: #{alexnet_forward.13} parent=5 // pred_check_branch
        %1658 = sbr.rel (%p1656) target = $region113
      $region112: #{alexnet_forward.13} parent=5 // pred_region
        %s1659 = ssub.s32 %s9, 2
        // Predicated region
        $region114: #{alexnet_forward.13} parent=112 // pred_check
          %p1660 = pneg %p141
        $region115: #{alexnet_forward.13} parent=112 // pred_check_branch
          %1662 = sbr.rel (%p1660) target = $region117
        $region116: #{alexnet_forward.13} parent=112 // pred_region
          %s1663 = sand.u32 %s126, 1
          %s1664 = sand.u32 %s126, 1
          %s1665 = smul.addr %s1664, 32
          %s1666 = scalar_lea.vmem [#allocation5], %s1665
        $region117: #{alexnet_forward.13} parent=112 // pred_fallthru
          _
      $region113: #{alexnet_forward.13} parent=5 // pred_fallthru
        _
    $region6: #{alexnet_forward.13} parent=1 // loop_footer
      %s13 = sadd.s32 1, %s9
    $region7: #{alexnet_forward.13} parent=1 // loop_footer_branch
      %8 = sbr.rel target = $region3
    $region8: #{alexnet_forward.13} parent=1 // loop_exit
      _

// kernel: alexnet_forward.14
$region0: #{alexnet_forward.14}
  #allocation0 [shape = 'u32[]', space=smem, size = 0x4, offset = 0x4, fixed_abs, tag = 'smem constant byte address 0x4 - core index']
  #allocation1 [shape = 'u32[144,128]{1,0:T(1,128)}', space=vmem, size = 0x12000, scoped, tag = 'internal scratch']
  #allocation2 [shape = 'f32[16,512]{1,0:T(8,128)}', space=vmem, size = 0x8000, scoped, tag = 'scratch operand']
  %s0 = inlined_call_operand.vmem [shape: bf16[16,4096], index: 0, kind: input, shape index: {}]
  %s1 = inlined_call_operand.hbm [shape: bf16[4096,4096], index: 1, kind: input, shape index: {}]
  %s2 = inlined_call_operand.vmem [shape: f32[1,4096], index: 2, kind: input, shape index: {}]
  %s3 = inlined_call_operand.vmem [shape: bf16[16,4096], index: 3, kind: output, shape index: {}]
  %s4 = sld [smem:[#allocation0]]
  $region99: #{alexnet_forward.14} parent=0
    _
  %s6 = ssub.s32 1, %s4
  %s7 = scalar_select 0, %s6, %s4
  $region1: #{alexnet_forward.14} parent=0
    #allocation3 [shape = 'u8[32768]{0}', space=vmem, size = 0x8000, scoped, tag = 'input window, operand 0']
    #allocation4 [shape = 'u8[1048576]{0}', space=vmem, size = 0x100000, scoped, tag = 'input window, operand 1']
    #allocation5 [shape = 's32[2]{0}', space=sflag, size = 0x8, scoped, tag = 'scoped memory for alexnet_forward.14']
    #allocation6 [shape = 'u8[32768]{0}', space=vmem, size = 0x8000, scoped, tag = 'output window, operand 0']
    %8 = vsyncpa [#allocation5], 0
    %s9 = scalar_lea.sflag [#allocation5], 1
    %10 = vsyncpa %s9, 0
    loop: start=0, step=1, limit=66
    $region2: #{alexnet_forward.14} parent=1 // loop_pre_header
      _
    $region3: #{alexnet_forward.14} parent=1 // loop_header
      %s12 = sphi 0, %s16
      %p13 = scmp.ge.s32.totalorder %s12, 66
      %s19 = sphi 0, %s38
      %s20 = sphi 0, %s34
      %s21 = sphi 0, %s30
      %s22 = sphi 0, %s19
      %s23 = sphi 0, %s20
      %s24 = sphi 0, %s21
      %s25 = sphi 0, %s22
      %s26 = sphi 0, %s23
      %s27 = sphi 0, %s24
      %s43 = sphi 0, %s45
      %s46 = sphi 0, %s43
      %s47 = sphi 0, %s46
      %s63 = sphi 0, %s47
      %s71 = sphi 0, %s73
      %s74 = sphi 0, %s71
      %s75 = sphi 0, %s74
      %s91 = sphi 0, %s75
      %s97 = sphi 0, %s99
      %s100 = sphi 0, %s97
      %s101 = sphi 0, %s100
      %s117 = sphi 0, %s101
      %s125 = sphi 0, %s127
      %s128 = sphi 0, %s125
      %s129 = sphi 0, %s128
      %s145 = sphi 0, %s129
    $region4: #{alexnet_forward.14} parent=1 // loop_header_branch
      %15 = sbr.rel (%p13) target = $region8
    $region5: #{alexnet_forward.14} parent=1 // loop_body
      %s17 = ssub.s32 %s12, 1
      %s18 = ssub.s32 %s12, 2
      %s28 = sadd.s32 1, %s21
      %p29 = scmp.ge.s32.totalorder %s28, 8
      %s30 = scalar_select %p29, 0, %s28
      %s31 = sadd.s32 1, %s20
      %s32 = scalar_select %p29, %s31, %s20
      %p33 = scmp.ge.s32.totalorder %s32, 8
      %s34 = scalar_select %p33, 0, %s32
      %s35 = sadd.s32 1, %s19
      %s36 = scalar_select %p33, %s35, %s19
      %p37 = scmp.ge.s32.totalorder %s36, 1
      %s38 = scalar_select %p37, 0, %s36
      %s39 = ssub.s32 %s19, %s38
      %s40 = ssub.s32 %s21, %s30
      %s41 = sor.u32 %s39, %s40
      %p42 = scmp.eq.s32.totalorder %s41, 0
      %s44 = sadd.s32 %s43, 1
      %s45 = scalar_select %p42, %s43, %s44
      %p48 = pneg %p42
      %p49 = scmp.eq.s32.totalorder %s12, 63
      %p50 = por %p48, %p49
      %p51 = scmp.ne.s32.totalorder %s43, %s46
      %p52 = scmp.eq.s32.totalorder %s12, 0
      %p53 = por %p51, %p52
      %p54 = scmp.ne.s32.totalorder %s43, %s46
      %p55 = scmp.eq.s32.totalorder %s17, 63
      %p56 = por %p54, %p55
      %p57 = scmp.ne.s32.totalorder %s46, %s47
      %p58 = scmp.eq.s32.totalorder %s17, 0
      %p59 = por %p57, %p58
      %p60 = scmp.ne.s32.totalorder %s46, %s47
      %p61 = scmp.eq.s32.totalorder %s18, 63
      %p62 = por %p60, %p61
      %p64 = scmp.ne.s32.totalorder %s47, %s63
      %p65 = scmp.eq.s32.totalorder %s18, 0
      %p66 = por %p64, %p65
      %s67 = ssub.s32 %s21, %s30
      %s68 = ssub.s32 %s20, %s34
      %s69 = sor.u32 %s67, %s68
      %p70 = scmp.eq.s32.totalorder %s69, 0
      %s72 = sadd.s32 %s71, 1
      %s73 = scalar_select %p70, %s71, %s72
      %p76 = pneg %p70
      %p77 = scmp.eq.s32.totalorder %s12, 63
      %p78 = por %p76, %p77
      %p79 = scmp.ne.s32.totalorder %s71, %s74
      %p80 = scmp.eq.s32.totalorder %s12, 0
      %p81 = por %p79, %p80
      %p82 = scmp.ne.s32.totalorder %s71, %s74
      %p83 = scmp.eq.s32.totalorder %s17, 63
      %p84 = por %p82, %p83
      %p85 = scmp.ne.s32.totalorder %s74, %s75
      %p86 = scmp.eq.s32.totalorder %s17, 0
      %p87 = por %p85, %p86
      %p88 = scmp.ne.s32.totalorder %s74, %s75
      %p89 = scmp.eq.s32.totalorder %s18, 63
      %p90 = por %p88, %p89
      %p92 = scmp.ne.s32.totalorder %s75, %s91
      %p93 = scmp.eq.s32.totalorder %s18, 0
      %p94 = por %p92, %p93
      %s95 = ssub.s32 %s20, %s34
      %p96 = scmp.eq.s32.totalorder %s95, 0
      %s98 = sadd.s32 %s97, 1
      %s99 = scalar_select %p96, %s97, %s98
      %p102 = pneg %p96
      %p103 = scmp.eq.s32.totalorder %s12, 63
      %p104 = por %p102, %p103
      %p105 = scmp.ne.s32.totalorder %s97, %s100
      %p106 = scmp.eq.s32.totalorder %s12, 0
      %p107 = por %p105, %p106
      %p108 = scmp.ne.s32.totalorder %s97, %s100
      %p109 = scmp.eq.s32.totalorder %s17, 63
      %p110 = por %p108, %p109
      %p111 = scmp.ne.s32.totalorder %s100, %s101
      %p112 = scmp.eq.s32.totalorder %s17, 0
      %p113 = por %p111, %p112
      %p114 = scmp.ne.s32.totalorder %s100, %s101
      %p115 = scmp.eq.s32.totalorder %s18, 63
      %p116 = por %p114, %p115
      %p118 = scmp.ne.s32.totalorder %s101, %s117
      %p119 = scmp.eq.s32.totalorder %s18, 0
      %p120 = por %p118, %p119
      %s121 = ssub.s32 %s19, %s38
      %s122 = ssub.s32 %s20, %s34
      %s123 = sor.u32 %s121, %s122
      %p124 = scmp.eq.s32.totalorder %s123, 0
      %s126 = sadd.s32 %s125, 1
      %s127 = scalar_select %p124, %s125, %s126
      %p130 = pneg %p124
      %p131 = scmp.eq.s32.totalorder %s12, 63
      %p132 = por %p130, %p131
      %p133 = scmp.ne.s32.totalorder %s125, %s128
      %p134 = scmp.eq.s32.totalorder %s12, 0
      %p135 = por %p133, %p134
      %p136 = scmp.ne.s32.totalorder %s125, %s128
      %p137 = scmp.eq.s32.totalorder %s17, 63
      %p138 = por %p136, %p137
      %p139 = scmp.ne.s32.totalorder %s128, %s129
      %p140 = scmp.eq.s32.totalorder %s17, 0
      %p141 = por %p139, %p140
      %p142 = scmp.ne.s32.totalorder %s128, %s129
      %p143 = scmp.eq.s32.totalorder %s18, 63
      %p144 = por %p142, %p143
      %p146 = scmp.ne.s32.totalorder %s129, %s145
      %p147 = scmp.eq.s32.totalorder %s18, 0
      %p148 = por %p146, %p147
      %p149 = scmp.le.s32.totalorder 1, %s12
      %p150 = scmp.lt.s32.totalorder %s12, 65
      %p151 = pnand %p149, %p150
      %p152 = pneg %p151
      // Predicated region
      $region9: #{alexnet_forward.14} parent=5 // pred_check
        _
      $region10: #{alexnet_forward.14} parent=5 // pred_check_branch
        %154 = sbr.rel (%p151) target = $region12
      $region11: #{alexnet_forward.14} parent=5 // pred_region
        %s155 = ssub.s32 %s12, 1
      $region12: #{alexnet_forward.14} parent=5 // pred_fallthru
        _
      %p156 = scmp.lt.s32.totalorder %s12, 64
      // Predicated region
      $region13: #{alexnet_forward.14} parent=5 // pred_check
        %p157 = pneg %p156
      $region14: #{alexnet_forward.14} parent=5 // pred_check_branch
        %159 = sbr.rel (%p157) target = $region16
      $region15: #{alexnet_forward.14} parent=5 // pred_region
        // Predicated region
        $region17: #{alexnet_forward.14} parent=15 // pred_check
          %p160 = pneg %p53
        $region18: #{alexnet_forward.14} parent=15 // pred_check_branch
          %162 = sbr.rel (%p160) target = $region20
        $region19: #{alexnet_forward.14} parent=15 // pred_region
          %s163 = sand.u32 %s43, 1
          %s164 = sand.u32 %s43, 1
          %s165 = smul.addr %s164, 32
          %s166 = scalar_lea.vmem [#allocation3], %s165
          %s167 = smul.u32 2, %s19
          %s168 = smul.u32 4, %s21
          %s169 = smul.addr %s167, 32
          %s170 = sadd.s32 %s168, %s169
          %s171 = smul.addr %s170, 4
          %s172 = scalar_lea.vmem %s0, %s171
          // Predicated region
          $region21: #{alexnet_forward.14} parent=19 // pred_check
            _
          $region22: #{alexnet_forward.14} parent=19 // pred_check_branch
            %174 = sbr.rel (0) target = $region24
          $region23: #{alexnet_forward.14} parent=19 // pred_region
            // Predicated region
            $region25: #{alexnet_forward.14} parent=23 // pred_check
              _
            $region26: #{alexnet_forward.14} parent=23 // pred_check_branch
              %176 = sbr.rel (0) target = $region28
            $region27: #{alexnet_forward.14} parent=23 // pred_region
              loop: start=0, step=1, limit=1
              $region29: #{alexnet_forward.14} parent=27 // loop_pre_header
                _
              $region30: #{alexnet_forward.14} parent=27 // loop_header
                %s178 = sphi 0, %s182
                %p179 = scmp.ge.s32.totalorder %s178, 1
                %s183 = sphi %s172, %s172
                %s184 = sphi %s166, %s166
              $region31: #{alexnet_forward.14} parent=27 // loop_header_branch
                %181 = sbr.rel (%p179) target = $region35
              $region32: #{alexnet_forward.14} parent=27 // loop_body
                %v185 = vld [vmem:[%s183] sm:$0xff]
                %186 = vst [vmem:[%s184] sm:$0xff] %v185
                %v187 = vld [vmem:[%s183 + $0x8] sm:$0xff]
                %188 = vst [vmem:[%s184 + $0x8] sm:$0xff] %v187
                %v189 = vld [vmem:[%s183 + $0x80] sm:$0xff]
                %190 = vst [vmem:[%s184 + $0x10] sm:$0xff] %v189
                %v191 = vld [vmem:[%s183 + $0x88] sm:$0xff]
                %192 = vst [vmem:[%s184 + $0x18] sm:$0xff] %v191
              $region33: #{alexnet_forward.14} parent=27 // loop_footer
                %s182 = sadd.s32 1, %s178
              $region34: #{alexnet_forward.14} parent=27 // loop_footer_branch
                %177 = sbr.rel target = $region30
              $region35: #{alexnet_forward.14} parent=27 // loop_exit
                _
            $region28: #{alexnet_forward.14} parent=23 // pred_fallthru
              _
            // Predicated region
            $region36: #{alexnet_forward.14} parent=23 // pred_check
              _
            $region37: #{alexnet_forward.14} parent=23 // pred_check_branch
              %194 = sbr.rel target = $region39
            $region38: #{alexnet_forward.14} parent=23 // pred_region
              _
            $region39: #{alexnet_forward.14} parent=23 // pred_fallthru
              _
          $region24: #{alexnet_forward.14} parent=19 // pred_fallthru
            _
          %195 = vnop
        $region20: #{alexnet_forward.14} parent=15 // pred_fallthru
          _
        // Predicated region
        $region40: #{alexnet_forward.14} parent=15 // pred_check
          %p196 = pneg %p81
        $region41: #{alexnet_forward.14} parent=15 // pred_check_branch
          %198 = sbr.rel (%p196) target = $region43
        $region42: #{alexnet_forward.14} parent=15 // pred_region
          %s199 = sand.u32 %s71, 1
          %s200 = scalar_lea.sflag [#allocation5], %s199
          %s201 = sand.u32 %s71, 1
          %s202 = smul.addr %s201, 1024
          %s203 = scalar_lea.vmem [#allocation4], %s202
          %s204 = smul.u32 64, %s21
          %s205 = smul.u32 4, %s20
          %s207 = ssub.s32 16384, 16384
          %208 = vsyncadd %s200, %s207
          %s209 = smul.addr %s204, 32
          %s210 = sadd.s32 %s205, %s209
          %s211 = smul.addr %s210, 64
          %s212 = scalar_lea.hbm %s1, %s211
          %s213 = sshll.u32 %s203, 4
          %s214 = int_to_ptr.vmem [resolvable:$true] %s213
          %219 = dma.hbm_to_vmem [thread:$0]  %s212, 16384, %s214, %s200, 2048, 256, 16
        $region43: #{alexnet_forward.14} parent=15 // pred_fallthru
          _
        // Predicated region
        $region44: #{alexnet_forward.14} parent=15 // pred_check
          %p220 = pneg %p107
        $region45: #{alexnet_forward.14} parent=15 // pred_check_branch
          %222 = sbr.rel (%p220) target = $region47
        $region46: #{alexnet_forward.14} parent=15 // pred_region
          %s223 = smul.u32 4, %s20
          %p224 = scmp.lt.s32.totalorder %s223, 31
          %s225 = scalar_select %p224, %s223, 31
          %s226 = scalar_lea.vmem %s2, %s225
          %s227 = smul.u32 4, %s20
        $region47: #{alexnet_forward.14} parent=15 // pred_fallthru
          _
      $region16: #{alexnet_forward.14} parent=5 // pred_fallthru
        _
      %p228 = scmp.le.s32.totalorder 1, %s12
      %p229 = scmp.lt.s32.totalorder %s12, 65
      %p230 = pnand %p228, %p229
      %p231 = pneg %p230
      // Predicated region
      $region48: #{alexnet_forward.14} parent=5 // pred_check
        _
      $region49: #{alexnet_forward.14} parent=5 // pred_check_branch
        %233 = sbr.rel (%p230) target = $region51
      $region50: #{alexnet_forward.14} parent=5 // pred_region
        %s234 = ssub.s32 %s12, 1
        %s235 = sand.u32 %s46, 1
        %s236 = sand.u32 %s46, 1
        %s237 = smul.addr %s236, 32
        %s238 = scalar_lea.vmem [#allocation3], %s237
        // Predicated region
        $region52: #{alexnet_forward.14} parent=50 // pred_check
          %p239 = pneg %p59
        $region53: #{alexnet_forward.14} parent=50 // pred_check_branch
          %241 = sbr.rel (%p239) target = $region55
        $region54: #{alexnet_forward.14} parent=50 // pred_region
          _
        $region55: #{alexnet_forward.14} parent=50 // pred_fallthru
          _
        %s242 = sand.u32 %s74, 1
        %s243 = scalar_lea.sflag [#allocation5], %s242
        %s244 = sand.u32 %s74, 1
        %s245 = smul.addr %s244, 1024
        %s246 = scalar_lea.vmem [#allocation4], %s245
        // Predicated region
        $region56: #{alexnet_forward.14} parent=50 // pred_check
          %p247 = pneg %p87
        $region57: #{alexnet_forward.14} parent=50 // pred_check_branch
          %249 = sbr.rel (%p247) target = $region59
        $region58: #{alexnet_forward.14} parent=50 // pred_region
          %250 = dma.done %s243, 16384
        $region59: #{alexnet_forward.14} parent=50 // pred_fallthru
          _
        %s251 = sand.u32 %s46, 1
        %s252 = sand.u32 %s46, 1
        %s253 = smul.addr %s252, 32
        %s254 = scalar_lea.vmem [#allocation3], %s253
        %p255 = pneg %p59
        %p256 = pneg %p56
        %s257 = sand.u32 %s74, 1
        %s258 = scalar_lea.sflag [#allocation5], %s257
        %s259 = sand.u32 %s74, 1
        %s260 = smul.addr %s259, 1024
        %s261 = scalar_lea.vmem [#allocation4], %s260
        %p262 = pneg %p87
        %p263 = pneg %p84
        %s264 = smul.u32 4, %s23
        %p265 = scmp.lt.s32.totalorder %s264, 31
        %s266 = scalar_select %p265, %s264, 31
        %s267 = scalar_lea.vmem %s2, %s266
        %p268 = pneg %p113
        %p269 = pneg %p110
        %p270 = pneg %p141
        %p271 = pneg %p138
        %s272 = sand.u32 %s128, 1
        %s273 = sand.u32 %s128, 1
        %s274 = smul.addr %s273, 32
        %s275 = scalar_lea.vmem [#allocation6], %s274
        %s276 = smul.u32 2, %s22
        %s277 = smul.u32 4, %s24
        %s278 = smul.u32 64, %s24
        %s279 = smul.u32 4, %s23
        %s280 = smul.u32 4, %s23
        %p281 = scmp.lt.s32.totalorder %s280, 31
        %s282 = scalar_select %p281, %s280, 31
        %s283 = scalar_lea.vmem %s2, %s282
        %s284 = smul.u32 4, %s23
        %s285 = smul.u32 2, %s22
        %s286 = smul.u32 4, %s23
        %p287 = scmp.eq.s32.totalorder %s24, 0
        // Predicated region
        $region60: #{alexnet_forward.14} parent=50 // pred_check
          %p288 = pneg %p287
        $region61: #{alexnet_forward.14} parent=50 // pred_check_branch
          %290 = sbr.rel (%p288) target = $region63
        $region62: #{alexnet_forward.14} parent=50 // pred_region
          %291 = vst [vmem:[#allocation2] sm:$0xff] 0.0
          %292 = vst [vmem:[#allocation2 + $0x8] sm:$0xff] 0.0
          %293 = vst [vmem:[#allocation2 + $0x10] sm:$0xff] 0.0
          %294 = vst [vmem:[#allocation2 + $0x18] sm:$0xff] 0.0
          %295 = vst [vmem:[#allocation2 + $0x20] sm:$0xff] 0.0
          %296 = vst [vmem:[#allocation2 + $0x28] sm:$0xff] 0.0
          %297 = vst [vmem:[#allocation2 + $0x30] sm:$0xff] 0.0
          %298 = vst [vmem:[#allocation2 + $0x38] sm:$0xff] 0.0
        $region63: #{alexnet_forward.14} parent=50 // pred_fallthru
          _
        %v299 = vld [vmem:[#allocation2] sm:$0xff]
        %v300 = vld [vmem:[#allocation2 + $0x8] sm:$0xff]
        %v301 = vld [vmem:[#allocation2 + $0x10] sm:$0xff]
        %v302 = vld [vmem:[#allocation2 + $0x18] sm:$0xff]
        %v303 = vld [vmem:[#allocation2 + $0x20] sm:$0xff]
        %v304 = vld [vmem:[#allocation2 + $0x28] sm:$0xff]
        %v305 = vld [vmem:[#allocation2 + $0x30] sm:$0xff]
        %v306 = vld [vmem:[#allocation2 + $0x38] sm:$0xff]
        %v307 = vld [vmem:[%s238] sm:$0xff]
        %v308 = vld [vmem:[%s238 + $0x8] sm:$0xff]
        %v309 = vld [vmem:[%s238 + $0x10] sm:$0xff]
        %v310 = vld [vmem:[%s238 + $0x18] sm:$0xff]
        %v311 = vld [vmem:[%s246] sm:$0xff]
        %v312 = vld [vmem:[%s246 + $0x8] sm:$0xff]
        %v313 = vld [vmem:[%s246 + $0x10] sm:$0xff]
        %v314 = vld [vmem:[%s246 + $0x18] sm:$0xff]
        %v315 = vld [vmem:[%s246 + $0x20] sm:$0xff]
        %v316 = vld [vmem:[%s246 + $0x28] sm:$0xff]
        %v317 = vld [vmem:[%s246 + $0x30] sm:$0xff]
        %v318 = vld [vmem:[%s246 + $0x38] sm:$0xff]
        %v319 = vld [vmem:[%s246 + $0x40] sm:$0xff]
        %v320 = vld [vmem:[%s246 + $0x48] sm:$0xff]
        %v321 = vld [vmem:[%s246 + $0x50] sm:$0xff]
        %v322 = vld [vmem:[%s246 + $0x58] sm:$0xff]
        %v323 = vld [vmem:[%s246 + $0x60] sm:$0xff]
        %v324 = vld [vmem:[%s246 + $0x68] sm:$0xff]
        %v325 = vld [vmem:[%s246 + $0x70] sm:$0xff]
        %v326 = vld [vmem:[%s246 + $0x78] sm:$0xff]
        %v327 = vld [vmem:[%s246 + $0x80] sm:$0xff]
        %v328 = vld [vmem:[%s246 + $0x88] sm:$0xff]
        %v329 = vld [vmem:[%s246 + $0x90] sm:$0xff]
        %v330 = vld [vmem:[%s246 + $0x98] sm:$0xff]
        %v331 = vld [vmem:[%s246 + $0xa0] sm:$0xff]
        %v332 = vld [vmem:[%s246 + $0xa8] sm:$0xff]
        %v333 = vld [vmem:[%s246 + $0xb0] sm:$0xff]
        %v334 = vld [vmem:[%s246 + $0xb8] sm:$0xff]
        %v335 = vld [vmem:[%s246 + $0xc0] sm:$0xff]
        %v336 = vld [vmem:[%s246 + $0xc8] sm:$0xff]
        %v337 = vld [vmem:[%s246 + $0xd0] sm:$0xff]
        %v338 = vld [vmem:[%s246 + $0xd8] sm:$0xff]
        %v339 = vld [vmem:[%s246 + $0xe0] sm:$0xff]
        %v340 = vld [vmem:[%s246 + $0xe8] sm:$0xff]
        %v341 = vld [vmem:[%s246 + $0xf0] sm:$0xff]
        %v342 = vld [vmem:[%s246 + $0xf8] sm:$0xff]
        %v343 = vld [vmem:[%s246 + $0x100] sm:$0xff]
        %v344 = vld [vmem:[%s246 + $0x108] sm:$0xff]
        %v345 = vld [vmem:[%s246 + $0x110] sm:$0xff]
        %v346 = vld [vmem:[%s246 + $0x118] sm:$0xff]
        %v347 = vld [vmem:[%s246 + $0x120] sm:$0xff]
        %v348 = vld [vmem:[%s246 + $0x128] sm:$0xff]
        %v349 = vld [vmem:[%s246 + $0x130] sm:$0xff]
        %v350 = vld [vmem:[%s246 + $0x138] sm:$0xff]
        %v351 = vld [vmem:[%s246 + $0x140] sm:$0xff]
        %v352 = vld [vmem:[%s246 + $0x148] sm:$0xff]
        %v353 = vld [vmem:[%s246 + $0x150] sm:$0xff]
        %v354 = vld [vmem:[%s246 + $0x158] sm:$0xff]
        %v355 = vld [vmem:[%s246 + $0x160] sm:$0xff]
        %v356 = vld [vmem:[%s246 + $0x168] sm:$0xff]
        %v357 = vld [vmem:[%s246 + $0x170] sm:$0xff]
        %v358 = vld [vmem:[%s246 + $0x178] sm:$0xff]
        %v359 = vld [vmem:[%s246 + $0x180] sm:$0xff]
        %v360 = vld [vmem:[%s246 + $0x188] sm:$0xff]
        %v361 = vld [vmem:[%s246 + $0x190] sm:$0xff]
        %v362 = vld [vmem:[%s246 + $0x198] sm:$0xff]
        %v363 = vld [vmem:[%s246 + $0x1a0] sm:$0xff]
        %v364 = vld [vmem:[%s246 + $0x1a8] sm:$0xff]
        %v365 = vld [vmem:[%s246 + $0x1b0] sm:$0xff]
        %v366 = vld [vmem:[%s246 + $0x1b8] sm:$0xff]
        %v367 = vld [vmem:[%s246 + $0x1c0] sm:$0xff]
        %v368 = vld [vmem:[%s246 + $0x1c8] sm:$0xff]
        %v369 = vld [vmem:[%s246 + $0x1d0] sm:$0xff]
        %v370 = vld [vmem:[%s246 + $0x1d8] sm:$0xff]
        %v371 = vld [vmem:[%s246 + $0x1e0] sm:$0xff]
        %v372 = vld [vmem:[%s246 + $0x1e8] sm:$0xff]
        %v373 = vld [vmem:[%s246 + $0x1f0] sm:$0xff]
        %v374 = vld [vmem:[%s246 + $0x1f8] sm:$0xff]
        %v375 = vld [vmem:[%s246 + $0x200] sm:$0xff]
        %v376 = vld [vmem:[%s246 + $0x208] sm:$0xff]
        %v377 = vld [vmem:[%s246 + $0x210] sm:$0xff]
        %v378 = vld [vmem:[%s246 + $0x218] sm:$0xff]
        %v379 = vld [vmem:[%s246 + $0x220] sm:$0xff]
        %v380 = vld [vmem:[%s246 + $0x228] sm:$0xff]
        %v381 = vld [vmem:[%s246 + $0x230] sm:$0xff]
        %v382 = vld [vmem:[%s246 + $0x238] sm:$0xff]
        %v383 = vld [vmem:[%s246 + $0x240] sm:$0xff]
        %v384 = vld [vmem:[%s246 + $0x248] sm:$0xff]
        %v385 = vld [vmem:[%s246 + $0x250] sm:$0xff]
        %v386 = vld [vmem:[%s246 + $0x258] sm:$0xff]
        %v387 = vld [vmem:[%s246 + $0x260] sm:$0xff]
        %v388 = vld [vmem:[%s246 + $0x268] sm:$0xff]
        %v389 = vld [vmem:[%s246 + $0x270] sm:$0xff]
        %v390 = vld [vmem:[%s246 + $0x278] sm:$0xff]
        %v391 = vld [vmem:[%s246 + $0x280] sm:$0xff]
        %v392 = vld [vmem:[%s246 + $0x288] sm:$0xff]
        %v393 = vld [vmem:[%s246 + $0x290] sm:$0xff]
        %v394 = vld [vmem:[%s246 + $0x298] sm:$0xff]
        %v395 = vld [vmem:[%s246 + $0x2a0] sm:$0xff]
        %v396 = vld [vmem:[%s246 + $0x2a8] sm:$0xff]
        %v397 = vld [vmem:[%s246 + $0x2b0] sm:$0xff]
        %v398 = vld [vmem:[%s246 + $0x2b8] sm:$0xff]
        %v399 = vld [vmem:[%s246 + $0x2c0] sm:$0xff]
        %v400 = vld [vmem:[%s246 + $0x2c8] sm:$0xff]
        %v401 = vld [vmem:[%s246 + $0x2d0] sm:$0xff]
        %v402 = vld [vmem:[%s246 + $0x2d8] sm:$0xff]
        %v403 = vld [vmem:[%s246 + $0x2e0] sm:$0xff]
        %v404 = vld [vmem:[%s246 + $0x2e8] sm:$0xff]
        %v405 = vld [vmem:[%s246 + $0x2f0] sm:$0xff]
        %v406 = vld [vmem:[%s246 + $0x2f8] sm:$0xff]
        %v407 = vld [vmem:[%s246 + $0x300] sm:$0xff]
        %v408 = vld [vmem:[%s246 + $0x308] sm:$0xff]
        %v409 = vld [vmem:[%s246 + $0x310] sm:$0xff]
        %v410 = vld [vmem:[%s246 + $0x318] sm:$0xff]
        %v411 = vld [vmem:[%s246 + $0x320] sm:$0xff]
        %v412 = vld [vmem:[%s246 + $0x328] sm:$0xff]
        %v413 = vld [vmem:[%s246 + $0x330] sm:$0xff]
        %v414 = vld [vmem:[%s246 + $0x338] sm:$0xff]
        %v415 = vld [vmem:[%s246 + $0x340] sm:$0xff]
        %v416 = vld [vmem:[%s246 + $0x348] sm:$0xff]
        %v417 = vld [vmem:[%s246 + $0x350] sm:$0xff]
        %v418 = vld [vmem:[%s246 + $0x358] sm:$0xff]
        %v419 = vld [vmem:[%s246 + $0x360] sm:$0xff]
        %v420 = vld [vmem:[%s246 + $0x368] sm:$0xff]
        %v421 = vld [vmem:[%s246 + $0x370] sm:$0xff]
        %v422 = vld [vmem:[%s246 + $0x378] sm:$0xff]
        %v423 = vld [vmem:[%s246 + $0x380] sm:$0xff]
        %v424 = vld [vmem:[%s246 + $0x388] sm:$0xff]
        %v425 = vld [vmem:[%s246 + $0x390] sm:$0xff]
        %v426 = vld [vmem:[%s246 + $0x398] sm:$0xff]
        %v427 = vld [vmem:[%s246 + $0x3a0] sm:$0xff]
        %v428 = vld [vmem:[%s246 + $0x3a8] sm:$0xff]
        %v429 = vld [vmem:[%s246 + $0x3b0] sm:$0xff]
        %v430 = vld [vmem:[%s246 + $0x3b8] sm:$0xff]
        %v431 = vld [vmem:[%s246 + $0x3c0] sm:$0xff]
        %v432 = vld [vmem:[%s246 + $0x3c8] sm:$0xff]
        %v433 = vld [vmem:[%s246 + $0x3d0] sm:$0xff]
        %v434 = vld [vmem:[%s246 + $0x3d8] sm:$0xff]
        %v435 = vld [vmem:[%s246 + $0x3e0] sm:$0xff]
        %v436 = vld [vmem:[%s246 + $0x3e8] sm:$0xff]
        %v437 = vld [vmem:[%s246 + $0x3f0] sm:$0xff]
        %v438 = vld [vmem:[%s246 + $0x3f8] sm:$0xff]
        %v443 = vunpack.c.l.b16 %v307
        %v444 = vunpack.c.h.b16 %v307
        %v445 = vunpack.c.l.b16 %v308
        %v446 = vunpack.c.h.b16 %v308
        %v447 = vunpack.c.l.b16 %v309
        %v448 = vunpack.c.h.b16 %v309
        %v449 = vunpack.c.l.b16 %v310
        %v450 = vunpack.c.h.b16 %v310
        %v451 = vpack.c.b16 %v447, %v443
        %v452 = vpack.c.b16 %v448, %v444
        %v453 = vpack.c.b16 %v449, %v445
        %v454 = vpack.c.b16 %v450, %v446
        %v587 = vunpack.c.l.b16 %v311
        %v588 = vunpack.c.h.b16 %v311
        %v589 = vunpack.c.l.b16 %v312
        %v590 = vunpack.c.h.b16 %v312
        %v591 = vunpack.c.l.b16 %v313
        %v592 = vunpack.c.h.b16 %v313
        %v593 = vunpack.c.l.b16 %v314
        %v594 = vunpack.c.h.b16 %v314
        %v595 = vunpack.c.l.b16 %v315
        %v596 = vunpack.c.h.b16 %v315
        %v597 = vunpack.c.l.b16 %v316
        %v598 = vunpack.c.h.b16 %v316
        %v599 = vunpack.c.l.b16 %v317
        %v600 = vunpack.c.h.b16 %v317
        %v601 = vunpack.c.l.b16 %v318
        %v602 = vunpack.c.h.b16 %v318
        %v603 = vunpack.c.l.b16 %v319
        %v604 = vunpack.c.h.b16 %v319
        %v605 = vunpack.c.l.b16 %v320
        %v606 = vunpack.c.h.b16 %v320
        %v607 = vunpack.c.l.b16 %v321
        %v608 = vunpack.c.h.b16 %v321
        %v609 = vunpack.c.l.b16 %v322
        %v610 = vunpack.c.h.b16 %v322
        %v611 = vunpack.c.l.b16 %v323
        %v612 = vunpack.c.h.b16 %v323
        %v613 = vunpack.c.l.b16 %v324
        %v614 = vunpack.c.h.b16 %v324
        %v615 = vunpack.c.l.b16 %v325
        %v616 = vunpack.c.h.b16 %v325
        %v617 = vunpack.c.l.b16 %v326
        %v618 = vunpack.c.h.b16 %v326
        %v619 = vunpack.c.l.b16 %v327
        %v620 = vunpack.c.h.b16 %v327
        %v621 = vunpack.c.l.b16 %v328
        %v622 = vunpack.c.h.b16 %v328
        %v623 = vunpack.c.l.b16 %v329
        %v624 = vunpack.c.h.b16 %v329
        %v625 = vunpack.c.l.b16 %v330
        %v626 = vunpack.c.h.b16 %v330
        %v627 = vunpack.c.l.b16 %v331
        %v628 = vunpack.c.h.b16 %v331
        %v629 = vunpack.c.l.b16 %v332
        %v630 = vunpack.c.h.b16 %v332
        %v631 = vunpack.c.l.b16 %v333
        %v632 = vunpack.c.h.b16 %v333
        %v633 = vunpack.c.l.b16 %v334
        %v634 = vunpack.c.h.b16 %v334
        %v635 = vunpack.c.l.b16 %v335
        %v636 = vunpack.c.h.b16 %v335
        %v637 = vunpack.c.l.b16 %v336
        %v638 = vunpack.c.h.b16 %v336
        %v639 = vunpack.c.l.b16 %v337
        %v640 = vunpack.c.h.b16 %v337
        %v641 = vunpack.c.l.b16 %v338
        %v642 = vunpack.c.h.b16 %v338
        %v643 = vunpack.c.l.b16 %v339
        %v644 = vunpack.c.h.b16 %v339
        %v645 = vunpack.c.l.b16 %v340
        %v646 = vunpack.c.h.b16 %v340
        %v647 = vunpack.c.l.b16 %v341
        %v648 = vunpack.c.h.b16 %v341
        %v649 = vunpack.c.l.b16 %v342
        %v650 = vunpack.c.h.b16 %v342
        %v651 = vunpack.c.l.b16 %v343
        %v652 = vunpack.c.h.b16 %v343
        %v653 = vunpack.c.l.b16 %v344
        %v654 = vunpack.c.h.b16 %v344
        %v655 = vunpack.c.l.b16 %v345
        %v656 = vunpack.c.h.b16 %v345
        %v657 = vunpack.c.l.b16 %v346
        %v658 = vunpack.c.h.b16 %v346
        %v659 = vunpack.c.l.b16 %v347
        %v660 = vunpack.c.h.b16 %v347
        %v661 = vunpack.c.l.b16 %v348
        %v662 = vunpack.c.h.b16 %v348
        %v663 = vunpack.c.l.b16 %v349
        %v664 = vunpack.c.h.b16 %v349
        %v665 = vunpack.c.l.b16 %v350
        %v666 = vunpack.c.h.b16 %v350
        %v667 = vunpack.c.l.b16 %v351
        %v668 = vunpack.c.h.b16 %v351
        %v669 = vunpack.c.l.b16 %v352
        %v670 = vunpack.c.h.b16 %v352
        %v671 = vunpack.c.l.b16 %v353
        %v672 = vunpack.c.h.b16 %v353
        %v673 = vunpack.c.l.b16 %v354
        %v674 = vunpack.c.h.b16 %v354
        %v675 = vunpack.c.l.b16 %v355
        %v676 = vunpack.c.h.b16 %v355
        %v677 = vunpack.c.l.b16 %v356
        %v678 = vunpack.c.h.b16 %v356
        %v679 = vunpack.c.l.b16 %v357
        %v680 = vunpack.c.h.b16 %v357
        %v681 = vunpack.c.l.b16 %v358
        %v682 = vunpack.c.h.b16 %v358
        %v683 = vunpack.c.l.b16 %v359
        %v684 = vunpack.c.h.b16 %v359
        %v685 = vunpack.c.l.b16 %v360
        %v686 = vunpack.c.h.b16 %v360
        %v687 = vunpack.c.l.b16 %v361
        %v688 = vunpack.c.h.b16 %v361
        %v689 = vunpack.c.l.b16 %v362
        %v690 = vunpack.c.h.b16 %v362
        %v691 = vunpack.c.l.b16 %v363
        %v692 = vunpack.c.h.b16 %v363
        %v693 = vunpack.c.l.b16 %v364
        %v694 = vunpack.c.h.b16 %v364
        %v695 = vunpack.c.l.b16 %v365
        %v696 = vunpack.c.h.b16 %v365
        %v697 = vunpack.c.l.b16 %v366
        %v698 = vunpack.c.h.b16 %v366
        %v699 = vunpack.c.l.b16 %v367
        %v700 = vunpack.c.h.b16 %v367
        %v701 = vunpack.c.l.b16 %v368
        %v702 = vunpack.c.h.b16 %v368
        %v703 = vunpack.c.l.b16 %v369
        %v704 = vunpack.c.h.b16 %v369
        %v705 = vunpack.c.l.b16 %v370
        %v706 = vunpack.c.h.b16 %v370
        %v707 = vunpack.c.l.b16 %v371
        %v708 = vunpack.c.h.b16 %v371
        %v709 = vunpack.c.l.b16 %v372
        %v710 = vunpack.c.h.b16 %v372
        %v711 = vunpack.c.l.b16 %v373
        %v712 = vunpack.c.h.b16 %v373
        %v713 = vunpack.c.l.b16 %v374
        %v714 = vunpack.c.h.b16 %v374
        %v715 = vunpack.c.l.b16 %v375
        %v716 = vunpack.c.h.b16 %v375
        %v717 = vunpack.c.l.b16 %v376
        %v718 = vunpack.c.h.b16 %v376
        %v719 = vunpack.c.l.b16 %v377
        %v720 = vunpack.c.h.b16 %v377
        %v721 = vunpack.c.l.b16 %v378
        %v722 = vunpack.c.h.b16 %v378
        %v723 = vunpack.c.l.b16 %v379
        %v724 = vunpack.c.h.b16 %v379
        %v725 = vunpack.c.l.b16 %v380
        %v726 = vunpack.c.h.b16 %v380
        %v727 = vunpack.c.l.b16 %v381
        %v728 = vunpack.c.h.b16 %v381
        %v729 = vunpack.c.l.b16 %v382
        %v730 = vunpack.c.h.b16 %v382
        %v731 = vunpack.c.l.b16 %v383
        %v732 = vunpack.c.h.b16 %v383
        %v733 = vunpack.c.l.b16 %v384
        %v734 = vunpack.c.h.b16 %v384
        %v735 = vunpack.c.l.b16 %v385
        %v736 = vunpack.c.h.b16 %v385
        %v737 = vunpack.c.l.b16 %v386
        %v738 = vunpack.c.h.b16 %v386
        %v739 = vunpack.c.l.b16 %v387
        %v740 = vunpack.c.h.b16 %v387
        %v741 = vunpack.c.l.b16 %v388
        %v742 = vunpack.c.h.b16 %v388
        %v743 = vunpack.c.l.b16 %v389
        %v744 = vunpack.c.h.b16 %v389
        %v745 = vunpack.c.l.b16 %v390
        %v746 = vunpack.c.h.b16 %v390
        %v747 = vunpack.c.l.b16 %v391
        %v748 = vunpack.c.h.b16 %v391
        %v749 = vunpack.c.l.b16 %v392
        %v750 = vunpack.c.h.b16 %v392
        %v751 = vunpack.c.l.b16 %v393
        %v752 = vunpack.c.h.b16 %v393
        %v753 = vunpack.c.l.b16 %v394
        %v754 = vunpack.c.h.b16 %v394
        %v755 = vunpack.c.l.b16 %v395
        %v756 = vunpack.c.h.b16 %v395
        %v757 = vunpack.c.l.b16 %v396
        %v758 = vunpack.c.h.b16 %v396
        %v759 = vunpack.c.l.b16 %v397
        %v760 = vunpack.c.h.b16 %v397
        %v761 = vunpack.c.l.b16 %v398
        %v762 = vunpack.c.h.b16 %v398
        %v763 = vunpack.c.l.b16 %v399
        %v764 = vunpack.c.h.b16 %v399
        %v765 = vunpack.c.l.b16 %v400
        %v766 = vunpack.c.h.b16 %v400
        %v767 = vunpack.c.l.b16 %v401
        %v768 = vunpack.c.h.b16 %v401
        %v769 = vunpack.c.l.b16 %v402
        %v770 = vunpack.c.h.b16 %v402
        %v771 = vunpack.c.l.b16 %v403
        %v772 = vunpack.c.h.b16 %v403
        %v773 = vunpack.c.l.b16 %v404
        %v774 = vunpack.c.h.b16 %v404
        %v775 = vunpack.c.l.b16 %v405
        %v776 = vunpack.c.h.b16 %v405
        %v777 = vunpack.c.l.b16 %v406
        %v778 = vunpack.c.h.b16 %v406
        %v779 = vunpack.c.l.b16 %v407
        %v780 = vunpack.c.h.b16 %v407
        %v781 = vunpack.c.l.b16 %v408
        %v782 = vunpack.c.h.b16 %v408
        %v783 = vunpack.c.l.b16 %v409
        %v784 = vunpack.c.h.b16 %v409
        %v785 = vunpack.c.l.b16 %v410
        %v786 = vunpack.c.h.b16 %v410
        %v787 = vunpack.c.l.b16 %v411
        %v788 = vunpack.c.h.b16 %v411
        %v789 = vunpack.c.l.b16 %v412
        %v790 = vunpack.c.h.b16 %v412
        %v791 = vunpack.c.l.b16 %v413
        %v792 = vunpack.c.h.b16 %v413
        %v793 = vunpack.c.l.b16 %v414
        %v794 = vunpack.c.h.b16 %v414
        %v795 = vunpack.c.l.b16 %v415
        %v796 = vunpack.c.h.b16 %v415
        %v797 = vunpack.c.l.b16 %v416
        %v798 = vunpack.c.h.b16 %v416
        %v799 = vunpack.c.l.b16 %v417
        %v800 = vunpack.c.h.b16 %v417
        %v801 = vunpack.c.l.b16 %v418
        %v802 = vunpack.c.h.b16 %v418
        %v803 = vunpack.c.l.b16 %v419
        %v804 = vunpack.c.h.b16 %v419
        %v805 = vunpack.c.l.b16 %v420
        %v806 = vunpack.c.h.b16 %v420
        %v807 = vunpack.c.l.b16 %v421
        %v808 = vunpack.c.h.b16 %v421
        %v809 = vunpack.c.l.b16 %v422
        %v810 = vunpack.c.h.b16 %v422
        %v811 = vunpack.c.l.b16 %v423
        %v812 = vunpack.c.h.b16 %v423
        %v813 = vunpack.c.l.b16 %v424
        %v814 = vunpack.c.h.b16 %v424
        %v815 = vunpack.c.l.b16 %v425
        %v816 = vunpack.c.h.b16 %v425
        %v817 = vunpack.c.l.b16 %v426
        %v818 = vunpack.c.h.b16 %v426
        %v819 = vunpack.c.l.b16 %v427
        %v820 = vunpack.c.h.b16 %v427
        %v821 = vunpack.c.l.b16 %v428
        %v822 = vunpack.c.h.b16 %v428
        %v823 = vunpack.c.l.b16 %v429
        %v824 = vunpack.c.h.b16 %v429
        %v825 = vunpack.c.l.b16 %v430
        %v826 = vunpack.c.h.b16 %v430
        %v827 = vunpack.c.l.b16 %v431
        %v828 = vunpack.c.h.b16 %v431
        %v829 = vunpack.c.l.b16 %v432
        %v830 = vunpack.c.h.b16 %v432
        %v831 = vunpack.c.l.b16 %v433
        %v832 = vunpack.c.h.b16 %v433
        %v833 = vunpack.c.l.b16 %v434
        %v834 = vunpack.c.h.b16 %v434
        %v835 = vunpack.c.l.b16 %v435
        %v836 = vunpack.c.h.b16 %v435
        %v837 = vunpack.c.l.b16 %v436
        %v838 = vunpack.c.h.b16 %v436
        %v839 = vunpack.c.l.b16 %v437
        %v840 = vunpack.c.h.b16 %v437
        %v841 = vunpack.c.l.b16 %v438
        %v842 = vunpack.c.h.b16 %v438
        %v843 = vpack.c.b16 %v591, %v587
        %v844 = vpack.c.b16 %v592, %v588
        %v845 = vpack.c.b16 %v593, %v589
        %v846 = vpack.c.b16 %v594, %v590
        %v847 = vpack.c.b16 %v599, %v595
        %v848 = vpack.c.b16 %v600, %v596
        %v849 = vpack.c.b16 %v601, %v597
        %v850 = vpack.c.b16 %v602, %v598
        %v851 = vpack.c.b16 %v607, %v603
        %v852 = vpack.c.b16 %v608, %v604
        %v853 = vpack.c.b16 %v609, %v605
        %v854 = vpack.c.b16 %v610, %v606
        %v855 = vpack.c.b16 %v615, %v611
        %v856 = vpack.c.b16 %v616, %v612
        %v857 = vpack.c.b16 %v617, %v613
        %v858 = vpack.c.b16 %v618, %v614
        %v859 = vpack.c.b16 %v623, %v619
        %v860 = vpack.c.b16 %v624, %v620
        %v861 = vpack.c.b16 %v625, %v621
        %v862 = vpack.c.b16 %v626, %v622
        %v863 = vpack.c.b16 %v631, %v627
        %v864 = vpack.c.b16 %v632, %v628
        %v865 = vpack.c.b16 %v633, %v629
        %v866 = vpack.c.b16 %v634, %v630
        %v867 = vpack.c.b16 %v639, %v635
        %v868 = vpack.c.b16 %v640, %v636
        %v869 = vpack.c.b16 %v641, %v637
        %v870 = vpack.c.b16 %v642, %v638
        %v871 = vpack.c.b16 %v647, %v643
        %v872 = vpack.c.b16 %v648, %v644
        %v873 = vpack.c.b16 %v649, %v645
        %v874 = vpack.c.b16 %v650, %v646
        %v875 = vpack.c.b16 %v655, %v651
        %v876 = vpack.c.b16 %v656, %v652
        %v877 = vpack.c.b16 %v657, %v653
        %v878 = vpack.c.b16 %v658, %v654
        %v879 = vpack.c.b16 %v663, %v659
        %v880 = vpack.c.b16 %v664, %v660
        %v881 = vpack.c.b16 %v665, %v661
        %v882 = vpack.c.b16 %v666, %v662
        %v883 = vpack.c.b16 %v671, %v667
        %v884 = vpack.c.b16 %v672, %v668
        %v885 = vpack.c.b16 %v673, %v669
        %v886 = vpack.c.b16 %v674, %v670
        %v887 = vpack.c.b16 %v679, %v675
        %v888 = vpack.c.b16 %v680, %v676
        %v889 = vpack.c.b16 %v681, %v677
        %v890 = vpack.c.b16 %v682, %v678
        %v891 = vpack.c.b16 %v687, %v683
        %v892 = vpack.c.b16 %v688, %v684
        %v893 = vpack.c.b16 %v689, %v685
        %v894 = vpack.c.b16 %v690, %v686
        %v895 = vpack.c.b16 %v695, %v691
        %v896 = vpack.c.b16 %v696, %v692
        %v897 = vpack.c.b16 %v697, %v693
        %v898 = vpack.c.b16 %v698, %v694
        %v899 = vpack.c.b16 %v703, %v699
        %v900 = vpack.c.b16 %v704, %v700
        %v901 = vpack.c.b16 %v705, %v701
        %v902 = vpack.c.b16 %v706, %v702
        %v903 = vpack.c.b16 %v711, %v707
        %v904 = vpack.c.b16 %v712, %v708
        %v905 = vpack.c.b16 %v713, %v709
        %v906 = vpack.c.b16 %v714, %v710
        %v907 = vpack.c.b16 %v719, %v715
        %v908 = vpack.c.b16 %v720, %v716
        %v909 = vpack.c.b16 %v721, %v717
        %v910 = vpack.c.b16 %v722, %v718
        %v911 = vpack.c.b16 %v727, %v723
        %v912 = vpack.c.b16 %v728, %v724
        %v913 = vpack.c.b16 %v729, %v725
        %v914 = vpack.c.b16 %v730, %v726
        %v915 = vpack.c.b16 %v735, %v731
        %v916 = vpack.c.b16 %v736, %v732
        %v917 = vpack.c.b16 %v737, %v733
        %v918 = vpack.c.b16 %v738, %v734
        %v919 = vpack.c.b16 %v743, %v739
        %v920 = vpack.c.b16 %v744, %v740
        %v921 = vpack.c.b16 %v745, %v741
        %v922 = vpack.c.b16 %v746, %v742
        %v923 = vpack.c.b16 %v751, %v747
        %v924 = vpack.c.b16 %v752, %v748
        %v925 = vpack.c.b16 %v753, %v749
        %v926 = vpack.c.b16 %v754, %v750
        %v927 = vpack.c.b16 %v759, %v755
        %v928 = vpack.c.b16 %v760, %v756
        %v929 = vpack.c.b16 %v761, %v757
        %v930 = vpack.c.b16 %v762, %v758
        %v931 = vpack.c.b16 %v767, %v763
        %v932 = vpack.c.b16 %v768, %v764
        %v933 = vpack.c.b16 %v769, %v765
        %v934 = vpack.c.b16 %v770, %v766
        %v935 = vpack.c.b16 %v775, %v771
        %v936 = vpack.c.b16 %v776, %v772
        %v937 = vpack.c.b16 %v777, %v773
        %v938 = vpack.c.b16 %v778, %v774
        %v939 = vpack.c.b16 %v783, %v779
        %v940 = vpack.c.b16 %v784, %v780
        %v941 = vpack.c.b16 %v785, %v781
        %v942 = vpack.c.b16 %v786, %v782
        %v943 = vpack.c.b16 %v791, %v787
        %v944 = vpack.c.b16 %v792, %v788
        %v945 = vpack.c.b16 %v793, %v789
        %v946 = vpack.c.b16 %v794, %v790
        %v947 = vpack.c.b16 %v799, %v795
        %v948 = vpack.c.b16 %v800, %v796
        %v949 = vpack.c.b16 %v801, %v797
        %v950 = vpack.c.b16 %v802, %v798
        %v951 = vpack.c.b16 %v807, %v803
        %v952 = vpack.c.b16 %v808, %v804
        %v953 = vpack.c.b16 %v809, %v805
        %v954 = vpack.c.b16 %v810, %v806
        %v955 = vpack.c.b16 %v815, %v811
        %v956 = vpack.c.b16 %v816, %v812
        %v957 = vpack.c.b16 %v817, %v813
        %v958 = vpack.c.b16 %v818, %v814
        %v959 = vpack.c.b16 %v823, %v819
        %v960 = vpack.c.b16 %v824, %v820
        %v961 = vpack.c.b16 %v825, %v821
        %v962 = vpack.c.b16 %v826, %v822
        %v963 = vpack.c.b16 %v831, %v827
        %v964 = vpack.c.b16 %v832, %v828
        %v965 = vpack.c.b16 %v833, %v829
        %v966 = vpack.c.b16 %v834, %v830
        %v967 = vpack.c.b16 %v839, %v835
        %v968 = vpack.c.b16 %v840, %v836
        %v969 = vpack.c.b16 %v841, %v837
        %v970 = vpack.c.b16 %v842, %v838
        %1099 = vmatprep.subr.bf16.mxu0 %v872
        %1100 = vmatpush1.bf16.msra.mxu0 %v871
        %1101 = vmatprep.subr.bf16.mxu0 %v868
        %1102 = vmatpush1.bf16.msra.mxu0 %v867
        %1103 = vmatprep.subr.bf16.mxu0 %v864
        %1104 = vmatpush1.bf16.msra.mxu0 %v863
        %1105 = vmatprep.subr.bf16.mxu0 %v860
        %1106 = vmatpush1.bf16.msra.mxu0 %v859
        %1107 = vmatprep.subr.bf16.mxu0 %v856
        %1108 = vmatpush1.bf16.msra.mxu0 %v855
        %1109 = vmatprep.subr.bf16.mxu0 %v852
        %1110 = vmatpush1.bf16.msra.mxu0 %v851
        %1111 = vmatprep.subr.bf16.mxu0 %v848
        %1112 = vmatpush1.bf16.msra.mxu0 %v847
        %1113 = vmatprep.subr.bf16.mxu0 %v844
        %1114 = vmatpush1.bf16.msra.mxu0 %v843
        %1115 = vmatprep.subr.bf16.mxu0 %v904
        %1116 = vmatpush2.bf16.msra.mxu0 %v903
        %1117 = vmatprep.subr.bf16.mxu0 %v900
        %1118 = vmatpush2.bf16.msra.mxu0 %v899
        %1119 = vmatprep.subr.bf16.mxu0 %v896
        %1120 = vmatpush2.bf16.msra.mxu0 %v895
        %1121 = vmatprep.subr.bf16.mxu0 %v892
        %1122 = vmatpush2.bf16.msra.mxu0 %v891
        %1123 = vmatprep.subr.bf16.mxu0 %v888
        %1124 = vmatpush2.bf16.msra.mxu0 %v887
        %1125 = vmatprep.subr.bf16.mxu0 %v884
        %1126 = vmatpush2.bf16.msra.mxu0 %v883
        %1127 = vmatprep.subr.bf16.mxu0 %v880
        %1128 = vmatpush2.bf16.msra.mxu0 %v879
        %1129 = vmatprep.subr.bf16.mxu0 %v876
        %1130 = vmatpush2.bf16.msra.mxu0 %v875
        %1131 = vmatprep.mubr.bf16.mxu0 %v452
        %1132 = vmatmul.mubr.bf16.gmra.mxu0 %v451
        %v1133 = vpop.f32.mrf.mxu0
        %v1134 = vadd.f32 0.0, %v1133
        %v1135 = vpop.f32.mrf.mxu0
        %v1136 = vadd.f32 0.0, %v1135
        %v1137 = vpop.f32.mrf.mxu0
        %v1138 = vadd.f32 0.0, %v1137
        %v1139 = vpop.f32.mrf.mxu0
        %v1140 = vadd.f32 0.0, %v1139
        %1141 = vdwg.mxu0
        %1142 = vmatprep.subr.bf16.mxu0 %v936
        %1143 = vmatpush1.bf16.msra.mxu0 %v935
        %1144 = vmatprep.subr.bf16.mxu0 %v932
        %1145 = vmatpush1.bf16.msra.mxu0 %v931
        %1146 = vmatprep.subr.bf16.mxu0 %v928
        %1147 = vmatpush1.bf16.msra.mxu0 %v927
        %1148 = vmatprep.subr.bf16.mxu0 %v924
        %1149 = vmatpush1.bf16.msra.mxu0 %v923
        %1150 = vmatprep.subr.bf16.mxu0 %v920
        %1151 = vmatpush1.bf16.msra.mxu0 %v919
        %1152 = vmatprep.subr.bf16.mxu0 %v916
        %1153 = vmatpush1.bf16.msra.mxu0 %v915
        %1154 = vmatprep.subr.bf16.mxu0 %v912
        %1155 = vmatpush1.bf16.msra.mxu0 %v911
        %1156 = vmatprep.subr.bf16.mxu0 %v908
        %1157 = vmatpush1.bf16.msra.mxu0 %v907
        %1158 = vmatprep.subr.bf16.mxu0 %v968
        %1159 = vmatpush2.bf16.msra.mxu0 %v967
        %1160 = vmatprep.subr.bf16.mxu0 %v964
        %1161 = vmatpush2.bf16.msra.mxu0 %v963
        %1162 = vmatprep.subr.bf16.mxu0 %v960
        %1163 = vmatpush2.bf16.msra.mxu0 %v959
        %1164 = vmatprep.subr.bf16.mxu0 %v956
        %1165 = vmatpush2.bf16.msra.mxu0 %v955
        %1166 = vmatprep.subr.bf16.mxu0 %v952
        %1167 = vmatpush2.bf16.msra.mxu0 %v951
        %1168 = vmatprep.subr.bf16.mxu0 %v948
        %1169 = vmatpush2.bf16.msra.mxu0 %v947
        %1170 = vmatprep.subr.bf16.mxu0 %v944
        %1171 = vmatpush2.bf16.msra.mxu0 %v943
        %1172 = vmatprep.subr.bf16.mxu0 %v940
        %1173 = vmatpush2.bf16.msra.mxu0 %v939
        %1174 = vmatprep.mubr.bf16.mxu0 %v454
        %1175 = vmatmul.mubr.bf16.gmra.mxu0 %v453
        %v1176 = vpop.f32.mrf.mxu0
        %v1177 = vadd.f32 %v1134, %v1176
        %v1178 = vpop.f32.mrf.mxu0
        %v1179 = vadd.f32 %v1136, %v1178
        %v1180 = vpop.f32.mrf.mxu0
        %v1181 = vadd.f32 %v1138, %v1180
        %v1182 = vpop.f32.mrf.mxu0
        %v1183 = vadd.f32 %v1140, %v1182
        %1184 = vdwg.mxu0
        %1185 = vmatprep.subr.bf16.mxu0 %v874
        %1186 = vmatpush1.bf16.msra.mxu0 %v873
        %1187 = vmatprep.subr.bf16.mxu0 %v870
        %1188 = vmatpush1.bf16.msra.mxu0 %v869
        %1189 = vmatprep.subr.bf16.mxu0 %v866
        %1190 = vmatpush1.bf16.msra.mxu0 %v865
        %1191 = vmatprep.subr.bf16.mxu0 %v862
        %1192 = vmatpush1.bf16.msra.mxu0 %v861
        %1193 = vmatprep.subr.bf16.mxu0 %v858
        %1194 = vmatpush1.bf16.msra.mxu0 %v857
        %1195 = vmatprep.subr.bf16.mxu0 %v854
        %1196 = vmatpush1.bf16.msra.mxu0 %v853
        %1197 = vmatprep.subr.bf16.mxu0 %v850
        %1198 = vmatpush1.bf16.msra.mxu0 %v849
        %1199 = vmatprep.subr.bf16.mxu0 %v846
        %1200 = vmatpush1.bf16.msra.mxu0 %v845
        %1201 = vmatprep.subr.bf16.mxu0 %v906
        %1202 = vmatpush2.bf16.msra.mxu0 %v905
        %1203 = vmatprep.subr.bf16.mxu0 %v902
        %1204 = vmatpush2.bf16.msra.mxu0 %v901
        %1205 = vmatprep.subr.bf16.mxu0 %v898
        %1206 = vmatpush2.bf16.msra.mxu0 %v897
        %1207 = vmatprep.subr.bf16.mxu0 %v894
        %1208 = vmatpush2.bf16.msra.mxu0 %v893
        %1209 = vmatprep.subr.bf16.mxu0 %v890
        %1210 = vmatpush2.bf16.msra.mxu0 %v889
        %1211 = vmatprep.subr.bf16.mxu0 %v886
        %1212 = vmatpush2.bf16.msra.mxu0 %v885
        %1213 = vmatprep.subr.bf16.mxu0 %v882
        %1214 = vmatpush2.bf16.msra.mxu0 %v881
        %1215 = vmatprep.subr.bf16.mxu0 %v878
        %1216 = vmatpush2.bf16.msra.mxu0 %v877
        %1217 = vmatprep.mubr.bf16.mxu0 %v452
        %1218 = vmatmul.mubr.bf16.gmra.mxu0 %v451
        %v1219 = vpop.f32.mrf.mxu0
        %v1220 = vadd.f32 0.0, %v1219
        %v1221 = vpop.f32.mrf.mxu0
        %v1222 = vadd.f32 0.0, %v1221
        %v1223 = vpop.f32.mrf.mxu0
        %v1224 = vadd.f32 0.0, %v1223
        %v1225 = vpop.f32.mrf.mxu0
        %v1226 = vadd.f32 0.0, %v1225
        %1227 = vdwg.mxu0
        %1228 = vmatprep.subr.bf16.mxu0 %v938
        %1229 = vmatpush1.bf16.msra.mxu0 %v937
        %1230 = vmatprep.subr.bf16.mxu0 %v934
        %1231 = vmatpush1.bf16.msra.mxu0 %v933
        %1232 = vmatprep.subr.bf16.mxu0 %v930
        %1233 = vmatpush1.bf16.msra.mxu0 %v929
        %1234 = vmatprep.subr.bf16.mxu0 %v926
        %1235 = vmatpush1.bf16.msra.mxu0 %v925
        %1236 = vmatprep.subr.bf16.mxu0 %v922
        %1237 = vmatpush1.bf16.msra.mxu0 %v921
        %1238 = vmatprep.subr.bf16.mxu0 %v918
        %1239 = vmatpush1.bf16.msra.mxu0 %v917
        %1240 = vmatprep.subr.bf16.mxu0 %v914
        %1241 = vmatpush1.bf16.msra.mxu0 %v913
        %1242 = vmatprep.subr.bf16.mxu0 %v910
        %1243 = vmatpush1.bf16.msra.mxu0 %v909
        %1244 = vmatprep.subr.bf16.mxu0 %v970
        %1245 = vmatpush2.bf16.msra.mxu0 %v969
        %1246 = vmatprep.subr.bf16.mxu0 %v966
        %1247 = vmatpush2.bf16.msra.mxu0 %v965
        %1248 = vmatprep.subr.bf16.mxu0 %v962
        %1249 = vmatpush2.bf16.msra.mxu0 %v961
        %1250 = vmatprep.subr.bf16.mxu0 %v958
        %1251 = vmatpush2.bf16.msra.mxu0 %v957
        %1252 = vmatprep.subr.bf16.mxu0 %v954
        %1253 = vmatpush2.bf16.msra.mxu0 %v953
        %1254 = vmatprep.subr.bf16.mxu0 %v950
        %1255 = vmatpush2.bf16.msra.mxu0 %v949
        %1256 = vmatprep.subr.bf16.mxu0 %v946
        %1257 = vmatpush2.bf16.msra.mxu0 %v945
        %1258 = vmatprep.subr.bf16.mxu0 %v942
        %1259 = vmatpush2.bf16.msra.mxu0 %v941
        %1260 = vmatprep.mubr.bf16.mxu0 %v454
        %1261 = vmatmul.mubr.bf16.gmra.mxu0 %v453
        %v1262 = vpop.f32.mrf.mxu0
        %v1263 = vadd.f32 %v1220, %v1262
        %v1264 = vpop.f32.mrf.mxu0
        %v1265 = vadd.f32 %v1222, %v1264
        %v1266 = vpop.f32.mrf.mxu0
        %v1267 = vadd.f32 %v1224, %v1266
        %v1268 = vpop.f32.mrf.mxu0
        %v1269 = vadd.f32 %v1226, %v1268
        %1270 = vdwg.mxu0
        %v1271 = vadd.f32 %v299, %v1177
        %v1272 = vadd.f32 %v300, %v1179
        %v1273 = vadd.f32 %v301, %v1263
        %v1274 = vadd.f32 %v302, %v1265
        %v1275 = vadd.f32 %v303, %v1181
        %v1276 = vadd.f32 %v304, %v1183
        %v1277 = vadd.f32 %v305, %v1267
        %v1278 = vadd.f32 %v306, %v1269
        %1279 = vst [vmem:[#allocation2] sm:$0xff] %v1271
        %1280 = vst [vmem:[#allocation2 + $0x8] sm:$0xff] %v1272
        %1281 = vst [vmem:[#allocation2 + $0x10] sm:$0xff] %v1273
        %1282 = vst [vmem:[#allocation2 + $0x18] sm:$0xff] %v1274
        %1283 = vst [vmem:[#allocation2 + $0x20] sm:$0xff] %v1275
        %1284 = vst [vmem:[#allocation2 + $0x28] sm:$0xff] %v1276
        %1285 = vst [vmem:[#allocation2 + $0x30] sm:$0xff] %v1277
        %1286 = vst [vmem:[#allocation2 + $0x38] sm:$0xff] %v1278
        %p1287 = scmp.eq.s32.totalorder %s24, 7
        // Predicated region
        $region64: #{alexnet_forward.14} parent=50 // pred_check
          %p1288 = pneg %p1287
        $region65: #{alexnet_forward.14} parent=50 // pred_check_branch
          %1290 = sbr.rel (%p1288) target = $region67
        $region66: #{alexnet_forward.14} parent=50 // pred_region
          %v1291 = vld [vmem:[#allocation2] sm:$0xff]
          %v1292 = vld [vmem:[#allocation2 + $0x8] sm:$0xff]
          %v1293 = vld [vmem:[#allocation2 + $0x10] sm:$0xff]
          %v1294 = vld [vmem:[#allocation2 + $0x18] sm:$0xff]
          %v1295 = vld [vmem:[#allocation2 + $0x20] sm:$0xff]
          %v1296 = vld [vmem:[#allocation2 + $0x28] sm:$0xff]
          %v1297 = vld [vmem:[#allocation2 + $0x30] sm:$0xff]
          %v1298 = vld [vmem:[#allocation2 + $0x38] sm:$0xff]
          %v1299 = vld [vmem:[%s283] sm:$0xf]
          %v1301 = vlaneseq
          %v1302 = vshrl.u32 %v1301, 7
          %v1303 = vsub.s32 0, %v1302
          %v1304 = vrot.slane %v1299, %v1303
          %v1305 = vlaneseq
          %v1306 = vshrl.u32 %v1305, 7
          %v1307 = vsub.s32 1, %v1306
          %v1308 = vrot.slane %v1299, %v1307
          %v1309 = vlaneseq
          %v1310 = vshrl.u32 %v1309, 7
          %v1311 = vsub.s32 2, %v1310
          %v1312 = vrot.slane %v1299, %v1311
          %v1313 = vlaneseq
          %v1314 = vshrl.u32 %v1313, 7
          %v1315 = vsub.s32 3, %v1314
          %v1316 = vrot.slane %v1299, %v1315
          %v1321 = vadd.f32 %v1291, %v1304
          %v1322 = vadd.f32 %v1292, %v1308
          %v1323 = vadd.f32 %v1293, %v1312
          %v1324 = vadd.f32 %v1294, %v1316
          %v1325 = vadd.f32 %v1295, %v1304
          %v1326 = vadd.f32 %v1296, %v1308
          %v1327 = vadd.f32 %v1297, %v1312
          %v1328 = vadd.f32 %v1298, %v1316
          %v1329 = vmax.f32 %v1321, 0.0
          %v1330 = vmax.f32 %v1322, 0.0
          %v1331 = vmax.f32 %v1323, 0.0
          %v1332 = vmax.f32 %v1324, 0.0
          %v1333 = vmax.f32 %v1325, 0.0
          %v1334 = vmax.f32 %v1326, 0.0
          %v1335 = vmax.f32 %v1327, 0.0
          %v1336 = vmax.f32 %v1328, 0.0
          %v1337 = vpack.c.bf16 %v1333, %v1329
          %v1338 = vpack.c.bf16 %v1334, %v1330
          %v1339 = vpack.c.bf16 %v1335, %v1331
          %v1340 = vpack.c.bf16 %v1336, %v1332
          %v1345 = vunpack.c.l.b16 %v1337
          %v1346 = vunpack.c.l.b16 %v1338
          %v1347 = vunpack.c.l.b16 %v1339
          %v1348 = vunpack.c.l.b16 %v1340
          %v1349 = vunpack.c.h.b16 %v1337
          %v1350 = vunpack.c.h.b16 %v1338
          %v1351 = vunpack.c.h.b16 %v1339
          %v1352 = vunpack.c.h.b16 %v1340
          %v1353 = vpack.c.b16 %v1346, %v1345
          %v1354 = vpack.c.b16 %v1348, %v1347
          %v1355 = vpack.c.b16 %v1350, %v1349
          %v1356 = vpack.c.b16 %v1352, %v1351
          %1361 = vst [vmem:[%s275] sm:$0xff] %v1353
          %1362 = vst [vmem:[%s275 + $0x8] sm:$0xff] %v1354
          %1363 = vst [vmem:[%s275 + $0x10] sm:$0xff] %v1355
          %1364 = vst [vmem:[%s275 + $0x18] sm:$0xff] %v1356
        $region67: #{alexnet_forward.14} parent=50 // pred_fallthru
          _
        %s1365 = sand.u32 %s128, 1
        %s1366 = sand.u32 %s128, 1
        %s1367 = smul.addr %s1366, 32
        %s1368 = scalar_lea.vmem [#allocation6], %s1367
        // Predicated region
        $region68: #{alexnet_forward.14} parent=50 // pred_check
          %p1369 = pneg %p138
        $region69: #{alexnet_forward.14} parent=50 // pred_check_branch
          %1371 = sbr.rel (%p1369) target = $region71
        $region70: #{alexnet_forward.14} parent=50 // pred_region
          %s1372 = smul.u32 2, %s22
          %s1373 = smul.u32 4, %s23
          %s1374 = smul.addr %s1372, 32
          %s1375 = sadd.s32 %s1373, %s1374
          %s1376 = smul.addr %s1375, 4
          %s1377 = scalar_lea.vmem %s3, %s1376
          // Predicated region
          $region72: #{alexnet_forward.14} parent=70 // pred_check
            _
          $region73: #{alexnet_forward.14} parent=70 // pred_check_branch
            %1379 = sbr.rel (0) target = $region75
          $region74: #{alexnet_forward.14} parent=70 // pred_region
            // Predicated region
            $region76: #{alexnet_forward.14} parent=74 // pred_check
              _
            $region77: #{alexnet_forward.14} parent=74 // pred_check_branch
              %1381 = sbr.rel (0) target = $region79
            $region78: #{alexnet_forward.14} parent=74 // pred_region
              loop: start=0, step=1, limit=1
              $region80: #{alexnet_forward.14} parent=78 // loop_pre_header
                _
              $region81: #{alexnet_forward.14} parent=78 // loop_header
                %s1383 = sphi 0, %s1387
                %p1384 = scmp.ge.s32.totalorder %s1383, 1
                %s1388 = sphi %s1368, %s1368
                %s1389 = sphi %s1377, %s1377
              $region82: #{alexnet_forward.14} parent=78 // loop_header_branch
                %1386 = sbr.rel (%p1384) target = $region86
              $region83: #{alexnet_forward.14} parent=78 // loop_body
                %v1390 = vld [vmem:[%s1388] sm:$0xff]
                %1391 = vst [vmem:[%s1389] sm:$0xff] %v1390
                %v1392 = vld [vmem:[%s1388 + $0x8] sm:$0xff]
                %1393 = vst [vmem:[%s1389 + $0x8] sm:$0xff] %v1392
                %v1394 = vld [vmem:[%s1388 + $0x10] sm:$0xff]
                %1395 = vst [vmem:[%s1389 + $0x80] sm:$0xff] %v1394
                %v1396 = vld [vmem:[%s1388 + $0x18] sm:$0xff]
                %1397 = vst [vmem:[%s1389 + $0x88] sm:$0xff] %v1396
              $region84: #{alexnet_forward.14} parent=78 // loop_footer
                %s1387 = sadd.s32 1, %s1383
              $region85: #{alexnet_forward.14} parent=78 // loop_footer_branch
                %1382 = sbr.rel target = $region81
              $region86: #{alexnet_forward.14} parent=78 // loop_exit
                _
            $region79: #{alexnet_forward.14} parent=74 // pred_fallthru
              _
            // Predicated region
            $region87: #{alexnet_forward.14} parent=74 // pred_check
              _
            $region88: #{alexnet_forward.14} parent=74 // pred_check_branch
              %1399 = sbr.rel target = $region90
            $region89: #{alexnet_forward.14} parent=74 // pred_region
              _
            $region90: #{alexnet_forward.14} parent=74 // pred_fallthru
              _
          $region75: #{alexnet_forward.14} parent=70 // pred_fallthru
            _
          %1400 = vnop
        $region71: #{alexnet_forward.14} parent=50 // pred_fallthru
          _
      $region51: #{alexnet_forward.14} parent=5 // pred_fallthru
        _
      %p1401 = scmp.le.s32.totalorder 2, %s12
      // Predicated region
      $region91: #{alexnet_forward.14} parent=5 // pred_check
        %p1402 = pneg %p1401
      $region92: #{alexnet_forward.14} parent=5 // pred_check_branch
        %1404 = sbr.rel (%p1402) target = $region94
      $region93: #{alexnet_forward.14} parent=5 // pred_region
        %s1405 = ssub.s32 %s12, 2
        // Predicated region
        $region95: #{alexnet_forward.14} parent=93 // pred_check
          %p1406 = pneg %p144
        $region96: #{alexnet_forward.14} parent=93 // pred_check_branch
          %1408 = sbr.rel (%p1406) target = $region98
        $region97: #{alexnet_forward.14} parent=93 // pred_region
          %s1409 = sand.u32 %s129, 1
          %s1410 = sand.u32 %s129, 1
          %s1411 = smul.addr %s1410, 32
          %s1412 = scalar_lea.vmem [#allocation6], %s1411
        $region98: #{alexnet_forward.14} parent=93 // pred_fallthru
          _
      $region94: #{alexnet_forward.14} parent=5 // pred_fallthru
        _
    $region6: #{alexnet_forward.14} parent=1 // loop_footer
      %s16 = sadd.s32 1, %s12
    $region7: #{alexnet_forward.14} parent=1 // loop_footer_branch
      %11 = sbr.rel target = $region3
    $region8: #{alexnet_forward.14} parent=1 // loop_exit
      _
    %1413 = vsyncpa [#allocation5], 1
    %s1414 = scalar_lea.sflag [#allocation5], 1
    %1415 = vsyncpa %s1414, 1

// kernel: alexnet_forward.15
$region0: #{alexnet_forward.15}
  #allocation0 [shape = 'u32[]', space=smem, size = 0x4, offset = 0x4, fixed_abs, tag = 'smem constant byte address 0x4 - core index']
  #allocation1 [shape = 'u32[144,128]{1,0:T(1,128)}', space=vmem, size = 0x12000, scoped, tag = 'internal scratch']
  #allocation2 [shape = 'f32[16,128]{1,0:T(8,128)}', space=vmem, size = 0x2000, scoped, tag = 'scratch operand']
  %s0 = inlined_call_operand.vmem [shape: bf16[16,4096], index: 0, kind: input, shape index: {}]
  %s1 = inlined_call_operand.vmem [shape: bf16[4096,128], index: 1, kind: input, shape index: {}]
  %s2 = inlined_call_operand.vmem [shape: f32[1,128], index: 2, kind: input, shape index: {}]
  %s3 = inlined_call_operand.vmem [shape: f32[16,128], index: 3, kind: output, shape index: {}]
  %s4 = sld [smem:[#allocation0]]
  $region76: #{alexnet_forward.15} parent=0
    _
  %s6 = ssub.s32 1, %s4
  %s7 = scalar_select 0, %s6, %s4
  $region1: #{alexnet_forward.15} parent=0
    #allocation3 [shape = 'u8[32768]{0}', space=vmem, size = 0x8000, scoped, tag = 'input window, operand 0']
    loop: start=0, step=1, limit=10
    $region2: #{alexnet_forward.15} parent=1 // loop_pre_header
      _
    $region3: #{alexnet_forward.15} parent=1 // loop_header
      %s9 = sphi 0, %s13
      %p10 = scmp.ge.s32.totalorder %s9, 10
      %s16 = sphi 0, %s35
      %s17 = sphi 0, %s31
      %s18 = sphi 0, %s27
      %s19 = sphi 0, %s16
      %s20 = sphi 0, %s17
      %s21 = sphi 0, %s18
      %s22 = sphi 0, %s19
      %s23 = sphi 0, %s20
      %s24 = sphi 0, %s21
      %s40 = sphi 0, %s42
      %s43 = sphi 0, %s40
      %s44 = sphi 0, %s43
      %s60 = sphi 0, %s44
      %s68 = sphi 0, %s70
      %s71 = sphi 0, %s68
      %s72 = sphi 0, %s71
      %s88 = sphi 0, %s72
      %s94 = sphi 0, %s96
      %s97 = sphi 0, %s94
      %s98 = sphi 0, %s97
      %s114 = sphi 0, %s98
      %s122 = sphi 0, %s124
      %s125 = sphi 0, %s122
      %s126 = sphi 0, %s125
      %s142 = sphi 0, %s126
    $region4: #{alexnet_forward.15} parent=1 // loop_header_branch
      %12 = sbr.rel (%p10) target = $region8
    $region5: #{alexnet_forward.15} parent=1 // loop_body
      %s14 = ssub.s32 %s9, 1
      %s15 = ssub.s32 %s9, 2
      %s25 = sadd.s32 1, %s18
      %p26 = scmp.ge.s32.totalorder %s25, 8
      %s27 = scalar_select %p26, 0, %s25
      %s28 = sadd.s32 1, %s17
      %s29 = scalar_select %p26, %s28, %s17
      %p30 = scmp.ge.s32.totalorder %s29, 1
      %s31 = scalar_select %p30, 0, %s29
      %s32 = sadd.s32 1, %s16
      %s33 = scalar_select %p30, %s32, %s16
      %p34 = scmp.ge.s32.totalorder %s33, 1
      %s35 = scalar_select %p34, 0, %s33
      %s36 = ssub.s32 %s16, %s35
      %s37 = ssub.s32 %s18, %s27
      %s38 = sor.u32 %s36, %s37
      %p39 = scmp.eq.s32.totalorder %s38, 0
      %s41 = sadd.s32 %s40, 1
      %s42 = scalar_select %p39, %s40, %s41
      %p45 = pneg %p39
      %p46 = scmp.eq.s32.totalorder %s9, 7
      %p47 = por %p45, %p46
      %p48 = scmp.ne.s32.totalorder %s40, %s43
      %p49 = scmp.eq.s32.totalorder %s9, 0
      %p50 = por %p48, %p49
      %p51 = scmp.ne.s32.totalorder %s40, %s43
      %p52 = scmp.eq.s32.totalorder %s14, 7
      %p53 = por %p51, %p52
      %p54 = scmp.ne.s32.totalorder %s43, %s44
      %p55 = scmp.eq.s32.totalorder %s14, 0
      %p56 = por %p54, %p55
      %p57 = scmp.ne.s32.totalorder %s43, %s44
      %p58 = scmp.eq.s32.totalorder %s15, 7
      %p59 = por %p57, %p58
      %p61 = scmp.ne.s32.totalorder %s44, %s60
      %p62 = scmp.eq.s32.totalorder %s15, 0
      %p63 = por %p61, %p62
      %s64 = ssub.s32 %s18, %s27
      %s65 = ssub.s32 %s17, %s31
      %s66 = sor.u32 %s64, %s65
      %p67 = scmp.eq.s32.totalorder %s66, 0
      %s69 = sadd.s32 %s68, 1
      %s70 = scalar_select %p67, %s68, %s69
      %p73 = pneg %p67
      %p74 = scmp.eq.s32.totalorder %s9, 7
      %p75 = por %p73, %p74
      %p76 = scmp.ne.s32.totalorder %s68, %s71
      %p77 = scmp.eq.s32.totalorder %s9, 0
      %p78 = por %p76, %p77
      %p79 = scmp.ne.s32.totalorder %s68, %s71
      %p80 = scmp.eq.s32.totalorder %s14, 7
      %p81 = por %p79, %p80
      %p82 = scmp.ne.s32.totalorder %s71, %s72
      %p83 = scmp.eq.s32.totalorder %s14, 0
      %p84 = por %p82, %p83
      %p85 = scmp.ne.s32.totalorder %s71, %s72
      %p86 = scmp.eq.s32.totalorder %s15, 7
      %p87 = por %p85, %p86
      %p89 = scmp.ne.s32.totalorder %s72, %s88
      %p90 = scmp.eq.s32.totalorder %s15, 0
      %p91 = por %p89, %p90
      %s92 = ssub.s32 %s17, %s31
      %p93 = scmp.eq.s32.totalorder %s92, 0
      %s95 = sadd.s32 %s94, 1
      %s96 = scalar_select %p93, %s94, %s95
      %p99 = pneg %p93
      %p100 = scmp.eq.s32.totalorder %s9, 7
      %p101 = por %p99, %p100
      %p102 = scmp.ne.s32.totalorder %s94, %s97
      %p103 = scmp.eq.s32.totalorder %s9, 0
      %p104 = por %p102, %p103
      %p105 = scmp.ne.s32.totalorder %s94, %s97
      %p106 = scmp.eq.s32.totalorder %s14, 7
      %p107 = por %p105, %p106
      %p108 = scmp.ne.s32.totalorder %s97, %s98
      %p109 = scmp.eq.s32.totalorder %s14, 0
      %p110 = por %p108, %p109
      %p111 = scmp.ne.s32.totalorder %s97, %s98
      %p112 = scmp.eq.s32.totalorder %s15, 7
      %p113 = por %p111, %p112
      %p115 = scmp.ne.s32.totalorder %s98, %s114
      %p116 = scmp.eq.s32.totalorder %s15, 0
      %p117 = por %p115, %p116
      %s118 = ssub.s32 %s16, %s35
      %s119 = ssub.s32 %s17, %s31
      %s120 = sor.u32 %s118, %s119
      %p121 = scmp.eq.s32.totalorder %s120, 0
      %s123 = sadd.s32 %s122, 1
      %s124 = scalar_select %p121, %s122, %s123
      %p127 = pneg %p121
      %p128 = scmp.eq.s32.totalorder %s9, 7
      %p129 = por %p127, %p128
      %p130 = scmp.ne.s32.totalorder %s122, %s125
      %p131 = scmp.eq.s32.totalorder %s9, 0
      %p132 = por %p130, %p131
      %p133 = scmp.ne.s32.totalorder %s122, %s125
      %p134 = scmp.eq.s32.totalorder %s14, 7
      %p135 = por %p133, %p134
      %p136 = scmp.ne.s32.totalorder %s125, %s126
      %p137 = scmp.eq.s32.totalorder %s14, 0
      %p138 = por %p136, %p137
      %p139 = scmp.ne.s32.totalorder %s125, %s126
      %p140 = scmp.eq.s32.totalorder %s15, 7
      %p141 = por %p139, %p140
      %p143 = scmp.ne.s32.totalorder %s126, %s142
      %p144 = scmp.eq.s32.totalorder %s15, 0
      %p145 = por %p143, %p144
      %p146 = scmp.le.s32.totalorder 1, %s9
      %p147 = scmp.lt.s32.totalorder %s9, 9
      %p148 = pnand %p146, %p147
      %p149 = pneg %p148
      // Predicated region
      $region9: #{alexnet_forward.15} parent=5 // pred_check
        _
      $region10: #{alexnet_forward.15} parent=5 // pred_check_branch
        %151 = sbr.rel (%p148) target = $region12
      $region11: #{alexnet_forward.15} parent=5 // pred_region
        %s152 = ssub.s32 %s9, 1
        // Predicated region
        $region13: #{alexnet_forward.15} parent=11 // pred_check
          %p153 = pneg %p110
        $region14: #{alexnet_forward.15} parent=11 // pred_check_branch
          %155 = sbr.rel (%p153) target = $region16
        $region15: #{alexnet_forward.15} parent=11 // pred_region
          %p156 = scmp.lt.s32.totalorder %s20, 0
          %s157 = scalar_select %p156, %s20, 0
          %s158 = scalar_lea.vmem %s2, %s157
        $region16: #{alexnet_forward.15} parent=11 // pred_fallthru
          _
      $region12: #{alexnet_forward.15} parent=5 // pred_fallthru
        _
      %p159 = scmp.lt.s32.totalorder %s9, 8
      // Predicated region
      $region17: #{alexnet_forward.15} parent=5 // pred_check
        %p160 = pneg %p159
      $region18: #{alexnet_forward.15} parent=5 // pred_check_branch
        %162 = sbr.rel (%p160) target = $region20
      $region19: #{alexnet_forward.15} parent=5 // pred_region
        // Predicated region
        $region21: #{alexnet_forward.15} parent=19 // pred_check
          %p163 = pneg %p50
        $region22: #{alexnet_forward.15} parent=19 // pred_check_branch
          %165 = sbr.rel (%p163) target = $region24
        $region23: #{alexnet_forward.15} parent=19 // pred_region
          %s166 = sand.u32 %s40, 1
          %s167 = sand.u32 %s40, 1
          %s168 = smul.addr %s167, 32
          %s169 = scalar_lea.vmem [#allocation3], %s168
          %s170 = smul.u32 2, %s16
          %s171 = smul.u32 4, %s18
          %s172 = smul.addr %s170, 32
          %s173 = sadd.s32 %s171, %s172
          %s174 = smul.addr %s173, 4
          %s175 = scalar_lea.vmem %s0, %s174
          // Predicated region
          $region25: #{alexnet_forward.15} parent=23 // pred_check
            _
          $region26: #{alexnet_forward.15} parent=23 // pred_check_branch
            %177 = sbr.rel (0) target = $region28
          $region27: #{alexnet_forward.15} parent=23 // pred_region
            // Predicated region
            $region29: #{alexnet_forward.15} parent=27 // pred_check
              _
            $region30: #{alexnet_forward.15} parent=27 // pred_check_branch
              %179 = sbr.rel (0) target = $region32
            $region31: #{alexnet_forward.15} parent=27 // pred_region
              loop: start=0, step=1, limit=1
              $region33: #{alexnet_forward.15} parent=31 // loop_pre_header
                _
              $region34: #{alexnet_forward.15} parent=31 // loop_header
                %s181 = sphi 0, %s185
                %p182 = scmp.ge.s32.totalorder %s181, 1
                %s186 = sphi %s175, %s175
                %s187 = sphi %s169, %s169
              $region35: #{alexnet_forward.15} parent=31 // loop_header_branch
                %184 = sbr.rel (%p182) target = $region39
              $region36: #{alexnet_forward.15} parent=31 // loop_body
                %v188 = vld [vmem:[%s186] sm:$0xff]
                %189 = vst [vmem:[%s187] sm:$0xff] %v188
                %v190 = vld [vmem:[%s186 + $0x8] sm:$0xff]
                %191 = vst [vmem:[%s187 + $0x8] sm:$0xff] %v190
                %v192 = vld [vmem:[%s186 + $0x80] sm:$0xff]
                %193 = vst [vmem:[%s187 + $0x10] sm:$0xff] %v192
                %v194 = vld [vmem:[%s186 + $0x88] sm:$0xff]
                %195 = vst [vmem:[%s187 + $0x18] sm:$0xff] %v194
              $region37: #{alexnet_forward.15} parent=31 // loop_footer
                %s185 = sadd.s32 1, %s181
              $region38: #{alexnet_forward.15} parent=31 // loop_footer_branch
                %180 = sbr.rel target = $region34
              $region39: #{alexnet_forward.15} parent=31 // loop_exit
                _
            $region32: #{alexnet_forward.15} parent=27 // pred_fallthru
              _
            // Predicated region
            $region40: #{alexnet_forward.15} parent=27 // pred_check
              _
            $region41: #{alexnet_forward.15} parent=27 // pred_check_branch
              %197 = sbr.rel target = $region43
            $region42: #{alexnet_forward.15} parent=27 // pred_region
              _
            $region43: #{alexnet_forward.15} parent=27 // pred_fallthru
              _
          $region28: #{alexnet_forward.15} parent=23 // pred_fallthru
            _
          %198 = vnop
        $region24: #{alexnet_forward.15} parent=19 // pred_fallthru
          _
        // Predicated region
        $region44: #{alexnet_forward.15} parent=19 // pred_check
          %p199 = pneg %p78
        $region45: #{alexnet_forward.15} parent=19 // pred_check_branch
          %201 = sbr.rel (%p199) target = $region47
        $region46: #{alexnet_forward.15} parent=19 // pred_region
          %s202 = smul.u32 64, %s18
          %p203 = scmp.lt.s32.totalorder %s202, 511
          %s204 = scalar_select %p203, %s202, 511
          %p205 = scmp.lt.s32.totalorder %s17, 0
          %s206 = scalar_select %p205, %s17, 0
          %s207 = sadd.s32 %s206, %s204
          %s208 = smul.addr %s207, 4
          %s209 = scalar_lea.vmem %s1, %s208
          %s210 = smul.u32 64, %s18
        $region47: #{alexnet_forward.15} parent=19 // pred_fallthru
          _
      $region20: #{alexnet_forward.15} parent=5 // pred_fallthru
        _
      %p211 = scmp.le.s32.totalorder 1, %s9
      %p212 = scmp.lt.s32.totalorder %s9, 9
      %p213 = pnand %p211, %p212
      %p214 = pneg %p213
      // Predicated region
      $region48: #{alexnet_forward.15} parent=5 // pred_check
        _
      $region49: #{alexnet_forward.15} parent=5 // pred_check_branch
        %216 = sbr.rel (%p213) target = $region51
      $region50: #{alexnet_forward.15} parent=5 // pred_region
        %s217 = ssub.s32 %s9, 1
        %s218 = sand.u32 %s43, 1
        %s219 = sand.u32 %s43, 1
        %s220 = smul.addr %s219, 32
        %s221 = scalar_lea.vmem [#allocation3], %s220
        // Predicated region
        $region52: #{alexnet_forward.15} parent=50 // pred_check
          %p222 = pneg %p56
        $region53: #{alexnet_forward.15} parent=50 // pred_check_branch
          %224 = sbr.rel (%p222) target = $region55
        $region54: #{alexnet_forward.15} parent=50 // pred_region
          _
        $region55: #{alexnet_forward.15} parent=50 // pred_fallthru
          _
        %s225 = sand.u32 %s43, 1
        %s226 = sand.u32 %s43, 1
        %s227 = smul.addr %s226, 32
        %s228 = scalar_lea.vmem [#allocation3], %s227
        %p229 = pneg %p56
        %p230 = pneg %p53
        %s231 = smul.u32 64, %s21
        %p232 = scmp.lt.s32.totalorder %s231, 511
        %s233 = scalar_select %p232, %s231, 511
        %p234 = scmp.lt.s32.totalorder %s20, 0
        %s235 = scalar_select %p234, %s20, 0
        %s236 = sadd.s32 %s235, %s233
        %s237 = smul.addr %s236, 4
        %s238 = scalar_lea.vmem %s1, %s237
        %p239 = pneg %p84
        %p240 = pneg %p81
        %p241 = scmp.lt.s32.totalorder %s20, 0
        %s242 = scalar_select %p241, %s20, 0
        %s243 = scalar_lea.vmem %s2, %s242
        %p244 = pneg %p110
        %p245 = pneg %p107
        %p246 = pneg %p138
        %p247 = pneg %p135
        %s248 = smul.u32 2, %s19
        %p249 = scmp.lt.s32.totalorder %s248, 1
        %s250 = scalar_select %p249, %s248, 1
        %p251 = scmp.lt.s32.totalorder %s20, 0
        %s252 = scalar_select %p251, %s20, 0
        %s253 = sadd.s32 %s252, %s250
        %s254 = smul.addr %s253, 8
        %s255 = scalar_lea.vmem %s3, %s254
        %s256 = smul.u32 2, %s19
        %s257 = smul.u32 4, %s21
        %s258 = smul.u32 64, %s21
        %p259 = scmp.lt.s32.totalorder %s258, 511
        %s260 = scalar_select %p259, %s258, 511
        %p261 = scmp.lt.s32.totalorder %s20, 0
        %s262 = scalar_select %p261, %s20, 0
        %s263 = sadd.s32 %s262, %s260
        %s264 = smul.addr %s263, 4
        %s265 = scalar_lea.vmem %s1, %s264
        %s266 = smul.u32 64, %s21
        %p267 = scmp.lt.s32.totalorder %s20, 0
        %s268 = scalar_select %p267, %s20, 0
        %s269 = scalar_lea.vmem %s2, %s268
        %s270 = smul.u32 2, %s19
        %p271 = scmp.lt.s32.totalorder %s270, 1
        %s272 = scalar_select %p271, %s270, 1
        %p273 = scmp.lt.s32.totalorder %s20, 0
        %s274 = scalar_select %p273, %s20, 0
        %s275 = sadd.s32 %s274, %s272
        %s276 = smul.addr %s275, 8
        %s277 = scalar_lea.vmem %s3, %s276
        %s278 = smul.u32 2, %s19
        %p280 = scmp.eq.s32.totalorder %s21, 0
        // Predicated region
        $region56: #{alexnet_forward.15} parent=50 // pred_check
          %p281 = pneg %p280
        $region57: #{alexnet_forward.15} parent=50 // pred_check_branch
          %283 = sbr.rel (%p281) target = $region59
        $region58: #{alexnet_forward.15} parent=50 // pred_region
          %284 = vst [vmem:[#allocation2] sm:$0xff] 0.0
          %285 = vst [vmem:[#allocation2 + $0x8] sm:$0xff] 0.0
        $region59: #{alexnet_forward.15} parent=50 // pred_fallthru
          _
        %v286 = vld [vmem:[#allocation2] sm:$0xff]
        %v287 = vld [vmem:[#allocation2 + $0x8] sm:$0xff]
        %v288 = vld [vmem:[%s221] sm:$0xff]
        %v289 = vld [vmem:[%s221 + $0x8] sm:$0xff]
        %v290 = vld [vmem:[%s221 + $0x10] sm:$0xff]
        %v291 = vld [vmem:[%s221 + $0x18] sm:$0xff]
        %v292 = vld [vmem:[%s265] sm:$0xf]
        %v293 = vld [vmem:[%s265 + $0x4] sm:$0xf]
        %v294 = vld [vmem:[%s265 + $0x8] sm:$0xf]
        %v295 = vld [vmem:[%s265 + $0xc] sm:$0xf]
        %v296 = vld [vmem:[%s265 + $0x10] sm:$0xf]
        %v297 = vld [vmem:[%s265 + $0x14] sm:$0xf]
        %v298 = vld [vmem:[%s265 + $0x18] sm:$0xf]
        %v299 = vld [vmem:[%s265 + $0x1c] sm:$0xf]
        %v300 = vld [vmem:[%s265 + $0x20] sm:$0xf]
        %v301 = vld [vmem:[%s265 + $0x24] sm:$0xf]
        %v302 = vld [vmem:[%s265 + $0x28] sm:$0xf]
        %v303 = vld [vmem:[%s265 + $0x2c] sm:$0xf]
        %v304 = vld [vmem:[%s265 + $0x30] sm:$0xf]
        %v305 = vld [vmem:[%s265 + $0x34] sm:$0xf]
        %v306 = vld [vmem:[%s265 + $0x38] sm:$0xf]
        %v307 = vld [vmem:[%s265 + $0x3c] sm:$0xf]
        %v308 = vld [vmem:[%s265 + $0x40] sm:$0xf]
        %v309 = vld [vmem:[%s265 + $0x44] sm:$0xf]
        %v310 = vld [vmem:[%s265 + $0x48] sm:$0xf]
        %v311 = vld [vmem:[%s265 + $0x4c] sm:$0xf]
        %v312 = vld [vmem:[%s265 + $0x50] sm:$0xf]
        %v313 = vld [vmem:[%s265 + $0x54] sm:$0xf]
        %v314 = vld [vmem:[%s265 + $0x58] sm:$0xf]
        %v315 = vld [vmem:[%s265 + $0x5c] sm:$0xf]
        %v316 = vld [vmem:[%s265 + $0x60] sm:$0xf]
        %v317 = vld [vmem:[%s265 + $0x64] sm:$0xf]
        %v318 = vld [vmem:[%s265 + $0x68] sm:$0xf]
        %v319 = vld [vmem:[%s265 + $0x6c] sm:$0xf]
        %v320 = vld [vmem:[%s265 + $0x70] sm:$0xf]
        %v321 = vld [vmem:[%s265 + $0x74] sm:$0xf]
        %v322 = vld [vmem:[%s265 + $0x78] sm:$0xf]
        %v323 = vld [vmem:[%s265 + $0x7c] sm:$0xf]
        %v324 = vld [vmem:[%s265 + $0x80] sm:$0xf]
        %v325 = vld [vmem:[%s265 + $0x84] sm:$0xf]
        %v326 = vld [vmem:[%s265 + $0x88] sm:$0xf]
        %v327 = vld [vmem:[%s265 + $0x8c] sm:$0xf]
        %v328 = vld [vmem:[%s265 + $0x90] sm:$0xf]
        %v329 = vld [vmem:[%s265 + $0x94] sm:$0xf]
        %v330 = vld [vmem:[%s265 + $0x98] sm:$0xf]
        %v331 = vld [vmem:[%s265 + $0x9c] sm:$0xf]
        %v332 = vld [vmem:[%s265 + $0xa0] sm:$0xf]
        %v333 = vld [vmem:[%s265 + $0xa4] sm:$0xf]
        %v334 = vld [vmem:[%s265 + $0xa8] sm:$0xf]
        %v335 = vld [vmem:[%s265 + $0xac] sm:$0xf]
        %v336 = vld [vmem:[%s265 + $0xb0] sm:$0xf]
        %v337 = vld [vmem:[%s265 + $0xb4] sm:$0xf]
        %v338 = vld [vmem:[%s265 + $0xb8] sm:$0xf]
        %v339 = vld [vmem:[%s265 + $0xbc] sm:$0xf]
        %v340 = vld [vmem:[%s265 + $0xc0] sm:$0xf]
        %v341 = vld [vmem:[%s265 + $0xc4] sm:$0xf]
        %v342 = vld [vmem:[%s265 + $0xc8] sm:$0xf]
        %v343 = vld [vmem:[%s265 + $0xcc] sm:$0xf]
        %v344 = vld [vmem:[%s265 + $0xd0] sm:$0xf]
        %v345 = vld [vmem:[%s265 + $0xd4] sm:$0xf]
        %v346 = vld [vmem:[%s265 + $0xd8] sm:$0xf]
        %v347 = vld [vmem:[%s265 + $0xdc] sm:$0xf]
        %v348 = vld [vmem:[%s265 + $0xe0] sm:$0xf]
        %v349 = vld [vmem:[%s265 + $0xe4] sm:$0xf]
        %v350 = vld [vmem:[%s265 + $0xe8] sm:$0xf]
        %v351 = vld [vmem:[%s265 + $0xec] sm:$0xf]
        %v352 = vld [vmem:[%s265 + $0xf0] sm:$0xf]
        %v353 = vld [vmem:[%s265 + $0xf4] sm:$0xf]
        %v354 = vld [vmem:[%s265 + $0xf8] sm:$0xf]
        %v355 = vld [vmem:[%s265 + $0xfc] sm:$0xf]
        %v360 = vunpack.c.l.b16 %v288
        %v361 = vunpack.c.h.b16 %v288
        %v362 = vunpack.c.l.b16 %v289
        %v363 = vunpack.c.h.b16 %v289
        %v364 = vunpack.c.l.b16 %v290
        %v365 = vunpack.c.h.b16 %v290
        %v366 = vunpack.c.l.b16 %v291
        %v367 = vunpack.c.h.b16 %v291
        %v368 = vpack.c.b16 %v364, %v360
        %v369 = vpack.c.b16 %v365, %v361
        %v370 = vpack.c.b16 %v366, %v362
        %v371 = vpack.c.b16 %v367, %v363
        %v440 = vunpack.c.l.b16 %v292
        %v441 = vunpack.c.l.b16 %v293
        %v442 = vunpack.c.l.b16 %v294
        %v443 = vunpack.c.l.b16 %v295
        %v444 = vunpack.c.l.b16 %v296
        %v445 = vunpack.c.l.b16 %v297
        %v446 = vunpack.c.l.b16 %v298
        %v447 = vunpack.c.l.b16 %v299
        %v448 = vunpack.c.l.b16 %v300
        %v449 = vunpack.c.l.b16 %v301
        %v450 = vunpack.c.l.b16 %v302
        %v451 = vunpack.c.l.b16 %v303
        %v452 = vunpack.c.l.b16 %v304
        %v453 = vunpack.c.l.b16 %v305
        %v454 = vunpack.c.l.b16 %v306
        %v455 = vunpack.c.l.b16 %v307
        %v456 = vunpack.c.l.b16 %v308
        %v457 = vunpack.c.l.b16 %v309
        %v458 = vunpack.c.l.b16 %v310
        %v459 = vunpack.c.l.b16 %v311
        %v460 = vunpack.c.l.b16 %v312
        %v461 = vunpack.c.l.b16 %v313
        %v462 = vunpack.c.l.b16 %v314
        %v463 = vunpack.c.l.b16 %v315
        %v464 = vunpack.c.l.b16 %v316
        %v465 = vunpack.c.l.b16 %v317
        %v466 = vunpack.c.l.b16 %v318
        %v467 = vunpack.c.l.b16 %v319
        %v468 = vunpack.c.l.b16 %v320
        %v469 = vunpack.c.l.b16 %v321
        %v470 = vunpack.c.l.b16 %v322
        %v471 = vunpack.c.l.b16 %v323
        %v472 = vunpack.c.l.b16 %v324
        %v473 = vunpack.c.l.b16 %v325
        %v474 = vunpack.c.l.b16 %v326
        %v475 = vunpack.c.l.b16 %v327
        %v476 = vunpack.c.l.b16 %v328
        %v477 = vunpack.c.l.b16 %v329
        %v478 = vunpack.c.l.b16 %v330
        %v479 = vunpack.c.l.b16 %v331
        %v480 = vunpack.c.l.b16 %v332
        %v481 = vunpack.c.l.b16 %v333
        %v482 = vunpack.c.l.b16 %v334
        %v483 = vunpack.c.l.b16 %v335
        %v484 = vunpack.c.l.b16 %v336
        %v485 = vunpack.c.l.b16 %v337
        %v486 = vunpack.c.l.b16 %v338
        %v487 = vunpack.c.l.b16 %v339
        %v488 = vunpack.c.l.b16 %v340
        %v489 = vunpack.c.l.b16 %v341
        %v490 = vunpack.c.l.b16 %v342
        %v491 = vunpack.c.l.b16 %v343
        %v492 = vunpack.c.l.b16 %v344
        %v493 = vunpack.c.l.b16 %v345
        %v494 = vunpack.c.l.b16 %v346
        %v495 = vunpack.c.l.b16 %v347
        %v496 = vunpack.c.l.b16 %v348
        %v497 = vunpack.c.l.b16 %v349
        %v498 = vunpack.c.l.b16 %v350
        %v499 = vunpack.c.l.b16 %v351
        %v500 = vunpack.c.l.b16 %v352
        %v501 = vunpack.c.l.b16 %v353
        %v502 = vunpack.c.l.b16 %v354
        %v503 = vunpack.c.l.b16 %v355
        %v504 = vpack.c.b16 %v441, %v440
        %v505 = vpack.c.b16 %v443, %v442
        %v506 = vpack.c.b16 %v445, %v444
        %v507 = vpack.c.b16 %v447, %v446
        %v508 = vpack.c.b16 %v449, %v448
        %v509 = vpack.c.b16 %v451, %v450
        %v510 = vpack.c.b16 %v453, %v452
        %v511 = vpack.c.b16 %v455, %v454
        %v512 = vpack.c.b16 %v457, %v456
        %v513 = vpack.c.b16 %v459, %v458
        %v514 = vpack.c.b16 %v461, %v460
        %v515 = vpack.c.b16 %v463, %v462
        %v516 = vpack.c.b16 %v465, %v464
        %v517 = vpack.c.b16 %v467, %v466
        %v518 = vpack.c.b16 %v469, %v468
        %v519 = vpack.c.b16 %v471, %v470
        %v520 = vpack.c.b16 %v473, %v472
        %v521 = vpack.c.b16 %v475, %v474
        %v522 = vpack.c.b16 %v477, %v476
        %v523 = vpack.c.b16 %v479, %v478
        %v524 = vpack.c.b16 %v481, %v480
        %v525 = vpack.c.b16 %v483, %v482
        %v526 = vpack.c.b16 %v485, %v484
        %v527 = vpack.c.b16 %v487, %v486
        %v528 = vpack.c.b16 %v489, %v488
        %v529 = vpack.c.b16 %v491, %v490
        %v530 = vpack.c.b16 %v493, %v492
        %v531 = vpack.c.b16 %v495, %v494
        %v532 = vpack.c.b16 %v497, %v496
        %v533 = vpack.c.b16 %v499, %v498
        %v534 = vpack.c.b16 %v501, %v500
        %v535 = vpack.c.b16 %v503, %v502
        %568 = vmatprep.subr.bf16.mxu0 0
        %569 = vmatpush1.bf16.msra.mxu0 %v511
        %570 = vmatprep.subr.bf16.mxu0 0
        %571 = vmatpush1.bf16.msra.mxu0 %v510
        %572 = vmatprep.subr.bf16.mxu0 0
        %573 = vmatpush1.bf16.msra.mxu0 %v509
        %574 = vmatprep.subr.bf16.mxu0 0
        %575 = vmatpush1.bf16.msra.mxu0 %v508
        %576 = vmatprep.subr.bf16.mxu0 0
        %577 = vmatpush1.bf16.msra.mxu0 %v507
        %578 = vmatprep.subr.bf16.mxu0 0
        %579 = vmatpush1.bf16.msra.mxu0 %v506
        %580 = vmatprep.subr.bf16.mxu0 0
        %581 = vmatpush1.bf16.msra.mxu0 %v505
        %582 = vmatprep.subr.bf16.mxu0 0
        %583 = vmatpush1.bf16.msra.mxu0 %v504
        %584 = vmatprep.subr.bf16.mxu0 0
        %585 = vmatpush2.bf16.msra.mxu0 %v519
        %586 = vmatprep.subr.bf16.mxu0 0
        %587 = vmatpush2.bf16.msra.mxu0 %v518
        %588 = vmatprep.subr.bf16.mxu0 0
        %589 = vmatpush2.bf16.msra.mxu0 %v517
        %590 = vmatprep.subr.bf16.mxu0 0
        %591 = vmatpush2.bf16.msra.mxu0 %v516
        %592 = vmatprep.subr.bf16.mxu0 0
        %593 = vmatpush2.bf16.msra.mxu0 %v515
        %594 = vmatprep.subr.bf16.mxu0 0
        %595 = vmatpush2.bf16.msra.mxu0 %v514
        %596 = vmatprep.subr.bf16.mxu0 0
        %597 = vmatpush2.bf16.msra.mxu0 %v513
        %598 = vmatprep.subr.bf16.mxu0 0
        %599 = vmatpush2.bf16.msra.mxu0 %v512
        %600 = vmatprep.mubr.bf16.mxu0 %v369
        %601 = vmatmul.mubr.bf16.gmra.mxu0 %v368
        %v602 = vpop.f32.mrf.mxu0
        %v603 = vadd.f32 0.0, %v602
        %v604 = vpop.f32.mrf.mxu0
        %v605 = vpop.f32.mrf.mxu0
        %v606 = vadd.f32 0.0, %v605
        %v607 = vpop.f32.mrf.mxu0
        %608 = vdwg.mxu0
        %609 = vmatprep.subr.bf16.mxu0 0
        %610 = vmatpush1.bf16.msra.mxu0 %v527
        %611 = vmatprep.subr.bf16.mxu0 0
        %612 = vmatpush1.bf16.msra.mxu0 %v526
        %613 = vmatprep.subr.bf16.mxu0 0
        %614 = vmatpush1.bf16.msra.mxu0 %v525
        %615 = vmatprep.subr.bf16.mxu0 0
        %616 = vmatpush1.bf16.msra.mxu0 %v524
        %617 = vmatprep.subr.bf16.mxu0 0
        %618 = vmatpush1.bf16.msra.mxu0 %v523
        %619 = vmatprep.subr.bf16.mxu0 0
        %620 = vmatpush1.bf16.msra.mxu0 %v522
        %621 = vmatprep.subr.bf16.mxu0 0
        %622 = vmatpush1.bf16.msra.mxu0 %v521
        %623 = vmatprep.subr.bf16.mxu0 0
        %624 = vmatpush1.bf16.msra.mxu0 %v520
        %625 = vmatprep.subr.bf16.mxu0 0
        %626 = vmatpush2.bf16.msra.mxu0 %v535
        %627 = vmatprep.subr.bf16.mxu0 0
        %628 = vmatpush2.bf16.msra.mxu0 %v534
        %629 = vmatprep.subr.bf16.mxu0 0
        %630 = vmatpush2.bf16.msra.mxu0 %v533
        %631 = vmatprep.subr.bf16.mxu0 0
        %632 = vmatpush2.bf16.msra.mxu0 %v532
        %633 = vmatprep.subr.bf16.mxu0 0
        %634 = vmatpush2.bf16.msra.mxu0 %v531
        %635 = vmatprep.subr.bf16.mxu0 0
        %636 = vmatpush2.bf16.msra.mxu0 %v530
        %637 = vmatprep.subr.bf16.mxu0 0
        %638 = vmatpush2.bf16.msra.mxu0 %v529
        %639 = vmatprep.subr.bf16.mxu0 0
        %640 = vmatpush2.bf16.msra.mxu0 %v528
        %641 = vmatprep.mubr.bf16.mxu0 %v371
        %642 = vmatmul.mubr.bf16.gmra.mxu0 %v370
        %v643 = vpop.f32.mrf.mxu0
        %v644 = vadd.f32 %v603, %v643
        %v645 = vpop.f32.mrf.mxu0
        %v646 = vpop.f32.mrf.mxu0
        %v647 = vadd.f32 %v606, %v646
        %v648 = vpop.f32.mrf.mxu0
        %649 = vdwg.mxu0
        %v650 = vadd.f32 %v286, %v644
        %v651 = vadd.f32 %v287, %v647
        %652 = vst [vmem:[#allocation2] sm:$0xff] %v650
        %653 = vst [vmem:[#allocation2 + $0x8] sm:$0xff] %v651
        %p654 = scmp.eq.s32.totalorder %s21, 7
        // Predicated region
        $region60: #{alexnet_forward.15} parent=50 // pred_check
          %p655 = pneg %p654
        $region61: #{alexnet_forward.15} parent=50 // pred_check_branch
          %657 = sbr.rel (%p655) target = $region63
        $region62: #{alexnet_forward.15} parent=50 // pred_region
          %v658 = vld [vmem:[#allocation2] sm:$0xff]
          %v659 = vld [vmem:[#allocation2 + $0x8] sm:$0xff]
          %v660 = vld [vmem:[%s269] sm:$0x1]
          %v662 = vlaneseq
          %v663 = vshrl.u32 %v662, 7
          %v664 = vsub.s32 0, %v663
          %v665 = vrot.slane %v660, %v664
          %v667 = vadd.f32 %v658, %v665
          %v668 = vadd.f32 %v659, %v665
          %669 = vst [vmem:[%s277] sm:$0xff] %v667
          %670 = vst [vmem:[%s277 + $0x8] sm:$0xff] %v668
        $region63: #{alexnet_forward.15} parent=50 // pred_fallthru
          _
        %s671 = smul.u32 2, %s19
        %p672 = scmp.lt.s32.totalorder %s671, 1
        %s673 = scalar_select %p672, %s671, 1
        %p674 = scmp.lt.s32.totalorder %s20, 0
        %s675 = scalar_select %p674, %s20, 0
        %s676 = sadd.s32 %s675, %s673
        %s677 = smul.addr %s676, 8
        %s678 = scalar_lea.vmem %s3, %s677
        // Predicated region
        $region64: #{alexnet_forward.15} parent=50 // pred_check
          %p679 = pneg %p135
        $region65: #{alexnet_forward.15} parent=50 // pred_check_branch
          %681 = sbr.rel (%p679) target = $region67
        $region66: #{alexnet_forward.15} parent=50 // pred_region
          %s682 = smul.u32 2, %s19
        $region67: #{alexnet_forward.15} parent=50 // pred_fallthru
          _
        // Predicated region
        $region68: #{alexnet_forward.15} parent=50 // pred_check
          %p683 = pneg %p135
        $region69: #{alexnet_forward.15} parent=50 // pred_check_branch
          %685 = sbr.rel (%p683) target = $region71
        $region70: #{alexnet_forward.15} parent=50 // pred_region
          %s686 = smul.u32 2, %s19
          %p687 = scmp.lt.s32.totalorder %s686, 1
          %s688 = scalar_select %p687, %s686, 1
          %p689 = scmp.lt.s32.totalorder %s20, 0
          %s690 = scalar_select %p689, %s20, 0
          %s691 = sadd.s32 %s690, %s688
          %s692 = smul.addr %s691, 8
          %s693 = scalar_lea.vmem %s3, %s692
        $region71: #{alexnet_forward.15} parent=50 // pred_fallthru
          _
      $region51: #{alexnet_forward.15} parent=5 // pred_fallthru
        _
      %p694 = scmp.le.s32.totalorder 2, %s9
      // Predicated region
      $region72: #{alexnet_forward.15} parent=5 // pred_check
        %p695 = pneg %p694
      $region73: #{alexnet_forward.15} parent=5 // pred_check_branch
        %697 = sbr.rel (%p695) target = $region75
      $region74: #{alexnet_forward.15} parent=5 // pred_region
        %s698 = ssub.s32 %s9, 2
      $region75: #{alexnet_forward.15} parent=5 // pred_fallthru
        _
    $region6: #{alexnet_forward.15} parent=1 // loop_footer
      %s13 = sadd.s32 1, %s9
    $region7: #{alexnet_forward.15} parent=1 // loop_footer_branch
      %8 = sbr.rel target = $region3
    $region8: #{alexnet_forward.15} parent=1 // loop_exit
      _

</llo_original>
